<compile_context>
chip_gen: v5e
topology: v5e:2x2
jax: 0.10.0
libtpu: 0.0.40
codegen_flags: <defaults>
</compile_context>

<pallas_src>
import jax
import jax.numpy as jnp
from jax import lax
from jax.experimental import pallas as pl
from jax.experimental.pallas import tpu as pltpu

# ----------------------------------------------------------------------------
# Static shape constants implied by the module
# ----------------------------------------------------------------------------
H_IN, W_IN = 40, 32          # input spatial size (forced by fc1: 64*14*10 = 8960)
K = 5                        # conv kernel size
NTAP = K * K                 # 25 taps
H1, W1 = 36, 28              # conv1 output
HP, WP = 18, 14              # after 2x2 max-pool
H2, W2 = 14, 10              # conv2 valid output
W2_WIDE = 14                 # over-computed conv2 width (garbage cols -> fc1 zeros)
NPOS = H2 * W2_WIDE          # 196 conv2 rows carried per image
C1 = 64
C2 = 64
A1P_ROWS = HP * WP + 4       # 256: flat pooled activation + 4 zero pad rows


# ----------------------------------------------------------------------------
# Kernel 1: conv1 + bias + ReLU + 2x2 maxpool + conv2 + bias + ReLU  (per image)
# ----------------------------------------------------------------------------
def _conv_path_kernel(p1_ref, w1_ref, b1_ref, w2_ref, b2_ref, out_ref, a1p_scr):
    # conv1 with the pool fused: the host-side im2col groups the 4 taps of each
    # 2x2 pool window, so pooling is an elementwise max of 4 matmul results.
    d0 = jnp.dot(p1_ref[0, 0], w1_ref[...], preferred_element_type=jnp.float32)
    d1 = jnp.dot(p1_ref[0, 1], w1_ref[...], preferred_element_type=jnp.float32)
    d2 = jnp.dot(p1_ref[0, 2], w1_ref[...], preferred_element_type=jnp.float32)
    d3 = jnp.dot(p1_ref[0, 3], w1_ref[...], preferred_element_type=jnp.float32)
    pooled = jnp.maximum(jnp.maximum(d0, d1), jnp.maximum(d2, d3))     # (252, 64)
    # pool(relu(x + b)) == relu(pool(x) + b) for a per-channel bias.
    pooled = jnp.maximum(pooled + b1_ref[...], 0.0)

    # Stage the pooled activation as a flat (row = hp*WP + wp, chan) image in
    # VMEM; the last 4 rows stay zero so the over-wide conv2 taps below never
    # read uninitialized memory.
    a1p_scr[0:HP * WP, :] = pooled
    a1p_scr[HP * WP:, :] = jnp.zeros((A1P_ROWS - HP * WP, C1), jnp.float32)

    # conv2: 25 taps; tap (i, j) contributes a1p_flat[i*WP + j + r] @ w2[i,j]
    # to output row r.  Computing the output "over-wide" (w = 0..13 instead of
    # 0..9) makes every tap a single contiguous 196-row slice -> one MXU push.
    acc = jnp.zeros((NPOS, C2), jnp.float32)
    for i in range(K):
        for j in range(K):
            lhs = a1p_scr[pl.ds(i * WP + j, NPOS), :]                  # (196, 64)
            acc = acc + jnp.dot(lhs, w2_ref[i * K + j],
                                preferred_element_type=jnp.float32)
    out_ref[0] = jnp.maximum(acc + b2_ref[...], 0.0)                   # (196, 64)


def conv_path(p1, w1, b1, w2, b2):
    n = p1.shape[0]
    flops = n * (4 * (HP * WP) * NTAP * C1 * 2 + NTAP * NPOS * C1 * C2 * 2)
    bytes_acc = 4 * (p1.size + w1.size + b1.size + w2.size + b2.size
                     + n * NPOS * C2)
    return pl.pallas_call(
        _conv_path_kernel,
        out_shape=jax.ShapeDtypeStruct((n, NPOS, C2), jnp.float32),
        grid=(n,),
        in_specs=[
            pl.BlockSpec((1, 4, HP * WP, NTAP), lambda i: (i, 0, 0, 0)),
            pl.BlockSpec((NTAP, C1), lambda i: (0, 0)),
            pl.BlockSpec((1, C1), lambda i: (0, 0)),
            pl.BlockSpec((NTAP, C1, C2), lambda i: (0, 0, 0)),
            pl.BlockSpec((1, C2), lambda i: (0, 0)),
        ],
        out_specs=pl.BlockSpec((1, NPOS, C2), lambda i: (i, 0, 0)),
        scratch_shapes=[pltpu.VMEM((A1P_ROWS, C1), jnp.float32)],
        compiler_params=pltpu.CompilerParams(
            dimension_semantics=("parallel",),
            vmem_limit_bytes=32 * 1024 * 1024,
        ),
        cost_estimate=pl.CostEstimate(
            flops=flops, transcendentals=0, bytes_accessed=bytes_acc),
    )(p1, w1, b1, w2, b2)


# ----------------------------------------------------------------------------
# Kernel 2: fc1..fc5 chained (whole batch, single VMEM-resident block)
# ----------------------------------------------------------------------------
def _fc_kernel(x_ref, w1_ref, b1_ref, w2_ref, b2_ref, w3_ref, b3_ref,
               w4_ref, b4_ref, w5_ref, b5_ref, o_ref):
    def dense(h, w_ref, b_ref, relu):
        y = jnp.dot(h, w_ref[...], preferred_element_type=jnp.float32) + b_ref[...]
        return jnp.maximum(y, 0.0) if relu else y

    h = dense(x_ref[...], w1_ref, b1_ref, True)
    h = dense(h, w2_ref, b2_ref, True)
    h = dense(h, w3_ref, b3_ref, True)
    h = dense(h, w4_ref, b4_ref, True)
    o_ref[...] = dense(h, w5_ref, b5_ref, False).astype(o_ref.dtype)


_VMEM = pl.BlockSpec(memory_space=pltpu.MemorySpace.VMEM)


def fc_path(xf, fcs):
    n = xf.shape[0]
    args = [xf]
    for w, b in fcs:
        args += [w, b]
    flops = n * 2 * sum(w.shape[0] * w.shape[1] for w, _ in fcs)
    bytes_acc = 4 * (xf.size + sum(w.size + b.size for w, b in fcs)
                     + n * fcs[-1][0].shape[1])
    return pl.pallas_call(
        _fc_kernel,
        out_shape=jax.ShapeDtypeStruct((n, fcs[-1][0].shape[1]), jnp.float32),
        in_specs=[_VMEM] * len(args),
        out_specs=_VMEM,
        compiler_params=pltpu.CompilerParams(vmem_limit_bytes=32 * 1024 * 1024),
        cost_estimate=pl.CostEstimate(
            flops=flops, transcendentals=0, bytes_accessed=bytes_acc),
    )(*args)


# ----------------------------------------------------------------------------
# Full forward pass (mirrors Net.forward)
# ----------------------------------------------------------------------------
@jax.jit
def net_forward(x_nchw, kp):
    n = x_nchw.shape[0]
    x = x_nchw[:, 0, :, :]                                             # (N, 40, 32)

    # im2col for conv1, grouped by 2x2 pool-window tap -> (N, 4, 252, 25).
    # Row ((hp*14+wp)) of tap (dy,dx), col (i*5+j) = x[2*hp+dy+i, 2*wp+dx+j].
    cols = jnp.stack([x[:, i:i + H1, j:j + W1]
                      for i in range(K) for j in range(K)], axis=-1)   # (N,36,28,25)
    cols = cols.reshape(n, HP, 2, WP, 2, NTAP)
    p1 = jnp.transpose(cols, (0, 2, 4, 1, 3, 5)).reshape(n, 4, HP * WP, NTAP)

    conv_out = conv_path(p1, kp["w1"], kp["b1"], kp["w2"], kp["b2"])   # (N,196,64)
    xf = conv_out.reshape(n, NPOS * C2)                                # free bitcast
    fcs = [(kp[f"fc{i}_w"], kp[f"fc{i}_b"]) for i in range(1, 6)]
    return fc_path(xf, fcs)


# ----------------------------------------------------------------------------
# Parameter init (PyTorch layout) and one-time packing into kernel layout
# ----------------------------------------------------------------------------
def init_params_torch(key):
    def uni(k, shape, fan_in):
        bound = 1.0 / jnp.sqrt(float(fan_in))
        return jax.random.uniform(k, shape, jnp.float32, -bound, bound)

    keys = jax.random.split(key, 14)
    p = {}
    p["conv1_w"] = uni(keys[0], (64, 1, 5, 5), 25)
    p["conv1_b"] = uni(keys[1], (64,), 25)
    p["conv2_w"] = uni(keys[2], (64, 64, 5, 5), 64 * 25)
    p["conv2_b"] = uni(keys[3], (64,), 64 * 25)
    fcs = [(8960, 32), (32, 128), (128, 128), (128, 128), (128, 36)]
    for idx, (fin, fout) in enumerate(fcs, start=1):
        p[f"fc{idx}_w"] = uni(keys[2 + 2 * idx], (fout, fin), fin)   # torch (out,in)
        p[f"fc{idx}_b"] = uni(keys[3 + 2 * idx], (fout,), fin)
    return p


def pack_params(tp):
    """One-time layout prep: hoists all transposes/reshapes out of the hot path."""
    kp = {}
    kp["w1"] = jnp.transpose(tp["conv1_w"].reshape(C1, NTAP))            # (25, 64)
    kp["b1"] = tp["conv1_b"].reshape(1, C1)
    kp["w2"] = jnp.transpose(tp["conv2_w"], (2, 3, 1, 0)).reshape(NTAP, C1, C2)
    kp["b2"] = tp["conv2_b"].reshape(1, C2)
    # fc1: fold torch's NCHW flatten permutation AND the 4 over-computed
    # (garbage) conv2 columns into the weight: rows (h*14+w)*64+c, zero at w>=10.
    w = jnp.transpose(tp["fc1_w"]).reshape(C2, H2, W2, 32)               # (c,h,w,m)
    w = jnp.pad(w, ((0, 0), (0, 0), (0, W2_WIDE - W2), (0, 0)))
    kp["fc1_w"] = jnp.transpose(w, (1, 2, 0, 3)).reshape(NPOS * C2, 32)
    kp["fc1_b"] = tp["fc1_b"].reshape(1, -1)
    for i in range(2, 6):
        kp[f"fc{i}_w"] = jnp.transpose(tp[f"fc{i}_w"])
        kp[f"fc{i}_b"] = tp[f"fc{i}_b"].reshape(1, -1)
    return kp


# ----------------------------------------------------------------------------
# Pure-JAX reference (mirrors the PyTorch module exactly) for a sanity check
# ----------------------------------------------------------------------------
def reference_forward(x, tp):
    dn = ("NCHW", "OIHW", "NCHW")
    y = lax.conv_general_dilated(x, tp["conv1_w"], (1, 1), "VALID",
                                 dimension_numbers=dn)
    y = jnp.maximum(y + tp["conv1_b"][None, :, None, None], 0.0)
    y = lax.reduce_window(y, -jnp.inf, lax.max, (1, 1, 2, 2), (1, 1, 2, 2), "VALID")
    y = lax.conv_general_dilated(y, tp["conv2_w"], (1, 1), "VALID",
                                 dimension_numbers=dn)
    y = jnp.maximum(y + tp["conv2_b"][None, :, None, None], 0.0)
    y = y.reshape(y.shape[0], -1)
    for i in range(1, 5):
        y = jnp.maximum(y @ tp[f"fc{i}_w"].T + tp[f"fc{i}_b"], 0.0)
    return y @ tp["fc5_w"].T + tp["fc5_b"]


if __name__ == "__main__":
    key = jax.random.PRNGKey(0)
    k_x, k_p = jax.random.split(key)
    tparams = init_params_torch(k_p)
    kparams = pack_params(tparams)                  # one-time, outside the hot path
    x = jax.random.normal(k_x, (2, 1, H_IN, W_IN), dtype=jnp.float32)

    out = jax.block_until_ready(net_forward(x, kparams))
    assert out.shape == (2, 36), out.shape
    assert out.dtype == jnp.float32

    ref = jax.block_until_ready(jax.jit(reference_forward)(x, tparams))
    max_err = float(jnp.max(jnp.abs(out - ref)))
    assert bool(jnp.allclose(out, ref, rtol=5e-2, atol=5e-3)), (
        f"Pallas/reference mismatch, max abs err = {max_err}")

    print("KERNEL_OK")
</pallas_src>

<mosaic_0001>
module attributes {stable_mosaic.version = 11 : i64} {
  func.func @_conv_path_kernel(%arg0: i32, %arg1: memref<1x4x252x25xf32, #tpu.memory_space<vmem>>, %arg2: memref<25x64xf32, #tpu.memory_space<vmem>>, %arg3: memref<1x64xf32, #tpu.memory_space<vmem>>, %arg4: memref<25x64x64xf32, #tpu.memory_space<vmem>>, %arg5: memref<1x64xf32, #tpu.memory_space<vmem>>, %arg6: memref<1x196x64xf32, #tpu.memory_space<vmem>>, %arg7: memref<256x64xf32, #tpu.memory_space<vmem>>) attributes {dimension_semantics = [#tpu.dimension_semantics<parallel>], iteration_bounds = array<i64: 2>, scalar_prefetch = 0 : i64, scratch_operands = 1 : i64, tpu.core_type = #tpu.core_type<tc>, window_params = [{transform_indices = @transform_0, window_bounds = array<i64: 1, 4, 252, 25>}, {pipeline_mode = #tpu.pipeline_mode<synchronous>, transform_indices = @transform_1, window_bounds = array<i64: 25, 64>}, {pipeline_mode = #tpu.pipeline_mode<synchronous>, transform_indices = @transform_2, window_bounds = array<i64: 1, 64>}, {pipeline_mode = #tpu.pipeline_mode<synchronous>, transform_indices = @transform_3, window_bounds = array<i64: 25, 64, 64>}, {pipeline_mode = #tpu.pipeline_mode<synchronous>, transform_indices = @transform_4, window_bounds = array<i64: 1, 64>}, {transform_indices = @transform_5, window_bounds = array<i64: 1, 196, 64>}]} {
    %c0 = arith.constant 0 : index
    %c0_0 = arith.constant 0 : index
    %c0_1 = arith.constant 0 : index
    %c0_2 = arith.constant 0 : index
    %0 = vector.load %arg1[%c0, %c0_0, %c0_1, %c0_2] : memref<1x4x252x25xf32, #tpu.memory_space<vmem>>, vector<1x1x252x25xf32>
    %1 = vector.shape_cast %0 : vector<1x1x252x25xf32> to vector<252x25xf32>
    %c0_3 = arith.constant 0 : index
    %c0_4 = arith.constant 0 : index
    %2 = vector.load %arg2[%c0_3, %c0_4] : memref<25x64xf32, #tpu.memory_space<vmem>>, vector<25x64xf32>
    %cst = arith.constant dense<0.000000e+00> : vector<252x64xf32>
    %3 = tpu.matmul %1, %2, %cst {dimension_numbers = #tpu.dot_dimension_numbers<[1], [0], [0], [1], [0, 0, 1, 1], [], []>} : vector<252x25xf32>, vector<25x64xf32>, vector<252x64xf32> -> vector<252x64xf32>
    %c0_5 = arith.constant 0 : index
    %c1 = arith.constant 1 : index
    %c0_6 = arith.constant 0 : index
    %c0_7 = arith.constant 0 : index
    %4 = vector.load %arg1[%c0_5, %c1, %c0_6, %c0_7] : memref<1x4x252x25xf32, #tpu.memory_space<vmem>>, vector<1x1x252x25xf32>
    %5 = vector.shape_cast %4 : vector<1x1x252x25xf32> to vector<252x25xf32>
    %c0_8 = arith.constant 0 : index
    %c0_9 = arith.constant 0 : index
    %6 = vector.load %arg2[%c0_8, %c0_9] : memref<25x64xf32, #tpu.memory_space<vmem>>, vector<25x64xf32>
    %cst_10 = arith.constant dense<0.000000e+00> : vector<252x64xf32>
    %7 = tpu.matmul %5, %6, %cst_10 {dimension_numbers = #tpu.dot_dimension_numbers<[1], [0], [0], [1], [0, 0, 1, 1], [], []>} : vector<252x25xf32>, vector<25x64xf32>, vector<252x64xf32> -> vector<252x64xf32>
    %c0_11 = arith.constant 0 : index
    %c2 = arith.constant 2 : index
    %c0_12 = arith.constant 0 : index
    %c0_13 = arith.constant 0 : index
    %8 = vector.load %arg1[%c0_11, %c2, %c0_12, %c0_13] : memref<1x4x252x25xf32, #tpu.memory_space<vmem>>, vector<1x1x252x25xf32>
    %9 = vector.shape_cast %8 : vector<1x1x252x25xf32> to vector<252x25xf32>
    %c0_14 = arith.constant 0 : index
    %c0_15 = arith.constant 0 : index
    %10 = vector.load %arg2[%c0_14, %c0_15] : memref<25x64xf32, #tpu.memory_space<vmem>>, vector<25x64xf32>
    %cst_16 = arith.constant dense<0.000000e+00> : vector<252x64xf32>
    %11 = tpu.matmul %9, %10, %cst_16 {dimension_numbers = #tpu.dot_dimension_numbers<[1], [0], [0], [1], [0, 0, 1, 1], [], []>} : vector<252x25xf32>, vector<25x64xf32>, vector<252x64xf32> -> vector<252x64xf32>
    %c0_17 = arith.constant 0 : index
    %c3 = arith.constant 3 : index
    %c0_18 = arith.constant 0 : index
    %c0_19 = arith.constant 0 : index
    %12 = vector.load %arg1[%c0_17, %c3, %c0_18, %c0_19] : memref<1x4x252x25xf32, #tpu.memory_space<vmem>>, vector<1x1x252x25xf32>
    %13 = vector.shape_cast %12 : vector<1x1x252x25xf32> to vector<252x25xf32>
    %c0_20 = arith.constant 0 : index
    %c0_21 = arith.constant 0 : index
    %14 = vector.load %arg2[%c0_20, %c0_21] : memref<25x64xf32, #tpu.memory_space<vmem>>, vector<25x64xf32>
    %cst_22 = arith.constant dense<0.000000e+00> : vector<252x64xf32>
    %15 = tpu.matmul %13, %14, %cst_22 {dimension_numbers = #tpu.dot_dimension_numbers<[1], [0], [0], [1], [0, 0, 1, 1], [], []>} : vector<252x25xf32>, vector<25x64xf32>, vector<252x64xf32> -> vector<252x64xf32>
    %16 = arith.maximumf %3, %7 : vector<252x64xf32>
    %17 = arith.maximumf %11, %15 : vector<252x64xf32>
    %18 = arith.maximumf %16, %17 : vector<252x64xf32>
    %c0_23 = arith.constant 0 : index
    %c0_24 = arith.constant 0 : index
    %19 = vector.load %arg3[%c0_23, %c0_24] : memref<1x64xf32, #tpu.memory_space<vmem>>, vector<1x64xf32>
    %20 = vector.broadcast %19 : vector<1x64xf32> to vector<252x64xf32>
    %21 = arith.addf %18, %20 : vector<252x64xf32>
    %cst_25 = arith.constant 0.000000e+00 : f32
    %22 = vector.broadcast %cst_25 : f32 to vector<252x64xf32>
    %23 = arith.maximumf %21, %22 : vector<252x64xf32>
    %c0_26 = arith.constant 0 : index
    %c0_27 = arith.constant 0 : index
    %24 = vector.load %arg7[%c0_26, %c0_27] : memref<256x64xf32, #tpu.memory_space<vmem>>, vector<252x64xf32>
    tpu.vector_store %arg7[%c0_26, %c0_27], %23 {strides = array<i32>} : memref<256x64xf32, #tpu.memory_space<vmem>>, vector<252x64xf32>,
    %cst_28 = arith.constant 0.000000e+00 : f32
    %25 = vector.broadcast %cst_28 : f32 to vector<4x64xf32>
    %c252 = arith.constant 252 : index
    %c0_29 = arith.constant 0 : index
    %26 = vector.load %arg7[%c252, %c0_29] : memref<256x64xf32, #tpu.memory_space<vmem>>, vector<4x64xf32>
    tpu.vector_store %arg7[%c252, %c0_29], %25 {strides = array<i32>} : memref<256x64xf32, #tpu.memory_space<vmem>>, vector<4x64xf32>,
    %cst_30 = arith.constant 0.000000e+00 : f32
    %27 = vector.broadcast %cst_30 : f32 to vector<196x64xf32>
    %c0_31 = arith.constant 0 : index
    %c0_32 = arith.constant 0 : index
    %28 = vector.load %arg7[%c0_31, %c0_32] : memref<256x64xf32, #tpu.memory_space<vmem>>, vector<196x64xf32>
    %c0_33 = arith.constant 0 : index
    %c0_34 = arith.constant 0 : index
    %c0_35 = arith.constant 0 : index
    %29 = vector.load %arg4[%c0_33, %c0_34, %c0_35] : memref<25x64x64xf32, #tpu.memory_space<vmem>>, vector<1x64x64xf32>
    %30 = vector.shape_cast %29 : vector<1x64x64xf32> to vector<64x64xf32>
    %cst_36 = arith.constant dense<0.000000e+00> : vector<196x64xf32>
    %31 = tpu.matmul %28, %30, %cst_36 {dimension_numbers = #tpu.dot_dimension_numbers<[1], [0], [0], [1], [0, 0, 1, 1], [], []>} : vector<196x64xf32>, vector<64x64xf32>, vector<196x64xf32> -> vector<196x64xf32>
    %32 = arith.addf %27, %31 : vector<196x64xf32>
    %c1_37 = arith.constant 1 : index
    %c0_38 = arith.constant 0 : index
    %33 = vector.load %arg7[%c1_37, %c0_38] : memref<256x64xf32, #tpu.memory_space<vmem>>, vector<196x64xf32>
    %c1_39 = arith.constant 1 : index
    %c0_40 = arith.constant 0 : index
    %c0_41 = arith.constant 0 : index
    %34 = vector.load %arg4[%c1_39, %c0_40, %c0_41] : memref<25x64x64xf32, #tpu.memory_space<vmem>>, vector<1x64x64xf32>
    %35 = vector.shape_cast %34 : vector<1x64x64xf32> to vector<64x64xf32>
    %cst_42 = arith.constant dense<0.000000e+00> : vector<196x64xf32>
    %36 = tpu.matmul %33, %35, %cst_42 {dimension_numbers = #tpu.dot_dimension_numbers<[1], [0], [0], [1], [0, 0, 1, 1], [], []>} : vector<196x64xf32>, vector<64x64xf32>, vector<196x64xf32> -> vector<196x64xf32>
    %37 = arith.addf %32, %36 : vector<196x64xf32>
    %c2_43 = arith.constant 2 : index
    %c0_44 = arith.constant 0 : index
    %38 = vector.load %arg7[%c2_43, %c0_44] : memref<256x64xf32, #tpu.memory_space<vmem>>, vector<196x64xf32>
    %c2_45 = arith.constant 2 : index
    %c0_46 = arith.constant 0 : index
    %c0_47 = arith.constant 0 : index
    %39 = vector.load %arg4[%c2_45, %c0_46, %c0_47] : memref<25x64x64xf32, #tpu.memory_space<vmem>>, vector<1x64x64xf32>
    %40 = vector.shape_cast %39 : vector<1x64x64xf32> to vector<64x64xf32>
    %cst_48 = arith.constant dense<0.000000e+00> : vector<196x64xf32>
    %41 = tpu.matmul %38, %40, %cst_48 {dimension_numbers = #tpu.dot_dimension_numbers<[1], [0], [0], [1], [0, 0, 1, 1], [], []>} : vector<196x64xf32>, vector<64x64xf32>, vector<196x64xf32> -> vector<196x64xf32>
    %42 = arith.addf %37, %41 : vector<196x64xf32>
    %c3_49 = arith.constant 3 : index
    %c0_50 = arith.constant 0 : index
    %43 = vector.load %arg7[%c3_49, %c0_50] : memref<256x64xf32, #tpu.memory_space<vmem>>, vector<196x64xf32>
    %c3_51 = arith.constant 3 : index
    %c0_52 = arith.constant 0 : index
    %c0_53 = arith.constant 0 : index
    %44 = vector.load %arg4[%c3_51, %c0_52, %c0_53] : memref<25x64x64xf32, #tpu.memory_space<vmem>>, vector<1x64x64xf32>
    %45 = vector.shape_cast %44 : vector<1x64x64xf32> to vector<64x64xf32>
    %cst_54 = arith.constant dense<0.000000e+00> : vector<196x64xf32>
    %46 = tpu.matmul %43, %45, %cst_54 {dimension_numbers = #tpu.dot_dimension_numbers<[1], [0], [0], [1], [0, 0, 1, 1], [], []>} : vector<196x64xf32>, vector<64x64xf32>, vector<196x64xf32> -> vector<196x64xf32>
    %47 = arith.addf %42, %46 : vector<196x64xf32>
    %c4 = arith.constant 4 : index
    %c0_55 = arith.constant 0 : index
    %48 = vector.load %arg7[%c4, %c0_55] : memref<256x64xf32, #tpu.memory_space<vmem>>, vector<196x64xf32>
    %c4_56 = arith.constant 4 : index
    %c0_57 = arith.constant 0 : index
    %c0_58 = arith.constant 0 : index
    %49 = vector.load %arg4[%c4_56, %c0_57, %c0_58] : memref<25x64x64xf32, #tpu.memory_space<vmem>>, vector<1x64x64xf32>
    %50 = vector.shape_cast %49 : vector<1x64x64xf32> to vector<64x64xf32>
    %cst_59 = arith.constant dense<0.000000e+00> : vector<196x64xf32>
    %51 = tpu.matmul %48, %50, %cst_59 {dimension_numbers = #tpu.dot_dimension_numbers<[1], [0], [0], [1], [0, 0, 1, 1], [], []>} : vector<196x64xf32>, vector<64x64xf32>, vector<196x64xf32> -> vector<196x64xf32>
    %52 = arith.addf %47, %51 : vector<196x64xf32>
    %c14 = arith.constant 14 : index
    %c0_60 = arith.constant 0 : index
    %53 = vector.load %arg7[%c14, %c0_60] : memref<256x64xf32, #tpu.memory_space<vmem>>, vector<196x64xf32>
    %c5 = arith.constant 5 : index
    %c0_61 = arith.constant 0 : index
    %c0_62 = arith.constant 0 : index
    %54 = vector.load %arg4[%c5, %c0_61, %c0_62] : memref<25x64x64xf32, #tpu.memory_space<vmem>>, vector<1x64x64xf32>
    %55 = vector.shape_cast %54 : vector<1x64x64xf32> to vector<64x64xf32>
    %cst_63 = arith.constant dense<0.000000e+00> : vector<196x64xf32>
    %56 = tpu.matmul %53, %55, %cst_63 {dimension_numbers = #tpu.dot_dimension_numbers<[1], [0], [0], [1], [0, 0, 1, 1], [], []>} : vector<196x64xf32>, vector<64x64xf32>, vector<196x64xf32> -> vector<196x64xf32>
    %57 = arith.addf %52, %56 : vector<196x64xf32>
    %c15 = arith.constant 15 : index
    %c0_64 = arith.constant 0 : index
    %58 = vector.load %arg7[%c15, %c0_64] : memref<256x64xf32, #tpu.memory_space<vmem>>, vector<196x64xf32>
    %c6 = arith.constant 6 : index
    %c0_65 = arith.constant 0 : index
    %c0_66 = arith.constant 0 : index
    %59 = vector.load %arg4[%c6, %c0_65, %c0_66] : memref<25x64x64xf32, #tpu.memory_space<vmem>>, vector<1x64x64xf32>
    %60 = vector.shape_cast %59 : vector<1x64x64xf32> to vector<64x64xf32>
    %cst_67 = arith.constant dense<0.000000e+00> : vector<196x64xf32>
    %61 = tpu.matmul %58, %60, %cst_67 {dimension_numbers = #tpu.dot_dimension_numbers<[1], [0], [0], [1], [0, 0, 1, 1], [], []>} : vector<196x64xf32>, vector<64x64xf32>, vector<196x64xf32> -> vector<196x64xf32>
    %62 = arith.addf %57, %61 : vector<196x64xf32>
    %c16 = arith.constant 16 : index
    %c0_68 = arith.constant 0 : index
    %63 = vector.load %arg7[%c16, %c0_68] : memref<256x64xf32, #tpu.memory_space<vmem>>, vector<196x64xf32>
    %c7 = arith.constant 7 : index
    %c0_69 = arith.constant 0 : index
    %c0_70 = arith.constant 0 : index
    %64 = vector.load %arg4[%c7, %c0_69, %c0_70] : memref<25x64x64xf32, #tpu.memory_space<vmem>>, vector<1x64x64xf32>
    %65 = vector.shape_cast %64 : vector<1x64x64xf32> to vector<64x64xf32>
    %cst_71 = arith.constant dense<0.000000e+00> : vector<196x64xf32>
    %66 = tpu.matmul %63, %65, %cst_71 {dimension_numbers = #tpu.dot_dimension_numbers<[1], [0], [0], [1], [0, 0, 1, 1], [], []>} : vector<196x64xf32>, vector<64x64xf32>, vector<196x64xf32> -> vector<196x64xf32>
    %67 = arith.addf %62, %66 : vector<196x64xf32>
    %c17 = arith.constant 17 : index
    %c0_72 = arith.constant 0 : index
    %68 = vector.load %arg7[%c17, %c0_72] : memref<256x64xf32, #tpu.memory_space<vmem>>, vector<196x64xf32>
    %c8 = arith.constant 8 : index
    %c0_73 = arith.constant 0 : index
    %c0_74 = arith.constant 0 : index
    %69 = vector.load %arg4[%c8, %c0_73, %c0_74] : memref<25x64x64xf32, #tpu.memory_space<vmem>>, vector<1x64x64xf32>
    %70 = vector.shape_cast %69 : vector<1x64x64xf32> to vector<64x64xf32>
    %cst_75 = arith.constant dense<0.000000e+00> : vector<196x64xf32>
    %71 = tpu.matmul %68, %70, %cst_75 {dimension_numbers = #tpu.dot_dimension_numbers<[1], [0], [0], [1], [0, 0, 1, 1], [], []>} : vector<196x64xf32>, vector<64x64xf32>, vector<196x64xf32> -> vector<196x64xf32>
    %72 = arith.addf %67, %71 : vector<196x64xf32>
    %c18 = arith.constant 18 : index
    %c0_76 = arith.constant 0 : index
    %73 = vector.load %arg7[%c18, %c0_76] : memref<256x64xf32, #tpu.memory_space<vmem>>, vector<196x64xf32>
    %c9 = arith.constant 9 : index
    %c0_77 = arith.constant 0 : index
    %c0_78 = arith.constant 0 : index
    %74 = vector.load %arg4[%c9, %c0_77, %c0_78] : memref<25x64x64xf32, #tpu.memory_space<vmem>>, vector<1x64x64xf32>
    %75 = vector.shape_cast %74 : vector<1x64x64xf32> to vector<64x64xf32>
    %cst_79 = arith.constant dense<0.000000e+00> : vector<196x64xf32>
    %76 = tpu.matmul %73, %75, %cst_79 {dimension_numbers = #tpu.dot_dimension_numbers<[1], [0], [0], [1], [0, 0, 1, 1], [], []>} : vector<196x64xf32>, vector<64x64xf32>, vector<196x64xf32> -> vector<196x64xf32>
    %77 = arith.addf %72, %76 : vector<196x64xf32>
    %c28 = arith.constant 28 : index
    %c0_80 = arith.constant 0 : index
    %78 = vector.load %arg7[%c28, %c0_80] : memref<256x64xf32, #tpu.memory_space<vmem>>, vector<196x64xf32>
    %c10 = arith.constant 10 : index
    %c0_81 = arith.constant 0 : index
    %c0_82 = arith.constant 0 : index
    %79 = vector.load %arg4[%c10, %c0_81, %c0_82] : memref<25x64x64xf32, #tpu.memory_space<vmem>>, vector<1x64x64xf32>
    %80 = vector.shape_cast %79 : vector<1x64x64xf32> to vector<64x64xf32>
    %cst_83 = arith.constant dense<0.000000e+00> : vector<196x64xf32>
    %81 = tpu.matmul %78, %80, %cst_83 {dimension_numbers = #tpu.dot_dimension_numbers<[1], [0], [0], [1], [0, 0, 1, 1], [], []>} : vector<196x64xf32>, vector<64x64xf32>, vector<196x64xf32> -> vector<196x64xf32>
    %82 = arith.addf %77, %81 : vector<196x64xf32>
    %c29 = arith.constant 29 : index
    %c0_84 = arith.constant 0 : index
    %83 = vector.load %arg7[%c29, %c0_84] : memref<256x64xf32, #tpu.memory_space<vmem>>, vector<196x64xf32>
    %c11 = arith.constant 11 : index
    %c0_85 = arith.constant 0 : index
    %c0_86 = arith.constant 0 : index
    %84 = vector.load %arg4[%c11, %c0_85, %c0_86] : memref<25x64x64xf32, #tpu.memory_space<vmem>>, vector<1x64x64xf32>
    %85 = vector.shape_cast %84 : vector<1x64x64xf32> to vector<64x64xf32>
    %cst_87 = arith.constant dense<0.000000e+00> : vector<196x64xf32>
    %86 = tpu.matmul %83, %85, %cst_87 {dimension_numbers = #tpu.dot_dimension_numbers<[1], [0], [0], [1], [0, 0, 1, 1], [], []>} : vector<196x64xf32>, vector<64x64xf32>, vector<196x64xf32> -> vector<196x64xf32>
    %87 = arith.addf %82, %86 : vector<196x64xf32>
    %c30 = arith.constant 30 : index
    %c0_88 = arith.constant 0 : index
    %88 = vector.load %arg7[%c30, %c0_88] : memref<256x64xf32, #tpu.memory_space<vmem>>, vector<196x64xf32>
    %c12 = arith.constant 12 : index
    %c0_89 = arith.constant 0 : index
    %c0_90 = arith.constant 0 : index
    %89 = vector.load %arg4[%c12, %c0_89, %c0_90] : memref<25x64x64xf32, #tpu.memory_space<vmem>>, vector<1x64x64xf32>
    %90 = vector.shape_cast %89 : vector<1x64x64xf32> to vector<64x64xf32>
    %cst_91 = arith.constant dense<0.000000e+00> : vector<196x64xf32>
    %91 = tpu.matmul %88, %90, %cst_91 {dimension_numbers = #tpu.dot_dimension_numbers<[1], [0], [0], [1], [0, 0, 1, 1], [], []>} : vector<196x64xf32>, vector<64x64xf32>, vector<196x64xf32> -> vector<196x64xf32>
    %92 = arith.addf %87, %91 : vector<196x64xf32>
    %c31 = arith.constant 31 : index
    %c0_92 = arith.constant 0 : index
    %93 = vector.load %arg7[%c31, %c0_92] : memref<256x64xf32, #tpu.memory_space<vmem>>, vector<196x64xf32>
    %c13 = arith.constant 13 : index
    %c0_93 = arith.constant 0 : index
    %c0_94 = arith.constant 0 : index
    %94 = vector.load %arg4[%c13, %c0_93, %c0_94] : memref<25x64x64xf32, #tpu.memory_space<vmem>>, vector<1x64x64xf32>
    %95 = vector.shape_cast %94 : vector<1x64x64xf32> to vector<64x64xf32>
    %cst_95 = arith.constant dense<0.000000e+00> : vector<196x64xf32>
    %96 = tpu.matmul %93, %95, %cst_95 {dimension_numbers = #tpu.dot_dimension_numbers<[1], [0], [0], [1], [0, 0, 1, 1], [], []>} : vector<196x64xf32>, vector<64x64xf32>, vector<196x64xf32> -> vector<196x64xf32>
    %97 = arith.addf %92, %96 : vector<196x64xf32>
    %c32 = arith.constant 32 : index
    %c0_96 = arith.constant 0 : index
    %98 = vector.load %arg7[%c32, %c0_96] : memref<256x64xf32, #tpu.memory_space<vmem>>, vector<196x64xf32>
    %c14_97 = arith.constant 14 : index
    %c0_98 = arith.constant 0 : index
    %c0_99 = arith.constant 0 : index
    %99 = vector.load %arg4[%c14_97, %c0_98, %c0_99] : memref<25x64x64xf32, #tpu.memory_space<vmem>>, vector<1x64x64xf32>
    %100 = vector.shape_cast %99 : vector<1x64x64xf32> to vector<64x64xf32>
    %cst_100 = arith.constant dense<0.000000e+00> : vector<196x64xf32>
    %101 = tpu.matmul %98, %100, %cst_100 {dimension_numbers = #tpu.dot_dimension_numbers<[1], [0], [0], [1], [0, 0, 1, 1], [], []>} : vector<196x64xf32>, vector<64x64xf32>, vector<196x64xf32> -> vector<196x64xf32>
    %102 = arith.addf %97, %101 : vector<196x64xf32>
    %c42 = arith.constant 42 : index
    %c0_101 = arith.constant 0 : index
    %103 = vector.load %arg7[%c42, %c0_101] : memref<256x64xf32, #tpu.memory_space<vmem>>, vector<196x64xf32>
    %c15_102 = arith.constant 15 : index
    %c0_103 = arith.constant 0 : index
    %c0_104 = arith.constant 0 : index
    %104 = vector.load %arg4[%c15_102, %c0_103, %c0_104] : memref<25x64x64xf32, #tpu.memory_space<vmem>>, vector<1x64x64xf32>
    %105 = vector.shape_cast %104 : vector<1x64x64xf32> to vector<64x64xf32>
    %cst_105 = arith.constant dense<0.000000e+00> : vector<196x64xf32>
    %106 = tpu.matmul %103, %105, %cst_105 {dimension_numbers = #tpu.dot_dimension_numbers<[1], [0], [0], [1], [0, 0, 1, 1], [], []>} : vector<196x64xf32>, vector<64x64xf32>, vector<196x64xf32> -> vector<196x64xf32>
    %107 = arith.addf %102, %106 : vector<196x64xf32>
    %c43 = arith.constant 43 : index
    %c0_106 = arith.constant 0 : index
    %108 = vector.load %arg7[%c43, %c0_106] : memref<256x64xf32, #tpu.memory_space<vmem>>, vector<196x64xf32>
    %c16_107 = arith.constant 16 : index
    %c0_108 = arith.constant 0 : index
    %c0_109 = arith.constant 0 : index
    %109 = vector.load %arg4[%c16_107, %c0_108, %c0_109] : memref<25x64x64xf32, #tpu.memory_space<vmem>>, vector<1x64x64xf32>
    %110 = vector.shape_cast %109 : vector<1x64x64xf32> to vector<64x64xf32>
    %cst_110 = arith.constant dense<0.000000e+00> : vector<196x64xf32>
    %111 = tpu.matmul %108, %110, %cst_110 {dimension_numbers = #tpu.dot_dimension_numbers<[1], [0], [0], [1], [0, 0, 1, 1], [], []>} : vector<196x64xf32>, vector<64x64xf32>, vector<196x64xf32> -> vector<196x64xf32>
    %112 = arith.addf %107, %111 : vector<196x64xf32>
    %c44 = arith.constant 44 : index
    %c0_111 = arith.constant 0 : index
    %113 = vector.load %arg7[%c44, %c0_111] : memref<256x64xf32, #tpu.memory_space<vmem>>, vector<196x64xf32>
    %c17_112 = arith.constant 17 : index
    %c0_113 = arith.constant 0 : index
    %c0_114 = arith.constant 0 : index
    %114 = vector.load %arg4[%c17_112, %c0_113, %c0_114] : memref<25x64x64xf32, #tpu.memory_space<vmem>>, vector<1x64x64xf32>
    %115 = vector.shape_cast %114 : vector<1x64x64xf32> to vector<64x64xf32>
    %cst_115 = arith.constant dense<0.000000e+00> : vector<196x64xf32>
    %116 = tpu.matmul %113, %115, %cst_115 {dimension_numbers = #tpu.dot_dimension_numbers<[1], [0], [0], [1], [0, 0, 1, 1], [], []>} : vector<196x64xf32>, vector<64x64xf32>, vector<196x64xf32> -> vector<196x64xf32>
    %117 = arith.addf %112, %116 : vector<196x64xf32>
    %c45 = arith.constant 45 : index
    %c0_116 = arith.constant 0 : index
    %118 = vector.load %arg7[%c45, %c0_116] : memref<256x64xf32, #tpu.memory_space<vmem>>, vector<196x64xf32>
    %c18_117 = arith.constant 18 : index
    %c0_118 = arith.constant 0 : index
    %c0_119 = arith.constant 0 : index
    %119 = vector.load %arg4[%c18_117, %c0_118, %c0_119] : memref<25x64x64xf32, #tpu.memory_space<vmem>>, vector<1x64x64xf32>
    %120 = vector.shape_cast %119 : vector<1x64x64xf32> to vector<64x64xf32>
    %cst_120 = arith.constant dense<0.000000e+00> : vector<196x64xf32>
    %121 = tpu.matmul %118, %120, %cst_120 {dimension_numbers = #tpu.dot_dimension_numbers<[1], [0], [0], [1], [0, 0, 1, 1], [], []>} : vector<196x64xf32>, vector<64x64xf32>, vector<196x64xf32> -> vector<196x64xf32>
    %122 = arith.addf %117, %121 : vector<196x64xf32>
    %c46 = arith.constant 46 : index
    %c0_121 = arith.constant 0 : index
    %123 = vector.load %arg7[%c46, %c0_121] : memref<256x64xf32, #tpu.memory_space<vmem>>, vector<196x64xf32>
    %c19 = arith.constant 19 : index
    %c0_122 = arith.constant 0 : index
    %c0_123 = arith.constant 0 : index
    %124 = vector.load %arg4[%c19, %c0_122, %c0_123] : memref<25x64x64xf32, #tpu.memory_space<vmem>>, vector<1x64x64xf32>
    %125 = vector.shape_cast %124 : vector<1x64x64xf32> to vector<64x64xf32>
    %cst_124 = arith.constant dense<0.000000e+00> : vector<196x64xf32>
    %126 = tpu.matmul %123, %125, %cst_124 {dimension_numbers = #tpu.dot_dimension_numbers<[1], [0], [0], [1], [0, 0, 1, 1], [], []>} : vector<196x64xf32>, vector<64x64xf32>, vector<196x64xf32> -> vector<196x64xf32>
    %127 = arith.addf %122, %126 : vector<196x64xf32>
    %c56 = arith.constant 56 : index
    %c0_125 = arith.constant 0 : index
    %128 = vector.load %arg7[%c56, %c0_125] : memref<256x64xf32, #tpu.memory_space<vmem>>, vector<196x64xf32>
    %c20 = arith.constant 20 : index
    %c0_126 = arith.constant 0 : index
    %c0_127 = arith.constant 0 : index
    %129 = vector.load %arg4[%c20, %c0_126, %c0_127] : memref<25x64x64xf32, #tpu.memory_space<vmem>>, vector<1x64x64xf32>
    %130 = vector.shape_cast %129 : vector<1x64x64xf32> to vector<64x64xf32>
    %cst_128 = arith.constant dense<0.000000e+00> : vector<196x64xf32>
    %131 = tpu.matmul %128, %130, %cst_128 {dimension_numbers = #tpu.dot_dimension_numbers<[1], [0], [0], [1], [0, 0, 1, 1], [], []>} : vector<196x64xf32>, vector<64x64xf32>, vector<196x64xf32> -> vector<196x64xf32>
    %132 = arith.addf %127, %131 : vector<196x64xf32>
    %c57 = arith.constant 57 : index
    %c0_129 = arith.constant 0 : index
    %133 = vector.load %arg7[%c57, %c0_129] : memref<256x64xf32, #tpu.memory_space<vmem>>, vector<196x64xf32>
    %c21 = arith.constant 21 : index
    %c0_130 = arith.constant 0 : index
    %c0_131 = arith.constant 0 : index
    %134 = vector.load %arg4[%c21, %c0_130, %c0_131] : memref<25x64x64xf32, #tpu.memory_space<vmem>>, vector<1x64x64xf32>
    %135 = vector.shape_cast %134 : vector<1x64x64xf32> to vector<64x64xf32>
    %cst_132 = arith.constant dense<0.000000e+00> : vector<196x64xf32>
    %136 = tpu.matmul %133, %135, %cst_132 {dimension_numbers = #tpu.dot_dimension_numbers<[1], [0], [0], [1], [0, 0, 1, 1], [], []>} : vector<196x64xf32>, vector<64x64xf32>, vector<196x64xf32> -> vector<196x64xf32>
    %137 = arith.addf %132, %136 : vector<196x64xf32>
    %c58 = arith.constant 58 : index
    %c0_133 = arith.constant 0 : index
    %138 = vector.load %arg7[%c58, %c0_133] : memref<256x64xf32, #tpu.memory_space<vmem>>, vector<196x64xf32>
    %c22 = arith.constant 22 : index
    %c0_134 = arith.constant 0 : index
    %c0_135 = arith.constant 0 : index
    %139 = vector.load %arg4[%c22, %c0_134, %c0_135] : memref<25x64x64xf32, #tpu.memory_space<vmem>>, vector<1x64x64xf32>
    %140 = vector.shape_cast %139 : vector<1x64x64xf32> to vector<64x64xf32>
    %cst_136 = arith.constant dense<0.000000e+00> : vector<196x64xf32>
    %141 = tpu.matmul %138, %140, %cst_136 {dimension_numbers = #tpu.dot_dimension_numbers<[1], [0], [0], [1], [0, 0, 1, 1], [], []>} : vector<196x64xf32>, vector<64x64xf32>, vector<196x64xf32> -> vector<196x64xf32>
    %142 = arith.addf %137, %141 : vector<196x64xf32>
    %c59 = arith.constant 59 : index
    %c0_137 = arith.constant 0 : index
    %143 = vector.load %arg7[%c59, %c0_137] : memref<256x64xf32, #tpu.memory_space<vmem>>, vector<196x64xf32>
    %c23 = arith.constant 23 : index
    %c0_138 = arith.constant 0 : index
    %c0_139 = arith.constant 0 : index
    %144 = vector.load %arg4[%c23, %c0_138, %c0_139] : memref<25x64x64xf32, #tpu.memory_space<vmem>>, vector<1x64x64xf32>
    %145 = vector.shape_cast %144 : vector<1x64x64xf32> to vector<64x64xf32>
    %cst_140 = arith.constant dense<0.000000e+00> : vector<196x64xf32>
    %146 = tpu.matmul %143, %145, %cst_140 {dimension_numbers = #tpu.dot_dimension_numbers<[1], [0], [0], [1], [0, 0, 1, 1], [], []>} : vector<196x64xf32>, vector<64x64xf32>, vector<196x64xf32> -> vector<196x64xf32>
    %147 = arith.addf %142, %146 : vector<196x64xf32>
    %c60 = arith.constant 60 : index
    %c0_141 = arith.constant 0 : index
    %148 = vector.load %arg7[%c60, %c0_141] : memref<256x64xf32, #tpu.memory_space<vmem>>, vector<196x64xf32>
    %c24 = arith.constant 24 : index
    %c0_142 = arith.constant 0 : index
    %c0_143 = arith.constant 0 : index
    %149 = vector.load %arg4[%c24, %c0_142, %c0_143] : memref<25x64x64xf32, #tpu.memory_space<vmem>>, vector<1x64x64xf32>
    %150 = vector.shape_cast %149 : vector<1x64x64xf32> to vector<64x64xf32>
    %cst_144 = arith.constant dense<0.000000e+00> : vector<196x64xf32>
    %151 = tpu.matmul %148, %150, %cst_144 {dimension_numbers = #tpu.dot_dimension_numbers<[1], [0], [0], [1], [0, 0, 1, 1], [], []>} : vector<196x64xf32>, vector<64x64xf32>, vector<196x64xf32> -> vector<196x64xf32>
    %152 = arith.addf %147, %151 : vector<196x64xf32>
    %c0_145 = arith.constant 0 : index
    %c0_146 = arith.constant 0 : index
    %153 = vector.load %arg5[%c0_145, %c0_146] : memref<1x64xf32, #tpu.memory_space<vmem>>, vector<1x64xf32>
    %154 = vector.broadcast %153 : vector<1x64xf32> to vector<196x64xf32>
    %155 = arith.addf %152, %154 : vector<196x64xf32>
    %cst_147 = arith.constant 0.000000e+00 : f32
    %156 = vector.broadcast %cst_147 : f32 to vector<196x64xf32>
    %157 = arith.maximumf %155, %156 : vector<196x64xf32>
    %c0_148 = arith.constant 0 : index
    %c0_149 = arith.constant 0 : index
    %c0_150 = arith.constant 0 : index
    %158 = vector.load %arg6[%c0_148, %c0_149, %c0_150] : memref<1x196x64xf32, #tpu.memory_space<vmem>>, vector<1x196x64xf32>
    %159 = vector.shape_cast %158 : vector<1x196x64xf32> to vector<196x64xf32>
    %160 = vector.shape_cast %157 : vector<196x64xf32> to vector<1x196x64xf32>
    tpu.vector_store %arg6[%c0_148, %c0_149, %c0_150], %160 {strides = array<i32>} : memref<1x196x64xf32, #tpu.memory_space<vmem>>, vector<1x196x64xf32>,
    return
  }
  func.func @transform_0(%arg0: i32) -> (i32, i32, i32, i32) {
    %c0_i32 = arith.constant 0 : i32
    %c0_i32_0 = arith.constant 0 : i32
    %c0_i32_1 = arith.constant 0 : i32
    %c0_i32_2 = arith.constant 0 : i32
    return %arg0, %c0_i32, %c0_i32_0, %c0_i32_1 : i32, i32, i32, i32
  }
  func.func @transform_1(%arg0: i32) -> (i32, i32) {
    %c0_i32 = arith.constant 0 : i32
    %c0_i32_0 = arith.constant 0 : i32
    %c0_i32_1 = arith.constant 0 : i32
    return %c0_i32, %c0_i32_0 : i32, i32
  }
  func.func @transform_2(%arg0: i32) -> (i32, i32) {
    %c0_i32 = arith.constant 0 : i32
    %c0_i32_0 = arith.constant 0 : i32
    %c0_i32_1 = arith.constant 0 : i32
    return %c0_i32, %c0_i32_0 : i32, i32
  }
  func.func @transform_3(%arg0: i32) -> (i32, i32, i32) {
    %c0_i32 = arith.constant 0 : i32
    %c0_i32_0 = arith.constant 0 : i32
    %c0_i32_1 = arith.constant 0 : i32
    %c0_i32_2 = arith.constant 0 : i32
    return %c0_i32, %c0_i32_0, %c0_i32_1 : i32, i32, i32
  }
  func.func @transform_4(%arg0: i32) -> (i32, i32) {
    %c0_i32 = arith.constant 0 : i32
    %c0_i32_0 = arith.constant 0 : i32
    %c0_i32_1 = arith.constant 0 : i32
    return %c0_i32, %c0_i32_0 : i32, i32
  }
  func.func @transform_5(%arg0: i32) -> (i32, i32, i32) {
    %c0_i32 = arith.constant 0 : i32
    %c0_i32_0 = arith.constant 0 : i32
    %c0_i32_1 = arith.constant 0 : i32
    return %arg0, %c0_i32, %c0_i32_0 : i32, i32, i32
  }
}

module attributes {stable_mosaic.version = 11 : i64} {
  func.func @_fc_kernel(%arg0: memref<2x12544xf32, #tpu.memory_space<vmem>>, %arg1: memref<12544x32xf32, #tpu.memory_space<vmem>>, %arg2: memref<1x32xf32, #tpu.memory_space<vmem>>, %arg3: memref<32x128xf32, #tpu.memory_space<vmem>>, %arg4: memref<1x128xf32, #tpu.memory_space<vmem>>, %arg5: memref<128x128xf32, #tpu.memory_space<vmem>>, %arg6: memref<1x128xf32, #tpu.memory_space<vmem>>, %arg7: memref<128x128xf32, #tpu.memory_space<vmem>>, %arg8: memref<1x128xf32, #tpu.memory_space<vmem>>, %arg9: memref<128x36xf32, #tpu.memory_space<vmem>>, %arg10: memref<1x36xf32, #tpu.memory_space<vmem>>, %arg11: memref<2x36xf32, #tpu.memory_space<vmem>>) attributes {dimension_semantics = [], scalar_prefetch = 0 : i64, scratch_operands = 0 : i64, tpu.core_type = #tpu.core_type<tc>} {
    %c0 = arith.constant 0 : index
    %c0_0 = arith.constant 0 : index
    %0 = vector.load %arg0[%c0, %c0_0] : memref<2x12544xf32, #tpu.memory_space<vmem>>, vector<2x12544xf32>
    %c0_1 = arith.constant 0 : index
    %c0_2 = arith.constant 0 : index
    %1 = vector.load %arg1[%c0_1, %c0_2] : memref<12544x32xf32, #tpu.memory_space<vmem>>, vector<12544x32xf32>
    %cst = arith.constant dense<0.000000e+00> : vector<2x32xf32>
    %2 = tpu.matmul %0, %1, %cst {dimension_numbers = #tpu.dot_dimension_numbers<[1], [0], [0], [1], [0, 0, 1, 1], [], []>} : vector<2x12544xf32>, vector<12544x32xf32>, vector<2x32xf32> -> vector<2x32xf32>
    %c0_3 = arith.constant 0 : index
    %c0_4 = arith.constant 0 : index
    %3 = vector.load %arg2[%c0_3, %c0_4] : memref<1x32xf32, #tpu.memory_space<vmem>>, vector<1x32xf32>
    %4 = vector.broadcast %3 : vector<1x32xf32> to vector<2x32xf32>
    %5 = arith.addf %2, %4 : vector<2x32xf32>
    %cst_5 = arith.constant 0.000000e+00 : f32
    %6 = vector.broadcast %cst_5 : f32 to vector<2x32xf32>
    %7 = arith.maximumf %5, %6 : vector<2x32xf32>
    %c0_6 = arith.constant 0 : index
    %c0_7 = arith.constant 0 : index
    %8 = vector.load %arg3[%c0_6, %c0_7] : memref<32x128xf32, #tpu.memory_space<vmem>>, vector<32x128xf32>
    %cst_8 = arith.constant dense<0.000000e+00> : vector<2x128xf32>
    %9 = tpu.matmul %7, %8, %cst_8 {dimension_numbers = #tpu.dot_dimension_numbers<[1], [0], [0], [1], [0, 0, 1, 1], [], []>} : vector<2x32xf32>, vector<32x128xf32>, vector<2x128xf32> -> vector<2x128xf32>
    %c0_9 = arith.constant 0 : index
    %c0_10 = arith.constant 0 : index
    %10 = vector.load %arg4[%c0_9, %c0_10] : memref<1x128xf32, #tpu.memory_space<vmem>>, vector<1x128xf32>
    %11 = vector.broadcast %10 : vector<1x128xf32> to vector<2x128xf32>
    %12 = arith.addf %9, %11 : vector<2x128xf32>
    %cst_11 = arith.constant 0.000000e+00 : f32
    %13 = vector.broadcast %cst_11 : f32 to vector<2x128xf32>
    %14 = arith.maximumf %12, %13 : vector<2x128xf32>
    %c0_12 = arith.constant 0 : index
    %c0_13 = arith.constant 0 : index
    %15 = vector.load %arg5[%c0_12, %c0_13] : memref<128x128xf32, #tpu.memory_space<vmem>>, vector<128x128xf32>
    %cst_14 = arith.constant dense<0.000000e+00> : vector<2x128xf32>
    %16 = tpu.matmul %14, %15, %cst_14 {dimension_numbers = #tpu.dot_dimension_numbers<[1], [0], [0], [1], [0, 0, 1, 1], [], []>} : vector<2x128xf32>, vector<128x128xf32>, vector<2x128xf32> -> vector<2x128xf32>
    %c0_15 = arith.constant 0 : index
    %c0_16 = arith.constant 0 : index
    %17 = vector.load %arg6[%c0_15, %c0_16] : memref<1x128xf32, #tpu.memory_space<vmem>>, vector<1x128xf32>
    %18 = vector.broadcast %17 : vector<1x128xf32> to vector<2x128xf32>
    %19 = arith.addf %16, %18 : vector<2x128xf32>
    %cst_17 = arith.constant 0.000000e+00 : f32
    %20 = vector.broadcast %cst_17 : f32 to vector<2x128xf32>
    %21 = arith.maximumf %19, %20 : vector<2x128xf32>
    %c0_18 = arith.constant 0 : index
    %c0_19 = arith.constant 0 : index
    %22 = vector.load %arg7[%c0_18, %c0_19] : memref<128x128xf32, #tpu.memory_space<vmem>>, vector<128x128xf32>
    %cst_20 = arith.constant dense<0.000000e+00> : vector<2x128xf32>
    %23 = tpu.matmul %21, %22, %cst_20 {dimension_numbers = #tpu.dot_dimension_numbers<[1], [0], [0], [1], [0, 0, 1, 1], [], []>} : vector<2x128xf32>, vector<128x128xf32>, vector<2x128xf32> -> vector<2x128xf32>
    %c0_21 = arith.constant 0 : index
    %c0_22 = arith.constant 0 : index
    %24 = vector.load %arg8[%c0_21, %c0_22] : memref<1x128xf32, #tpu.memory_space<vmem>>, vector<1x128xf32>
    %25 = vector.broadcast %24 : vector<1x128xf32> to vector<2x128xf32>
    %26 = arith.addf %23, %25 : vector<2x128xf32>
    %cst_23 = arith.constant 0.000000e+00 : f32
    %27 = vector.broadcast %cst_23 : f32 to vector<2x128xf32>
    %28 = arith.maximumf %26, %27 : vector<2x128xf32>
    %c0_24 = arith.constant 0 : index
    %c0_25 = arith.constant 0 : index
    %29 = vector.load %arg9[%c0_24, %c0_25] : memref<128x36xf32, #tpu.memory_space<vmem>>, vector<128x36xf32>
    %cst_26 = arith.constant dense<0.000000e+00> : vector<2x36xf32>
    %30 = tpu.matmul %28, %29, %cst_26 {dimension_numbers = #tpu.dot_dimension_numbers<[1], [0], [0], [1], [0, 0, 1, 1], [], []>} : vector<2x128xf32>, vector<128x36xf32>, vector<2x36xf32> -> vector<2x36xf32>
    %c0_27 = arith.constant 0 : index
    %c0_28 = arith.constant 0 : index
    %31 = vector.load %arg10[%c0_27, %c0_28] : memref<1x36xf32, #tpu.memory_space<vmem>>, vector<1x36xf32>
    %32 = vector.broadcast %31 : vector<1x36xf32> to vector<2x36xf32>
    %33 = arith.addf %30, %32 : vector<2x36xf32>
    %c0_29 = arith.constant 0 : index
    %c0_30 = arith.constant 0 : index
    %34 = vector.load %arg11[%c0_29, %c0_30] : memref<2x36xf32, #tpu.memory_space<vmem>>, vector<2x36xf32>
    tpu.vector_store %arg11[%c0_29, %c0_30], %33 {strides = array<i32>} : memref<2x36xf32, #tpu.memory_space<vmem>>, vector<2x36xf32>,
    return
  }
}

</mosaic_0001>

<llo_original>
// kernel: net_forward.2
$region0: #{net_forward.2}
  #allocation0 [shape = 'u32[]', space=smem, size = 0x4, offset = 0x4, fixed_abs, tag = 'smem constant byte address 0x4 - core index']
  #allocation1 [shape = 'u32[72,128]{1,0:T(1,128)}', space=vmem, size = 0x9000, scoped, tag = 'internal scratch']
  #allocation2 [shape = 'f32[256,64]{1,0:T(8,128)}', space=vmem, size = 0x20000, scoped, tag = 'scratch operand']
  %s0 = inlined_call_operand.vmem [shape: f32[2,4,252,25], index: 0, kind: input, shape index: {}]
  %s1 = inlined_call_operand.vmem [shape: f32[25,64], index: 1, kind: input, shape index: {}]
  %s2 = inlined_call_operand.vmem [shape: f32[1,64], index: 2, kind: input, shape index: {}]
  %s3 = inlined_call_operand.vmem [shape: f32[25,64,64], index: 3, kind: input, shape index: {}]
  %s4 = inlined_call_operand.vmem [shape: f32[1,64], index: 4, kind: input, shape index: {}]
  %s5 = inlined_call_operand.vmem [shape: f32[2,196,64], index: 5, kind: output, shape index: {}]
  %s6 = sld [smem:[#allocation0]]
  $region53: #{net_forward.2} parent=0
    _
  %s8 = ssub.s32 1, %s6
  %s9 = scalar_select 0, %s8, %s6
  loop: start=0, step=1, limit=4
  $region2: #{net_forward.2} parent=0 // loop_pre_header
    _
  $region3: #{net_forward.2} parent=0 // loop_header
    %s11 = sphi 0, %s15
    %p12 = scmp.ge.s32.totalorder %s11, 4
    %s21 = sphi 0, %s23
    %s24 = sphi 0, %s21
    %s25 = sphi 0, %s24
    %s41 = sphi 0, %s25
    %s45 = sphi 0, %s45
    %s47 = sphi 0, %s45
    %s48 = sphi 0, %s47
    %s62 = sphi 0, %s48
    %s66 = sphi 0, %s66
    %s68 = sphi 0, %s66
    %s69 = sphi 0, %s68
    %s83 = sphi 0, %s69
    %s87 = sphi 0, %s87
    %s89 = sphi 0, %s87
    %s90 = sphi 0, %s89
    %s104 = sphi 0, %s90
    %s108 = sphi 0, %s108
    %s110 = sphi 0, %s108
    %s111 = sphi 0, %s110
    %s125 = sphi 0, %s111
    %s131 = sphi 0, %s133
    %s134 = sphi 0, %s131
    %s135 = sphi 0, %s134
    %s151 = sphi 0, %s135
  $region4: #{net_forward.2} parent=0 // loop_header_branch
    %14 = sbr.rel (%p12) target = $region8
  $region5: #{net_forward.2} parent=0 // loop_body
    %s16 = ssub.s32 %s11, 1
    %s17 = ssub.s32 %s11, 2
    %s18 = sadd.s32 %s11, 1
    %s19 = ssub.s32 %s11, %s18
    %p20 = scmp.eq.s32.totalorder %s19, 0
    %s22 = sadd.s32 %s21, 1
    %s23 = scalar_select %p20, %s21, %s22
    %p26 = pneg %p20
    %p27 = scmp.eq.s32.totalorder %s11, 1
    %p28 = por %p26, %p27
    %p29 = scmp.ne.s32.totalorder %s21, %s24
    %p30 = scmp.eq.s32.totalorder %s11, 0
    %p31 = por %p29, %p30
    %p32 = scmp.ne.s32.totalorder %s21, %s24
    %p33 = scmp.eq.s32.totalorder %s16, 1
    %p34 = por %p32, %p33
    %p35 = scmp.ne.s32.totalorder %s24, %s25
    %p36 = scmp.eq.s32.totalorder %s16, 0
    %p37 = por %p35, %p36
    %p38 = scmp.ne.s32.totalorder %s24, %s25
    %p39 = scmp.eq.s32.totalorder %s17, 1
    %p40 = por %p38, %p39
    %p42 = scmp.ne.s32.totalorder %s25, %s41
    %p43 = scmp.eq.s32.totalorder %s17, 0
    %p44 = por %p42, %p43
    %s46 = sadd.s32 %s45, 1
    %p49 = scmp.eq.s32.totalorder %s11, 1
    %p50 = scmp.ne.s32.totalorder %s45, %s47
    %p51 = scmp.eq.s32.totalorder %s11, 0
    %p52 = por %p50, %p51
    %p53 = scmp.ne.s32.totalorder %s45, %s47
    %p54 = scmp.eq.s32.totalorder %s16, 1
    %p55 = por %p53, %p54
    %p56 = scmp.ne.s32.totalorder %s47, %s48
    %p57 = scmp.eq.s32.totalorder %s16, 0
    %p58 = por %p56, %p57
    %p59 = scmp.ne.s32.totalorder %s47, %s48
    %p60 = scmp.eq.s32.totalorder %s17, 1
    %p61 = por %p59, %p60
    %p63 = scmp.ne.s32.totalorder %s48, %s62
    %p64 = scmp.eq.s32.totalorder %s17, 0
    %p65 = por %p63, %p64
    %s67 = sadd.s32 %s66, 1
    %p70 = scmp.eq.s32.totalorder %s11, 1
    %p71 = scmp.ne.s32.totalorder %s66, %s68
    %p72 = scmp.eq.s32.totalorder %s11, 0
    %p73 = por %p71, %p72
    %p74 = scmp.ne.s32.totalorder %s66, %s68
    %p75 = scmp.eq.s32.totalorder %s16, 1
    %p76 = por %p74, %p75
    %p77 = scmp.ne.s32.totalorder %s68, %s69
    %p78 = scmp.eq.s32.totalorder %s16, 0
    %p79 = por %p77, %p78
    %p80 = scmp.ne.s32.totalorder %s68, %s69
    %p81 = scmp.eq.s32.totalorder %s17, 1
    %p82 = por %p80, %p81
    %p84 = scmp.ne.s32.totalorder %s69, %s83
    %p85 = scmp.eq.s32.totalorder %s17, 0
    %p86 = por %p84, %p85
    %s88 = sadd.s32 %s87, 1
    %p91 = scmp.eq.s32.totalorder %s11, 1
    %p92 = scmp.ne.s32.totalorder %s87, %s89
    %p93 = scmp.eq.s32.totalorder %s11, 0
    %p94 = por %p92, %p93
    %p95 = scmp.ne.s32.totalorder %s87, %s89
    %p96 = scmp.eq.s32.totalorder %s16, 1
    %p97 = por %p95, %p96
    %p98 = scmp.ne.s32.totalorder %s89, %s90
    %p99 = scmp.eq.s32.totalorder %s16, 0
    %p100 = por %p98, %p99
    %p101 = scmp.ne.s32.totalorder %s89, %s90
    %p102 = scmp.eq.s32.totalorder %s17, 1
    %p103 = por %p101, %p102
    %p105 = scmp.ne.s32.totalorder %s90, %s104
    %p106 = scmp.eq.s32.totalorder %s17, 0
    %p107 = por %p105, %p106
    %s109 = sadd.s32 %s108, 1
    %p112 = scmp.eq.s32.totalorder %s11, 1
    %p113 = scmp.ne.s32.totalorder %s108, %s110
    %p114 = scmp.eq.s32.totalorder %s11, 0
    %p115 = por %p113, %p114
    %p116 = scmp.ne.s32.totalorder %s108, %s110
    %p117 = scmp.eq.s32.totalorder %s16, 1
    %p118 = por %p116, %p117
    %p119 = scmp.ne.s32.totalorder %s110, %s111
    %p120 = scmp.eq.s32.totalorder %s16, 0
    %p121 = por %p119, %p120
    %p122 = scmp.ne.s32.totalorder %s110, %s111
    %p123 = scmp.eq.s32.totalorder %s17, 1
    %p124 = por %p122, %p123
    %p126 = scmp.ne.s32.totalorder %s111, %s125
    %p127 = scmp.eq.s32.totalorder %s17, 0
    %p128 = por %p126, %p127
    %s129 = ssub.s32 %s11, %s18
    %p130 = scmp.eq.s32.totalorder %s129, 0
    %s132 = sadd.s32 %s131, 1
    %s133 = scalar_select %p130, %s131, %s132
    %p136 = pneg %p130
    %p137 = scmp.eq.s32.totalorder %s11, 1
    %p138 = por %p136, %p137
    %p139 = scmp.ne.s32.totalorder %s131, %s134
    %p140 = scmp.eq.s32.totalorder %s11, 0
    %p141 = por %p139, %p140
    %p142 = scmp.ne.s32.totalorder %s131, %s134
    %p143 = scmp.eq.s32.totalorder %s16, 1
    %p144 = por %p142, %p143
    %p145 = scmp.ne.s32.totalorder %s134, %s135
    %p146 = scmp.eq.s32.totalorder %s16, 0
    %p147 = por %p145, %p146
    %p148 = scmp.ne.s32.totalorder %s134, %s135
    %p149 = scmp.eq.s32.totalorder %s17, 1
    %p150 = por %p148, %p149
    %p152 = scmp.ne.s32.totalorder %s135, %s151
    %p153 = scmp.eq.s32.totalorder %s17, 0
    %p154 = por %p152, %p153
    %p155 = scmp.le.s32.totalorder 1, %s11
    %p156 = scmp.lt.s32.totalorder %s11, 3
    %p157 = pnand %p155, %p156
    %p158 = pneg %p157
    // Predicated region
    $region9: #{net_forward.2} parent=5 // pred_check
      _
    $region10: #{net_forward.2} parent=5 // pred_check_branch
      %160 = sbr.rel (%p157) target = $region12
    $region11: #{net_forward.2} parent=5 // pred_region
      %s161 = ssub.s32 %s11, 1
      // Predicated region
      $region13: #{net_forward.2} parent=11 // pred_check
        %p162 = pneg %p58
      $region14: #{net_forward.2} parent=11 // pred_check_branch
        %164 = sbr.rel (%p162) target = $region16
      $region15: #{net_forward.2} parent=11 // pred_region
        _
      $region16: #{net_forward.2} parent=11 // pred_fallthru
        _
      // Predicated region
      $region17: #{net_forward.2} parent=11 // pred_check
        %p165 = pneg %p79
      $region18: #{net_forward.2} parent=11 // pred_check_branch
        %167 = sbr.rel (%p165) target = $region20
      $region19: #{net_forward.2} parent=11 // pred_region
        _
      $region20: #{net_forward.2} parent=11 // pred_fallthru
        _
      // Predicated region
      $region21: #{net_forward.2} parent=11 // pred_check
        %p168 = pneg %p100
      $region22: #{net_forward.2} parent=11 // pred_check_branch
        %170 = sbr.rel (%p168) target = $region24
      $region23: #{net_forward.2} parent=11 // pred_region
        _
      $region24: #{net_forward.2} parent=11 // pred_fallthru
        _
      // Predicated region
      $region25: #{net_forward.2} parent=11 // pred_check
        %p171 = pneg %p121
      $region26: #{net_forward.2} parent=11 // pred_check_branch
        %173 = sbr.rel (%p171) target = $region28
      $region27: #{net_forward.2} parent=11 // pred_region
        _
      $region28: #{net_forward.2} parent=11 // pred_fallthru
        _
    $region12: #{net_forward.2} parent=5 // pred_fallthru
      _
    %p174 = scmp.lt.s32.totalorder %s11, 2
    // Predicated region
    $region29: #{net_forward.2} parent=5 // pred_check
      %p175 = pneg %p174
    $region30: #{net_forward.2} parent=5 // pred_check_branch
      %177 = sbr.rel (%p175) target = $region32
    $region31: #{net_forward.2} parent=5 // pred_region
      // Predicated region
      $region33: #{net_forward.2} parent=31 // pred_check
        %p178 = pneg %p31
      $region34: #{net_forward.2} parent=31 // pred_check_branch
        %180 = sbr.rel (%p178) target = $region36
      $region35: #{net_forward.2} parent=31 // pred_region
        %p181 = scmp.lt.s32.totalorder %s11, 1
        %s182 = scalar_select %p181, %s11, 1
        %s183 = smul.addr %s182, 128
        %s184 = smul.addr %s183, 8
        %s185 = scalar_lea.vmem %s0, %s184
      $region36: #{net_forward.2} parent=31 // pred_fallthru
        _
    $region32: #{net_forward.2} parent=5 // pred_fallthru
      _
    %p186 = scmp.le.s32.totalorder 1, %s11
    %p187 = scmp.lt.s32.totalorder %s11, 3
    %p188 = pnand %p186, %p187
    %p189 = pneg %p188
    // Predicated region
    $region37: #{net_forward.2} parent=5 // pred_check
      _
    $region38: #{net_forward.2} parent=5 // pred_check_branch
      %191 = sbr.rel (%p188) target = $region40
    $region39: #{net_forward.2} parent=5 // pred_region
      %s192 = ssub.s32 %s11, 1
      %p193 = scmp.lt.s32.totalorder %s16, 1
      %s194 = scalar_select %p193, %s16, 1
      %s195 = smul.addr %s194, 128
      %s196 = smul.addr %s195, 8
      %s197 = scalar_lea.vmem %s0, %s196
      %p198 = pneg %p37
      %p199 = pneg %p34
      %p200 = pneg %p58
      %p201 = pneg %p55
      %p202 = pneg %p79
      %p203 = pneg %p76
      %p204 = pneg %p100
      %p205 = pneg %p97
      %p206 = pneg %p121
      %p207 = pneg %p118
      %p208 = pneg %p147
      %p209 = pneg %p144
      %p210 = scmp.lt.s32.totalorder %s16, 1
      %s211 = scalar_select %p210, %s16, 1
      %s212 = smul.addr %s211, 25
      %s213 = smul.addr %s212, 8
      %s214 = scalar_lea.vmem %s5, %s213
      %p215 = scmp.lt.s32.totalorder %s16, 1
      %s216 = scalar_select %p215, %s16, 1
      %s217 = smul.addr %s216, 128
      %s218 = smul.addr %s217, 8
      %s219 = scalar_lea.vmem %s0, %s218
      %p220 = scmp.lt.s32.totalorder %s16, 1
      %s221 = scalar_select %p220, %s16, 1
      %s222 = smul.addr %s221, 25
      %s223 = smul.addr %s222, 8
      %s224 = scalar_lea.vmem %s5, %s223
      %v225 = vld [vmem:[%s219] sm:$0xff]
      %v226 = vld [vmem:[%s219 + $0x8] sm:$0xff]
      %v227 = vld [vmem:[%s219 + $0x10] sm:$0xff]
      %v228 = vld [vmem:[%s219 + $0x18] sm:$0xff]
      %v229 = vld [vmem:[%s219 + $0x20] sm:$0xff]
      %v230 = vld [vmem:[%s219 + $0x28] sm:$0xff]
      %v231 = vld [vmem:[%s219 + $0x30] sm:$0xff]
      %v232 = vld [vmem:[%s219 + $0x38] sm:$0xff]
      %v233 = vld [vmem:[%s219 + $0x40] sm:$0xff]
      %v234 = vld [vmem:[%s219 + $0x48] sm:$0xff]
      %v235 = vld [vmem:[%s219 + $0x50] sm:$0xff]
      %v236 = vld [vmem:[%s219 + $0x58] sm:$0xff]
      %v237 = vld [vmem:[%s219 + $0x60] sm:$0xff]
      %v238 = vld [vmem:[%s219 + $0x68] sm:$0xff]
      %v239 = vld [vmem:[%s219 + $0x70] sm:$0xff]
      %v240 = vld [vmem:[%s219 + $0x78] sm:$0xff]
      %v241 = vld [vmem:[%s219 + $0x80] sm:$0xff]
      %v242 = vld [vmem:[%s219 + $0x88] sm:$0xff]
      %v243 = vld [vmem:[%s219 + $0x90] sm:$0xff]
      %v244 = vld [vmem:[%s219 + $0x98] sm:$0xff]
      %v245 = vld [vmem:[%s219 + $0xa0] sm:$0xff]
      %v246 = vld [vmem:[%s219 + $0xa8] sm:$0xff]
      %v247 = vld [vmem:[%s219 + $0xb0] sm:$0xff]
      %v248 = vld [vmem:[%s219 + $0xb8] sm:$0xff]
      %v249 = vld [vmem:[%s219 + $0xc0] sm:$0xff]
      %v250 = vld [vmem:[%s219 + $0xc8] sm:$0xff]
      %v251 = vld [vmem:[%s219 + $0xd0] sm:$0xff]
      %v252 = vld [vmem:[%s219 + $0xd8] sm:$0xff]
      %v253 = vld [vmem:[%s219 + $0xe0] sm:$0xff]
      %v254 = vld [vmem:[%s219 + $0xe8] sm:$0xff]
      %v255 = vld [vmem:[%s219 + $0xf0] sm:$0xff]
      %v256 = vld [vmem:[%s219 + $0xf8] sm:$0xf]
      %v257 = vld [vmem:[%s1] sm:$0xff]
      %v258 = vld [vmem:[%s1 + $0x8] sm:$0xff]
      %v259 = vld [vmem:[%s1 + $0x10] sm:$0xff]
      %v260 = vld [vmem:[%s1 + $0x18] sm:$0x1]
      %vm261 = vcmask 203776
      %v263 = vsel %vm261, %v225, 0
      %v266 = vsel %vm261, %v226, 0
      %v269 = vsel %vm261, %v227, 0
      %v272 = vsel %vm261, %v228, 0
      %v275 = vsel %vm261, %v229, 0
      %v278 = vsel %vm261, %v230, 0
      %v281 = vsel %vm261, %v231, 0
      %v284 = vsel %vm261, %v232, 0
      %v287 = vsel %vm261, %v233, 0
      %v290 = vsel %vm261, %v234, 0
      %v293 = vsel %vm261, %v235, 0
      %v296 = vsel %vm261, %v236, 0
      %v299 = vsel %vm261, %v237, 0
      %v302 = vsel %vm261, %v238, 0
      %v305 = vsel %vm261, %v239, 0
      %v308 = vsel %vm261, %v240, 0
      %v311 = vsel %vm261, %v241, 0
      %v314 = vsel %vm261, %v242, 0
      %v317 = vsel %vm261, %v243, 0
      %v320 = vsel %vm261, %v244, 0
      %v323 = vsel %vm261, %v245, 0
      %v326 = vsel %vm261, %v246, 0
      %v329 = vsel %vm261, %v247, 0
      %v332 = vsel %vm261, %v248, 0
      %v335 = vsel %vm261, %v249, 0
      %v338 = vsel %vm261, %v250, 0
      %v341 = vsel %vm261, %v251, 0
      %v344 = vsel %vm261, %v252, 0
      %v347 = vsel %vm261, %v253, 0
      %v350 = vsel %vm261, %v254, 0
      %v353 = vsel %vm261, %v255, 0
      %v356 = vsel %vm261, %v256, 0
      %vm358 = vcmask 1040384
      %v360 = vsel %vm358, %v260, 0
      %362 = vmatpush.msra.mxu0 0.0
      %363 = vmatpush.msra.mxu0 0.0
      %364 = vmatpush.msra.mxu0 0.0
      %365 = vmatpush.msra.mxu0 0.0
      %366 = vmatpush.msra.mxu0 0.0
      %367 = vmatpush.msra.mxu0 0.0
      %368 = vmatpush.msra.mxu0 0.0
      %369 = vmatpush.msra.mxu0 0.0
      %370 = vmatpush.msra.mxu0 0.0
      %371 = vmatpush.msra.mxu0 0.0
      %372 = vmatpush.msra.mxu0 0.0
      %373 = vmatpush.msra.mxu0 0.0
      %374 = vmatpush.msra.mxu0 %v360
      %375 = vmatpush.msra.mxu0 %v259
      %376 = vmatpush.msra.mxu0 %v258
      %377 = vmatpush.msra.mxu0 %v257
      %378 = vmatmul.f32.gmra.mxu0 %v263
      %v379 = vpop.f32.mrf.mxu0
      %v380 = vadd.f32 0.0, %v379
      %381 = vmatmul.f32.gmra.mxu0 %v266
      %v382 = vpop.f32.mrf.mxu0
      %v383 = vadd.f32 0.0, %v382
      %384 = vmatmul.f32.gmra.mxu0 %v269
      %v385 = vpop.f32.mrf.mxu0
      %v386 = vadd.f32 0.0, %v385
      %387 = vmatmul.f32.gmra.mxu0 %v272
      %v388 = vpop.f32.mrf.mxu0
      %v389 = vadd.f32 0.0, %v388
      %390 = vmatmul.f32.gmra.mxu0 %v275
      %v391 = vpop.f32.mrf.mxu0
      %v392 = vadd.f32 0.0, %v391
      %393 = vmatmul.f32.gmra.mxu0 %v278
      %v394 = vpop.f32.mrf.mxu0
      %v395 = vadd.f32 0.0, %v394
      %396 = vmatmul.f32.gmra.mxu0 %v281
      %v397 = vpop.f32.mrf.mxu0
      %v398 = vadd.f32 0.0, %v397
      %399 = vmatmul.f32.gmra.mxu0 %v284
      %v400 = vpop.f32.mrf.mxu0
      %v401 = vadd.f32 0.0, %v400
      %402 = vmatmul.f32.gmra.mxu0 %v287
      %v403 = vpop.f32.mrf.mxu0
      %v404 = vadd.f32 0.0, %v403
      %405 = vmatmul.f32.gmra.mxu0 %v290
      %v406 = vpop.f32.mrf.mxu0
      %v407 = vadd.f32 0.0, %v406
      %408 = vmatmul.f32.gmra.mxu0 %v293
      %v409 = vpop.f32.mrf.mxu0
      %v410 = vadd.f32 0.0, %v409
      %411 = vmatmul.f32.gmra.mxu0 %v296
      %v412 = vpop.f32.mrf.mxu0
      %v413 = vadd.f32 0.0, %v412
      %414 = vmatmul.f32.gmra.mxu0 %v299
      %v415 = vpop.f32.mrf.mxu0
      %v416 = vadd.f32 0.0, %v415
      %417 = vmatmul.f32.gmra.mxu0 %v302
      %v418 = vpop.f32.mrf.mxu0
      %v419 = vadd.f32 0.0, %v418
      %420 = vmatmul.f32.gmra.mxu0 %v305
      %v421 = vpop.f32.mrf.mxu0
      %v422 = vadd.f32 0.0, %v421
      %423 = vmatmul.f32.gmra.mxu0 %v308
      %v424 = vpop.f32.mrf.mxu0
      %v425 = vadd.f32 0.0, %v424
      %426 = vmatmul.f32.gmra.mxu0 %v311
      %v427 = vpop.f32.mrf.mxu0
      %v428 = vadd.f32 0.0, %v427
      %429 = vmatmul.f32.gmra.mxu0 %v314
      %v430 = vpop.f32.mrf.mxu0
      %v431 = vadd.f32 0.0, %v430
      %432 = vmatmul.f32.gmra.mxu0 %v317
      %v433 = vpop.f32.mrf.mxu0
      %v434 = vadd.f32 0.0, %v433
      %435 = vmatmul.f32.gmra.mxu0 %v320
      %v436 = vpop.f32.mrf.mxu0
      %v437 = vadd.f32 0.0, %v436
      %438 = vmatmul.f32.gmra.mxu0 %v323
      %v439 = vpop.f32.mrf.mxu0
      %v440 = vadd.f32 0.0, %v439
      %441 = vmatmul.f32.gmra.mxu0 %v326
      %v442 = vpop.f32.mrf.mxu0
      %v443 = vadd.f32 0.0, %v442
      %444 = vmatmul.f32.gmra.mxu0 %v329
      %v445 = vpop.f32.mrf.mxu0
      %v446 = vadd.f32 0.0, %v445
      %447 = vmatmul.f32.gmra.mxu0 %v332
      %v448 = vpop.f32.mrf.mxu0
      %v449 = vadd.f32 0.0, %v448
      %450 = vmatmul.f32.gmra.mxu0 %v335
      %v451 = vpop.f32.mrf.mxu0
      %v452 = vadd.f32 0.0, %v451
      %453 = vmatmul.f32.gmra.mxu0 %v338
      %v454 = vpop.f32.mrf.mxu0
      %v455 = vadd.f32 0.0, %v454
      %456 = vmatmul.f32.gmra.mxu0 %v341
      %v457 = vpop.f32.mrf.mxu0
      %v458 = vadd.f32 0.0, %v457
      %459 = vmatmul.f32.gmra.mxu0 %v344
      %v460 = vpop.f32.mrf.mxu0
      %v461 = vadd.f32 0.0, %v460
      %462 = vmatmul.f32.gmra.mxu0 %v347
      %v463 = vpop.f32.mrf.mxu0
      %v464 = vadd.f32 0.0, %v463
      %465 = vmatmul.f32.gmra.mxu0 %v350
      %v466 = vpop.f32.mrf.mxu0
      %v467 = vadd.f32 0.0, %v466
      %468 = vmatmul.f32.gmra.mxu0 %v353
      %v469 = vpop.f32.mrf.mxu0
      %v470 = vadd.f32 0.0, %v469
      %471 = vmatmul.f32.gmra.mxu0 %v356
      %v472 = vpop.f32.mrf.mxu0
      %v473 = vadd.f32 0.0, %v472
      %474 = vdwg.mxu0
      %s475 = scalar_lea.vmem %s219, 256
      %v476 = vld [vmem:[%s475] sm:$0xff]
      %v477 = vld [vmem:[%s475 + $0x8] sm:$0xff]
      %v478 = vld [vmem:[%s475 + $0x10] sm:$0xff]
      %v479 = vld [vmem:[%s475 + $0x18] sm:$0xff]
      %v480 = vld [vmem:[%s475 + $0x20] sm:$0xff]
      %v481 = vld [vmem:[%s475 + $0x28] sm:$0xff]
      %v482 = vld [vmem:[%s475 + $0x30] sm:$0xff]
      %v483 = vld [vmem:[%s475 + $0x38] sm:$0xff]
      %v484 = vld [vmem:[%s475 + $0x40] sm:$0xff]
      %v485 = vld [vmem:[%s475 + $0x48] sm:$0xff]
      %v486 = vld [vmem:[%s475 + $0x50] sm:$0xff]
      %v487 = vld [vmem:[%s475 + $0x58] sm:$0xff]
      %v488 = vld [vmem:[%s475 + $0x60] sm:$0xff]
      %v489 = vld [vmem:[%s475 + $0x68] sm:$0xff]
      %v490 = vld [vmem:[%s475 + $0x70] sm:$0xff]
      %v491 = vld [vmem:[%s475 + $0x78] sm:$0xff]
      %v492 = vld [vmem:[%s475 + $0x80] sm:$0xff]
      %v493 = vld [vmem:[%s475 + $0x88] sm:$0xff]
      %v494 = vld [vmem:[%s475 + $0x90] sm:$0xff]
      %v495 = vld [vmem:[%s475 + $0x98] sm:$0xff]
      %v496 = vld [vmem:[%s475 + $0xa0] sm:$0xff]
      %v497 = vld [vmem:[%s475 + $0xa8] sm:$0xff]
      %v498 = vld [vmem:[%s475 + $0xb0] sm:$0xff]
      %v499 = vld [vmem:[%s475 + $0xb8] sm:$0xff]
      %v500 = vld [vmem:[%s475 + $0xc0] sm:$0xff]
      %v501 = vld [vmem:[%s475 + $0xc8] sm:$0xff]
      %v502 = vld [vmem:[%s475 + $0xd0] sm:$0xff]
      %v503 = vld [vmem:[%s475 + $0xd8] sm:$0xff]
      %v504 = vld [vmem:[%s475 + $0xe0] sm:$0xff]
      %v505 = vld [vmem:[%s475 + $0xe8] sm:$0xff]
      %v506 = vld [vmem:[%s475 + $0xf0] sm:$0xff]
      %v507 = vld [vmem:[%s475 + $0xf8] sm:$0xf]
      %v509 = vsel %vm261, %v476, 0
      %v512 = vsel %vm261, %v477, 0
      %v515 = vsel %vm261, %v478, 0
      %v518 = vsel %vm261, %v479, 0
      %v521 = vsel %vm261, %v480, 0
      %v524 = vsel %vm261, %v481, 0
      %v527 = vsel %vm261, %v482, 0
      %v530 = vsel %vm261, %v483, 0
      %v533 = vsel %vm261, %v484, 0
      %v536 = vsel %vm261, %v485, 0
      %v539 = vsel %vm261, %v486, 0
      %v542 = vsel %vm261, %v487, 0
      %v545 = vsel %vm261, %v488, 0
      %v548 = vsel %vm261, %v489, 0
      %v551 = vsel %vm261, %v490, 0
      %v554 = vsel %vm261, %v491, 0
      %v557 = vsel %vm261, %v492, 0
      %v560 = vsel %vm261, %v493, 0
      %v563 = vsel %vm261, %v494, 0
      %v566 = vsel %vm261, %v495, 0
      %v569 = vsel %vm261, %v496, 0
      %v572 = vsel %vm261, %v497, 0
      %v575 = vsel %vm261, %v498, 0
      %v578 = vsel %vm261, %v499, 0
      %v581 = vsel %vm261, %v500, 0
      %v584 = vsel %vm261, %v501, 0
      %v587 = vsel %vm261, %v502, 0
      %v590 = vsel %vm261, %v503, 0
      %v593 = vsel %vm261, %v504, 0
      %v596 = vsel %vm261, %v505, 0
      %v599 = vsel %vm261, %v506, 0
      %v602 = vsel %vm261, %v507, 0
      %604 = vmatpush.msra.mxu0 0.0
      %605 = vmatpush.msra.mxu0 0.0
      %606 = vmatpush.msra.mxu0 0.0
      %607 = vmatpush.msra.mxu0 0.0
      %608 = vmatpush.msra.mxu0 0.0
      %609 = vmatpush.msra.mxu0 0.0
      %610 = vmatpush.msra.mxu0 0.0
      %611 = vmatpush.msra.mxu0 0.0
      %612 = vmatpush.msra.mxu0 0.0
      %613 = vmatpush.msra.mxu0 0.0
      %614 = vmatpush.msra.mxu0 0.0
      %615 = vmatpush.msra.mxu0 0.0
      %616 = vmatpush.msra.mxu0 %v360
      %617 = vmatpush.msra.mxu0 %v259
      %618 = vmatpush.msra.mxu0 %v258
      %619 = vmatpush.msra.mxu0 %v257
      %620 = vmatmul.f32.gmra.mxu0 %v509
      %v621 = vpop.f32.mrf.mxu0
      %v622 = vadd.f32 0.0, %v621
      %623 = vmatmul.f32.gmra.mxu0 %v512
      %v624 = vpop.f32.mrf.mxu0
      %v625 = vadd.f32 0.0, %v624
      %626 = vmatmul.f32.gmra.mxu0 %v515
      %v627 = vpop.f32.mrf.mxu0
      %v628 = vadd.f32 0.0, %v627
      %629 = vmatmul.f32.gmra.mxu0 %v518
      %v630 = vpop.f32.mrf.mxu0
      %v631 = vadd.f32 0.0, %v630
      %632 = vmatmul.f32.gmra.mxu0 %v521
      %v633 = vpop.f32.mrf.mxu0
      %v634 = vadd.f32 0.0, %v633
      %635 = vmatmul.f32.gmra.mxu0 %v524
      %v636 = vpop.f32.mrf.mxu0
      %v637 = vadd.f32 0.0, %v636
      %638 = vmatmul.f32.gmra.mxu0 %v527
      %v639 = vpop.f32.mrf.mxu0
      %v640 = vadd.f32 0.0, %v639
      %641 = vmatmul.f32.gmra.mxu0 %v530
      %v642 = vpop.f32.mrf.mxu0
      %v643 = vadd.f32 0.0, %v642
      %644 = vmatmul.f32.gmra.mxu0 %v533
      %v645 = vpop.f32.mrf.mxu0
      %v646 = vadd.f32 0.0, %v645
      %647 = vmatmul.f32.gmra.mxu0 %v536
      %v648 = vpop.f32.mrf.mxu0
      %v649 = vadd.f32 0.0, %v648
      %650 = vmatmul.f32.gmra.mxu0 %v539
      %v651 = vpop.f32.mrf.mxu0
      %v652 = vadd.f32 0.0, %v651
      %653 = vmatmul.f32.gmra.mxu0 %v542
      %v654 = vpop.f32.mrf.mxu0
      %v655 = vadd.f32 0.0, %v654
      %656 = vmatmul.f32.gmra.mxu0 %v545
      %v657 = vpop.f32.mrf.mxu0
      %v658 = vadd.f32 0.0, %v657
      %659 = vmatmul.f32.gmra.mxu0 %v548
      %v660 = vpop.f32.mrf.mxu0
      %v661 = vadd.f32 0.0, %v660
      %662 = vmatmul.f32.gmra.mxu0 %v551
      %v663 = vpop.f32.mrf.mxu0
      %v664 = vadd.f32 0.0, %v663
      %665 = vmatmul.f32.gmra.mxu0 %v554
      %v666 = vpop.f32.mrf.mxu0
      %v667 = vadd.f32 0.0, %v666
      %668 = vmatmul.f32.gmra.mxu0 %v557
      %v669 = vpop.f32.mrf.mxu0
      %v670 = vadd.f32 0.0, %v669
      %671 = vmatmul.f32.gmra.mxu0 %v560
      %v672 = vpop.f32.mrf.mxu0
      %v673 = vadd.f32 0.0, %v672
      %674 = vmatmul.f32.gmra.mxu0 %v563
      %v675 = vpop.f32.mrf.mxu0
      %v676 = vadd.f32 0.0, %v675
      %677 = vmatmul.f32.gmra.mxu0 %v566
      %v678 = vpop.f32.mrf.mxu0
      %v679 = vadd.f32 0.0, %v678
      %680 = vmatmul.f32.gmra.mxu0 %v569
      %v681 = vpop.f32.mrf.mxu0
      %v682 = vadd.f32 0.0, %v681
      %683 = vmatmul.f32.gmra.mxu0 %v572
      %v684 = vpop.f32.mrf.mxu0
      %v685 = vadd.f32 0.0, %v684
      %686 = vmatmul.f32.gmra.mxu0 %v575
      %v687 = vpop.f32.mrf.mxu0
      %v688 = vadd.f32 0.0, %v687
      %689 = vmatmul.f32.gmra.mxu0 %v578
      %v690 = vpop.f32.mrf.mxu0
      %v691 = vadd.f32 0.0, %v690
      %692 = vmatmul.f32.gmra.mxu0 %v581
      %v693 = vpop.f32.mrf.mxu0
      %v694 = vadd.f32 0.0, %v693
      %695 = vmatmul.f32.gmra.mxu0 %v584
      %v696 = vpop.f32.mrf.mxu0
      %v697 = vadd.f32 0.0, %v696
      %698 = vmatmul.f32.gmra.mxu0 %v587
      %v699 = vpop.f32.mrf.mxu0
      %v700 = vadd.f32 0.0, %v699
      %701 = vmatmul.f32.gmra.mxu0 %v590
      %v702 = vpop.f32.mrf.mxu0
      %v703 = vadd.f32 0.0, %v702
      %704 = vmatmul.f32.gmra.mxu0 %v593
      %v705 = vpop.f32.mrf.mxu0
      %v706 = vadd.f32 0.0, %v705
      %707 = vmatmul.f32.gmra.mxu0 %v596
      %v708 = vpop.f32.mrf.mxu0
      %v709 = vadd.f32 0.0, %v708
      %710 = vmatmul.f32.gmra.mxu0 %v599
      %v711 = vpop.f32.mrf.mxu0
      %v712 = vadd.f32 0.0, %v711
      %713 = vmatmul.f32.gmra.mxu0 %v602
      %v714 = vpop.f32.mrf.mxu0
      %v715 = vadd.f32 0.0, %v714
      %716 = vdwg.mxu0
      %s717 = scalar_lea.vmem %s219, 512
      %v718 = vld [vmem:[%s717] sm:$0xff]
      %v719 = vld [vmem:[%s717 + $0x8] sm:$0xff]
      %v720 = vld [vmem:[%s717 + $0x10] sm:$0xff]
      %v721 = vld [vmem:[%s717 + $0x18] sm:$0xff]
      %v722 = vld [vmem:[%s717 + $0x20] sm:$0xff]
      %v723 = vld [vmem:[%s717 + $0x28] sm:$0xff]
      %v724 = vld [vmem:[%s717 + $0x30] sm:$0xff]
      %v725 = vld [vmem:[%s717 + $0x38] sm:$0xff]
      %v726 = vld [vmem:[%s717 + $0x40] sm:$0xff]
      %v727 = vld [vmem:[%s717 + $0x48] sm:$0xff]
      %v728 = vld [vmem:[%s717 + $0x50] sm:$0xff]
      %v729 = vld [vmem:[%s717 + $0x58] sm:$0xff]
      %v730 = vld [vmem:[%s717 + $0x60] sm:$0xff]
      %v731 = vld [vmem:[%s717 + $0x68] sm:$0xff]
      %v732 = vld [vmem:[%s717 + $0x70] sm:$0xff]
      %v733 = vld [vmem:[%s717 + $0x78] sm:$0xff]
      %v734 = vld [vmem:[%s717 + $0x80] sm:$0xff]
      %v735 = vld [vmem:[%s717 + $0x88] sm:$0xff]
      %v736 = vld [vmem:[%s717 + $0x90] sm:$0xff]
      %v737 = vld [vmem:[%s717 + $0x98] sm:$0xff]
      %v738 = vld [vmem:[%s717 + $0xa0] sm:$0xff]
      %v739 = vld [vmem:[%s717 + $0xa8] sm:$0xff]
      %v740 = vld [vmem:[%s717 + $0xb0] sm:$0xff]
      %v741 = vld [vmem:[%s717 + $0xb8] sm:$0xff]
      %v742 = vld [vmem:[%s717 + $0xc0] sm:$0xff]
      %v743 = vld [vmem:[%s717 + $0xc8] sm:$0xff]
      %v744 = vld [vmem:[%s717 + $0xd0] sm:$0xff]
      %v745 = vld [vmem:[%s717 + $0xd8] sm:$0xff]
      %v746 = vld [vmem:[%s717 + $0xe0] sm:$0xff]
      %v747 = vld [vmem:[%s717 + $0xe8] sm:$0xff]
      %v748 = vld [vmem:[%s717 + $0xf0] sm:$0xff]
      %v749 = vld [vmem:[%s717 + $0xf8] sm:$0xf]
      %v751 = vsel %vm261, %v718, 0
      %v754 = vsel %vm261, %v719, 0
      %v757 = vsel %vm261, %v720, 0
      %v760 = vsel %vm261, %v721, 0
      %v763 = vsel %vm261, %v722, 0
      %v766 = vsel %vm261, %v723, 0
      %v769 = vsel %vm261, %v724, 0
      %v772 = vsel %vm261, %v725, 0
      %v775 = vsel %vm261, %v726, 0
      %v778 = vsel %vm261, %v727, 0
      %v781 = vsel %vm261, %v728, 0
      %v784 = vsel %vm261, %v729, 0
      %v787 = vsel %vm261, %v730, 0
      %v790 = vsel %vm261, %v731, 0
      %v793 = vsel %vm261, %v732, 0
      %v796 = vsel %vm261, %v733, 0
      %v799 = vsel %vm261, %v734, 0
      %v802 = vsel %vm261, %v735, 0
      %v805 = vsel %vm261, %v736, 0
      %v808 = vsel %vm261, %v737, 0
      %v811 = vsel %vm261, %v738, 0
      %v814 = vsel %vm261, %v739, 0
      %v817 = vsel %vm261, %v740, 0
      %v820 = vsel %vm261, %v741, 0
      %v823 = vsel %vm261, %v742, 0
      %v826 = vsel %vm261, %v743, 0
      %v829 = vsel %vm261, %v744, 0
      %v832 = vsel %vm261, %v745, 0
      %v835 = vsel %vm261, %v746, 0
      %v838 = vsel %vm261, %v747, 0
      %v841 = vsel %vm261, %v748, 0
      %v844 = vsel %vm261, %v749, 0
      %846 = vmatpush.msra.mxu0 0.0
      %847 = vmatpush.msra.mxu0 0.0
      %848 = vmatpush.msra.mxu0 0.0
      %849 = vmatpush.msra.mxu0 0.0
      %850 = vmatpush.msra.mxu0 0.0
      %851 = vmatpush.msra.mxu0 0.0
      %852 = vmatpush.msra.mxu0 0.0
      %853 = vmatpush.msra.mxu0 0.0
      %854 = vmatpush.msra.mxu0 0.0
      %855 = vmatpush.msra.mxu0 0.0
      %856 = vmatpush.msra.mxu0 0.0
      %857 = vmatpush.msra.mxu0 0.0
      %858 = vmatpush.msra.mxu0 %v360
      %859 = vmatpush.msra.mxu0 %v259
      %860 = vmatpush.msra.mxu0 %v258
      %861 = vmatpush.msra.mxu0 %v257
      %862 = vmatmul.f32.gmra.mxu0 %v751
      %v863 = vpop.f32.mrf.mxu0
      %v864 = vadd.f32 0.0, %v863
      %865 = vmatmul.f32.gmra.mxu0 %v754
      %v866 = vpop.f32.mrf.mxu0
      %v867 = vadd.f32 0.0, %v866
      %868 = vmatmul.f32.gmra.mxu0 %v757
      %v869 = vpop.f32.mrf.mxu0
      %v870 = vadd.f32 0.0, %v869
      %871 = vmatmul.f32.gmra.mxu0 %v760
      %v872 = vpop.f32.mrf.mxu0
      %v873 = vadd.f32 0.0, %v872
      %874 = vmatmul.f32.gmra.mxu0 %v763
      %v875 = vpop.f32.mrf.mxu0
      %v876 = vadd.f32 0.0, %v875
      %877 = vmatmul.f32.gmra.mxu0 %v766
      %v878 = vpop.f32.mrf.mxu0
      %v879 = vadd.f32 0.0, %v878
      %880 = vmatmul.f32.gmra.mxu0 %v769
      %v881 = vpop.f32.mrf.mxu0
      %v882 = vadd.f32 0.0, %v881
      %883 = vmatmul.f32.gmra.mxu0 %v772
      %v884 = vpop.f32.mrf.mxu0
      %v885 = vadd.f32 0.0, %v884
      %886 = vmatmul.f32.gmra.mxu0 %v775
      %v887 = vpop.f32.mrf.mxu0
      %v888 = vadd.f32 0.0, %v887
      %889 = vmatmul.f32.gmra.mxu0 %v778
      %v890 = vpop.f32.mrf.mxu0
      %v891 = vadd.f32 0.0, %v890
      %892 = vmatmul.f32.gmra.mxu0 %v781
      %v893 = vpop.f32.mrf.mxu0
      %v894 = vadd.f32 0.0, %v893
      %895 = vmatmul.f32.gmra.mxu0 %v784
      %v896 = vpop.f32.mrf.mxu0
      %v897 = vadd.f32 0.0, %v896
      %898 = vmatmul.f32.gmra.mxu0 %v787
      %v899 = vpop.f32.mrf.mxu0
      %v900 = vadd.f32 0.0, %v899
      %901 = vmatmul.f32.gmra.mxu0 %v790
      %v902 = vpop.f32.mrf.mxu0
      %v903 = vadd.f32 0.0, %v902
      %904 = vmatmul.f32.gmra.mxu0 %v793
      %v905 = vpop.f32.mrf.mxu0
      %v906 = vadd.f32 0.0, %v905
      %907 = vmatmul.f32.gmra.mxu0 %v796
      %v908 = vpop.f32.mrf.mxu0
      %v909 = vadd.f32 0.0, %v908
      %910 = vmatmul.f32.gmra.mxu0 %v799
      %v911 = vpop.f32.mrf.mxu0
      %v912 = vadd.f32 0.0, %v911
      %913 = vmatmul.f32.gmra.mxu0 %v802
      %v914 = vpop.f32.mrf.mxu0
      %v915 = vadd.f32 0.0, %v914
      %916 = vmatmul.f32.gmra.mxu0 %v805
      %v917 = vpop.f32.mrf.mxu0
      %v918 = vadd.f32 0.0, %v917
      %919 = vmatmul.f32.gmra.mxu0 %v808
      %v920 = vpop.f32.mrf.mxu0
      %v921 = vadd.f32 0.0, %v920
      %922 = vmatmul.f32.gmra.mxu0 %v811
      %v923 = vpop.f32.mrf.mxu0
      %v924 = vadd.f32 0.0, %v923
      %925 = vmatmul.f32.gmra.mxu0 %v814
      %v926 = vpop.f32.mrf.mxu0
      %v927 = vadd.f32 0.0, %v926
      %928 = vmatmul.f32.gmra.mxu0 %v817
      %v929 = vpop.f32.mrf.mxu0
      %v930 = vadd.f32 0.0, %v929
      %931 = vmatmul.f32.gmra.mxu0 %v820
      %v932 = vpop.f32.mrf.mxu0
      %v933 = vadd.f32 0.0, %v932
      %934 = vmatmul.f32.gmra.mxu0 %v823
      %v935 = vpop.f32.mrf.mxu0
      %v936 = vadd.f32 0.0, %v935
      %937 = vmatmul.f32.gmra.mxu0 %v826
      %v938 = vpop.f32.mrf.mxu0
      %v939 = vadd.f32 0.0, %v938
      %940 = vmatmul.f32.gmra.mxu0 %v829
      %v941 = vpop.f32.mrf.mxu0
      %v942 = vadd.f32 0.0, %v941
      %943 = vmatmul.f32.gmra.mxu0 %v832
      %v944 = vpop.f32.mrf.mxu0
      %v945 = vadd.f32 0.0, %v944
      %946 = vmatmul.f32.gmra.mxu0 %v835
      %v947 = vpop.f32.mrf.mxu0
      %v948 = vadd.f32 0.0, %v947
      %949 = vmatmul.f32.gmra.mxu0 %v838
      %v950 = vpop.f32.mrf.mxu0
      %v951 = vadd.f32 0.0, %v950
      %952 = vmatmul.f32.gmra.mxu0 %v841
      %v953 = vpop.f32.mrf.mxu0
      %v954 = vadd.f32 0.0, %v953
      %955 = vmatmul.f32.gmra.mxu0 %v844
      %v956 = vpop.f32.mrf.mxu0
      %v957 = vadd.f32 0.0, %v956
      %958 = vdwg.mxu0
      %s959 = scalar_lea.vmem %s219, 768
      %v960 = vld [vmem:[%s959] sm:$0xff]
      %v961 = vld [vmem:[%s959 + $0x8] sm:$0xff]
      %v962 = vld [vmem:[%s959 + $0x10] sm:$0xff]
      %v963 = vld [vmem:[%s959 + $0x18] sm:$0xff]
      %v964 = vld [vmem:[%s959 + $0x20] sm:$0xff]
      %v965 = vld [vmem:[%s959 + $0x28] sm:$0xff]
      %v966 = vld [vmem:[%s959 + $0x30] sm:$0xff]
      %v967 = vld [vmem:[%s959 + $0x38] sm:$0xff]
      %v968 = vld [vmem:[%s959 + $0x40] sm:$0xff]
      %v969 = vld [vmem:[%s959 + $0x48] sm:$0xff]
      %v970 = vld [vmem:[%s959 + $0x50] sm:$0xff]
      %v971 = vld [vmem:[%s959 + $0x58] sm:$0xff]
      %v972 = vld [vmem:[%s959 + $0x60] sm:$0xff]
      %v973 = vld [vmem:[%s959 + $0x68] sm:$0xff]
      %v974 = vld [vmem:[%s959 + $0x70] sm:$0xff]
      %v975 = vld [vmem:[%s959 + $0x78] sm:$0xff]
      %v976 = vld [vmem:[%s959 + $0x80] sm:$0xff]
      %v977 = vld [vmem:[%s959 + $0x88] sm:$0xff]
      %v978 = vld [vmem:[%s959 + $0x90] sm:$0xff]
      %v979 = vld [vmem:[%s959 + $0x98] sm:$0xff]
      %v980 = vld [vmem:[%s959 + $0xa0] sm:$0xff]
      %v981 = vld [vmem:[%s959 + $0xa8] sm:$0xff]
      %v982 = vld [vmem:[%s959 + $0xb0] sm:$0xff]
      %v983 = vld [vmem:[%s959 + $0xb8] sm:$0xff]
      %v984 = vld [vmem:[%s959 + $0xc0] sm:$0xff]
      %v985 = vld [vmem:[%s959 + $0xc8] sm:$0xff]
      %v986 = vld [vmem:[%s959 + $0xd0] sm:$0xff]
      %v987 = vld [vmem:[%s959 + $0xd8] sm:$0xff]
      %v988 = vld [vmem:[%s959 + $0xe0] sm:$0xff]
      %v989 = vld [vmem:[%s959 + $0xe8] sm:$0xff]
      %v990 = vld [vmem:[%s959 + $0xf0] sm:$0xff]
      %v991 = vld [vmem:[%s959 + $0xf8] sm:$0xf]
      %v993 = vsel %vm261, %v960, 0
      %v996 = vsel %vm261, %v961, 0
      %v999 = vsel %vm261, %v962, 0
      %v1002 = vsel %vm261, %v963, 0
      %v1005 = vsel %vm261, %v964, 0
      %v1008 = vsel %vm261, %v965, 0
      %v1011 = vsel %vm261, %v966, 0
      %v1014 = vsel %vm261, %v967, 0
      %v1017 = vsel %vm261, %v968, 0
      %v1020 = vsel %vm261, %v969, 0
      %v1023 = vsel %vm261, %v970, 0
      %v1026 = vsel %vm261, %v971, 0
      %v1029 = vsel %vm261, %v972, 0
      %v1032 = vsel %vm261, %v973, 0
      %v1035 = vsel %vm261, %v974, 0
      %v1038 = vsel %vm261, %v975, 0
      %v1041 = vsel %vm261, %v976, 0
      %v1044 = vsel %vm261, %v977, 0
      %v1047 = vsel %vm261, %v978, 0
      %v1050 = vsel %vm261, %v979, 0
      %v1053 = vsel %vm261, %v980, 0
      %v1056 = vsel %vm261, %v981, 0
      %v1059 = vsel %vm261, %v982, 0
      %v1062 = vsel %vm261, %v983, 0
      %v1065 = vsel %vm261, %v984, 0
      %v1068 = vsel %vm261, %v985, 0
      %v1071 = vsel %vm261, %v986, 0
      %v1074 = vsel %vm261, %v987, 0
      %v1077 = vsel %vm261, %v988, 0
      %v1080 = vsel %vm261, %v989, 0
      %v1083 = vsel %vm261, %v990, 0
      %v1086 = vsel %vm261, %v991, 0
      %1088 = vmatpush.msra.mxu0 0.0
      %1089 = vmatpush.msra.mxu0 0.0
      %1090 = vmatpush.msra.mxu0 0.0
      %1091 = vmatpush.msra.mxu0 0.0
      %1092 = vmatpush.msra.mxu0 0.0
      %1093 = vmatpush.msra.mxu0 0.0
      %1094 = vmatpush.msra.mxu0 0.0
      %1095 = vmatpush.msra.mxu0 0.0
      %1096 = vmatpush.msra.mxu0 0.0
      %1097 = vmatpush.msra.mxu0 0.0
      %1098 = vmatpush.msra.mxu0 0.0
      %1099 = vmatpush.msra.mxu0 0.0
      %1100 = vmatpush.msra.mxu0 %v360
      %1101 = vmatpush.msra.mxu0 %v259
      %1102 = vmatpush.msra.mxu0 %v258
      %1103 = vmatpush.msra.mxu0 %v257
      %1104 = vmatmul.f32.gmra.mxu0 %v993
      %v1105 = vpop.f32.mrf.mxu0
      %v1106 = vadd.f32 0.0, %v1105
      %1107 = vmatmul.f32.gmra.mxu0 %v996
      %v1108 = vpop.f32.mrf.mxu0
      %v1109 = vadd.f32 0.0, %v1108
      %1110 = vmatmul.f32.gmra.mxu0 %v999
      %v1111 = vpop.f32.mrf.mxu0
      %v1112 = vadd.f32 0.0, %v1111
      %1113 = vmatmul.f32.gmra.mxu0 %v1002
      %v1114 = vpop.f32.mrf.mxu0
      %v1115 = vadd.f32 0.0, %v1114
      %1116 = vmatmul.f32.gmra.mxu0 %v1005
      %v1117 = vpop.f32.mrf.mxu0
      %v1118 = vadd.f32 0.0, %v1117
      %1119 = vmatmul.f32.gmra.mxu0 %v1008
      %v1120 = vpop.f32.mrf.mxu0
      %v1121 = vadd.f32 0.0, %v1120
      %1122 = vmatmul.f32.gmra.mxu0 %v1011
      %v1123 = vpop.f32.mrf.mxu0
      %v1124 = vadd.f32 0.0, %v1123
      %1125 = vmatmul.f32.gmra.mxu0 %v1014
      %v1126 = vpop.f32.mrf.mxu0
      %v1127 = vadd.f32 0.0, %v1126
      %1128 = vmatmul.f32.gmra.mxu0 %v1017
      %v1129 = vpop.f32.mrf.mxu0
      %v1130 = vadd.f32 0.0, %v1129
      %1131 = vmatmul.f32.gmra.mxu0 %v1020
      %v1132 = vpop.f32.mrf.mxu0
      %v1133 = vadd.f32 0.0, %v1132
      %1134 = vmatmul.f32.gmra.mxu0 %v1023
      %v1135 = vpop.f32.mrf.mxu0
      %v1136 = vadd.f32 0.0, %v1135
      %1137 = vmatmul.f32.gmra.mxu0 %v1026
      %v1138 = vpop.f32.mrf.mxu0
      %v1139 = vadd.f32 0.0, %v1138
      %1140 = vmatmul.f32.gmra.mxu0 %v1029
      %v1141 = vpop.f32.mrf.mxu0
      %v1142 = vadd.f32 0.0, %v1141
      %1143 = vmatmul.f32.gmra.mxu0 %v1032
      %v1144 = vpop.f32.mrf.mxu0
      %v1145 = vadd.f32 0.0, %v1144
      %1146 = vmatmul.f32.gmra.mxu0 %v1035
      %v1147 = vpop.f32.mrf.mxu0
      %v1148 = vadd.f32 0.0, %v1147
      %1149 = vmatmul.f32.gmra.mxu0 %v1038
      %v1150 = vpop.f32.mrf.mxu0
      %v1151 = vadd.f32 0.0, %v1150
      %1152 = vmatmul.f32.gmra.mxu0 %v1041
      %v1153 = vpop.f32.mrf.mxu0
      %v1154 = vadd.f32 0.0, %v1153
      %1155 = vmatmul.f32.gmra.mxu0 %v1044
      %v1156 = vpop.f32.mrf.mxu0
      %v1157 = vadd.f32 0.0, %v1156
      %1158 = vmatmul.f32.gmra.mxu0 %v1047
      %v1159 = vpop.f32.mrf.mxu0
      %v1160 = vadd.f32 0.0, %v1159
      %1161 = vmatmul.f32.gmra.mxu0 %v1050
      %v1162 = vpop.f32.mrf.mxu0
      %v1163 = vadd.f32 0.0, %v1162
      %1164 = vmatmul.f32.gmra.mxu0 %v1053
      %v1165 = vpop.f32.mrf.mxu0
      %v1166 = vadd.f32 0.0, %v1165
      %1167 = vmatmul.f32.gmra.mxu0 %v1056
      %v1168 = vpop.f32.mrf.mxu0
      %v1169 = vadd.f32 0.0, %v1168
      %1170 = vmatmul.f32.gmra.mxu0 %v1059
      %v1171 = vpop.f32.mrf.mxu0
      %v1172 = vadd.f32 0.0, %v1171
      %1173 = vmatmul.f32.gmra.mxu0 %v1062
      %v1174 = vpop.f32.mrf.mxu0
      %v1175 = vadd.f32 0.0, %v1174
      %1176 = vmatmul.f32.gmra.mxu0 %v1065
      %v1177 = vpop.f32.mrf.mxu0
      %v1178 = vadd.f32 0.0, %v1177
      %1179 = vmatmul.f32.gmra.mxu0 %v1068
      %v1180 = vpop.f32.mrf.mxu0
      %v1181 = vadd.f32 0.0, %v1180
      %1182 = vmatmul.f32.gmra.mxu0 %v1071
      %v1183 = vpop.f32.mrf.mxu0
      %v1184 = vadd.f32 0.0, %v1183
      %1185 = vmatmul.f32.gmra.mxu0 %v1074
      %v1186 = vpop.f32.mrf.mxu0
      %v1187 = vadd.f32 0.0, %v1186
      %1188 = vmatmul.f32.gmra.mxu0 %v1077
      %v1189 = vpop.f32.mrf.mxu0
      %v1190 = vadd.f32 0.0, %v1189
      %1191 = vmatmul.f32.gmra.mxu0 %v1080
      %v1192 = vpop.f32.mrf.mxu0
      %v1193 = vadd.f32 0.0, %v1192
      %1194 = vmatmul.f32.gmra.mxu0 %v1083
      %v1195 = vpop.f32.mrf.mxu0
      %v1196 = vadd.f32 0.0, %v1195
      %1197 = vmatmul.f32.gmra.mxu0 %v1086
      %v1198 = vpop.f32.mrf.mxu0
      %v1199 = vadd.f32 0.0, %v1198
      %1200 = vdwg.mxu0
      %v1201 = vmax.f32 %v380, %v622
      %v1202 = vmax.f32 %v383, %v625
      %v1203 = vmax.f32 %v386, %v628
      %v1204 = vmax.f32 %v389, %v631
      %v1205 = vmax.f32 %v392, %v634
      %v1206 = vmax.f32 %v395, %v637
      %v1207 = vmax.f32 %v398, %v640
      %v1208 = vmax.f32 %v401, %v643
      %v1209 = vmax.f32 %v404, %v646
      %v1210 = vmax.f32 %v407, %v649
      %v1211 = vmax.f32 %v410, %v652
      %v1212 = vmax.f32 %v413, %v655
      %v1213 = vmax.f32 %v416, %v658
      %v1214 = vmax.f32 %v419, %v661
      %v1215 = vmax.f32 %v422, %v664
      %v1216 = vmax.f32 %v425, %v667
      %v1217 = vmax.f32 %v428, %v670
      %v1218 = vmax.f32 %v431, %v673
      %v1219 = vmax.f32 %v434, %v676
      %v1220 = vmax.f32 %v437, %v679
      %v1221 = vmax.f32 %v440, %v682
      %v1222 = vmax.f32 %v443, %v685
      %v1223 = vmax.f32 %v446, %v688
      %v1224 = vmax.f32 %v449, %v691
      %v1225 = vmax.f32 %v452, %v694
      %v1226 = vmax.f32 %v455, %v697
      %v1227 = vmax.f32 %v458, %v700
      %v1228 = vmax.f32 %v461, %v703
      %v1229 = vmax.f32 %v464, %v706
      %v1230 = vmax.f32 %v467, %v709
      %v1231 = vmax.f32 %v470, %v712
      %v1232 = vmax.f32 %v473, %v715
      %v1233 = vmax.f32 %v864, %v1106
      %v1234 = vmax.f32 %v867, %v1109
      %v1235 = vmax.f32 %v870, %v1112
      %v1236 = vmax.f32 %v873, %v1115
      %v1237 = vmax.f32 %v876, %v1118
      %v1238 = vmax.f32 %v879, %v1121
      %v1239 = vmax.f32 %v882, %v1124
      %v1240 = vmax.f32 %v885, %v1127
      %v1241 = vmax.f32 %v888, %v1130
      %v1242 = vmax.f32 %v891, %v1133
      %v1243 = vmax.f32 %v894, %v1136
      %v1244 = vmax.f32 %v897, %v1139
      %v1245 = vmax.f32 %v900, %v1142
      %v1246 = vmax.f32 %v903, %v1145
      %v1247 = vmax.f32 %v906, %v1148
      %v1248 = vmax.f32 %v909, %v1151
      %v1249 = vmax.f32 %v912, %v1154
      %v1250 = vmax.f32 %v915, %v1157
      %v1251 = vmax.f32 %v918, %v1160
      %v1252 = vmax.f32 %v921, %v1163
      %v1253 = vmax.f32 %v924, %v1166
      %v1254 = vmax.f32 %v927, %v1169
      %v1255 = vmax.f32 %v930, %v1172
      %v1256 = vmax.f32 %v933, %v1175
      %v1257 = vmax.f32 %v936, %v1178
      %v1258 = vmax.f32 %v939, %v1181
      %v1259 = vmax.f32 %v942, %v1184
      %v1260 = vmax.f32 %v945, %v1187
      %v1261 = vmax.f32 %v948, %v1190
      %v1262 = vmax.f32 %v951, %v1193
      %v1263 = vmax.f32 %v954, %v1196
      %v1264 = vmax.f32 %v957, %v1199
      %v1265 = vmax.f32 %v1201, %v1233
      %v1266 = vmax.f32 %v1202, %v1234
      %v1267 = vmax.f32 %v1203, %v1235
      %v1268 = vmax.f32 %v1204, %v1236
      %v1269 = vmax.f32 %v1205, %v1237
      %v1270 = vmax.f32 %v1206, %v1238
      %v1271 = vmax.f32 %v1207, %v1239
      %v1272 = vmax.f32 %v1208, %v1240
      %v1273 = vmax.f32 %v1209, %v1241
      %v1274 = vmax.f32 %v1210, %v1242
      %v1275 = vmax.f32 %v1211, %v1243
      %v1276 = vmax.f32 %v1212, %v1244
      %v1277 = vmax.f32 %v1213, %v1245
      %v1278 = vmax.f32 %v1214, %v1246
      %v1279 = vmax.f32 %v1215, %v1247
      %v1280 = vmax.f32 %v1216, %v1248
      %v1281 = vmax.f32 %v1217, %v1249
      %v1282 = vmax.f32 %v1218, %v1250
      %v1283 = vmax.f32 %v1219, %v1251
      %v1284 = vmax.f32 %v1220, %v1252
      %v1285 = vmax.f32 %v1221, %v1253
      %v1286 = vmax.f32 %v1222, %v1254
      %v1287 = vmax.f32 %v1223, %v1255
      %v1288 = vmax.f32 %v1224, %v1256
      %v1289 = vmax.f32 %v1225, %v1257
      %v1290 = vmax.f32 %v1226, %v1258
      %v1291 = vmax.f32 %v1227, %v1259
      %v1292 = vmax.f32 %v1228, %v1260
      %v1293 = vmax.f32 %v1229, %v1261
      %v1294 = vmax.f32 %v1230, %v1262
      %v1295 = vmax.f32 %v1231, %v1263
      %v1296 = vmax.f32 %v1232, %v1264
      %v1297 = vld [vmem:[%s2] sm:$0x1]
      %v1299 = vperm.slane %v1297, 0
      %v1301 = vadd.f32 %v1265, %v1299
      %v1302 = vadd.f32 %v1266, %v1299
      %v1303 = vadd.f32 %v1267, %v1299
      %v1304 = vadd.f32 %v1268, %v1299
      %v1305 = vadd.f32 %v1269, %v1299
      %v1306 = vadd.f32 %v1270, %v1299
      %v1307 = vadd.f32 %v1271, %v1299
      %v1308 = vadd.f32 %v1272, %v1299
      %v1309 = vadd.f32 %v1273, %v1299
      %v1310 = vadd.f32 %v1274, %v1299
      %v1311 = vadd.f32 %v1275, %v1299
      %v1312 = vadd.f32 %v1276, %v1299
      %v1313 = vadd.f32 %v1277, %v1299
      %v1314 = vadd.f32 %v1278, %v1299
      %v1315 = vadd.f32 %v1279, %v1299
      %v1316 = vadd.f32 %v1280, %v1299
      %v1317 = vadd.f32 %v1281, %v1299
      %v1318 = vadd.f32 %v1282, %v1299
      %v1319 = vadd.f32 %v1283, %v1299
      %v1320 = vadd.f32 %v1284, %v1299
      %v1321 = vadd.f32 %v1285, %v1299
      %v1322 = vadd.f32 %v1286, %v1299
      %v1323 = vadd.f32 %v1287, %v1299
      %v1324 = vadd.f32 %v1288, %v1299
      %v1325 = vadd.f32 %v1289, %v1299
      %v1326 = vadd.f32 %v1290, %v1299
      %v1327 = vadd.f32 %v1291, %v1299
      %v1328 = vadd.f32 %v1292, %v1299
      %v1329 = vadd.f32 %v1293, %v1299
      %v1330 = vadd.f32 %v1294, %v1299
      %v1331 = vadd.f32 %v1295, %v1299
      %v1332 = vadd.f32 %v1296, %v1299
      %v1333 = vmax.f32 %v1301, 0.0
      %v1334 = vmax.f32 %v1302, 0.0
      %v1335 = vmax.f32 %v1303, 0.0
      %v1336 = vmax.f32 %v1304, 0.0
      %v1337 = vmax.f32 %v1305, 0.0
      %v1338 = vmax.f32 %v1306, 0.0
      %v1339 = vmax.f32 %v1307, 0.0
      %v1340 = vmax.f32 %v1308, 0.0
      %v1341 = vmax.f32 %v1309, 0.0
      %v1342 = vmax.f32 %v1310, 0.0
      %v1343 = vmax.f32 %v1311, 0.0
      %v1344 = vmax.f32 %v1312, 0.0
      %v1345 = vmax.f32 %v1313, 0.0
      %v1346 = vmax.f32 %v1314, 0.0
      %v1347 = vmax.f32 %v1315, 0.0
      %v1348 = vmax.f32 %v1316, 0.0
      %v1349 = vmax.f32 %v1317, 0.0
      %v1350 = vmax.f32 %v1318, 0.0
      %v1351 = vmax.f32 %v1319, 0.0
      %v1352 = vmax.f32 %v1320, 0.0
      %v1353 = vmax.f32 %v1321, 0.0
      %v1354 = vmax.f32 %v1322, 0.0
      %v1355 = vmax.f32 %v1323, 0.0
      %v1356 = vmax.f32 %v1324, 0.0
      %v1357 = vmax.f32 %v1325, 0.0
      %v1358 = vmax.f32 %v1326, 0.0
      %v1359 = vmax.f32 %v1327, 0.0
      %v1360 = vmax.f32 %v1328, 0.0
      %v1361 = vmax.f32 %v1329, 0.0
      %v1362 = vmax.f32 %v1330, 0.0
      %v1363 = vmax.f32 %v1331, 0.0
      %v1364 = vmax.f32 %v1332, 0.0
      %vm1365 = vcmask 523264
      %1366 = vst.msk [vmem:[#allocation2] sm:$0xff] %vm1365, %v1333
      %1367 = vst.msk [vmem:[#allocation2 + $0x8] sm:$0xff] %vm1365, %v1334
      %1368 = vst.msk [vmem:[#allocation2 + $0x10] sm:$0xff] %vm1365, %v1335
      %1369 = vst.msk [vmem:[#allocation2 + $0x18] sm:$0xff] %vm1365, %v1336
      %1370 = vst.msk [vmem:[#allocation2 + $0x20] sm:$0xff] %vm1365, %v1337
      %1371 = vst.msk [vmem:[#allocation2 + $0x28] sm:$0xff] %vm1365, %v1338
      %1372 = vst.msk [vmem:[#allocation2 + $0x30] sm:$0xff] %vm1365, %v1339
      %1373 = vst.msk [vmem:[#allocation2 + $0x38] sm:$0xff] %vm1365, %v1340
      %1374 = vst.msk [vmem:[#allocation2 + $0x40] sm:$0xff] %vm1365, %v1341
      %1375 = vst.msk [vmem:[#allocation2 + $0x48] sm:$0xff] %vm1365, %v1342
      %1376 = vst.msk [vmem:[#allocation2 + $0x50] sm:$0xff] %vm1365, %v1343
      %1377 = vst.msk [vmem:[#allocation2 + $0x58] sm:$0xff] %vm1365, %v1344
      %1378 = vst.msk [vmem:[#allocation2 + $0x60] sm:$0xff] %vm1365, %v1345
      %1379 = vst.msk [vmem:[#allocation2 + $0x68] sm:$0xff] %vm1365, %v1346
      %1380 = vst.msk [vmem:[#allocation2 + $0x70] sm:$0xff] %vm1365, %v1347
      %1381 = vst.msk [vmem:[#allocation2 + $0x78] sm:$0xff] %vm1365, %v1348
      %1382 = vst.msk [vmem:[#allocation2 + $0x80] sm:$0xff] %vm1365, %v1349
      %1383 = vst.msk [vmem:[#allocation2 + $0x88] sm:$0xff] %vm1365, %v1350
      %1384 = vst.msk [vmem:[#allocation2 + $0x90] sm:$0xff] %vm1365, %v1351
      %1385 = vst.msk [vmem:[#allocation2 + $0x98] sm:$0xff] %vm1365, %v1352
      %1386 = vst.msk [vmem:[#allocation2 + $0xa0] sm:$0xff] %vm1365, %v1353
      %1387 = vst.msk [vmem:[#allocation2 + $0xa8] sm:$0xff] %vm1365, %v1354
      %1388 = vst.msk [vmem:[#allocation2 + $0xb0] sm:$0xff] %vm1365, %v1355
      %1389 = vst.msk [vmem:[#allocation2 + $0xb8] sm:$0xff] %vm1365, %v1356
      %1390 = vst.msk [vmem:[#allocation2 + $0xc0] sm:$0xff] %vm1365, %v1357
      %1391 = vst.msk [vmem:[#allocation2 + $0xc8] sm:$0xff] %vm1365, %v1358
      %1392 = vst.msk [vmem:[#allocation2 + $0xd0] sm:$0xff] %vm1365, %v1359
      %1393 = vst.msk [vmem:[#allocation2 + $0xd8] sm:$0xff] %vm1365, %v1360
      %1394 = vst.msk [vmem:[#allocation2 + $0xe0] sm:$0xff] %vm1365, %v1361
      %1395 = vst.msk [vmem:[#allocation2 + $0xe8] sm:$0xff] %vm1365, %v1362
      %1396 = vst.msk [vmem:[#allocation2 + $0xf0] sm:$0xff] %vm1365, %v1363
      %vm1397 = vcmask 519168
      %1398 = vst.msk [vmem:[#allocation2 + $0xf8] sm:$0xf] %vm1397, %v1364
      %1399 = vst.msk [vmem:[#allocation2 + $0xfc] sm:$0xf] %vm1397, 0.0
      %v1400 = vld [vmem:[#allocation2] sm:$0xff]
      %v1401 = vld [vmem:[#allocation2 + $0x8] sm:$0xff]
      %v1402 = vld [vmem:[#allocation2 + $0x10] sm:$0xff]
      %v1403 = vld [vmem:[#allocation2 + $0x18] sm:$0xff]
      %v1404 = vld [vmem:[#allocation2 + $0x20] sm:$0xff]
      %v1405 = vld [vmem:[#allocation2 + $0x28] sm:$0xff]
      %v1406 = vld [vmem:[#allocation2 + $0x30] sm:$0xff]
      %v1407 = vld [vmem:[#allocation2 + $0x38] sm:$0xff]
      %v1408 = vld [vmem:[#allocation2 + $0x40] sm:$0xff]
      %v1409 = vld [vmem:[#allocation2 + $0x48] sm:$0xff]
      %v1410 = vld [vmem:[#allocation2 + $0x50] sm:$0xff]
      %v1411 = vld [vmem:[#allocation2 + $0x58] sm:$0xff]
      %v1412 = vld [vmem:[#allocation2 + $0x60] sm:$0xff]
      %v1413 = vld [vmem:[#allocation2 + $0x68] sm:$0xff]
      %v1414 = vld [vmem:[#allocation2 + $0x70] sm:$0xff]
      %v1415 = vld [vmem:[#allocation2 + $0x78] sm:$0xff]
      %v1416 = vld [vmem:[#allocation2 + $0x80] sm:$0xff]
      %v1417 = vld [vmem:[#allocation2 + $0x88] sm:$0xff]
      %v1418 = vld [vmem:[#allocation2 + $0x90] sm:$0xff]
      %v1419 = vld [vmem:[#allocation2 + $0x98] sm:$0xff]
      %v1420 = vld [vmem:[#allocation2 + $0xa0] sm:$0xff]
      %v1421 = vld [vmem:[#allocation2 + $0xa8] sm:$0xff]
      %v1422 = vld [vmem:[#allocation2 + $0xb0] sm:$0xff]
      %v1423 = vld [vmem:[#allocation2 + $0xb8] sm:$0xff]
      %v1424 = vld [vmem:[#allocation2 + $0xc0] sm:$0xf]
      %v1425 = vld [vmem:[%s3] sm:$0xff]
      %v1426 = vld [vmem:[%s3 + $0x8] sm:$0xff]
      %v1427 = vld [vmem:[%s3 + $0x10] sm:$0xff]
      %v1428 = vld [vmem:[%s3 + $0x18] sm:$0xff]
      %v1429 = vld [vmem:[%s3 + $0x20] sm:$0xff]
      %v1430 = vld [vmem:[%s3 + $0x28] sm:$0xff]
      %v1431 = vld [vmem:[%s3 + $0x30] sm:$0xff]
      %v1432 = vld [vmem:[%s3 + $0x38] sm:$0xff]
      %v1433 = vld [vmem:[#allocation2 + $0x1] sm:$0xff]
      %v1434 = vld [vmem:[#allocation2 + $0x9] sm:$0xff]
      %v1435 = vld [vmem:[#allocation2 + $0x11] sm:$0xff]
      %v1436 = vld [vmem:[#allocation2 + $0x19] sm:$0xff]
      %v1437 = vld [vmem:[#allocation2 + $0x21] sm:$0xff]
      %v1438 = vld [vmem:[#allocation2 + $0x29] sm:$0xff]
      %v1439 = vld [vmem:[#allocation2 + $0x31] sm:$0xff]
      %v1440 = vld [vmem:[#allocation2 + $0x39] sm:$0xff]
      %v1441 = vld [vmem:[#allocation2 + $0x41] sm:$0xff]
      %v1442 = vld [vmem:[#allocation2 + $0x49] sm:$0xff]
      %v1443 = vld [vmem:[#allocation2 + $0x51] sm:$0xff]
      %v1444 = vld [vmem:[#allocation2 + $0x59] sm:$0xff]
      %v1445 = vld [vmem:[#allocation2 + $0x61] sm:$0xff]
      %v1446 = vld [vmem:[#allocation2 + $0x69] sm:$0xff]
      %v1447 = vld [vmem:[#allocation2 + $0x71] sm:$0xff]
      %v1448 = vld [vmem:[#allocation2 + $0x79] sm:$0xff]
      %v1449 = vld [vmem:[#allocation2 + $0x81] sm:$0xff]
      %v1450 = vld [vmem:[#allocation2 + $0x89] sm:$0xff]
      %v1451 = vld [vmem:[#allocation2 + $0x91] sm:$0xff]
      %v1452 = vld [vmem:[#allocation2 + $0x99] sm:$0xff]
      %v1453 = vld [vmem:[#allocation2 + $0xa1] sm:$0xff]
      %v1454 = vld [vmem:[#allocation2 + $0xa9] sm:$0xff]
      %v1455 = vld [vmem:[#allocation2 + $0xb1] sm:$0xff]
      %v1456 = vld [vmem:[#allocation2 + $0xb9] sm:$0xff]
      %v1457 = vld [vmem:[#allocation2 + $0xc1] sm:$0xf]
      %s1458 = scalar_lea.vmem %s3, 64
      %v1459 = vld [vmem:[%s1458] sm:$0xff]
      %v1460 = vld [vmem:[%s1458 + $0x8] sm:$0xff]
      %v1461 = vld [vmem:[%s1458 + $0x10] sm:$0xff]
      %v1462 = vld [vmem:[%s1458 + $0x18] sm:$0xff]
      %v1463 = vld [vmem:[%s1458 + $0x20] sm:$0xff]
      %v1464 = vld [vmem:[%s1458 + $0x28] sm:$0xff]
      %v1465 = vld [vmem:[%s1458 + $0x30] sm:$0xff]
      %v1466 = vld [vmem:[%s1458 + $0x38] sm:$0xff]
      %v1468 = vsel %vm1365, %v1433, 0
      %v1471 = vsel %vm1365, %v1434, 0
      %v1474 = vsel %vm1365, %v1435, 0
      %v1477 = vsel %vm1365, %v1436, 0
      %v1480 = vsel %vm1365, %v1437, 0
      %v1483 = vsel %vm1365, %v1438, 0
      %v1486 = vsel %vm1365, %v1439, 0
      %v1489 = vsel %vm1365, %v1440, 0
      %v1492 = vsel %vm1365, %v1441, 0
      %v1495 = vsel %vm1365, %v1442, 0
      %v1498 = vsel %vm1365, %v1443, 0
      %v1501 = vsel %vm1365, %v1444, 0
      %v1504 = vsel %vm1365, %v1445, 0
      %v1507 = vsel %vm1365, %v1446, 0
      %v1510 = vsel %vm1365, %v1447, 0
      %v1513 = vsel %vm1365, %v1448, 0
      %v1516 = vsel %vm1365, %v1449, 0
      %v1519 = vsel %vm1365, %v1450, 0
      %v1522 = vsel %vm1365, %v1451, 0
      %v1525 = vsel %vm1365, %v1452, 0
      %v1528 = vsel %vm1365, %v1453, 0
      %v1531 = vsel %vm1365, %v1454, 0
      %v1534 = vsel %vm1365, %v1455, 0
      %v1537 = vsel %vm1365, %v1456, 0
      %v1540 = vsel %vm1365, %v1457, 0
      %1542 = vmatpush.msra.mxu0 0.0
      %1543 = vmatpush.msra.mxu0 0.0
      %1544 = vmatpush.msra.mxu0 0.0
      %1545 = vmatpush.msra.mxu0 0.0
      %1546 = vmatpush.msra.mxu0 0.0
      %1547 = vmatpush.msra.mxu0 0.0
      %1548 = vmatpush.msra.mxu0 0.0
      %1549 = vmatpush.msra.mxu0 0.0
      %1550 = vmatpush.msra.mxu0 %v1466
      %1551 = vmatpush.msra.mxu0 %v1465
      %1552 = vmatpush.msra.mxu0 %v1464
      %1553 = vmatpush.msra.mxu0 %v1463
      %1554 = vmatpush.msra.mxu0 %v1462
      %1555 = vmatpush.msra.mxu0 %v1461
      %1556 = vmatpush.msra.mxu0 %v1460
      %1557 = vmatpush.msra.mxu0 %v1459
      %1558 = vmatmul.f32.gmra.mxu0 %v1468
      %v1559 = vpop.f32.mrf.mxu0
      %v1560 = vadd.f32 0.0, %v1559
      %1561 = vmatmul.f32.gmra.mxu0 %v1471
      %v1562 = vpop.f32.mrf.mxu0
      %v1563 = vadd.f32 0.0, %v1562
      %1564 = vmatmul.f32.gmra.mxu0 %v1474
      %v1565 = vpop.f32.mrf.mxu0
      %v1566 = vadd.f32 0.0, %v1565
      %1567 = vmatmul.f32.gmra.mxu0 %v1477
      %v1568 = vpop.f32.mrf.mxu0
      %v1569 = vadd.f32 0.0, %v1568
      %1570 = vmatmul.f32.gmra.mxu0 %v1480
      %v1571 = vpop.f32.mrf.mxu0
      %v1572 = vadd.f32 0.0, %v1571
      %1573 = vmatmul.f32.gmra.mxu0 %v1483
      %v1574 = vpop.f32.mrf.mxu0
      %v1575 = vadd.f32 0.0, %v1574
      %1576 = vmatmul.f32.gmra.mxu0 %v1486
      %v1577 = vpop.f32.mrf.mxu0
      %v1578 = vadd.f32 0.0, %v1577
      %1579 = vmatmul.f32.gmra.mxu0 %v1489
      %v1580 = vpop.f32.mrf.mxu0
      %v1581 = vadd.f32 0.0, %v1580
      %1582 = vmatmul.f32.gmra.mxu0 %v1492
      %v1583 = vpop.f32.mrf.mxu0
      %v1584 = vadd.f32 0.0, %v1583
      %1585 = vmatmul.f32.gmra.mxu0 %v1495
      %v1586 = vpop.f32.mrf.mxu0
      %v1587 = vadd.f32 0.0, %v1586
      %1588 = vmatmul.f32.gmra.mxu0 %v1498
      %v1589 = vpop.f32.mrf.mxu0
      %v1590 = vadd.f32 0.0, %v1589
      %1591 = vmatmul.f32.gmra.mxu0 %v1501
      %v1592 = vpop.f32.mrf.mxu0
      %v1593 = vadd.f32 0.0, %v1592
      %1594 = vmatmul.f32.gmra.mxu0 %v1504
      %v1595 = vpop.f32.mrf.mxu0
      %v1596 = vadd.f32 0.0, %v1595
      %1597 = vmatmul.f32.gmra.mxu0 %v1507
      %v1598 = vpop.f32.mrf.mxu0
      %v1599 = vadd.f32 0.0, %v1598
      %1600 = vmatmul.f32.gmra.mxu0 %v1510
      %v1601 = vpop.f32.mrf.mxu0
      %v1602 = vadd.f32 0.0, %v1601
      %1603 = vmatmul.f32.gmra.mxu0 %v1513
      %v1604 = vpop.f32.mrf.mxu0
      %v1605 = vadd.f32 0.0, %v1604
      %1606 = vmatmul.f32.gmra.mxu0 %v1516
      %v1607 = vpop.f32.mrf.mxu0
      %v1608 = vadd.f32 0.0, %v1607
      %1609 = vmatmul.f32.gmra.mxu0 %v1519
      %v1610 = vpop.f32.mrf.mxu0
      %v1611 = vadd.f32 0.0, %v1610
      %1612 = vmatmul.f32.gmra.mxu0 %v1522
      %v1613 = vpop.f32.mrf.mxu0
      %v1614 = vadd.f32 0.0, %v1613
      %1615 = vmatmul.f32.gmra.mxu0 %v1525
      %v1616 = vpop.f32.mrf.mxu0
      %v1617 = vadd.f32 0.0, %v1616
      %1618 = vmatmul.f32.gmra.mxu0 %v1528
      %v1619 = vpop.f32.mrf.mxu0
      %v1620 = vadd.f32 0.0, %v1619
      %1621 = vmatmul.f32.gmra.mxu0 %v1531
      %v1622 = vpop.f32.mrf.mxu0
      %v1623 = vadd.f32 0.0, %v1622
      %1624 = vmatmul.f32.gmra.mxu0 %v1534
      %v1625 = vpop.f32.mrf.mxu0
      %v1626 = vadd.f32 0.0, %v1625
      %1627 = vmatmul.f32.gmra.mxu0 %v1537
      %v1628 = vpop.f32.mrf.mxu0
      %v1629 = vadd.f32 0.0, %v1628
      %1630 = vmatmul.f32.gmra.mxu0 %v1540
      %v1631 = vpop.f32.mrf.mxu0
      %v1632 = vadd.f32 0.0, %v1631
      %1633 = vdwg.mxu0
      %v1635 = vsel %vm1365, %v1400, 0
      %v1638 = vsel %vm1365, %v1401, 0
      %v1641 = vsel %vm1365, %v1402, 0
      %v1644 = vsel %vm1365, %v1403, 0
      %v1647 = vsel %vm1365, %v1404, 0
      %v1650 = vsel %vm1365, %v1405, 0
      %v1653 = vsel %vm1365, %v1406, 0
      %v1656 = vsel %vm1365, %v1407, 0
      %v1659 = vsel %vm1365, %v1408, 0
      %v1662 = vsel %vm1365, %v1409, 0
      %v1665 = vsel %vm1365, %v1410, 0
      %v1668 = vsel %vm1365, %v1411, 0
      %v1671 = vsel %vm1365, %v1412, 0
      %v1674 = vsel %vm1365, %v1413, 0
      %v1677 = vsel %vm1365, %v1414, 0
      %v1680 = vsel %vm1365, %v1415, 0
      %v1683 = vsel %vm1365, %v1416, 0
      %v1686 = vsel %vm1365, %v1417, 0
      %v1689 = vsel %vm1365, %v1418, 0
      %v1692 = vsel %vm1365, %v1419, 0
      %v1695 = vsel %vm1365, %v1420, 0
      %v1698 = vsel %vm1365, %v1421, 0
      %v1701 = vsel %vm1365, %v1422, 0
      %v1704 = vsel %vm1365, %v1423, 0
      %v1707 = vsel %vm1365, %v1424, 0
      %1709 = vmatpush.msra.mxu0 0.0
      %1710 = vmatpush.msra.mxu0 0.0
      %1711 = vmatpush.msra.mxu0 0.0
      %1712 = vmatpush.msra.mxu0 0.0
      %1713 = vmatpush.msra.mxu0 0.0
      %1714 = vmatpush.msra.mxu0 0.0
      %1715 = vmatpush.msra.mxu0 0.0
      %1716 = vmatpush.msra.mxu0 0.0
      %1717 = vmatpush.msra.mxu0 %v1432
      %1718 = vmatpush.msra.mxu0 %v1431
      %1719 = vmatpush.msra.mxu0 %v1430
      %1720 = vmatpush.msra.mxu0 %v1429
      %1721 = vmatpush.msra.mxu0 %v1428
      %1722 = vmatpush.msra.mxu0 %v1427
      %1723 = vmatpush.msra.mxu0 %v1426
      %1724 = vmatpush.msra.mxu0 %v1425
      %1725 = vmatmul.f32.gmra.mxu0 %v1635
      %v1726 = vpop.f32.mrf.mxu0
      %v1727 = vadd.f32 %v1560, %v1726
      %1728 = vmatmul.f32.gmra.mxu0 %v1638
      %v1729 = vpop.f32.mrf.mxu0
      %v1730 = vadd.f32 %v1563, %v1729
      %1731 = vmatmul.f32.gmra.mxu0 %v1641
      %v1732 = vpop.f32.mrf.mxu0
      %v1733 = vadd.f32 %v1566, %v1732
      %1734 = vmatmul.f32.gmra.mxu0 %v1644
      %v1735 = vpop.f32.mrf.mxu0
      %v1736 = vadd.f32 %v1569, %v1735
      %1737 = vmatmul.f32.gmra.mxu0 %v1647
      %v1738 = vpop.f32.mrf.mxu0
      %v1739 = vadd.f32 %v1572, %v1738
      %1740 = vmatmul.f32.gmra.mxu0 %v1650
      %v1741 = vpop.f32.mrf.mxu0
      %v1742 = vadd.f32 %v1575, %v1741
      %1743 = vmatmul.f32.gmra.mxu0 %v1653
      %v1744 = vpop.f32.mrf.mxu0
      %v1745 = vadd.f32 %v1578, %v1744
      %1746 = vmatmul.f32.gmra.mxu0 %v1656
      %v1747 = vpop.f32.mrf.mxu0
      %v1748 = vadd.f32 %v1581, %v1747
      %1749 = vmatmul.f32.gmra.mxu0 %v1659
      %v1750 = vpop.f32.mrf.mxu0
      %v1751 = vadd.f32 %v1584, %v1750
      %1752 = vmatmul.f32.gmra.mxu0 %v1662
      %v1753 = vpop.f32.mrf.mxu0
      %v1754 = vadd.f32 %v1587, %v1753
      %1755 = vmatmul.f32.gmra.mxu0 %v1665
      %v1756 = vpop.f32.mrf.mxu0
      %v1757 = vadd.f32 %v1590, %v1756
      %1758 = vmatmul.f32.gmra.mxu0 %v1668
      %v1759 = vpop.f32.mrf.mxu0
      %v1760 = vadd.f32 %v1593, %v1759
      %1761 = vmatmul.f32.gmra.mxu0 %v1671
      %v1762 = vpop.f32.mrf.mxu0
      %v1763 = vadd.f32 %v1596, %v1762
      %1764 = vmatmul.f32.gmra.mxu0 %v1674
      %v1765 = vpop.f32.mrf.mxu0
      %v1766 = vadd.f32 %v1599, %v1765
      %1767 = vmatmul.f32.gmra.mxu0 %v1677
      %v1768 = vpop.f32.mrf.mxu0
      %v1769 = vadd.f32 %v1602, %v1768
      %1770 = vmatmul.f32.gmra.mxu0 %v1680
      %v1771 = vpop.f32.mrf.mxu0
      %v1772 = vadd.f32 %v1605, %v1771
      %1773 = vmatmul.f32.gmra.mxu0 %v1683
      %v1774 = vpop.f32.mrf.mxu0
      %v1775 = vadd.f32 %v1608, %v1774
      %1776 = vmatmul.f32.gmra.mxu0 %v1686
      %v1777 = vpop.f32.mrf.mxu0
      %v1778 = vadd.f32 %v1611, %v1777
      %1779 = vmatmul.f32.gmra.mxu0 %v1689
      %v1780 = vpop.f32.mrf.mxu0
      %v1781 = vadd.f32 %v1614, %v1780
      %1782 = vmatmul.f32.gmra.mxu0 %v1692
      %v1783 = vpop.f32.mrf.mxu0
      %v1784 = vadd.f32 %v1617, %v1783
      %1785 = vmatmul.f32.gmra.mxu0 %v1695
      %v1786 = vpop.f32.mrf.mxu0
      %v1787 = vadd.f32 %v1620, %v1786
      %1788 = vmatmul.f32.gmra.mxu0 %v1698
      %v1789 = vpop.f32.mrf.mxu0
      %v1790 = vadd.f32 %v1623, %v1789
      %1791 = vmatmul.f32.gmra.mxu0 %v1701
      %v1792 = vpop.f32.mrf.mxu0
      %v1793 = vadd.f32 %v1626, %v1792
      %1794 = vmatmul.f32.gmra.mxu0 %v1704
      %v1795 = vpop.f32.mrf.mxu0
      %v1796 = vadd.f32 %v1629, %v1795
      %1797 = vmatmul.f32.gmra.mxu0 %v1707
      %v1798 = vpop.f32.mrf.mxu0
      %v1799 = vadd.f32 %v1632, %v1798
      %1800 = vdwg.mxu0
      %v1801 = vld [vmem:[#allocation2 + $0x2] sm:$0xff]
      %v1802 = vld [vmem:[#allocation2 + $0xa] sm:$0xff]
      %v1803 = vld [vmem:[#allocation2 + $0x12] sm:$0xff]
      %v1804 = vld [vmem:[#allocation2 + $0x1a] sm:$0xff]
      %v1805 = vld [vmem:[#allocation2 + $0x22] sm:$0xff]
      %v1806 = vld [vmem:[#allocation2 + $0x2a] sm:$0xff]
      %v1807 = vld [vmem:[#allocation2 + $0x32] sm:$0xff]
      %v1808 = vld [vmem:[#allocation2 + $0x3a] sm:$0xff]
      %v1809 = vld [vmem:[#allocation2 + $0x42] sm:$0xff]
      %v1810 = vld [vmem:[#allocation2 + $0x4a] sm:$0xff]
      %v1811 = vld [vmem:[#allocation2 + $0x52] sm:$0xff]
      %v1812 = vld [vmem:[#allocation2 + $0x5a] sm:$0xff]
      %v1813 = vld [vmem:[#allocation2 + $0x62] sm:$0xff]
      %v1814 = vld [vmem:[#allocation2 + $0x6a] sm:$0xff]
      %v1815 = vld [vmem:[#allocation2 + $0x72] sm:$0xff]
      %v1816 = vld [vmem:[#allocation2 + $0x7a] sm:$0xff]
      %v1817 = vld [vmem:[#allocation2 + $0x82] sm:$0xff]
      %v1818 = vld [vmem:[#allocation2 + $0x8a] sm:$0xff]
      %v1819 = vld [vmem:[#allocation2 + $0x92] sm:$0xff]
      %v1820 = vld [vmem:[#allocation2 + $0x9a] sm:$0xff]
      %v1821 = vld [vmem:[#allocation2 + $0xa2] sm:$0xff]
      %v1822 = vld [vmem:[#allocation2 + $0xaa] sm:$0xff]
      %v1823 = vld [vmem:[#allocation2 + $0xb2] sm:$0xff]
      %v1824 = vld [vmem:[#allocation2 + $0xba] sm:$0xff]
      %v1825 = vld [vmem:[#allocation2 + $0xc2] sm:$0xf]
      %s1826 = scalar_lea.vmem %s3, 128
      %v1827 = vld [vmem:[%s1826] sm:$0xff]
      %v1828 = vld [vmem:[%s1826 + $0x8] sm:$0xff]
      %v1829 = vld [vmem:[%s1826 + $0x10] sm:$0xff]
      %v1830 = vld [vmem:[%s1826 + $0x18] sm:$0xff]
      %v1831 = vld [vmem:[%s1826 + $0x20] sm:$0xff]
      %v1832 = vld [vmem:[%s1826 + $0x28] sm:$0xff]
      %v1833 = vld [vmem:[%s1826 + $0x30] sm:$0xff]
      %v1834 = vld [vmem:[%s1826 + $0x38] sm:$0xff]
      %v1836 = vsel %vm1365, %v1801, 0
      %v1839 = vsel %vm1365, %v1802, 0
      %v1842 = vsel %vm1365, %v1803, 0
      %v1845 = vsel %vm1365, %v1804, 0
      %v1848 = vsel %vm1365, %v1805, 0
      %v1851 = vsel %vm1365, %v1806, 0
      %v1854 = vsel %vm1365, %v1807, 0
      %v1857 = vsel %vm1365, %v1808, 0
      %v1860 = vsel %vm1365, %v1809, 0
      %v1863 = vsel %vm1365, %v1810, 0
      %v1866 = vsel %vm1365, %v1811, 0
      %v1869 = vsel %vm1365, %v1812, 0
      %v1872 = vsel %vm1365, %v1813, 0
      %v1875 = vsel %vm1365, %v1814, 0
      %v1878 = vsel %vm1365, %v1815, 0
      %v1881 = vsel %vm1365, %v1816, 0
      %v1884 = vsel %vm1365, %v1817, 0
      %v1887 = vsel %vm1365, %v1818, 0
      %v1890 = vsel %vm1365, %v1819, 0
      %v1893 = vsel %vm1365, %v1820, 0
      %v1896 = vsel %vm1365, %v1821, 0
      %v1899 = vsel %vm1365, %v1822, 0
      %v1902 = vsel %vm1365, %v1823, 0
      %v1905 = vsel %vm1365, %v1824, 0
      %v1908 = vsel %vm1365, %v1825, 0
      %1910 = vmatpush.msra.mxu0 0.0
      %1911 = vmatpush.msra.mxu0 0.0
      %1912 = vmatpush.msra.mxu0 0.0
      %1913 = vmatpush.msra.mxu0 0.0
      %1914 = vmatpush.msra.mxu0 0.0
      %1915 = vmatpush.msra.mxu0 0.0
      %1916 = vmatpush.msra.mxu0 0.0
      %1917 = vmatpush.msra.mxu0 0.0
      %1918 = vmatpush.msra.mxu0 %v1834
      %1919 = vmatpush.msra.mxu0 %v1833
      %1920 = vmatpush.msra.mxu0 %v1832
      %1921 = vmatpush.msra.mxu0 %v1831
      %1922 = vmatpush.msra.mxu0 %v1830
      %1923 = vmatpush.msra.mxu0 %v1829
      %1924 = vmatpush.msra.mxu0 %v1828
      %1925 = vmatpush.msra.mxu0 %v1827
      %1926 = vmatmul.f32.gmra.mxu0 %v1836
      %v1927 = vpop.f32.mrf.mxu0
      %v1928 = vadd.f32 0.0, %v1927
      %1929 = vmatmul.f32.gmra.mxu0 %v1839
      %v1930 = vpop.f32.mrf.mxu0
      %v1931 = vadd.f32 0.0, %v1930
      %1932 = vmatmul.f32.gmra.mxu0 %v1842
      %v1933 = vpop.f32.mrf.mxu0
      %v1934 = vadd.f32 0.0, %v1933
      %1935 = vmatmul.f32.gmra.mxu0 %v1845
      %v1936 = vpop.f32.mrf.mxu0
      %v1937 = vadd.f32 0.0, %v1936
      %1938 = vmatmul.f32.gmra.mxu0 %v1848
      %v1939 = vpop.f32.mrf.mxu0
      %v1940 = vadd.f32 0.0, %v1939
      %1941 = vmatmul.f32.gmra.mxu0 %v1851
      %v1942 = vpop.f32.mrf.mxu0
      %v1943 = vadd.f32 0.0, %v1942
      %1944 = vmatmul.f32.gmra.mxu0 %v1854
      %v1945 = vpop.f32.mrf.mxu0
      %v1946 = vadd.f32 0.0, %v1945
      %1947 = vmatmul.f32.gmra.mxu0 %v1857
      %v1948 = vpop.f32.mrf.mxu0
      %v1949 = vadd.f32 0.0, %v1948
      %1950 = vmatmul.f32.gmra.mxu0 %v1860
      %v1951 = vpop.f32.mrf.mxu0
      %v1952 = vadd.f32 0.0, %v1951
      %1953 = vmatmul.f32.gmra.mxu0 %v1863
      %v1954 = vpop.f32.mrf.mxu0
      %v1955 = vadd.f32 0.0, %v1954
      %1956 = vmatmul.f32.gmra.mxu0 %v1866
      %v1957 = vpop.f32.mrf.mxu0
      %v1958 = vadd.f32 0.0, %v1957
      %1959 = vmatmul.f32.gmra.mxu0 %v1869
      %v1960 = vpop.f32.mrf.mxu0
      %v1961 = vadd.f32 0.0, %v1960
      %1962 = vmatmul.f32.gmra.mxu0 %v1872
      %v1963 = vpop.f32.mrf.mxu0
      %v1964 = vadd.f32 0.0, %v1963
      %1965 = vmatmul.f32.gmra.mxu0 %v1875
      %v1966 = vpop.f32.mrf.mxu0
      %v1967 = vadd.f32 0.0, %v1966
      %1968 = vmatmul.f32.gmra.mxu0 %v1878
      %v1969 = vpop.f32.mrf.mxu0
      %v1970 = vadd.f32 0.0, %v1969
      %1971 = vmatmul.f32.gmra.mxu0 %v1881
      %v1972 = vpop.f32.mrf.mxu0
      %v1973 = vadd.f32 0.0, %v1972
      %1974 = vmatmul.f32.gmra.mxu0 %v1884
      %v1975 = vpop.f32.mrf.mxu0
      %v1976 = vadd.f32 0.0, %v1975
      %1977 = vmatmul.f32.gmra.mxu0 %v1887
      %v1978 = vpop.f32.mrf.mxu0
      %v1979 = vadd.f32 0.0, %v1978
      %1980 = vmatmul.f32.gmra.mxu0 %v1890
      %v1981 = vpop.f32.mrf.mxu0
      %v1982 = vadd.f32 0.0, %v1981
      %1983 = vmatmul.f32.gmra.mxu0 %v1893
      %v1984 = vpop.f32.mrf.mxu0
      %v1985 = vadd.f32 0.0, %v1984
      %1986 = vmatmul.f32.gmra.mxu0 %v1896
      %v1987 = vpop.f32.mrf.mxu0
      %v1988 = vadd.f32 0.0, %v1987
      %1989 = vmatmul.f32.gmra.mxu0 %v1899
      %v1990 = vpop.f32.mrf.mxu0
      %v1991 = vadd.f32 0.0, %v1990
      %1992 = vmatmul.f32.gmra.mxu0 %v1902
      %v1993 = vpop.f32.mrf.mxu0
      %v1994 = vadd.f32 0.0, %v1993
      %1995 = vmatmul.f32.gmra.mxu0 %v1905
      %v1996 = vpop.f32.mrf.mxu0
      %v1997 = vadd.f32 0.0, %v1996
      %1998 = vmatmul.f32.gmra.mxu0 %v1908
      %v1999 = vpop.f32.mrf.mxu0
      %v2000 = vadd.f32 0.0, %v1999
      %2001 = vdwg.mxu0
      %v2002 = vadd.f32 %v1727, %v1928
      %v2003 = vadd.f32 %v1730, %v1931
      %v2004 = vadd.f32 %v1733, %v1934
      %v2005 = vadd.f32 %v1736, %v1937
      %v2006 = vadd.f32 %v1739, %v1940
      %v2007 = vadd.f32 %v1742, %v1943
      %v2008 = vadd.f32 %v1745, %v1946
      %v2009 = vadd.f32 %v1748, %v1949
      %v2010 = vadd.f32 %v1751, %v1952
      %v2011 = vadd.f32 %v1754, %v1955
      %v2012 = vadd.f32 %v1757, %v1958
      %v2013 = vadd.f32 %v1760, %v1961
      %v2014 = vadd.f32 %v1763, %v1964
      %v2015 = vadd.f32 %v1766, %v1967
      %v2016 = vadd.f32 %v1769, %v1970
      %v2017 = vadd.f32 %v1772, %v1973
      %v2018 = vadd.f32 %v1775, %v1976
      %v2019 = vadd.f32 %v1778, %v1979
      %v2020 = vadd.f32 %v1781, %v1982
      %v2021 = vadd.f32 %v1784, %v1985
      %v2022 = vadd.f32 %v1787, %v1988
      %v2023 = vadd.f32 %v1790, %v1991
      %v2024 = vadd.f32 %v1793, %v1994
      %v2025 = vadd.f32 %v1796, %v1997
      %v2026 = vadd.f32 %v1799, %v2000
      %v2027 = vld [vmem:[#allocation2 + $0x3] sm:$0xff]
      %v2028 = vld [vmem:[#allocation2 + $0xb] sm:$0xff]
      %v2029 = vld [vmem:[#allocation2 + $0x13] sm:$0xff]
      %v2030 = vld [vmem:[#allocation2 + $0x1b] sm:$0xff]
      %v2031 = vld [vmem:[#allocation2 + $0x23] sm:$0xff]
      %v2032 = vld [vmem:[#allocation2 + $0x2b] sm:$0xff]
      %v2033 = vld [vmem:[#allocation2 + $0x33] sm:$0xff]
      %v2034 = vld [vmem:[#allocation2 + $0x3b] sm:$0xff]
      %v2035 = vld [vmem:[#allocation2 + $0x43] sm:$0xff]
      %v2036 = vld [vmem:[#allocation2 + $0x4b] sm:$0xff]
      %v2037 = vld [vmem:[#allocation2 + $0x53] sm:$0xff]
      %v2038 = vld [vmem:[#allocation2 + $0x5b] sm:$0xff]
      %v2039 = vld [vmem:[#allocation2 + $0x63] sm:$0xff]
      %v2040 = vld [vmem:[#allocation2 + $0x6b] sm:$0xff]
      %v2041 = vld [vmem:[#allocation2 + $0x73] sm:$0xff]
      %v2042 = vld [vmem:[#allocation2 + $0x7b] sm:$0xff]
      %v2043 = vld [vmem:[#allocation2 + $0x83] sm:$0xff]
      %v2044 = vld [vmem:[#allocation2 + $0x8b] sm:$0xff]
      %v2045 = vld [vmem:[#allocation2 + $0x93] sm:$0xff]
      %v2046 = vld [vmem:[#allocation2 + $0x9b] sm:$0xff]
      %v2047 = vld [vmem:[#allocation2 + $0xa3] sm:$0xff]
      %v2048 = vld [vmem:[#allocation2 + $0xab] sm:$0xff]
      %v2049 = vld [vmem:[#allocation2 + $0xb3] sm:$0xff]
      %v2050 = vld [vmem:[#allocation2 + $0xbb] sm:$0xff]
      %v2051 = vld [vmem:[#allocation2 + $0xc3] sm:$0xf]
      %s2052 = scalar_lea.vmem %s3, 192
      %v2053 = vld [vmem:[%s2052] sm:$0xff]
      %v2054 = vld [vmem:[%s2052 + $0x8] sm:$0xff]
      %v2055 = vld [vmem:[%s2052 + $0x10] sm:$0xff]
      %v2056 = vld [vmem:[%s2052 + $0x18] sm:$0xff]
      %v2057 = vld [vmem:[%s2052 + $0x20] sm:$0xff]
      %v2058 = vld [vmem:[%s2052 + $0x28] sm:$0xff]
      %v2059 = vld [vmem:[%s2052 + $0x30] sm:$0xff]
      %v2060 = vld [vmem:[%s2052 + $0x38] sm:$0xff]
      %v2062 = vsel %vm1365, %v2027, 0
      %v2065 = vsel %vm1365, %v2028, 0
      %v2068 = vsel %vm1365, %v2029, 0
      %v2071 = vsel %vm1365, %v2030, 0
      %v2074 = vsel %vm1365, %v2031, 0
      %v2077 = vsel %vm1365, %v2032, 0
      %v2080 = vsel %vm1365, %v2033, 0
      %v2083 = vsel %vm1365, %v2034, 0
      %v2086 = vsel %vm1365, %v2035, 0
      %v2089 = vsel %vm1365, %v2036, 0
      %v2092 = vsel %vm1365, %v2037, 0
      %v2095 = vsel %vm1365, %v2038, 0
      %v2098 = vsel %vm1365, %v2039, 0
      %v2101 = vsel %vm1365, %v2040, 0
      %v2104 = vsel %vm1365, %v2041, 0
      %v2107 = vsel %vm1365, %v2042, 0
      %v2110 = vsel %vm1365, %v2043, 0
      %v2113 = vsel %vm1365, %v2044, 0
      %v2116 = vsel %vm1365, %v2045, 0
      %v2119 = vsel %vm1365, %v2046, 0
      %v2122 = vsel %vm1365, %v2047, 0
      %v2125 = vsel %vm1365, %v2048, 0
      %v2128 = vsel %vm1365, %v2049, 0
      %v2131 = vsel %vm1365, %v2050, 0
      %v2134 = vsel %vm1365, %v2051, 0
      %2136 = vmatpush.msra.mxu0 0.0
      %2137 = vmatpush.msra.mxu0 0.0
      %2138 = vmatpush.msra.mxu0 0.0
      %2139 = vmatpush.msra.mxu0 0.0
      %2140 = vmatpush.msra.mxu0 0.0
      %2141 = vmatpush.msra.mxu0 0.0
      %2142 = vmatpush.msra.mxu0 0.0
      %2143 = vmatpush.msra.mxu0 0.0
      %2144 = vmatpush.msra.mxu0 %v2060
      %2145 = vmatpush.msra.mxu0 %v2059
      %2146 = vmatpush.msra.mxu0 %v2058
      %2147 = vmatpush.msra.mxu0 %v2057
      %2148 = vmatpush.msra.mxu0 %v2056
      %2149 = vmatpush.msra.mxu0 %v2055
      %2150 = vmatpush.msra.mxu0 %v2054
      %2151 = vmatpush.msra.mxu0 %v2053
      %2152 = vmatmul.f32.gmra.mxu0 %v2062
      %v2153 = vpop.f32.mrf.mxu0
      %v2154 = vadd.f32 0.0, %v2153
      %2155 = vmatmul.f32.gmra.mxu0 %v2065
      %v2156 = vpop.f32.mrf.mxu0
      %v2157 = vadd.f32 0.0, %v2156
      %2158 = vmatmul.f32.gmra.mxu0 %v2068
      %v2159 = vpop.f32.mrf.mxu0
      %v2160 = vadd.f32 0.0, %v2159
      %2161 = vmatmul.f32.gmra.mxu0 %v2071
      %v2162 = vpop.f32.mrf.mxu0
      %v2163 = vadd.f32 0.0, %v2162
      %2164 = vmatmul.f32.gmra.mxu0 %v2074
      %v2165 = vpop.f32.mrf.mxu0
      %v2166 = vadd.f32 0.0, %v2165
      %2167 = vmatmul.f32.gmra.mxu0 %v2077
      %v2168 = vpop.f32.mrf.mxu0
      %v2169 = vadd.f32 0.0, %v2168
      %2170 = vmatmul.f32.gmra.mxu0 %v2080
      %v2171 = vpop.f32.mrf.mxu0
      %v2172 = vadd.f32 0.0, %v2171
      %2173 = vmatmul.f32.gmra.mxu0 %v2083
      %v2174 = vpop.f32.mrf.mxu0
      %v2175 = vadd.f32 0.0, %v2174
      %2176 = vmatmul.f32.gmra.mxu0 %v2086
      %v2177 = vpop.f32.mrf.mxu0
      %v2178 = vadd.f32 0.0, %v2177
      %2179 = vmatmul.f32.gmra.mxu0 %v2089
      %v2180 = vpop.f32.mrf.mxu0
      %v2181 = vadd.f32 0.0, %v2180
      %2182 = vmatmul.f32.gmra.mxu0 %v2092
      %v2183 = vpop.f32.mrf.mxu0
      %v2184 = vadd.f32 0.0, %v2183
      %2185 = vmatmul.f32.gmra.mxu0 %v2095
      %v2186 = vpop.f32.mrf.mxu0
      %v2187 = vadd.f32 0.0, %v2186
      %2188 = vmatmul.f32.gmra.mxu0 %v2098
      %v2189 = vpop.f32.mrf.mxu0
      %v2190 = vadd.f32 0.0, %v2189
      %2191 = vmatmul.f32.gmra.mxu0 %v2101
      %v2192 = vpop.f32.mrf.mxu0
      %v2193 = vadd.f32 0.0, %v2192
      %2194 = vmatmul.f32.gmra.mxu0 %v2104
      %v2195 = vpop.f32.mrf.mxu0
      %v2196 = vadd.f32 0.0, %v2195
      %2197 = vmatmul.f32.gmra.mxu0 %v2107
      %v2198 = vpop.f32.mrf.mxu0
      %v2199 = vadd.f32 0.0, %v2198
      %2200 = vmatmul.f32.gmra.mxu0 %v2110
      %v2201 = vpop.f32.mrf.mxu0
      %v2202 = vadd.f32 0.0, %v2201
      %2203 = vmatmul.f32.gmra.mxu0 %v2113
      %v2204 = vpop.f32.mrf.mxu0
      %v2205 = vadd.f32 0.0, %v2204
      %2206 = vmatmul.f32.gmra.mxu0 %v2116
      %v2207 = vpop.f32.mrf.mxu0
      %v2208 = vadd.f32 0.0, %v2207
      %2209 = vmatmul.f32.gmra.mxu0 %v2119
      %v2210 = vpop.f32.mrf.mxu0
      %v2211 = vadd.f32 0.0, %v2210
      %2212 = vmatmul.f32.gmra.mxu0 %v2122
      %v2213 = vpop.f32.mrf.mxu0
      %v2214 = vadd.f32 0.0, %v2213
      %2215 = vmatmul.f32.gmra.mxu0 %v2125
      %v2216 = vpop.f32.mrf.mxu0
      %v2217 = vadd.f32 0.0, %v2216
      %2218 = vmatmul.f32.gmra.mxu0 %v2128
      %v2219 = vpop.f32.mrf.mxu0
      %v2220 = vadd.f32 0.0, %v2219
      %2221 = vmatmul.f32.gmra.mxu0 %v2131
      %v2222 = vpop.f32.mrf.mxu0
      %v2223 = vadd.f32 0.0, %v2222
      %2224 = vmatmul.f32.gmra.mxu0 %v2134
      %v2225 = vpop.f32.mrf.mxu0
      %v2226 = vadd.f32 0.0, %v2225
      %2227 = vdwg.mxu0
      %v2228 = vadd.f32 %v2002, %v2154
      %v2229 = vadd.f32 %v2003, %v2157
      %v2230 = vadd.f32 %v2004, %v2160
      %v2231 = vadd.f32 %v2005, %v2163
      %v2232 = vadd.f32 %v2006, %v2166
      %v2233 = vadd.f32 %v2007, %v2169
      %v2234 = vadd.f32 %v2008, %v2172
      %v2235 = vadd.f32 %v2009, %v2175
      %v2236 = vadd.f32 %v2010, %v2178
      %v2237 = vadd.f32 %v2011, %v2181
      %v2238 = vadd.f32 %v2012, %v2184
      %v2239 = vadd.f32 %v2013, %v2187
      %v2240 = vadd.f32 %v2014, %v2190
      %v2241 = vadd.f32 %v2015, %v2193
      %v2242 = vadd.f32 %v2016, %v2196
      %v2243 = vadd.f32 %v2017, %v2199
      %v2244 = vadd.f32 %v2018, %v2202
      %v2245 = vadd.f32 %v2019, %v2205
      %v2246 = vadd.f32 %v2020, %v2208
      %v2247 = vadd.f32 %v2021, %v2211
      %v2248 = vadd.f32 %v2022, %v2214
      %v2249 = vadd.f32 %v2023, %v2217
      %v2250 = vadd.f32 %v2024, %v2220
      %v2251 = vadd.f32 %v2025, %v2223
      %v2252 = vadd.f32 %v2026, %v2226
      %v2253 = vld [vmem:[#allocation2 + $0x4] sm:$0xff]
      %v2254 = vld [vmem:[#allocation2 + $0xc] sm:$0xff]
      %v2255 = vld [vmem:[#allocation2 + $0x14] sm:$0xff]
      %v2256 = vld [vmem:[#allocation2 + $0x1c] sm:$0xff]
      %v2257 = vld [vmem:[#allocation2 + $0x24] sm:$0xff]
      %v2258 = vld [vmem:[#allocation2 + $0x2c] sm:$0xff]
      %v2259 = vld [vmem:[#allocation2 + $0x34] sm:$0xff]
      %v2260 = vld [vmem:[#allocation2 + $0x3c] sm:$0xff]
      %v2261 = vld [vmem:[#allocation2 + $0x44] sm:$0xff]
      %v2262 = vld [vmem:[#allocation2 + $0x4c] sm:$0xff]
      %v2263 = vld [vmem:[#allocation2 + $0x54] sm:$0xff]
      %v2264 = vld [vmem:[#allocation2 + $0x5c] sm:$0xff]
      %v2265 = vld [vmem:[#allocation2 + $0x64] sm:$0xff]
      %v2266 = vld [vmem:[#allocation2 + $0x6c] sm:$0xff]
      %v2267 = vld [vmem:[#allocation2 + $0x74] sm:$0xff]
      %v2268 = vld [vmem:[#allocation2 + $0x7c] sm:$0xff]
      %v2269 = vld [vmem:[#allocation2 + $0x84] sm:$0xff]
      %v2270 = vld [vmem:[#allocation2 + $0x8c] sm:$0xff]
      %v2271 = vld [vmem:[#allocation2 + $0x94] sm:$0xff]
      %v2272 = vld [vmem:[#allocation2 + $0x9c] sm:$0xff]
      %v2273 = vld [vmem:[#allocation2 + $0xa4] sm:$0xff]
      %v2274 = vld [vmem:[#allocation2 + $0xac] sm:$0xff]
      %v2275 = vld [vmem:[#allocation2 + $0xb4] sm:$0xff]
      %v2276 = vld [vmem:[#allocation2 + $0xbc] sm:$0xff]
      %v2277 = vld [vmem:[#allocation2 + $0xc4] sm:$0xf]
      %s2278 = scalar_lea.vmem %s3, 256
      %v2279 = vld [vmem:[%s2278] sm:$0xff]
      %v2280 = vld [vmem:[%s2278 + $0x8] sm:$0xff]
      %v2281 = vld [vmem:[%s2278 + $0x10] sm:$0xff]
      %v2282 = vld [vmem:[%s2278 + $0x18] sm:$0xff]
      %v2283 = vld [vmem:[%s2278 + $0x20] sm:$0xff]
      %v2284 = vld [vmem:[%s2278 + $0x28] sm:$0xff]
      %v2285 = vld [vmem:[%s2278 + $0x30] sm:$0xff]
      %v2286 = vld [vmem:[%s2278 + $0x38] sm:$0xff]
      %v2288 = vsel %vm1365, %v2253, 0
      %v2291 = vsel %vm1365, %v2254, 0
      %v2294 = vsel %vm1365, %v2255, 0
      %v2297 = vsel %vm1365, %v2256, 0
      %v2300 = vsel %vm1365, %v2257, 0
      %v2303 = vsel %vm1365, %v2258, 0
      %v2306 = vsel %vm1365, %v2259, 0
      %v2309 = vsel %vm1365, %v2260, 0
      %v2312 = vsel %vm1365, %v2261, 0
      %v2315 = vsel %vm1365, %v2262, 0
      %v2318 = vsel %vm1365, %v2263, 0
      %v2321 = vsel %vm1365, %v2264, 0
      %v2324 = vsel %vm1365, %v2265, 0
      %v2327 = vsel %vm1365, %v2266, 0
      %v2330 = vsel %vm1365, %v2267, 0
      %v2333 = vsel %vm1365, %v2268, 0
      %v2336 = vsel %vm1365, %v2269, 0
      %v2339 = vsel %vm1365, %v2270, 0
      %v2342 = vsel %vm1365, %v2271, 0
      %v2345 = vsel %vm1365, %v2272, 0
      %v2348 = vsel %vm1365, %v2273, 0
      %v2351 = vsel %vm1365, %v2274, 0
      %v2354 = vsel %vm1365, %v2275, 0
      %v2357 = vsel %vm1365, %v2276, 0
      %v2360 = vsel %vm1365, %v2277, 0
      %2362 = vmatpush.msra.mxu0 0.0
      %2363 = vmatpush.msra.mxu0 0.0
      %2364 = vmatpush.msra.mxu0 0.0
      %2365 = vmatpush.msra.mxu0 0.0
      %2366 = vmatpush.msra.mxu0 0.0
      %2367 = vmatpush.msra.mxu0 0.0
      %2368 = vmatpush.msra.mxu0 0.0
      %2369 = vmatpush.msra.mxu0 0.0
      %2370 = vmatpush.msra.mxu0 %v2286
      %2371 = vmatpush.msra.mxu0 %v2285
      %2372 = vmatpush.msra.mxu0 %v2284
      %2373 = vmatpush.msra.mxu0 %v2283
      %2374 = vmatpush.msra.mxu0 %v2282
      %2375 = vmatpush.msra.mxu0 %v2281
      %2376 = vmatpush.msra.mxu0 %v2280
      %2377 = vmatpush.msra.mxu0 %v2279
      %2378 = vmatmul.f32.gmra.mxu0 %v2288
      %v2379 = vpop.f32.mrf.mxu0
      %v2380 = vadd.f32 0.0, %v2379
      %2381 = vmatmul.f32.gmra.mxu0 %v2291
      %v2382 = vpop.f32.mrf.mxu0
      %v2383 = vadd.f32 0.0, %v2382
      %2384 = vmatmul.f32.gmra.mxu0 %v2294
      %v2385 = vpop.f32.mrf.mxu0
      %v2386 = vadd.f32 0.0, %v2385
      %2387 = vmatmul.f32.gmra.mxu0 %v2297
      %v2388 = vpop.f32.mrf.mxu0
      %v2389 = vadd.f32 0.0, %v2388
      %2390 = vmatmul.f32.gmra.mxu0 %v2300
      %v2391 = vpop.f32.mrf.mxu0
      %v2392 = vadd.f32 0.0, %v2391
      %2393 = vmatmul.f32.gmra.mxu0 %v2303
      %v2394 = vpop.f32.mrf.mxu0
      %v2395 = vadd.f32 0.0, %v2394
      %2396 = vmatmul.f32.gmra.mxu0 %v2306
      %v2397 = vpop.f32.mrf.mxu0
      %v2398 = vadd.f32 0.0, %v2397
      %2399 = vmatmul.f32.gmra.mxu0 %v2309
      %v2400 = vpop.f32.mrf.mxu0
      %v2401 = vadd.f32 0.0, %v2400
      %2402 = vmatmul.f32.gmra.mxu0 %v2312
      %v2403 = vpop.f32.mrf.mxu0
      %v2404 = vadd.f32 0.0, %v2403
      %2405 = vmatmul.f32.gmra.mxu0 %v2315
      %v2406 = vpop.f32.mrf.mxu0
      %v2407 = vadd.f32 0.0, %v2406
      %2408 = vmatmul.f32.gmra.mxu0 %v2318
      %v2409 = vpop.f32.mrf.mxu0
      %v2410 = vadd.f32 0.0, %v2409
      %2411 = vmatmul.f32.gmra.mxu0 %v2321
      %v2412 = vpop.f32.mrf.mxu0
      %v2413 = vadd.f32 0.0, %v2412
      %2414 = vmatmul.f32.gmra.mxu0 %v2324
      %v2415 = vpop.f32.mrf.mxu0
      %v2416 = vadd.f32 0.0, %v2415
      %2417 = vmatmul.f32.gmra.mxu0 %v2327
      %v2418 = vpop.f32.mrf.mxu0
      %v2419 = vadd.f32 0.0, %v2418
      %2420 = vmatmul.f32.gmra.mxu0 %v2330
      %v2421 = vpop.f32.mrf.mxu0
      %v2422 = vadd.f32 0.0, %v2421
      %2423 = vmatmul.f32.gmra.mxu0 %v2333
      %v2424 = vpop.f32.mrf.mxu0
      %v2425 = vadd.f32 0.0, %v2424
      %2426 = vmatmul.f32.gmra.mxu0 %v2336
      %v2427 = vpop.f32.mrf.mxu0
      %v2428 = vadd.f32 0.0, %v2427
      %2429 = vmatmul.f32.gmra.mxu0 %v2339
      %v2430 = vpop.f32.mrf.mxu0
      %v2431 = vadd.f32 0.0, %v2430
      %2432 = vmatmul.f32.gmra.mxu0 %v2342
      %v2433 = vpop.f32.mrf.mxu0
      %v2434 = vadd.f32 0.0, %v2433
      %2435 = vmatmul.f32.gmra.mxu0 %v2345
      %v2436 = vpop.f32.mrf.mxu0
      %v2437 = vadd.f32 0.0, %v2436
      %2438 = vmatmul.f32.gmra.mxu0 %v2348
      %v2439 = vpop.f32.mrf.mxu0
      %v2440 = vadd.f32 0.0, %v2439
      %2441 = vmatmul.f32.gmra.mxu0 %v2351
      %v2442 = vpop.f32.mrf.mxu0
      %v2443 = vadd.f32 0.0, %v2442
      %2444 = vmatmul.f32.gmra.mxu0 %v2354
      %v2445 = vpop.f32.mrf.mxu0
      %v2446 = vadd.f32 0.0, %v2445
      %2447 = vmatmul.f32.gmra.mxu0 %v2357
      %v2448 = vpop.f32.mrf.mxu0
      %v2449 = vadd.f32 0.0, %v2448
      %2450 = vmatmul.f32.gmra.mxu0 %v2360
      %v2451 = vpop.f32.mrf.mxu0
      %v2452 = vadd.f32 0.0, %v2451
      %2453 = vdwg.mxu0
      %v2454 = vadd.f32 %v2228, %v2380
      %v2455 = vadd.f32 %v2229, %v2383
      %v2456 = vadd.f32 %v2230, %v2386
      %v2457 = vadd.f32 %v2231, %v2389
      %v2458 = vadd.f32 %v2232, %v2392
      %v2459 = vadd.f32 %v2233, %v2395
      %v2460 = vadd.f32 %v2234, %v2398
      %v2461 = vadd.f32 %v2235, %v2401
      %v2462 = vadd.f32 %v2236, %v2404
      %v2463 = vadd.f32 %v2237, %v2407
      %v2464 = vadd.f32 %v2238, %v2410
      %v2465 = vadd.f32 %v2239, %v2413
      %v2466 = vadd.f32 %v2240, %v2416
      %v2467 = vadd.f32 %v2241, %v2419
      %v2468 = vadd.f32 %v2242, %v2422
      %v2469 = vadd.f32 %v2243, %v2425
      %v2470 = vadd.f32 %v2244, %v2428
      %v2471 = vadd.f32 %v2245, %v2431
      %v2472 = vadd.f32 %v2246, %v2434
      %v2473 = vadd.f32 %v2247, %v2437
      %v2474 = vadd.f32 %v2248, %v2440
      %v2475 = vadd.f32 %v2249, %v2443
      %v2476 = vadd.f32 %v2250, %v2446
      %v2477 = vadd.f32 %v2251, %v2449
      %v2478 = vadd.f32 %v2252, %v2452
      %v2479 = vld [vmem:[#allocation2 + $0xe] sm:$0xff]
      %v2480 = vld [vmem:[#allocation2 + $0x16] sm:$0xff]
      %v2481 = vld [vmem:[#allocation2 + $0x1e] sm:$0xff]
      %v2482 = vld [vmem:[#allocation2 + $0x26] sm:$0xff]
      %v2483 = vld [vmem:[#allocation2 + $0x2e] sm:$0xff]
      %v2484 = vld [vmem:[#allocation2 + $0x36] sm:$0xff]
      %v2485 = vld [vmem:[#allocation2 + $0x3e] sm:$0xff]
      %v2486 = vld [vmem:[#allocation2 + $0x46] sm:$0xff]
      %v2487 = vld [vmem:[#allocation2 + $0x4e] sm:$0xff]
      %v2488 = vld [vmem:[#allocation2 + $0x56] sm:$0xff]
      %v2489 = vld [vmem:[#allocation2 + $0x5e] sm:$0xff]
      %v2490 = vld [vmem:[#allocation2 + $0x66] sm:$0xff]
      %v2491 = vld [vmem:[#allocation2 + $0x6e] sm:$0xff]
      %v2492 = vld [vmem:[#allocation2 + $0x76] sm:$0xff]
      %v2493 = vld [vmem:[#allocation2 + $0x7e] sm:$0xff]
      %v2494 = vld [vmem:[#allocation2 + $0x86] sm:$0xff]
      %v2495 = vld [vmem:[#allocation2 + $0x8e] sm:$0xff]
      %v2496 = vld [vmem:[#allocation2 + $0x96] sm:$0xff]
      %v2497 = vld [vmem:[#allocation2 + $0x9e] sm:$0xff]
      %v2498 = vld [vmem:[#allocation2 + $0xa6] sm:$0xff]
      %v2499 = vld [vmem:[#allocation2 + $0xae] sm:$0xff]
      %v2500 = vld [vmem:[#allocation2 + $0xb6] sm:$0xff]
      %v2501 = vld [vmem:[#allocation2 + $0xbe] sm:$0xff]
      %v2502 = vld [vmem:[#allocation2 + $0xc6] sm:$0xff]
      %v2503 = vld [vmem:[#allocation2 + $0xce] sm:$0xf]
      %s2504 = scalar_lea.vmem %s3, 320
      %v2505 = vld [vmem:[%s2504] sm:$0xff]
      %v2506 = vld [vmem:[%s2504 + $0x8] sm:$0xff]
      %v2507 = vld [vmem:[%s2504 + $0x10] sm:$0xff]
      %v2508 = vld [vmem:[%s2504 + $0x18] sm:$0xff]
      %v2509 = vld [vmem:[%s2504 + $0x20] sm:$0xff]
      %v2510 = vld [vmem:[%s2504 + $0x28] sm:$0xff]
      %v2511 = vld [vmem:[%s2504 + $0x30] sm:$0xff]
      %v2512 = vld [vmem:[%s2504 + $0x38] sm:$0xff]
      %v2514 = vsel %vm1365, %v2479, 0
      %v2517 = vsel %vm1365, %v2480, 0
      %v2520 = vsel %vm1365, %v2481, 0
      %v2523 = vsel %vm1365, %v2482, 0
      %v2526 = vsel %vm1365, %v2483, 0
      %v2529 = vsel %vm1365, %v2484, 0
      %v2532 = vsel %vm1365, %v2485, 0
      %v2535 = vsel %vm1365, %v2486, 0
      %v2538 = vsel %vm1365, %v2487, 0
      %v2541 = vsel %vm1365, %v2488, 0
      %v2544 = vsel %vm1365, %v2489, 0
      %v2547 = vsel %vm1365, %v2490, 0
      %v2550 = vsel %vm1365, %v2491, 0
      %v2553 = vsel %vm1365, %v2492, 0
      %v2556 = vsel %vm1365, %v2493, 0
      %v2559 = vsel %vm1365, %v2494, 0
      %v2562 = vsel %vm1365, %v2495, 0
      %v2565 = vsel %vm1365, %v2496, 0
      %v2568 = vsel %vm1365, %v2497, 0
      %v2571 = vsel %vm1365, %v2498, 0
      %v2574 = vsel %vm1365, %v2499, 0
      %v2577 = vsel %vm1365, %v2500, 0
      %v2580 = vsel %vm1365, %v2501, 0
      %v2583 = vsel %vm1365, %v2502, 0
      %v2586 = vsel %vm1365, %v2503, 0
      %2588 = vmatpush.msra.mxu0 0.0
      %2589 = vmatpush.msra.mxu0 0.0
      %2590 = vmatpush.msra.mxu0 0.0
      %2591 = vmatpush.msra.mxu0 0.0
      %2592 = vmatpush.msra.mxu0 0.0
      %2593 = vmatpush.msra.mxu0 0.0
      %2594 = vmatpush.msra.mxu0 0.0
      %2595 = vmatpush.msra.mxu0 0.0
      %2596 = vmatpush.msra.mxu0 %v2512
      %2597 = vmatpush.msra.mxu0 %v2511
      %2598 = vmatpush.msra.mxu0 %v2510
      %2599 = vmatpush.msra.mxu0 %v2509
      %2600 = vmatpush.msra.mxu0 %v2508
      %2601 = vmatpush.msra.mxu0 %v2507
      %2602 = vmatpush.msra.mxu0 %v2506
      %2603 = vmatpush.msra.mxu0 %v2505
      %2604 = vmatmul.f32.gmra.mxu0 %v2514
      %v2605 = vpop.f32.mrf.mxu0
      %v2606 = vadd.f32 0.0, %v2605
      %2607 = vmatmul.f32.gmra.mxu0 %v2517
      %v2608 = vpop.f32.mrf.mxu0
      %v2609 = vadd.f32 0.0, %v2608
      %2610 = vmatmul.f32.gmra.mxu0 %v2520
      %v2611 = vpop.f32.mrf.mxu0
      %v2612 = vadd.f32 0.0, %v2611
      %2613 = vmatmul.f32.gmra.mxu0 %v2523
      %v2614 = vpop.f32.mrf.mxu0
      %v2615 = vadd.f32 0.0, %v2614
      %2616 = vmatmul.f32.gmra.mxu0 %v2526
      %v2617 = vpop.f32.mrf.mxu0
      %v2618 = vadd.f32 0.0, %v2617
      %2619 = vmatmul.f32.gmra.mxu0 %v2529
      %v2620 = vpop.f32.mrf.mxu0
      %v2621 = vadd.f32 0.0, %v2620
      %2622 = vmatmul.f32.gmra.mxu0 %v2532
      %v2623 = vpop.f32.mrf.mxu0
      %v2624 = vadd.f32 0.0, %v2623
      %2625 = vmatmul.f32.gmra.mxu0 %v2535
      %v2626 = vpop.f32.mrf.mxu0
      %v2627 = vadd.f32 0.0, %v2626
      %2628 = vmatmul.f32.gmra.mxu0 %v2538
      %v2629 = vpop.f32.mrf.mxu0
      %v2630 = vadd.f32 0.0, %v2629
      %2631 = vmatmul.f32.gmra.mxu0 %v2541
      %v2632 = vpop.f32.mrf.mxu0
      %v2633 = vadd.f32 0.0, %v2632
      %2634 = vmatmul.f32.gmra.mxu0 %v2544
      %v2635 = vpop.f32.mrf.mxu0
      %v2636 = vadd.f32 0.0, %v2635
      %2637 = vmatmul.f32.gmra.mxu0 %v2547
      %v2638 = vpop.f32.mrf.mxu0
      %v2639 = vadd.f32 0.0, %v2638
      %2640 = vmatmul.f32.gmra.mxu0 %v2550
      %v2641 = vpop.f32.mrf.mxu0
      %v2642 = vadd.f32 0.0, %v2641
      %2643 = vmatmul.f32.gmra.mxu0 %v2553
      %v2644 = vpop.f32.mrf.mxu0
      %v2645 = vadd.f32 0.0, %v2644
      %2646 = vmatmul.f32.gmra.mxu0 %v2556
      %v2647 = vpop.f32.mrf.mxu0
      %v2648 = vadd.f32 0.0, %v2647
      %2649 = vmatmul.f32.gmra.mxu0 %v2559
      %v2650 = vpop.f32.mrf.mxu0
      %v2651 = vadd.f32 0.0, %v2650
      %2652 = vmatmul.f32.gmra.mxu0 %v2562
      %v2653 = vpop.f32.mrf.mxu0
      %v2654 = vadd.f32 0.0, %v2653
      %2655 = vmatmul.f32.gmra.mxu0 %v2565
      %v2656 = vpop.f32.mrf.mxu0
      %v2657 = vadd.f32 0.0, %v2656
      %2658 = vmatmul.f32.gmra.mxu0 %v2568
      %v2659 = vpop.f32.mrf.mxu0
      %v2660 = vadd.f32 0.0, %v2659
      %2661 = vmatmul.f32.gmra.mxu0 %v2571
      %v2662 = vpop.f32.mrf.mxu0
      %v2663 = vadd.f32 0.0, %v2662
      %2664 = vmatmul.f32.gmra.mxu0 %v2574
      %v2665 = vpop.f32.mrf.mxu0
      %v2666 = vadd.f32 0.0, %v2665
      %2667 = vmatmul.f32.gmra.mxu0 %v2577
      %v2668 = vpop.f32.mrf.mxu0
      %v2669 = vadd.f32 0.0, %v2668
      %2670 = vmatmul.f32.gmra.mxu0 %v2580
      %v2671 = vpop.f32.mrf.mxu0
      %v2672 = vadd.f32 0.0, %v2671
      %2673 = vmatmul.f32.gmra.mxu0 %v2583
      %v2674 = vpop.f32.mrf.mxu0
      %v2675 = vadd.f32 0.0, %v2674
      %2676 = vmatmul.f32.gmra.mxu0 %v2586
      %v2677 = vpop.f32.mrf.mxu0
      %v2678 = vadd.f32 0.0, %v2677
      %2679 = vdwg.mxu0
      %v2680 = vadd.f32 %v2454, %v2606
      %v2681 = vadd.f32 %v2455, %v2609
      %v2682 = vadd.f32 %v2456, %v2612
      %v2683 = vadd.f32 %v2457, %v2615
      %v2684 = vadd.f32 %v2458, %v2618
      %v2685 = vadd.f32 %v2459, %v2621
      %v2686 = vadd.f32 %v2460, %v2624
      %v2687 = vadd.f32 %v2461, %v2627
      %v2688 = vadd.f32 %v2462, %v2630
      %v2689 = vadd.f32 %v2463, %v2633
      %v2690 = vadd.f32 %v2464, %v2636
      %v2691 = vadd.f32 %v2465, %v2639
      %v2692 = vadd.f32 %v2466, %v2642
      %v2693 = vadd.f32 %v2467, %v2645
      %v2694 = vadd.f32 %v2468, %v2648
      %v2695 = vadd.f32 %v2469, %v2651
      %v2696 = vadd.f32 %v2470, %v2654
      %v2697 = vadd.f32 %v2471, %v2657
      %v2698 = vadd.f32 %v2472, %v2660
      %v2699 = vadd.f32 %v2473, %v2663
      %v2700 = vadd.f32 %v2474, %v2666
      %v2701 = vadd.f32 %v2475, %v2669
      %v2702 = vadd.f32 %v2476, %v2672
      %v2703 = vadd.f32 %v2477, %v2675
      %v2704 = vadd.f32 %v2478, %v2678
      %v2705 = vld [vmem:[#allocation2 + $0xf] sm:$0xff]
      %v2706 = vld [vmem:[#allocation2 + $0x17] sm:$0xff]
      %v2707 = vld [vmem:[#allocation2 + $0x1f] sm:$0xff]
      %v2708 = vld [vmem:[#allocation2 + $0x27] sm:$0xff]
      %v2709 = vld [vmem:[#allocation2 + $0x2f] sm:$0xff]
      %v2710 = vld [vmem:[#allocation2 + $0x37] sm:$0xff]
      %v2711 = vld [vmem:[#allocation2 + $0x3f] sm:$0xff]
      %v2712 = vld [vmem:[#allocation2 + $0x47] sm:$0xff]
      %v2713 = vld [vmem:[#allocation2 + $0x4f] sm:$0xff]
      %v2714 = vld [vmem:[#allocation2 + $0x57] sm:$0xff]
      %v2715 = vld [vmem:[#allocation2 + $0x5f] sm:$0xff]
      %v2716 = vld [vmem:[#allocation2 + $0x67] sm:$0xff]
      %v2717 = vld [vmem:[#allocation2 + $0x6f] sm:$0xff]
      %v2718 = vld [vmem:[#allocation2 + $0x77] sm:$0xff]
      %v2719 = vld [vmem:[#allocation2 + $0x7f] sm:$0xff]
      %v2720 = vld [vmem:[#allocation2 + $0x87] sm:$0xff]
      %v2721 = vld [vmem:[#allocation2 + $0x8f] sm:$0xff]
      %v2722 = vld [vmem:[#allocation2 + $0x97] sm:$0xff]
      %v2723 = vld [vmem:[#allocation2 + $0x9f] sm:$0xff]
      %v2724 = vld [vmem:[#allocation2 + $0xa7] sm:$0xff]
      %v2725 = vld [vmem:[#allocation2 + $0xaf] sm:$0xff]
      %v2726 = vld [vmem:[#allocation2 + $0xb7] sm:$0xff]
      %v2727 = vld [vmem:[#allocation2 + $0xbf] sm:$0xff]
      %v2728 = vld [vmem:[#allocation2 + $0xc7] sm:$0xff]
      %v2729 = vld [vmem:[#allocation2 + $0xcf] sm:$0xf]
      %s2730 = scalar_lea.vmem %s3, 384
      %v2731 = vld [vmem:[%s2730] sm:$0xff]
      %v2732 = vld [vmem:[%s2730 + $0x8] sm:$0xff]
      %v2733 = vld [vmem:[%s2730 + $0x10] sm:$0xff]
      %v2734 = vld [vmem:[%s2730 + $0x18] sm:$0xff]
      %v2735 = vld [vmem:[%s2730 + $0x20] sm:$0xff]
      %v2736 = vld [vmem:[%s2730 + $0x28] sm:$0xff]
      %v2737 = vld [vmem:[%s2730 + $0x30] sm:$0xff]
      %v2738 = vld [vmem:[%s2730 + $0x38] sm:$0xff]
      %v2740 = vsel %vm1365, %v2705, 0
      %v2743 = vsel %vm1365, %v2706, 0
      %v2746 = vsel %vm1365, %v2707, 0
      %v2749 = vsel %vm1365, %v2708, 0
      %v2752 = vsel %vm1365, %v2709, 0
      %v2755 = vsel %vm1365, %v2710, 0
      %v2758 = vsel %vm1365, %v2711, 0
      %v2761 = vsel %vm1365, %v2712, 0
      %v2764 = vsel %vm1365, %v2713, 0
      %v2767 = vsel %vm1365, %v2714, 0
      %v2770 = vsel %vm1365, %v2715, 0
      %v2773 = vsel %vm1365, %v2716, 0
      %v2776 = vsel %vm1365, %v2717, 0
      %v2779 = vsel %vm1365, %v2718, 0
      %v2782 = vsel %vm1365, %v2719, 0
      %v2785 = vsel %vm1365, %v2720, 0
      %v2788 = vsel %vm1365, %v2721, 0
      %v2791 = vsel %vm1365, %v2722, 0
      %v2794 = vsel %vm1365, %v2723, 0
      %v2797 = vsel %vm1365, %v2724, 0
      %v2800 = vsel %vm1365, %v2725, 0
      %v2803 = vsel %vm1365, %v2726, 0
      %v2806 = vsel %vm1365, %v2727, 0
      %v2809 = vsel %vm1365, %v2728, 0
      %v2812 = vsel %vm1365, %v2729, 0
      %2814 = vmatpush.msra.mxu0 0.0
      %2815 = vmatpush.msra.mxu0 0.0
      %2816 = vmatpush.msra.mxu0 0.0
      %2817 = vmatpush.msra.mxu0 0.0
      %2818 = vmatpush.msra.mxu0 0.0
      %2819 = vmatpush.msra.mxu0 0.0
      %2820 = vmatpush.msra.mxu0 0.0
      %2821 = vmatpush.msra.mxu0 0.0
      %2822 = vmatpush.msra.mxu0 %v2738
      %2823 = vmatpush.msra.mxu0 %v2737
      %2824 = vmatpush.msra.mxu0 %v2736
      %2825 = vmatpush.msra.mxu0 %v2735
      %2826 = vmatpush.msra.mxu0 %v2734
      %2827 = vmatpush.msra.mxu0 %v2733
      %2828 = vmatpush.msra.mxu0 %v2732
      %2829 = vmatpush.msra.mxu0 %v2731
      %2830 = vmatmul.f32.gmra.mxu0 %v2740
      %v2831 = vpop.f32.mrf.mxu0
      %v2832 = vadd.f32 0.0, %v2831
      %2833 = vmatmul.f32.gmra.mxu0 %v2743
      %v2834 = vpop.f32.mrf.mxu0
      %v2835 = vadd.f32 0.0, %v2834
      %2836 = vmatmul.f32.gmra.mxu0 %v2746
      %v2837 = vpop.f32.mrf.mxu0
      %v2838 = vadd.f32 0.0, %v2837
      %2839 = vmatmul.f32.gmra.mxu0 %v2749
      %v2840 = vpop.f32.mrf.mxu0
      %v2841 = vadd.f32 0.0, %v2840
      %2842 = vmatmul.f32.gmra.mxu0 %v2752
      %v2843 = vpop.f32.mrf.mxu0
      %v2844 = vadd.f32 0.0, %v2843
      %2845 = vmatmul.f32.gmra.mxu0 %v2755
      %v2846 = vpop.f32.mrf.mxu0
      %v2847 = vadd.f32 0.0, %v2846
      %2848 = vmatmul.f32.gmra.mxu0 %v2758
      %v2849 = vpop.f32.mrf.mxu0
      %v2850 = vadd.f32 0.0, %v2849
      %2851 = vmatmul.f32.gmra.mxu0 %v2761
      %v2852 = vpop.f32.mrf.mxu0
      %v2853 = vadd.f32 0.0, %v2852
      %2854 = vmatmul.f32.gmra.mxu0 %v2764
      %v2855 = vpop.f32.mrf.mxu0
      %v2856 = vadd.f32 0.0, %v2855
      %2857 = vmatmul.f32.gmra.mxu0 %v2767
      %v2858 = vpop.f32.mrf.mxu0
      %v2859 = vadd.f32 0.0, %v2858
      %2860 = vmatmul.f32.gmra.mxu0 %v2770
      %v2861 = vpop.f32.mrf.mxu0
      %v2862 = vadd.f32 0.0, %v2861
      %2863 = vmatmul.f32.gmra.mxu0 %v2773
      %v2864 = vpop.f32.mrf.mxu0
      %v2865 = vadd.f32 0.0, %v2864
      %2866 = vmatmul.f32.gmra.mxu0 %v2776
      %v2867 = vpop.f32.mrf.mxu0
      %v2868 = vadd.f32 0.0, %v2867
      %2869 = vmatmul.f32.gmra.mxu0 %v2779
      %v2870 = vpop.f32.mrf.mxu0
      %v2871 = vadd.f32 0.0, %v2870
      %2872 = vmatmul.f32.gmra.mxu0 %v2782
      %v2873 = vpop.f32.mrf.mxu0
      %v2874 = vadd.f32 0.0, %v2873
      %2875 = vmatmul.f32.gmra.mxu0 %v2785
      %v2876 = vpop.f32.mrf.mxu0
      %v2877 = vadd.f32 0.0, %v2876
      %2878 = vmatmul.f32.gmra.mxu0 %v2788
      %v2879 = vpop.f32.mrf.mxu0
      %v2880 = vadd.f32 0.0, %v2879
      %2881 = vmatmul.f32.gmra.mxu0 %v2791
      %v2882 = vpop.f32.mrf.mxu0
      %v2883 = vadd.f32 0.0, %v2882
      %2884 = vmatmul.f32.gmra.mxu0 %v2794
      %v2885 = vpop.f32.mrf.mxu0
      %v2886 = vadd.f32 0.0, %v2885
      %2887 = vmatmul.f32.gmra.mxu0 %v2797
      %v2888 = vpop.f32.mrf.mxu0
      %v2889 = vadd.f32 0.0, %v2888
      %2890 = vmatmul.f32.gmra.mxu0 %v2800
      %v2891 = vpop.f32.mrf.mxu0
      %v2892 = vadd.f32 0.0, %v2891
      %2893 = vmatmul.f32.gmra.mxu0 %v2803
      %v2894 = vpop.f32.mrf.mxu0
      %v2895 = vadd.f32 0.0, %v2894
      %2896 = vmatmul.f32.gmra.mxu0 %v2806
      %v2897 = vpop.f32.mrf.mxu0
      %v2898 = vadd.f32 0.0, %v2897
      %2899 = vmatmul.f32.gmra.mxu0 %v2809
      %v2900 = vpop.f32.mrf.mxu0
      %v2901 = vadd.f32 0.0, %v2900
      %2902 = vmatmul.f32.gmra.mxu0 %v2812
      %v2903 = vpop.f32.mrf.mxu0
      %v2904 = vadd.f32 0.0, %v2903
      %2905 = vdwg.mxu0
      %v2906 = vadd.f32 %v2680, %v2832
      %v2907 = vadd.f32 %v2681, %v2835
      %v2908 = vadd.f32 %v2682, %v2838
      %v2909 = vadd.f32 %v2683, %v2841
      %v2910 = vadd.f32 %v2684, %v2844
      %v2911 = vadd.f32 %v2685, %v2847
      %v2912 = vadd.f32 %v2686, %v2850
      %v2913 = vadd.f32 %v2687, %v2853
      %v2914 = vadd.f32 %v2688, %v2856
      %v2915 = vadd.f32 %v2689, %v2859
      %v2916 = vadd.f32 %v2690, %v2862
      %v2917 = vadd.f32 %v2691, %v2865
      %v2918 = vadd.f32 %v2692, %v2868
      %v2919 = vadd.f32 %v2693, %v2871
      %v2920 = vadd.f32 %v2694, %v2874
      %v2921 = vadd.f32 %v2695, %v2877
      %v2922 = vadd.f32 %v2696, %v2880
      %v2923 = vadd.f32 %v2697, %v2883
      %v2924 = vadd.f32 %v2698, %v2886
      %v2925 = vadd.f32 %v2699, %v2889
      %v2926 = vadd.f32 %v2700, %v2892
      %v2927 = vadd.f32 %v2701, %v2895
      %v2928 = vadd.f32 %v2702, %v2898
      %v2929 = vadd.f32 %v2703, %v2901
      %v2930 = vadd.f32 %v2704, %v2904
      %v2931 = vld [vmem:[#allocation2 + $0x10] sm:$0xff]
      %v2932 = vld [vmem:[#allocation2 + $0x18] sm:$0xff]
      %v2933 = vld [vmem:[#allocation2 + $0x20] sm:$0xff]
      %v2934 = vld [vmem:[#allocation2 + $0x28] sm:$0xff]
      %v2935 = vld [vmem:[#allocation2 + $0x30] sm:$0xff]
      %v2936 = vld [vmem:[#allocation2 + $0x38] sm:$0xff]
      %v2937 = vld [vmem:[#allocation2 + $0x40] sm:$0xff]
      %v2938 = vld [vmem:[#allocation2 + $0x48] sm:$0xff]
      %v2939 = vld [vmem:[#allocation2 + $0x50] sm:$0xff]
      %v2940 = vld [vmem:[#allocation2 + $0x58] sm:$0xff]
      %v2941 = vld [vmem:[#allocation2 + $0x60] sm:$0xff]
      %v2942 = vld [vmem:[#allocation2 + $0x68] sm:$0xff]
      %v2943 = vld [vmem:[#allocation2 + $0x70] sm:$0xff]
      %v2944 = vld [vmem:[#allocation2 + $0x78] sm:$0xff]
      %v2945 = vld [vmem:[#allocation2 + $0x80] sm:$0xff]
      %v2946 = vld [vmem:[#allocation2 + $0x88] sm:$0xff]
      %v2947 = vld [vmem:[#allocation2 + $0x90] sm:$0xff]
      %v2948 = vld [vmem:[#allocation2 + $0x98] sm:$0xff]
      %v2949 = vld [vmem:[#allocation2 + $0xa0] sm:$0xff]
      %v2950 = vld [vmem:[#allocation2 + $0xa8] sm:$0xff]
      %v2951 = vld [vmem:[#allocation2 + $0xb0] sm:$0xff]
      %v2952 = vld [vmem:[#allocation2 + $0xb8] sm:$0xff]
      %v2953 = vld [vmem:[#allocation2 + $0xc0] sm:$0xff]
      %v2954 = vld [vmem:[#allocation2 + $0xc8] sm:$0xff]
      %v2955 = vld [vmem:[#allocation2 + $0xd0] sm:$0xf]
      %s2956 = scalar_lea.vmem %s3, 448
      %v2957 = vld [vmem:[%s2956] sm:$0xff]
      %v2958 = vld [vmem:[%s2956 + $0x8] sm:$0xff]
      %v2959 = vld [vmem:[%s2956 + $0x10] sm:$0xff]
      %v2960 = vld [vmem:[%s2956 + $0x18] sm:$0xff]
      %v2961 = vld [vmem:[%s2956 + $0x20] sm:$0xff]
      %v2962 = vld [vmem:[%s2956 + $0x28] sm:$0xff]
      %v2963 = vld [vmem:[%s2956 + $0x30] sm:$0xff]
      %v2964 = vld [vmem:[%s2956 + $0x38] sm:$0xff]
      %v2966 = vsel %vm1365, %v2931, 0
      %v2969 = vsel %vm1365, %v2932, 0
      %v2972 = vsel %vm1365, %v2933, 0
      %v2975 = vsel %vm1365, %v2934, 0
      %v2978 = vsel %vm1365, %v2935, 0
      %v2981 = vsel %vm1365, %v2936, 0
      %v2984 = vsel %vm1365, %v2937, 0
      %v2987 = vsel %vm1365, %v2938, 0
      %v2990 = vsel %vm1365, %v2939, 0
      %v2993 = vsel %vm1365, %v2940, 0
      %v2996 = vsel %vm1365, %v2941, 0
      %v2999 = vsel %vm1365, %v2942, 0
      %v3002 = vsel %vm1365, %v2943, 0
      %v3005 = vsel %vm1365, %v2944, 0
      %v3008 = vsel %vm1365, %v2945, 0
      %v3011 = vsel %vm1365, %v2946, 0
      %v3014 = vsel %vm1365, %v2947, 0
      %v3017 = vsel %vm1365, %v2948, 0
      %v3020 = vsel %vm1365, %v2949, 0
      %v3023 = vsel %vm1365, %v2950, 0
      %v3026 = vsel %vm1365, %v2951, 0
      %v3029 = vsel %vm1365, %v2952, 0
      %v3032 = vsel %vm1365, %v2953, 0
      %v3035 = vsel %vm1365, %v2954, 0
      %v3038 = vsel %vm1365, %v2955, 0
      %3040 = vmatpush.msra.mxu0 0.0
      %3041 = vmatpush.msra.mxu0 0.0
      %3042 = vmatpush.msra.mxu0 0.0
      %3043 = vmatpush.msra.mxu0 0.0
      %3044 = vmatpush.msra.mxu0 0.0
      %3045 = vmatpush.msra.mxu0 0.0
      %3046 = vmatpush.msra.mxu0 0.0
      %3047 = vmatpush.msra.mxu0 0.0
      %3048 = vmatpush.msra.mxu0 %v2964
      %3049 = vmatpush.msra.mxu0 %v2963
      %3050 = vmatpush.msra.mxu0 %v2962
      %3051 = vmatpush.msra.mxu0 %v2961
      %3052 = vmatpush.msra.mxu0 %v2960
      %3053 = vmatpush.msra.mxu0 %v2959
      %3054 = vmatpush.msra.mxu0 %v2958
      %3055 = vmatpush.msra.mxu0 %v2957
      %3056 = vmatmul.f32.gmra.mxu0 %v2966
      %v3057 = vpop.f32.mrf.mxu0
      %v3058 = vadd.f32 0.0, %v3057
      %3059 = vmatmul.f32.gmra.mxu0 %v2969
      %v3060 = vpop.f32.mrf.mxu0
      %v3061 = vadd.f32 0.0, %v3060
      %3062 = vmatmul.f32.gmra.mxu0 %v2972
      %v3063 = vpop.f32.mrf.mxu0
      %v3064 = vadd.f32 0.0, %v3063
      %3065 = vmatmul.f32.gmra.mxu0 %v2975
      %v3066 = vpop.f32.mrf.mxu0
      %v3067 = vadd.f32 0.0, %v3066
      %3068 = vmatmul.f32.gmra.mxu0 %v2978
      %v3069 = vpop.f32.mrf.mxu0
      %v3070 = vadd.f32 0.0, %v3069
      %3071 = vmatmul.f32.gmra.mxu0 %v2981
      %v3072 = vpop.f32.mrf.mxu0
      %v3073 = vadd.f32 0.0, %v3072
      %3074 = vmatmul.f32.gmra.mxu0 %v2984
      %v3075 = vpop.f32.mrf.mxu0
      %v3076 = vadd.f32 0.0, %v3075
      %3077 = vmatmul.f32.gmra.mxu0 %v2987
      %v3078 = vpop.f32.mrf.mxu0
      %v3079 = vadd.f32 0.0, %v3078
      %3080 = vmatmul.f32.gmra.mxu0 %v2990
      %v3081 = vpop.f32.mrf.mxu0
      %v3082 = vadd.f32 0.0, %v3081
      %3083 = vmatmul.f32.gmra.mxu0 %v2993
      %v3084 = vpop.f32.mrf.mxu0
      %v3085 = vadd.f32 0.0, %v3084
      %3086 = vmatmul.f32.gmra.mxu0 %v2996
      %v3087 = vpop.f32.mrf.mxu0
      %v3088 = vadd.f32 0.0, %v3087
      %3089 = vmatmul.f32.gmra.mxu0 %v2999
      %v3090 = vpop.f32.mrf.mxu0
      %v3091 = vadd.f32 0.0, %v3090
      %3092 = vmatmul.f32.gmra.mxu0 %v3002
      %v3093 = vpop.f32.mrf.mxu0
      %v3094 = vadd.f32 0.0, %v3093
      %3095 = vmatmul.f32.gmra.mxu0 %v3005
      %v3096 = vpop.f32.mrf.mxu0
      %v3097 = vadd.f32 0.0, %v3096
      %3098 = vmatmul.f32.gmra.mxu0 %v3008
      %v3099 = vpop.f32.mrf.mxu0
      %v3100 = vadd.f32 0.0, %v3099
      %3101 = vmatmul.f32.gmra.mxu0 %v3011
      %v3102 = vpop.f32.mrf.mxu0
      %v3103 = vadd.f32 0.0, %v3102
      %3104 = vmatmul.f32.gmra.mxu0 %v3014
      %v3105 = vpop.f32.mrf.mxu0
      %v3106 = vadd.f32 0.0, %v3105
      %3107 = vmatmul.f32.gmra.mxu0 %v3017
      %v3108 = vpop.f32.mrf.mxu0
      %v3109 = vadd.f32 0.0, %v3108
      %3110 = vmatmul.f32.gmra.mxu0 %v3020
      %v3111 = vpop.f32.mrf.mxu0
      %v3112 = vadd.f32 0.0, %v3111
      %3113 = vmatmul.f32.gmra.mxu0 %v3023
      %v3114 = vpop.f32.mrf.mxu0
      %v3115 = vadd.f32 0.0, %v3114
      %3116 = vmatmul.f32.gmra.mxu0 %v3026
      %v3117 = vpop.f32.mrf.mxu0
      %v3118 = vadd.f32 0.0, %v3117
      %3119 = vmatmul.f32.gmra.mxu0 %v3029
      %v3120 = vpop.f32.mrf.mxu0
      %v3121 = vadd.f32 0.0, %v3120
      %3122 = vmatmul.f32.gmra.mxu0 %v3032
      %v3123 = vpop.f32.mrf.mxu0
      %v3124 = vadd.f32 0.0, %v3123
      %3125 = vmatmul.f32.gmra.mxu0 %v3035
      %v3126 = vpop.f32.mrf.mxu0
      %v3127 = vadd.f32 0.0, %v3126
      %3128 = vmatmul.f32.gmra.mxu0 %v3038
      %v3129 = vpop.f32.mrf.mxu0
      %v3130 = vadd.f32 0.0, %v3129
      %3131 = vdwg.mxu0
      %v3132 = vadd.f32 %v2906, %v3058
      %v3133 = vadd.f32 %v2907, %v3061
      %v3134 = vadd.f32 %v2908, %v3064
      %v3135 = vadd.f32 %v2909, %v3067
      %v3136 = vadd.f32 %v2910, %v3070
      %v3137 = vadd.f32 %v2911, %v3073
      %v3138 = vadd.f32 %v2912, %v3076
      %v3139 = vadd.f32 %v2913, %v3079
      %v3140 = vadd.f32 %v2914, %v3082
      %v3141 = vadd.f32 %v2915, %v3085
      %v3142 = vadd.f32 %v2916, %v3088
      %v3143 = vadd.f32 %v2917, %v3091
      %v3144 = vadd.f32 %v2918, %v3094
      %v3145 = vadd.f32 %v2919, %v3097
      %v3146 = vadd.f32 %v2920, %v3100
      %v3147 = vadd.f32 %v2921, %v3103
      %v3148 = vadd.f32 %v2922, %v3106
      %v3149 = vadd.f32 %v2923, %v3109
      %v3150 = vadd.f32 %v2924, %v3112
      %v3151 = vadd.f32 %v2925, %v3115
      %v3152 = vadd.f32 %v2926, %v3118
      %v3153 = vadd.f32 %v2927, %v3121
      %v3154 = vadd.f32 %v2928, %v3124
      %v3155 = vadd.f32 %v2929, %v3127
      %v3156 = vadd.f32 %v2930, %v3130
      %v3157 = vld [vmem:[#allocation2 + $0x11] sm:$0xff]
      %v3158 = vld [vmem:[#allocation2 + $0x19] sm:$0xff]
      %v3159 = vld [vmem:[#allocation2 + $0x21] sm:$0xff]
      %v3160 = vld [vmem:[#allocation2 + $0x29] sm:$0xff]
      %v3161 = vld [vmem:[#allocation2 + $0x31] sm:$0xff]
      %v3162 = vld [vmem:[#allocation2 + $0x39] sm:$0xff]
      %v3163 = vld [vmem:[#allocation2 + $0x41] sm:$0xff]
      %v3164 = vld [vmem:[#allocation2 + $0x49] sm:$0xff]
      %v3165 = vld [vmem:[#allocation2 + $0x51] sm:$0xff]
      %v3166 = vld [vmem:[#allocation2 + $0x59] sm:$0xff]
      %v3167 = vld [vmem:[#allocation2 + $0x61] sm:$0xff]
      %v3168 = vld [vmem:[#allocation2 + $0x69] sm:$0xff]
      %v3169 = vld [vmem:[#allocation2 + $0x71] sm:$0xff]
      %v3170 = vld [vmem:[#allocation2 + $0x79] sm:$0xff]
      %v3171 = vld [vmem:[#allocation2 + $0x81] sm:$0xff]
      %v3172 = vld [vmem:[#allocation2 + $0x89] sm:$0xff]
      %v3173 = vld [vmem:[#allocation2 + $0x91] sm:$0xff]
      %v3174 = vld [vmem:[#allocation2 + $0x99] sm:$0xff]
      %v3175 = vld [vmem:[#allocation2 + $0xa1] sm:$0xff]
      %v3176 = vld [vmem:[#allocation2 + $0xa9] sm:$0xff]
      %v3177 = vld [vmem:[#allocation2 + $0xb1] sm:$0xff]
      %v3178 = vld [vmem:[#allocation2 + $0xb9] sm:$0xff]
      %v3179 = vld [vmem:[#allocation2 + $0xc1] sm:$0xff]
      %v3180 = vld [vmem:[#allocation2 + $0xc9] sm:$0xff]
      %v3181 = vld [vmem:[#allocation2 + $0xd1] sm:$0xf]
      %s3182 = scalar_lea.vmem %s3, 512
      %v3183 = vld [vmem:[%s3182] sm:$0xff]
      %v3184 = vld [vmem:[%s3182 + $0x8] sm:$0xff]
      %v3185 = vld [vmem:[%s3182 + $0x10] sm:$0xff]
      %v3186 = vld [vmem:[%s3182 + $0x18] sm:$0xff]
      %v3187 = vld [vmem:[%s3182 + $0x20] sm:$0xff]
      %v3188 = vld [vmem:[%s3182 + $0x28] sm:$0xff]
      %v3189 = vld [vmem:[%s3182 + $0x30] sm:$0xff]
      %v3190 = vld [vmem:[%s3182 + $0x38] sm:$0xff]
      %v3192 = vsel %vm1365, %v3157, 0
      %v3195 = vsel %vm1365, %v3158, 0
      %v3198 = vsel %vm1365, %v3159, 0
      %v3201 = vsel %vm1365, %v3160, 0
      %v3204 = vsel %vm1365, %v3161, 0
      %v3207 = vsel %vm1365, %v3162, 0
      %v3210 = vsel %vm1365, %v3163, 0
      %v3213 = vsel %vm1365, %v3164, 0
      %v3216 = vsel %vm1365, %v3165, 0
      %v3219 = vsel %vm1365, %v3166, 0
      %v3222 = vsel %vm1365, %v3167, 0
      %v3225 = vsel %vm1365, %v3168, 0
      %v3228 = vsel %vm1365, %v3169, 0
      %v3231 = vsel %vm1365, %v3170, 0
      %v3234 = vsel %vm1365, %v3171, 0
      %v3237 = vsel %vm1365, %v3172, 0
      %v3240 = vsel %vm1365, %v3173, 0
      %v3243 = vsel %vm1365, %v3174, 0
      %v3246 = vsel %vm1365, %v3175, 0
      %v3249 = vsel %vm1365, %v3176, 0
      %v3252 = vsel %vm1365, %v3177, 0
      %v3255 = vsel %vm1365, %v3178, 0
      %v3258 = vsel %vm1365, %v3179, 0
      %v3261 = vsel %vm1365, %v3180, 0
      %v3264 = vsel %vm1365, %v3181, 0
      %3266 = vmatpush.msra.mxu0 0.0
      %3267 = vmatpush.msra.mxu0 0.0
      %3268 = vmatpush.msra.mxu0 0.0
      %3269 = vmatpush.msra.mxu0 0.0
      %3270 = vmatpush.msra.mxu0 0.0
      %3271 = vmatpush.msra.mxu0 0.0
      %3272 = vmatpush.msra.mxu0 0.0
      %3273 = vmatpush.msra.mxu0 0.0
      %3274 = vmatpush.msra.mxu0 %v3190
      %3275 = vmatpush.msra.mxu0 %v3189
      %3276 = vmatpush.msra.mxu0 %v3188
      %3277 = vmatpush.msra.mxu0 %v3187
      %3278 = vmatpush.msra.mxu0 %v3186
      %3279 = vmatpush.msra.mxu0 %v3185
      %3280 = vmatpush.msra.mxu0 %v3184
      %3281 = vmatpush.msra.mxu0 %v3183
      %3282 = vmatmul.f32.gmra.mxu0 %v3192
      %v3283 = vpop.f32.mrf.mxu0
      %v3284 = vadd.f32 0.0, %v3283
      %3285 = vmatmul.f32.gmra.mxu0 %v3195
      %v3286 = vpop.f32.mrf.mxu0
      %v3287 = vadd.f32 0.0, %v3286
      %3288 = vmatmul.f32.gmra.mxu0 %v3198
      %v3289 = vpop.f32.mrf.mxu0
      %v3290 = vadd.f32 0.0, %v3289
      %3291 = vmatmul.f32.gmra.mxu0 %v3201
      %v3292 = vpop.f32.mrf.mxu0
      %v3293 = vadd.f32 0.0, %v3292
      %3294 = vmatmul.f32.gmra.mxu0 %v3204
      %v3295 = vpop.f32.mrf.mxu0
      %v3296 = vadd.f32 0.0, %v3295
      %3297 = vmatmul.f32.gmra.mxu0 %v3207
      %v3298 = vpop.f32.mrf.mxu0
      %v3299 = vadd.f32 0.0, %v3298
      %3300 = vmatmul.f32.gmra.mxu0 %v3210
      %v3301 = vpop.f32.mrf.mxu0
      %v3302 = vadd.f32 0.0, %v3301
      %3303 = vmatmul.f32.gmra.mxu0 %v3213
      %v3304 = vpop.f32.mrf.mxu0
      %v3305 = vadd.f32 0.0, %v3304
      %3306 = vmatmul.f32.gmra.mxu0 %v3216
      %v3307 = vpop.f32.mrf.mxu0
      %v3308 = vadd.f32 0.0, %v3307
      %3309 = vmatmul.f32.gmra.mxu0 %v3219
      %v3310 = vpop.f32.mrf.mxu0
      %v3311 = vadd.f32 0.0, %v3310
      %3312 = vmatmul.f32.gmra.mxu0 %v3222
      %v3313 = vpop.f32.mrf.mxu0
      %v3314 = vadd.f32 0.0, %v3313
      %3315 = vmatmul.f32.gmra.mxu0 %v3225
      %v3316 = vpop.f32.mrf.mxu0
      %v3317 = vadd.f32 0.0, %v3316
      %3318 = vmatmul.f32.gmra.mxu0 %v3228
      %v3319 = vpop.f32.mrf.mxu0
      %v3320 = vadd.f32 0.0, %v3319
      %3321 = vmatmul.f32.gmra.mxu0 %v3231
      %v3322 = vpop.f32.mrf.mxu0
      %v3323 = vadd.f32 0.0, %v3322
      %3324 = vmatmul.f32.gmra.mxu0 %v3234
      %v3325 = vpop.f32.mrf.mxu0
      %v3326 = vadd.f32 0.0, %v3325
      %3327 = vmatmul.f32.gmra.mxu0 %v3237
      %v3328 = vpop.f32.mrf.mxu0
      %v3329 = vadd.f32 0.0, %v3328
      %3330 = vmatmul.f32.gmra.mxu0 %v3240
      %v3331 = vpop.f32.mrf.mxu0
      %v3332 = vadd.f32 0.0, %v3331
      %3333 = vmatmul.f32.gmra.mxu0 %v3243
      %v3334 = vpop.f32.mrf.mxu0
      %v3335 = vadd.f32 0.0, %v3334
      %3336 = vmatmul.f32.gmra.mxu0 %v3246
      %v3337 = vpop.f32.mrf.mxu0
      %v3338 = vadd.f32 0.0, %v3337
      %3339 = vmatmul.f32.gmra.mxu0 %v3249
      %v3340 = vpop.f32.mrf.mxu0
      %v3341 = vadd.f32 0.0, %v3340
      %3342 = vmatmul.f32.gmra.mxu0 %v3252
      %v3343 = vpop.f32.mrf.mxu0
      %v3344 = vadd.f32 0.0, %v3343
      %3345 = vmatmul.f32.gmra.mxu0 %v3255
      %v3346 = vpop.f32.mrf.mxu0
      %v3347 = vadd.f32 0.0, %v3346
      %3348 = vmatmul.f32.gmra.mxu0 %v3258
      %v3349 = vpop.f32.mrf.mxu0
      %v3350 = vadd.f32 0.0, %v3349
      %3351 = vmatmul.f32.gmra.mxu0 %v3261
      %v3352 = vpop.f32.mrf.mxu0
      %v3353 = vadd.f32 0.0, %v3352
      %3354 = vmatmul.f32.gmra.mxu0 %v3264
      %v3355 = vpop.f32.mrf.mxu0
      %v3356 = vadd.f32 0.0, %v3355
      %3357 = vdwg.mxu0
      %v3358 = vadd.f32 %v3132, %v3284
      %v3359 = vadd.f32 %v3133, %v3287
      %v3360 = vadd.f32 %v3134, %v3290
      %v3361 = vadd.f32 %v3135, %v3293
      %v3362 = vadd.f32 %v3136, %v3296
      %v3363 = vadd.f32 %v3137, %v3299
      %v3364 = vadd.f32 %v3138, %v3302
      %v3365 = vadd.f32 %v3139, %v3305
      %v3366 = vadd.f32 %v3140, %v3308
      %v3367 = vadd.f32 %v3141, %v3311
      %v3368 = vadd.f32 %v3142, %v3314
      %v3369 = vadd.f32 %v3143, %v3317
      %v3370 = vadd.f32 %v3144, %v3320
      %v3371 = vadd.f32 %v3145, %v3323
      %v3372 = vadd.f32 %v3146, %v3326
      %v3373 = vadd.f32 %v3147, %v3329
      %v3374 = vadd.f32 %v3148, %v3332
      %v3375 = vadd.f32 %v3149, %v3335
      %v3376 = vadd.f32 %v3150, %v3338
      %v3377 = vadd.f32 %v3151, %v3341
      %v3378 = vadd.f32 %v3152, %v3344
      %v3379 = vadd.f32 %v3153, %v3347
      %v3380 = vadd.f32 %v3154, %v3350
      %v3381 = vadd.f32 %v3155, %v3353
      %v3382 = vadd.f32 %v3156, %v3356
      %v3383 = vld [vmem:[#allocation2 + $0x12] sm:$0xff]
      %v3384 = vld [vmem:[#allocation2 + $0x1a] sm:$0xff]
      %v3385 = vld [vmem:[#allocation2 + $0x22] sm:$0xff]
      %v3386 = vld [vmem:[#allocation2 + $0x2a] sm:$0xff]
      %v3387 = vld [vmem:[#allocation2 + $0x32] sm:$0xff]
      %v3388 = vld [vmem:[#allocation2 + $0x3a] sm:$0xff]
      %v3389 = vld [vmem:[#allocation2 + $0x42] sm:$0xff]
      %v3390 = vld [vmem:[#allocation2 + $0x4a] sm:$0xff]
      %v3391 = vld [vmem:[#allocation2 + $0x52] sm:$0xff]
      %v3392 = vld [vmem:[#allocation2 + $0x5a] sm:$0xff]
      %v3393 = vld [vmem:[#allocation2 + $0x62] sm:$0xff]
      %v3394 = vld [vmem:[#allocation2 + $0x6a] sm:$0xff]
      %v3395 = vld [vmem:[#allocation2 + $0x72] sm:$0xff]
      %v3396 = vld [vmem:[#allocation2 + $0x7a] sm:$0xff]
      %v3397 = vld [vmem:[#allocation2 + $0x82] sm:$0xff]
      %v3398 = vld [vmem:[#allocation2 + $0x8a] sm:$0xff]
      %v3399 = vld [vmem:[#allocation2 + $0x92] sm:$0xff]
      %v3400 = vld [vmem:[#allocation2 + $0x9a] sm:$0xff]
      %v3401 = vld [vmem:[#allocation2 + $0xa2] sm:$0xff]
      %v3402 = vld [vmem:[#allocation2 + $0xaa] sm:$0xff]
      %v3403 = vld [vmem:[#allocation2 + $0xb2] sm:$0xff]
      %v3404 = vld [vmem:[#allocation2 + $0xba] sm:$0xff]
      %v3405 = vld [vmem:[#allocation2 + $0xc2] sm:$0xff]
      %v3406 = vld [vmem:[#allocation2 + $0xca] sm:$0xff]
      %v3407 = vld [vmem:[#allocation2 + $0xd2] sm:$0xf]
      %s3408 = scalar_lea.vmem %s3, 576
      %v3409 = vld [vmem:[%s3408] sm:$0xff]
      %v3410 = vld [vmem:[%s3408 + $0x8] sm:$0xff]
      %v3411 = vld [vmem:[%s3408 + $0x10] sm:$0xff]
      %v3412 = vld [vmem:[%s3408 + $0x18] sm:$0xff]
      %v3413 = vld [vmem:[%s3408 + $0x20] sm:$0xff]
      %v3414 = vld [vmem:[%s3408 + $0x28] sm:$0xff]
      %v3415 = vld [vmem:[%s3408 + $0x30] sm:$0xff]
      %v3416 = vld [vmem:[%s3408 + $0x38] sm:$0xff]
      %v3418 = vsel %vm1365, %v3383, 0
      %v3421 = vsel %vm1365, %v3384, 0
      %v3424 = vsel %vm1365, %v3385, 0
      %v3427 = vsel %vm1365, %v3386, 0
      %v3430 = vsel %vm1365, %v3387, 0
      %v3433 = vsel %vm1365, %v3388, 0
      %v3436 = vsel %vm1365, %v3389, 0
      %v3439 = vsel %vm1365, %v3390, 0
      %v3442 = vsel %vm1365, %v3391, 0
      %v3445 = vsel %vm1365, %v3392, 0
      %v3448 = vsel %vm1365, %v3393, 0
      %v3451 = vsel %vm1365, %v3394, 0
      %v3454 = vsel %vm1365, %v3395, 0
      %v3457 = vsel %vm1365, %v3396, 0
      %v3460 = vsel %vm1365, %v3397, 0
      %v3463 = vsel %vm1365, %v3398, 0
      %v3466 = vsel %vm1365, %v3399, 0
      %v3469 = vsel %vm1365, %v3400, 0
      %v3472 = vsel %vm1365, %v3401, 0
      %v3475 = vsel %vm1365, %v3402, 0
      %v3478 = vsel %vm1365, %v3403, 0
      %v3481 = vsel %vm1365, %v3404, 0
      %v3484 = vsel %vm1365, %v3405, 0
      %v3487 = vsel %vm1365, %v3406, 0
      %v3490 = vsel %vm1365, %v3407, 0
      %3492 = vmatpush.msra.mxu0 0.0
      %3493 = vmatpush.msra.mxu0 0.0
      %3494 = vmatpush.msra.mxu0 0.0
      %3495 = vmatpush.msra.mxu0 0.0
      %3496 = vmatpush.msra.mxu0 0.0
      %3497 = vmatpush.msra.mxu0 0.0
      %3498 = vmatpush.msra.mxu0 0.0
      %3499 = vmatpush.msra.mxu0 0.0
      %3500 = vmatpush.msra.mxu0 %v3416
      %3501 = vmatpush.msra.mxu0 %v3415
      %3502 = vmatpush.msra.mxu0 %v3414
      %3503 = vmatpush.msra.mxu0 %v3413
      %3504 = vmatpush.msra.mxu0 %v3412
      %3505 = vmatpush.msra.mxu0 %v3411
      %3506 = vmatpush.msra.mxu0 %v3410
      %3507 = vmatpush.msra.mxu0 %v3409
      %3508 = vmatmul.f32.gmra.mxu0 %v3418
      %v3509 = vpop.f32.mrf.mxu0
      %v3510 = vadd.f32 0.0, %v3509
      %3511 = vmatmul.f32.gmra.mxu0 %v3421
      %v3512 = vpop.f32.mrf.mxu0
      %v3513 = vadd.f32 0.0, %v3512
      %3514 = vmatmul.f32.gmra.mxu0 %v3424
      %v3515 = vpop.f32.mrf.mxu0
      %v3516 = vadd.f32 0.0, %v3515
      %3517 = vmatmul.f32.gmra.mxu0 %v3427
      %v3518 = vpop.f32.mrf.mxu0
      %v3519 = vadd.f32 0.0, %v3518
      %3520 = vmatmul.f32.gmra.mxu0 %v3430
      %v3521 = vpop.f32.mrf.mxu0
      %v3522 = vadd.f32 0.0, %v3521
      %3523 = vmatmul.f32.gmra.mxu0 %v3433
      %v3524 = vpop.f32.mrf.mxu0
      %v3525 = vadd.f32 0.0, %v3524
      %3526 = vmatmul.f32.gmra.mxu0 %v3436
      %v3527 = vpop.f32.mrf.mxu0
      %v3528 = vadd.f32 0.0, %v3527
      %3529 = vmatmul.f32.gmra.mxu0 %v3439
      %v3530 = vpop.f32.mrf.mxu0
      %v3531 = vadd.f32 0.0, %v3530
      %3532 = vmatmul.f32.gmra.mxu0 %v3442
      %v3533 = vpop.f32.mrf.mxu0
      %v3534 = vadd.f32 0.0, %v3533
      %3535 = vmatmul.f32.gmra.mxu0 %v3445
      %v3536 = vpop.f32.mrf.mxu0
      %v3537 = vadd.f32 0.0, %v3536
      %3538 = vmatmul.f32.gmra.mxu0 %v3448
      %v3539 = vpop.f32.mrf.mxu0
      %v3540 = vadd.f32 0.0, %v3539
      %3541 = vmatmul.f32.gmra.mxu0 %v3451
      %v3542 = vpop.f32.mrf.mxu0
      %v3543 = vadd.f32 0.0, %v3542
      %3544 = vmatmul.f32.gmra.mxu0 %v3454
      %v3545 = vpop.f32.mrf.mxu0
      %v3546 = vadd.f32 0.0, %v3545
      %3547 = vmatmul.f32.gmra.mxu0 %v3457
      %v3548 = vpop.f32.mrf.mxu0
      %v3549 = vadd.f32 0.0, %v3548
      %3550 = vmatmul.f32.gmra.mxu0 %v3460
      %v3551 = vpop.f32.mrf.mxu0
      %v3552 = vadd.f32 0.0, %v3551
      %3553 = vmatmul.f32.gmra.mxu0 %v3463
      %v3554 = vpop.f32.mrf.mxu0
      %v3555 = vadd.f32 0.0, %v3554
      %3556 = vmatmul.f32.gmra.mxu0 %v3466
      %v3557 = vpop.f32.mrf.mxu0
      %v3558 = vadd.f32 0.0, %v3557
      %3559 = vmatmul.f32.gmra.mxu0 %v3469
      %v3560 = vpop.f32.mrf.mxu0
      %v3561 = vadd.f32 0.0, %v3560
      %3562 = vmatmul.f32.gmra.mxu0 %v3472
      %v3563 = vpop.f32.mrf.mxu0
      %v3564 = vadd.f32 0.0, %v3563
      %3565 = vmatmul.f32.gmra.mxu0 %v3475
      %v3566 = vpop.f32.mrf.mxu0
      %v3567 = vadd.f32 0.0, %v3566
      %3568 = vmatmul.f32.gmra.mxu0 %v3478
      %v3569 = vpop.f32.mrf.mxu0
      %v3570 = vadd.f32 0.0, %v3569
      %3571 = vmatmul.f32.gmra.mxu0 %v3481
      %v3572 = vpop.f32.mrf.mxu0
      %v3573 = vadd.f32 0.0, %v3572
      %3574 = vmatmul.f32.gmra.mxu0 %v3484
      %v3575 = vpop.f32.mrf.mxu0
      %v3576 = vadd.f32 0.0, %v3575
      %3577 = vmatmul.f32.gmra.mxu0 %v3487
      %v3578 = vpop.f32.mrf.mxu0
      %v3579 = vadd.f32 0.0, %v3578
      %3580 = vmatmul.f32.gmra.mxu0 %v3490
      %v3581 = vpop.f32.mrf.mxu0
      %v3582 = vadd.f32 0.0, %v3581
      %3583 = vdwg.mxu0
      %v3584 = vadd.f32 %v3358, %v3510
      %v3585 = vadd.f32 %v3359, %v3513
      %v3586 = vadd.f32 %v3360, %v3516
      %v3587 = vadd.f32 %v3361, %v3519
      %v3588 = vadd.f32 %v3362, %v3522
      %v3589 = vadd.f32 %v3363, %v3525
      %v3590 = vadd.f32 %v3364, %v3528
      %v3591 = vadd.f32 %v3365, %v3531
      %v3592 = vadd.f32 %v3366, %v3534
      %v3593 = vadd.f32 %v3367, %v3537
      %v3594 = vadd.f32 %v3368, %v3540
      %v3595 = vadd.f32 %v3369, %v3543
      %v3596 = vadd.f32 %v3370, %v3546
      %v3597 = vadd.f32 %v3371, %v3549
      %v3598 = vadd.f32 %v3372, %v3552
      %v3599 = vadd.f32 %v3373, %v3555
      %v3600 = vadd.f32 %v3374, %v3558
      %v3601 = vadd.f32 %v3375, %v3561
      %v3602 = vadd.f32 %v3376, %v3564
      %v3603 = vadd.f32 %v3377, %v3567
      %v3604 = vadd.f32 %v3378, %v3570
      %v3605 = vadd.f32 %v3379, %v3573
      %v3606 = vadd.f32 %v3380, %v3576
      %v3607 = vadd.f32 %v3381, %v3579
      %v3608 = vadd.f32 %v3382, %v3582
      %v3609 = vld [vmem:[#allocation2 + $0x1c] sm:$0xff]
      %v3610 = vld [vmem:[#allocation2 + $0x24] sm:$0xff]
      %v3611 = vld [vmem:[#allocation2 + $0x2c] sm:$0xff]
      %v3612 = vld [vmem:[#allocation2 + $0x34] sm:$0xff]
      %v3613 = vld [vmem:[#allocation2 + $0x3c] sm:$0xff]
      %v3614 = vld [vmem:[#allocation2 + $0x44] sm:$0xff]
      %v3615 = vld [vmem:[#allocation2 + $0x4c] sm:$0xff]
      %v3616 = vld [vmem:[#allocation2 + $0x54] sm:$0xff]
      %v3617 = vld [vmem:[#allocation2 + $0x5c] sm:$0xff]
      %v3618 = vld [vmem:[#allocation2 + $0x64] sm:$0xff]
      %v3619 = vld [vmem:[#allocation2 + $0x6c] sm:$0xff]
      %v3620 = vld [vmem:[#allocation2 + $0x74] sm:$0xff]
      %v3621 = vld [vmem:[#allocation2 + $0x7c] sm:$0xff]
      %v3622 = vld [vmem:[#allocation2 + $0x84] sm:$0xff]
      %v3623 = vld [vmem:[#allocation2 + $0x8c] sm:$0xff]
      %v3624 = vld [vmem:[#allocation2 + $0x94] sm:$0xff]
      %v3625 = vld [vmem:[#allocation2 + $0x9c] sm:$0xff]
      %v3626 = vld [vmem:[#allocation2 + $0xa4] sm:$0xff]
      %v3627 = vld [vmem:[#allocation2 + $0xac] sm:$0xff]
      %v3628 = vld [vmem:[#allocation2 + $0xb4] sm:$0xff]
      %v3629 = vld [vmem:[#allocation2 + $0xbc] sm:$0xff]
      %v3630 = vld [vmem:[#allocation2 + $0xc4] sm:$0xff]
      %v3631 = vld [vmem:[#allocation2 + $0xcc] sm:$0xff]
      %v3632 = vld [vmem:[#allocation2 + $0xd4] sm:$0xff]
      %v3633 = vld [vmem:[#allocation2 + $0xdc] sm:$0xf]
      %s3634 = scalar_lea.vmem %s3, 640
      %v3635 = vld [vmem:[%s3634] sm:$0xff]
      %v3636 = vld [vmem:[%s3634 + $0x8] sm:$0xff]
      %v3637 = vld [vmem:[%s3634 + $0x10] sm:$0xff]
      %v3638 = vld [vmem:[%s3634 + $0x18] sm:$0xff]
      %v3639 = vld [vmem:[%s3634 + $0x20] sm:$0xff]
      %v3640 = vld [vmem:[%s3634 + $0x28] sm:$0xff]
      %v3641 = vld [vmem:[%s3634 + $0x30] sm:$0xff]
      %v3642 = vld [vmem:[%s3634 + $0x38] sm:$0xff]
      %v3644 = vsel %vm1365, %v3609, 0
      %v3647 = vsel %vm1365, %v3610, 0
      %v3650 = vsel %vm1365, %v3611, 0
      %v3653 = vsel %vm1365, %v3612, 0
      %v3656 = vsel %vm1365, %v3613, 0
      %v3659 = vsel %vm1365, %v3614, 0
      %v3662 = vsel %vm1365, %v3615, 0
      %v3665 = vsel %vm1365, %v3616, 0
      %v3668 = vsel %vm1365, %v3617, 0
      %v3671 = vsel %vm1365, %v3618, 0
      %v3674 = vsel %vm1365, %v3619, 0
      %v3677 = vsel %vm1365, %v3620, 0
      %v3680 = vsel %vm1365, %v3621, 0
      %v3683 = vsel %vm1365, %v3622, 0
      %v3686 = vsel %vm1365, %v3623, 0
      %v3689 = vsel %vm1365, %v3624, 0
      %v3692 = vsel %vm1365, %v3625, 0
      %v3695 = vsel %vm1365, %v3626, 0
      %v3698 = vsel %vm1365, %v3627, 0
      %v3701 = vsel %vm1365, %v3628, 0
      %v3704 = vsel %vm1365, %v3629, 0
      %v3707 = vsel %vm1365, %v3630, 0
      %v3710 = vsel %vm1365, %v3631, 0
      %v3713 = vsel %vm1365, %v3632, 0
      %v3716 = vsel %vm1365, %v3633, 0
      %3718 = vmatpush.msra.mxu0 0.0
      %3719 = vmatpush.msra.mxu0 0.0
      %3720 = vmatpush.msra.mxu0 0.0
      %3721 = vmatpush.msra.mxu0 0.0
      %3722 = vmatpush.msra.mxu0 0.0
      %3723 = vmatpush.msra.mxu0 0.0
      %3724 = vmatpush.msra.mxu0 0.0
      %3725 = vmatpush.msra.mxu0 0.0
      %3726 = vmatpush.msra.mxu0 %v3642
      %3727 = vmatpush.msra.mxu0 %v3641
      %3728 = vmatpush.msra.mxu0 %v3640
      %3729 = vmatpush.msra.mxu0 %v3639
      %3730 = vmatpush.msra.mxu0 %v3638
      %3731 = vmatpush.msra.mxu0 %v3637
      %3732 = vmatpush.msra.mxu0 %v3636
      %3733 = vmatpush.msra.mxu0 %v3635
      %3734 = vmatmul.f32.gmra.mxu0 %v3644
      %v3735 = vpop.f32.mrf.mxu0
      %v3736 = vadd.f32 0.0, %v3735
      %3737 = vmatmul.f32.gmra.mxu0 %v3647
      %v3738 = vpop.f32.mrf.mxu0
      %v3739 = vadd.f32 0.0, %v3738
      %3740 = vmatmul.f32.gmra.mxu0 %v3650
      %v3741 = vpop.f32.mrf.mxu0
      %v3742 = vadd.f32 0.0, %v3741
      %3743 = vmatmul.f32.gmra.mxu0 %v3653
      %v3744 = vpop.f32.mrf.mxu0
      %v3745 = vadd.f32 0.0, %v3744
      %3746 = vmatmul.f32.gmra.mxu0 %v3656
      %v3747 = vpop.f32.mrf.mxu0
      %v3748 = vadd.f32 0.0, %v3747
      %3749 = vmatmul.f32.gmra.mxu0 %v3659
      %v3750 = vpop.f32.mrf.mxu0
      %v3751 = vadd.f32 0.0, %v3750
      %3752 = vmatmul.f32.gmra.mxu0 %v3662
      %v3753 = vpop.f32.mrf.mxu0
      %v3754 = vadd.f32 0.0, %v3753
      %3755 = vmatmul.f32.gmra.mxu0 %v3665
      %v3756 = vpop.f32.mrf.mxu0
      %v3757 = vadd.f32 0.0, %v3756
      %3758 = vmatmul.f32.gmra.mxu0 %v3668
      %v3759 = vpop.f32.mrf.mxu0
      %v3760 = vadd.f32 0.0, %v3759
      %3761 = vmatmul.f32.gmra.mxu0 %v3671
      %v3762 = vpop.f32.mrf.mxu0
      %v3763 = vadd.f32 0.0, %v3762
      %3764 = vmatmul.f32.gmra.mxu0 %v3674
      %v3765 = vpop.f32.mrf.mxu0
      %v3766 = vadd.f32 0.0, %v3765
      %3767 = vmatmul.f32.gmra.mxu0 %v3677
      %v3768 = vpop.f32.mrf.mxu0
      %v3769 = vadd.f32 0.0, %v3768
      %3770 = vmatmul.f32.gmra.mxu0 %v3680
      %v3771 = vpop.f32.mrf.mxu0
      %v3772 = vadd.f32 0.0, %v3771
      %3773 = vmatmul.f32.gmra.mxu0 %v3683
      %v3774 = vpop.f32.mrf.mxu0
      %v3775 = vadd.f32 0.0, %v3774
      %3776 = vmatmul.f32.gmra.mxu0 %v3686
      %v3777 = vpop.f32.mrf.mxu0
      %v3778 = vadd.f32 0.0, %v3777
      %3779 = vmatmul.f32.gmra.mxu0 %v3689
      %v3780 = vpop.f32.mrf.mxu0
      %v3781 = vadd.f32 0.0, %v3780
      %3782 = vmatmul.f32.gmra.mxu0 %v3692
      %v3783 = vpop.f32.mrf.mxu0
      %v3784 = vadd.f32 0.0, %v3783
      %3785 = vmatmul.f32.gmra.mxu0 %v3695
      %v3786 = vpop.f32.mrf.mxu0
      %v3787 = vadd.f32 0.0, %v3786
      %3788 = vmatmul.f32.gmra.mxu0 %v3698
      %v3789 = vpop.f32.mrf.mxu0
      %v3790 = vadd.f32 0.0, %v3789
      %3791 = vmatmul.f32.gmra.mxu0 %v3701
      %v3792 = vpop.f32.mrf.mxu0
      %v3793 = vadd.f32 0.0, %v3792
      %3794 = vmatmul.f32.gmra.mxu0 %v3704
      %v3795 = vpop.f32.mrf.mxu0
      %v3796 = vadd.f32 0.0, %v3795
      %3797 = vmatmul.f32.gmra.mxu0 %v3707
      %v3798 = vpop.f32.mrf.mxu0
      %v3799 = vadd.f32 0.0, %v3798
      %3800 = vmatmul.f32.gmra.mxu0 %v3710
      %v3801 = vpop.f32.mrf.mxu0
      %v3802 = vadd.f32 0.0, %v3801
      %3803 = vmatmul.f32.gmra.mxu0 %v3713
      %v3804 = vpop.f32.mrf.mxu0
      %v3805 = vadd.f32 0.0, %v3804
      %3806 = vmatmul.f32.gmra.mxu0 %v3716
      %v3807 = vpop.f32.mrf.mxu0
      %v3808 = vadd.f32 0.0, %v3807
      %3809 = vdwg.mxu0
      %v3810 = vadd.f32 %v3584, %v3736
      %v3811 = vadd.f32 %v3585, %v3739
      %v3812 = vadd.f32 %v3586, %v3742
      %v3813 = vadd.f32 %v3587, %v3745
      %v3814 = vadd.f32 %v3588, %v3748
      %v3815 = vadd.f32 %v3589, %v3751
      %v3816 = vadd.f32 %v3590, %v3754
      %v3817 = vadd.f32 %v3591, %v3757
      %v3818 = vadd.f32 %v3592, %v3760
      %v3819 = vadd.f32 %v3593, %v3763
      %v3820 = vadd.f32 %v3594, %v3766
      %v3821 = vadd.f32 %v3595, %v3769
      %v3822 = vadd.f32 %v3596, %v3772
      %v3823 = vadd.f32 %v3597, %v3775
      %v3824 = vadd.f32 %v3598, %v3778
      %v3825 = vadd.f32 %v3599, %v3781
      %v3826 = vadd.f32 %v3600, %v3784
      %v3827 = vadd.f32 %v3601, %v3787
      %v3828 = vadd.f32 %v3602, %v3790
      %v3829 = vadd.f32 %v3603, %v3793
      %v3830 = vadd.f32 %v3604, %v3796
      %v3831 = vadd.f32 %v3605, %v3799
      %v3832 = vadd.f32 %v3606, %v3802
      %v3833 = vadd.f32 %v3607, %v3805
      %v3834 = vadd.f32 %v3608, %v3808
      %v3835 = vld [vmem:[#allocation2 + $0x1d] sm:$0xff]
      %v3836 = vld [vmem:[#allocation2 + $0x25] sm:$0xff]
      %v3837 = vld [vmem:[#allocation2 + $0x2d] sm:$0xff]
      %v3838 = vld [vmem:[#allocation2 + $0x35] sm:$0xff]
      %v3839 = vld [vmem:[#allocation2 + $0x3d] sm:$0xff]
      %v3840 = vld [vmem:[#allocation2 + $0x45] sm:$0xff]
      %v3841 = vld [vmem:[#allocation2 + $0x4d] sm:$0xff]
      %v3842 = vld [vmem:[#allocation2 + $0x55] sm:$0xff]
      %v3843 = vld [vmem:[#allocation2 + $0x5d] sm:$0xff]
      %v3844 = vld [vmem:[#allocation2 + $0x65] sm:$0xff]
      %v3845 = vld [vmem:[#allocation2 + $0x6d] sm:$0xff]
      %v3846 = vld [vmem:[#allocation2 + $0x75] sm:$0xff]
      %v3847 = vld [vmem:[#allocation2 + $0x7d] sm:$0xff]
      %v3848 = vld [vmem:[#allocation2 + $0x85] sm:$0xff]
      %v3849 = vld [vmem:[#allocation2 + $0x8d] sm:$0xff]
      %v3850 = vld [vmem:[#allocation2 + $0x95] sm:$0xff]
      %v3851 = vld [vmem:[#allocation2 + $0x9d] sm:$0xff]
      %v3852 = vld [vmem:[#allocation2 + $0xa5] sm:$0xff]
      %v3853 = vld [vmem:[#allocation2 + $0xad] sm:$0xff]
      %v3854 = vld [vmem:[#allocation2 + $0xb5] sm:$0xff]
      %v3855 = vld [vmem:[#allocation2 + $0xbd] sm:$0xff]
      %v3856 = vld [vmem:[#allocation2 + $0xc5] sm:$0xff]
      %v3857 = vld [vmem:[#allocation2 + $0xcd] sm:$0xff]
      %v3858 = vld [vmem:[#allocation2 + $0xd5] sm:$0xff]
      %v3859 = vld [vmem:[#allocation2 + $0xdd] sm:$0xf]
      %s3860 = scalar_lea.vmem %s3, 704
      %v3861 = vld [vmem:[%s3860] sm:$0xff]
      %v3862 = vld [vmem:[%s3860 + $0x8] sm:$0xff]
      %v3863 = vld [vmem:[%s3860 + $0x10] sm:$0xff]
      %v3864 = vld [vmem:[%s3860 + $0x18] sm:$0xff]
      %v3865 = vld [vmem:[%s3860 + $0x20] sm:$0xff]
      %v3866 = vld [vmem:[%s3860 + $0x28] sm:$0xff]
      %v3867 = vld [vmem:[%s3860 + $0x30] sm:$0xff]
      %v3868 = vld [vmem:[%s3860 + $0x38] sm:$0xff]
      %v3870 = vsel %vm1365, %v3835, 0
      %v3873 = vsel %vm1365, %v3836, 0
      %v3876 = vsel %vm1365, %v3837, 0
      %v3879 = vsel %vm1365, %v3838, 0
      %v3882 = vsel %vm1365, %v3839, 0
      %v3885 = vsel %vm1365, %v3840, 0
      %v3888 = vsel %vm1365, %v3841, 0
      %v3891 = vsel %vm1365, %v3842, 0
      %v3894 = vsel %vm1365, %v3843, 0
      %v3897 = vsel %vm1365, %v3844, 0
      %v3900 = vsel %vm1365, %v3845, 0
      %v3903 = vsel %vm1365, %v3846, 0
      %v3906 = vsel %vm1365, %v3847, 0
      %v3909 = vsel %vm1365, %v3848, 0
      %v3912 = vsel %vm1365, %v3849, 0
      %v3915 = vsel %vm1365, %v3850, 0
      %v3918 = vsel %vm1365, %v3851, 0
      %v3921 = vsel %vm1365, %v3852, 0
      %v3924 = vsel %vm1365, %v3853, 0
      %v3927 = vsel %vm1365, %v3854, 0
      %v3930 = vsel %vm1365, %v3855, 0
      %v3933 = vsel %vm1365, %v3856, 0
      %v3936 = vsel %vm1365, %v3857, 0
      %v3939 = vsel %vm1365, %v3858, 0
      %v3942 = vsel %vm1365, %v3859, 0
      %3944 = vmatpush.msra.mxu0 0.0
      %3945 = vmatpush.msra.mxu0 0.0
      %3946 = vmatpush.msra.mxu0 0.0
      %3947 = vmatpush.msra.mxu0 0.0
      %3948 = vmatpush.msra.mxu0 0.0
      %3949 = vmatpush.msra.mxu0 0.0
      %3950 = vmatpush.msra.mxu0 0.0
      %3951 = vmatpush.msra.mxu0 0.0
      %3952 = vmatpush.msra.mxu0 %v3868
      %3953 = vmatpush.msra.mxu0 %v3867
      %3954 = vmatpush.msra.mxu0 %v3866
      %3955 = vmatpush.msra.mxu0 %v3865
      %3956 = vmatpush.msra.mxu0 %v3864
      %3957 = vmatpush.msra.mxu0 %v3863
      %3958 = vmatpush.msra.mxu0 %v3862
      %3959 = vmatpush.msra.mxu0 %v3861
      %3960 = vmatmul.f32.gmra.mxu0 %v3870
      %v3961 = vpop.f32.mrf.mxu0
      %v3962 = vadd.f32 0.0, %v3961
      %3963 = vmatmul.f32.gmra.mxu0 %v3873
      %v3964 = vpop.f32.mrf.mxu0
      %v3965 = vadd.f32 0.0, %v3964
      %3966 = vmatmul.f32.gmra.mxu0 %v3876
      %v3967 = vpop.f32.mrf.mxu0
      %v3968 = vadd.f32 0.0, %v3967
      %3969 = vmatmul.f32.gmra.mxu0 %v3879
      %v3970 = vpop.f32.mrf.mxu0
      %v3971 = vadd.f32 0.0, %v3970
      %3972 = vmatmul.f32.gmra.mxu0 %v3882
      %v3973 = vpop.f32.mrf.mxu0
      %v3974 = vadd.f32 0.0, %v3973
      %3975 = vmatmul.f32.gmra.mxu0 %v3885
      %v3976 = vpop.f32.mrf.mxu0
      %v3977 = vadd.f32 0.0, %v3976
      %3978 = vmatmul.f32.gmra.mxu0 %v3888
      %v3979 = vpop.f32.mrf.mxu0
      %v3980 = vadd.f32 0.0, %v3979
      %3981 = vmatmul.f32.gmra.mxu0 %v3891
      %v3982 = vpop.f32.mrf.mxu0
      %v3983 = vadd.f32 0.0, %v3982
      %3984 = vmatmul.f32.gmra.mxu0 %v3894
      %v3985 = vpop.f32.mrf.mxu0
      %v3986 = vadd.f32 0.0, %v3985
      %3987 = vmatmul.f32.gmra.mxu0 %v3897
      %v3988 = vpop.f32.mrf.mxu0
      %v3989 = vadd.f32 0.0, %v3988
      %3990 = vmatmul.f32.gmra.mxu0 %v3900
      %v3991 = vpop.f32.mrf.mxu0
      %v3992 = vadd.f32 0.0, %v3991
      %3993 = vmatmul.f32.gmra.mxu0 %v3903
      %v3994 = vpop.f32.mrf.mxu0
      %v3995 = vadd.f32 0.0, %v3994
      %3996 = vmatmul.f32.gmra.mxu0 %v3906
      %v3997 = vpop.f32.mrf.mxu0
      %v3998 = vadd.f32 0.0, %v3997
      %3999 = vmatmul.f32.gmra.mxu0 %v3909
      %v4000 = vpop.f32.mrf.mxu0
      %v4001 = vadd.f32 0.0, %v4000
      %4002 = vmatmul.f32.gmra.mxu0 %v3912
      %v4003 = vpop.f32.mrf.mxu0
      %v4004 = vadd.f32 0.0, %v4003
      %4005 = vmatmul.f32.gmra.mxu0 %v3915
      %v4006 = vpop.f32.mrf.mxu0
      %v4007 = vadd.f32 0.0, %v4006
      %4008 = vmatmul.f32.gmra.mxu0 %v3918
      %v4009 = vpop.f32.mrf.mxu0
      %v4010 = vadd.f32 0.0, %v4009
      %4011 = vmatmul.f32.gmra.mxu0 %v3921
      %v4012 = vpop.f32.mrf.mxu0
      %v4013 = vadd.f32 0.0, %v4012
      %4014 = vmatmul.f32.gmra.mxu0 %v3924
      %v4015 = vpop.f32.mrf.mxu0
      %v4016 = vadd.f32 0.0, %v4015
      %4017 = vmatmul.f32.gmra.mxu0 %v3927
      %v4018 = vpop.f32.mrf.mxu0
      %v4019 = vadd.f32 0.0, %v4018
      %4020 = vmatmul.f32.gmra.mxu0 %v3930
      %v4021 = vpop.f32.mrf.mxu0
      %v4022 = vadd.f32 0.0, %v4021
      %4023 = vmatmul.f32.gmra.mxu0 %v3933
      %v4024 = vpop.f32.mrf.mxu0
      %v4025 = vadd.f32 0.0, %v4024
      %4026 = vmatmul.f32.gmra.mxu0 %v3936
      %v4027 = vpop.f32.mrf.mxu0
      %v4028 = vadd.f32 0.0, %v4027
      %4029 = vmatmul.f32.gmra.mxu0 %v3939
      %v4030 = vpop.f32.mrf.mxu0
      %v4031 = vadd.f32 0.0, %v4030
      %4032 = vmatmul.f32.gmra.mxu0 %v3942
      %v4033 = vpop.f32.mrf.mxu0
      %v4034 = vadd.f32 0.0, %v4033
      %4035 = vdwg.mxu0
      %v4036 = vadd.f32 %v3810, %v3962
      %v4037 = vadd.f32 %v3811, %v3965
      %v4038 = vadd.f32 %v3812, %v3968
      %v4039 = vadd.f32 %v3813, %v3971
      %v4040 = vadd.f32 %v3814, %v3974
      %v4041 = vadd.f32 %v3815, %v3977
      %v4042 = vadd.f32 %v3816, %v3980
      %v4043 = vadd.f32 %v3817, %v3983
      %v4044 = vadd.f32 %v3818, %v3986
      %v4045 = vadd.f32 %v3819, %v3989
      %v4046 = vadd.f32 %v3820, %v3992
      %v4047 = vadd.f32 %v3821, %v3995
      %v4048 = vadd.f32 %v3822, %v3998
      %v4049 = vadd.f32 %v3823, %v4001
      %v4050 = vadd.f32 %v3824, %v4004
      %v4051 = vadd.f32 %v3825, %v4007
      %v4052 = vadd.f32 %v3826, %v4010
      %v4053 = vadd.f32 %v3827, %v4013
      %v4054 = vadd.f32 %v3828, %v4016
      %v4055 = vadd.f32 %v3829, %v4019
      %v4056 = vadd.f32 %v3830, %v4022
      %v4057 = vadd.f32 %v3831, %v4025
      %v4058 = vadd.f32 %v3832, %v4028
      %v4059 = vadd.f32 %v3833, %v4031
      %v4060 = vadd.f32 %v3834, %v4034
      %v4061 = vld [vmem:[#allocation2 + $0x1e] sm:$0xff]
      %v4062 = vld [vmem:[#allocation2 + $0x26] sm:$0xff]
      %v4063 = vld [vmem:[#allocation2 + $0x2e] sm:$0xff]
      %v4064 = vld [vmem:[#allocation2 + $0x36] sm:$0xff]
      %v4065 = vld [vmem:[#allocation2 + $0x3e] sm:$0xff]
      %v4066 = vld [vmem:[#allocation2 + $0x46] sm:$0xff]
      %v4067 = vld [vmem:[#allocation2 + $0x4e] sm:$0xff]
      %v4068 = vld [vmem:[#allocation2 + $0x56] sm:$0xff]
      %v4069 = vld [vmem:[#allocation2 + $0x5e] sm:$0xff]
      %v4070 = vld [vmem:[#allocation2 + $0x66] sm:$0xff]
      %v4071 = vld [vmem:[#allocation2 + $0x6e] sm:$0xff]
      %v4072 = vld [vmem:[#allocation2 + $0x76] sm:$0xff]
      %v4073 = vld [vmem:[#allocation2 + $0x7e] sm:$0xff]
      %v4074 = vld [vmem:[#allocation2 + $0x86] sm:$0xff]
      %v4075 = vld [vmem:[#allocation2 + $0x8e] sm:$0xff]
      %v4076 = vld [vmem:[#allocation2 + $0x96] sm:$0xff]
      %v4077 = vld [vmem:[#allocation2 + $0x9e] sm:$0xff]
      %v4078 = vld [vmem:[#allocation2 + $0xa6] sm:$0xff]
      %v4079 = vld [vmem:[#allocation2 + $0xae] sm:$0xff]
      %v4080 = vld [vmem:[#allocation2 + $0xb6] sm:$0xff]
      %v4081 = vld [vmem:[#allocation2 + $0xbe] sm:$0xff]
      %v4082 = vld [vmem:[#allocation2 + $0xc6] sm:$0xff]
      %v4083 = vld [vmem:[#allocation2 + $0xce] sm:$0xff]
      %v4084 = vld [vmem:[#allocation2 + $0xd6] sm:$0xff]
      %v4085 = vld [vmem:[#allocation2 + $0xde] sm:$0xf]
      %s4086 = scalar_lea.vmem %s3, 768
      %v4087 = vld [vmem:[%s4086] sm:$0xff]
      %v4088 = vld [vmem:[%s4086 + $0x8] sm:$0xff]
      %v4089 = vld [vmem:[%s4086 + $0x10] sm:$0xff]
      %v4090 = vld [vmem:[%s4086 + $0x18] sm:$0xff]
      %v4091 = vld [vmem:[%s4086 + $0x20] sm:$0xff]
      %v4092 = vld [vmem:[%s4086 + $0x28] sm:$0xff]
      %v4093 = vld [vmem:[%s4086 + $0x30] sm:$0xff]
      %v4094 = vld [vmem:[%s4086 + $0x38] sm:$0xff]
      %v4096 = vsel %vm1365, %v4061, 0
      %v4099 = vsel %vm1365, %v4062, 0
      %v4102 = vsel %vm1365, %v4063, 0
      %v4105 = vsel %vm1365, %v4064, 0
      %v4108 = vsel %vm1365, %v4065, 0
      %v4111 = vsel %vm1365, %v4066, 0
      %v4114 = vsel %vm1365, %v4067, 0
      %v4117 = vsel %vm1365, %v4068, 0
      %v4120 = vsel %vm1365, %v4069, 0
      %v4123 = vsel %vm1365, %v4070, 0
      %v4126 = vsel %vm1365, %v4071, 0
      %v4129 = vsel %vm1365, %v4072, 0
      %v4132 = vsel %vm1365, %v4073, 0
      %v4135 = vsel %vm1365, %v4074, 0
      %v4138 = vsel %vm1365, %v4075, 0
      %v4141 = vsel %vm1365, %v4076, 0
      %v4144 = vsel %vm1365, %v4077, 0
      %v4147 = vsel %vm1365, %v4078, 0
      %v4150 = vsel %vm1365, %v4079, 0
      %v4153 = vsel %vm1365, %v4080, 0
      %v4156 = vsel %vm1365, %v4081, 0
      %v4159 = vsel %vm1365, %v4082, 0
      %v4162 = vsel %vm1365, %v4083, 0
      %v4165 = vsel %vm1365, %v4084, 0
      %v4168 = vsel %vm1365, %v4085, 0
      %4170 = vmatpush.msra.mxu0 0.0
      %4171 = vmatpush.msra.mxu0 0.0
      %4172 = vmatpush.msra.mxu0 0.0
      %4173 = vmatpush.msra.mxu0 0.0
      %4174 = vmatpush.msra.mxu0 0.0
      %4175 = vmatpush.msra.mxu0 0.0
      %4176 = vmatpush.msra.mxu0 0.0
      %4177 = vmatpush.msra.mxu0 0.0
      %4178 = vmatpush.msra.mxu0 %v4094
      %4179 = vmatpush.msra.mxu0 %v4093
      %4180 = vmatpush.msra.mxu0 %v4092
      %4181 = vmatpush.msra.mxu0 %v4091
      %4182 = vmatpush.msra.mxu0 %v4090
      %4183 = vmatpush.msra.mxu0 %v4089
      %4184 = vmatpush.msra.mxu0 %v4088
      %4185 = vmatpush.msra.mxu0 %v4087
      %4186 = vmatmul.f32.gmra.mxu0 %v4096
      %v4187 = vpop.f32.mrf.mxu0
      %v4188 = vadd.f32 0.0, %v4187
      %4189 = vmatmul.f32.gmra.mxu0 %v4099
      %v4190 = vpop.f32.mrf.mxu0
      %v4191 = vadd.f32 0.0, %v4190
      %4192 = vmatmul.f32.gmra.mxu0 %v4102
      %v4193 = vpop.f32.mrf.mxu0
      %v4194 = vadd.f32 0.0, %v4193
      %4195 = vmatmul.f32.gmra.mxu0 %v4105
      %v4196 = vpop.f32.mrf.mxu0
      %v4197 = vadd.f32 0.0, %v4196
      %4198 = vmatmul.f32.gmra.mxu0 %v4108
      %v4199 = vpop.f32.mrf.mxu0
      %v4200 = vadd.f32 0.0, %v4199
      %4201 = vmatmul.f32.gmra.mxu0 %v4111
      %v4202 = vpop.f32.mrf.mxu0
      %v4203 = vadd.f32 0.0, %v4202
      %4204 = vmatmul.f32.gmra.mxu0 %v4114
      %v4205 = vpop.f32.mrf.mxu0
      %v4206 = vadd.f32 0.0, %v4205
      %4207 = vmatmul.f32.gmra.mxu0 %v4117
      %v4208 = vpop.f32.mrf.mxu0
      %v4209 = vadd.f32 0.0, %v4208
      %4210 = vmatmul.f32.gmra.mxu0 %v4120
      %v4211 = vpop.f32.mrf.mxu0
      %v4212 = vadd.f32 0.0, %v4211
      %4213 = vmatmul.f32.gmra.mxu0 %v4123
      %v4214 = vpop.f32.mrf.mxu0
      %v4215 = vadd.f32 0.0, %v4214
      %4216 = vmatmul.f32.gmra.mxu0 %v4126
      %v4217 = vpop.f32.mrf.mxu0
      %v4218 = vadd.f32 0.0, %v4217
      %4219 = vmatmul.f32.gmra.mxu0 %v4129
      %v4220 = vpop.f32.mrf.mxu0
      %v4221 = vadd.f32 0.0, %v4220
      %4222 = vmatmul.f32.gmra.mxu0 %v4132
      %v4223 = vpop.f32.mrf.mxu0
      %v4224 = vadd.f32 0.0, %v4223
      %4225 = vmatmul.f32.gmra.mxu0 %v4135
      %v4226 = vpop.f32.mrf.mxu0
      %v4227 = vadd.f32 0.0, %v4226
      %4228 = vmatmul.f32.gmra.mxu0 %v4138
      %v4229 = vpop.f32.mrf.mxu0
      %v4230 = vadd.f32 0.0, %v4229
      %4231 = vmatmul.f32.gmra.mxu0 %v4141
      %v4232 = vpop.f32.mrf.mxu0
      %v4233 = vadd.f32 0.0, %v4232
      %4234 = vmatmul.f32.gmra.mxu0 %v4144
      %v4235 = vpop.f32.mrf.mxu0
      %v4236 = vadd.f32 0.0, %v4235
      %4237 = vmatmul.f32.gmra.mxu0 %v4147
      %v4238 = vpop.f32.mrf.mxu0
      %v4239 = vadd.f32 0.0, %v4238
      %4240 = vmatmul.f32.gmra.mxu0 %v4150
      %v4241 = vpop.f32.mrf.mxu0
      %v4242 = vadd.f32 0.0, %v4241
      %4243 = vmatmul.f32.gmra.mxu0 %v4153
      %v4244 = vpop.f32.mrf.mxu0
      %v4245 = vadd.f32 0.0, %v4244
      %4246 = vmatmul.f32.gmra.mxu0 %v4156
      %v4247 = vpop.f32.mrf.mxu0
      %v4248 = vadd.f32 0.0, %v4247
      %4249 = vmatmul.f32.gmra.mxu0 %v4159
      %v4250 = vpop.f32.mrf.mxu0
      %v4251 = vadd.f32 0.0, %v4250
      %4252 = vmatmul.f32.gmra.mxu0 %v4162
      %v4253 = vpop.f32.mrf.mxu0
      %v4254 = vadd.f32 0.0, %v4253
      %4255 = vmatmul.f32.gmra.mxu0 %v4165
      %v4256 = vpop.f32.mrf.mxu0
      %v4257 = vadd.f32 0.0, %v4256
      %4258 = vmatmul.f32.gmra.mxu0 %v4168
      %v4259 = vpop.f32.mrf.mxu0
      %v4260 = vadd.f32 0.0, %v4259
      %4261 = vdwg.mxu0
      %v4262 = vadd.f32 %v4036, %v4188
      %v4263 = vadd.f32 %v4037, %v4191
      %v4264 = vadd.f32 %v4038, %v4194
      %v4265 = vadd.f32 %v4039, %v4197
      %v4266 = vadd.f32 %v4040, %v4200
      %v4267 = vadd.f32 %v4041, %v4203
      %v4268 = vadd.f32 %v4042, %v4206
      %v4269 = vadd.f32 %v4043, %v4209
      %v4270 = vadd.f32 %v4044, %v4212
      %v4271 = vadd.f32 %v4045, %v4215
      %v4272 = vadd.f32 %v4046, %v4218
      %v4273 = vadd.f32 %v4047, %v4221
      %v4274 = vadd.f32 %v4048, %v4224
      %v4275 = vadd.f32 %v4049, %v4227
      %v4276 = vadd.f32 %v4050, %v4230
      %v4277 = vadd.f32 %v4051, %v4233
      %v4278 = vadd.f32 %v4052, %v4236
      %v4279 = vadd.f32 %v4053, %v4239
      %v4280 = vadd.f32 %v4054, %v4242
      %v4281 = vadd.f32 %v4055, %v4245
      %v4282 = vadd.f32 %v4056, %v4248
      %v4283 = vadd.f32 %v4057, %v4251
      %v4284 = vadd.f32 %v4058, %v4254
      %v4285 = vadd.f32 %v4059, %v4257
      %v4286 = vadd.f32 %v4060, %v4260
      %v4287 = vld [vmem:[#allocation2 + $0x1f] sm:$0xff]
      %v4288 = vld [vmem:[#allocation2 + $0x27] sm:$0xff]
      %v4289 = vld [vmem:[#allocation2 + $0x2f] sm:$0xff]
      %v4290 = vld [vmem:[#allocation2 + $0x37] sm:$0xff]
      %v4291 = vld [vmem:[#allocation2 + $0x3f] sm:$0xff]
      %v4292 = vld [vmem:[#allocation2 + $0x47] sm:$0xff]
      %v4293 = vld [vmem:[#allocation2 + $0x4f] sm:$0xff]
      %v4294 = vld [vmem:[#allocation2 + $0x57] sm:$0xff]
      %v4295 = vld [vmem:[#allocation2 + $0x5f] sm:$0xff]
      %v4296 = vld [vmem:[#allocation2 + $0x67] sm:$0xff]
      %v4297 = vld [vmem:[#allocation2 + $0x6f] sm:$0xff]
      %v4298 = vld [vmem:[#allocation2 + $0x77] sm:$0xff]
      %v4299 = vld [vmem:[#allocation2 + $0x7f] sm:$0xff]
      %v4300 = vld [vmem:[#allocation2 + $0x87] sm:$0xff]
      %v4301 = vld [vmem:[#allocation2 + $0x8f] sm:$0xff]
      %v4302 = vld [vmem:[#allocation2 + $0x97] sm:$0xff]
      %v4303 = vld [vmem:[#allocation2 + $0x9f] sm:$0xff]
      %v4304 = vld [vmem:[#allocation2 + $0xa7] sm:$0xff]
      %v4305 = vld [vmem:[#allocation2 + $0xaf] sm:$0xff]
      %v4306 = vld [vmem:[#allocation2 + $0xb7] sm:$0xff]
      %v4307 = vld [vmem:[#allocation2 + $0xbf] sm:$0xff]
      %v4308 = vld [vmem:[#allocation2 + $0xc7] sm:$0xff]
      %v4309 = vld [vmem:[#allocation2 + $0xcf] sm:$0xff]
      %v4310 = vld [vmem:[#allocation2 + $0xd7] sm:$0xff]
      %v4311 = vld [vmem:[#allocation2 + $0xdf] sm:$0xf]
      %s4312 = scalar_lea.vmem %s3, 832
      %v4313 = vld [vmem:[%s4312] sm:$0xff]
      %v4314 = vld [vmem:[%s4312 + $0x8] sm:$0xff]
      %v4315 = vld [vmem:[%s4312 + $0x10] sm:$0xff]
      %v4316 = vld [vmem:[%s4312 + $0x18] sm:$0xff]
      %v4317 = vld [vmem:[%s4312 + $0x20] sm:$0xff]
      %v4318 = vld [vmem:[%s4312 + $0x28] sm:$0xff]
      %v4319 = vld [vmem:[%s4312 + $0x30] sm:$0xff]
      %v4320 = vld [vmem:[%s4312 + $0x38] sm:$0xff]
      %v4322 = vsel %vm1365, %v4287, 0
      %v4325 = vsel %vm1365, %v4288, 0
      %v4328 = vsel %vm1365, %v4289, 0
      %v4331 = vsel %vm1365, %v4290, 0
      %v4334 = vsel %vm1365, %v4291, 0
      %v4337 = vsel %vm1365, %v4292, 0
      %v4340 = vsel %vm1365, %v4293, 0
      %v4343 = vsel %vm1365, %v4294, 0
      %v4346 = vsel %vm1365, %v4295, 0
      %v4349 = vsel %vm1365, %v4296, 0
      %v4352 = vsel %vm1365, %v4297, 0
      %v4355 = vsel %vm1365, %v4298, 0
      %v4358 = vsel %vm1365, %v4299, 0
      %v4361 = vsel %vm1365, %v4300, 0
      %v4364 = vsel %vm1365, %v4301, 0
      %v4367 = vsel %vm1365, %v4302, 0
      %v4370 = vsel %vm1365, %v4303, 0
      %v4373 = vsel %vm1365, %v4304, 0
      %v4376 = vsel %vm1365, %v4305, 0
      %v4379 = vsel %vm1365, %v4306, 0
      %v4382 = vsel %vm1365, %v4307, 0
      %v4385 = vsel %vm1365, %v4308, 0
      %v4388 = vsel %vm1365, %v4309, 0
      %v4391 = vsel %vm1365, %v4310, 0
      %v4394 = vsel %vm1365, %v4311, 0
      %4396 = vmatpush.msra.mxu0 0.0
      %4397 = vmatpush.msra.mxu0 0.0
      %4398 = vmatpush.msra.mxu0 0.0
      %4399 = vmatpush.msra.mxu0 0.0
      %4400 = vmatpush.msra.mxu0 0.0
      %4401 = vmatpush.msra.mxu0 0.0
      %4402 = vmatpush.msra.mxu0 0.0
      %4403 = vmatpush.msra.mxu0 0.0
      %4404 = vmatpush.msra.mxu0 %v4320
      %4405 = vmatpush.msra.mxu0 %v4319
      %4406 = vmatpush.msra.mxu0 %v4318
      %4407 = vmatpush.msra.mxu0 %v4317
      %4408 = vmatpush.msra.mxu0 %v4316
      %4409 = vmatpush.msra.mxu0 %v4315
      %4410 = vmatpush.msra.mxu0 %v4314
      %4411 = vmatpush.msra.mxu0 %v4313
      %4412 = vmatmul.f32.gmra.mxu0 %v4322
      %v4413 = vpop.f32.mrf.mxu0
      %v4414 = vadd.f32 0.0, %v4413
      %4415 = vmatmul.f32.gmra.mxu0 %v4325
      %v4416 = vpop.f32.mrf.mxu0
      %v4417 = vadd.f32 0.0, %v4416
      %4418 = vmatmul.f32.gmra.mxu0 %v4328
      %v4419 = vpop.f32.mrf.mxu0
      %v4420 = vadd.f32 0.0, %v4419
      %4421 = vmatmul.f32.gmra.mxu0 %v4331
      %v4422 = vpop.f32.mrf.mxu0
      %v4423 = vadd.f32 0.0, %v4422
      %4424 = vmatmul.f32.gmra.mxu0 %v4334
      %v4425 = vpop.f32.mrf.mxu0
      %v4426 = vadd.f32 0.0, %v4425
      %4427 = vmatmul.f32.gmra.mxu0 %v4337
      %v4428 = vpop.f32.mrf.mxu0
      %v4429 = vadd.f32 0.0, %v4428
      %4430 = vmatmul.f32.gmra.mxu0 %v4340
      %v4431 = vpop.f32.mrf.mxu0
      %v4432 = vadd.f32 0.0, %v4431
      %4433 = vmatmul.f32.gmra.mxu0 %v4343
      %v4434 = vpop.f32.mrf.mxu0
      %v4435 = vadd.f32 0.0, %v4434
      %4436 = vmatmul.f32.gmra.mxu0 %v4346
      %v4437 = vpop.f32.mrf.mxu0
      %v4438 = vadd.f32 0.0, %v4437
      %4439 = vmatmul.f32.gmra.mxu0 %v4349
      %v4440 = vpop.f32.mrf.mxu0
      %v4441 = vadd.f32 0.0, %v4440
      %4442 = vmatmul.f32.gmra.mxu0 %v4352
      %v4443 = vpop.f32.mrf.mxu0
      %v4444 = vadd.f32 0.0, %v4443
      %4445 = vmatmul.f32.gmra.mxu0 %v4355
      %v4446 = vpop.f32.mrf.mxu0
      %v4447 = vadd.f32 0.0, %v4446
      %4448 = vmatmul.f32.gmra.mxu0 %v4358
      %v4449 = vpop.f32.mrf.mxu0
      %v4450 = vadd.f32 0.0, %v4449
      %4451 = vmatmul.f32.gmra.mxu0 %v4361
      %v4452 = vpop.f32.mrf.mxu0
      %v4453 = vadd.f32 0.0, %v4452
      %4454 = vmatmul.f32.gmra.mxu0 %v4364
      %v4455 = vpop.f32.mrf.mxu0
      %v4456 = vadd.f32 0.0, %v4455
      %4457 = vmatmul.f32.gmra.mxu0 %v4367
      %v4458 = vpop.f32.mrf.mxu0
      %v4459 = vadd.f32 0.0, %v4458
      %4460 = vmatmul.f32.gmra.mxu0 %v4370
      %v4461 = vpop.f32.mrf.mxu0
      %v4462 = vadd.f32 0.0, %v4461
      %4463 = vmatmul.f32.gmra.mxu0 %v4373
      %v4464 = vpop.f32.mrf.mxu0
      %v4465 = vadd.f32 0.0, %v4464
      %4466 = vmatmul.f32.gmra.mxu0 %v4376
      %v4467 = vpop.f32.mrf.mxu0
      %v4468 = vadd.f32 0.0, %v4467
      %4469 = vmatmul.f32.gmra.mxu0 %v4379
      %v4470 = vpop.f32.mrf.mxu0
      %v4471 = vadd.f32 0.0, %v4470
      %4472 = vmatmul.f32.gmra.mxu0 %v4382
      %v4473 = vpop.f32.mrf.mxu0
      %v4474 = vadd.f32 0.0, %v4473
      %4475 = vmatmul.f32.gmra.mxu0 %v4385
      %v4476 = vpop.f32.mrf.mxu0
      %v4477 = vadd.f32 0.0, %v4476
      %4478 = vmatmul.f32.gmra.mxu0 %v4388
      %v4479 = vpop.f32.mrf.mxu0
      %v4480 = vadd.f32 0.0, %v4479
      %4481 = vmatmul.f32.gmra.mxu0 %v4391
      %v4482 = vpop.f32.mrf.mxu0
      %v4483 = vadd.f32 0.0, %v4482
      %4484 = vmatmul.f32.gmra.mxu0 %v4394
      %v4485 = vpop.f32.mrf.mxu0
      %v4486 = vadd.f32 0.0, %v4485
      %4487 = vdwg.mxu0
      %v4488 = vadd.f32 %v4262, %v4414
      %v4489 = vadd.f32 %v4263, %v4417
      %v4490 = vadd.f32 %v4264, %v4420
      %v4491 = vadd.f32 %v4265, %v4423
      %v4492 = vadd.f32 %v4266, %v4426
      %v4493 = vadd.f32 %v4267, %v4429
      %v4494 = vadd.f32 %v4268, %v4432
      %v4495 = vadd.f32 %v4269, %v4435
      %v4496 = vadd.f32 %v4270, %v4438
      %v4497 = vadd.f32 %v4271, %v4441
      %v4498 = vadd.f32 %v4272, %v4444
      %v4499 = vadd.f32 %v4273, %v4447
      %v4500 = vadd.f32 %v4274, %v4450
      %v4501 = vadd.f32 %v4275, %v4453
      %v4502 = vadd.f32 %v4276, %v4456
      %v4503 = vadd.f32 %v4277, %v4459
      %v4504 = vadd.f32 %v4278, %v4462
      %v4505 = vadd.f32 %v4279, %v4465
      %v4506 = vadd.f32 %v4280, %v4468
      %v4507 = vadd.f32 %v4281, %v4471
      %v4508 = vadd.f32 %v4282, %v4474
      %v4509 = vadd.f32 %v4283, %v4477
      %v4510 = vadd.f32 %v4284, %v4480
      %v4511 = vadd.f32 %v4285, %v4483
      %v4512 = vadd.f32 %v4286, %v4486
      %v4513 = vld [vmem:[#allocation2 + $0x20] sm:$0xff]
      %v4514 = vld [vmem:[#allocation2 + $0x28] sm:$0xff]
      %v4515 = vld [vmem:[#allocation2 + $0x30] sm:$0xff]
      %v4516 = vld [vmem:[#allocation2 + $0x38] sm:$0xff]
      %v4517 = vld [vmem:[#allocation2 + $0x40] sm:$0xff]
      %v4518 = vld [vmem:[#allocation2 + $0x48] sm:$0xff]
      %v4519 = vld [vmem:[#allocation2 + $0x50] sm:$0xff]
      %v4520 = vld [vmem:[#allocation2 + $0x58] sm:$0xff]
      %v4521 = vld [vmem:[#allocation2 + $0x60] sm:$0xff]
      %v4522 = vld [vmem:[#allocation2 + $0x68] sm:$0xff]
      %v4523 = vld [vmem:[#allocation2 + $0x70] sm:$0xff]
      %v4524 = vld [vmem:[#allocation2 + $0x78] sm:$0xff]
      %v4525 = vld [vmem:[#allocation2 + $0x80] sm:$0xff]
      %v4526 = vld [vmem:[#allocation2 + $0x88] sm:$0xff]
      %v4527 = vld [vmem:[#allocation2 + $0x90] sm:$0xff]
      %v4528 = vld [vmem:[#allocation2 + $0x98] sm:$0xff]
      %v4529 = vld [vmem:[#allocation2 + $0xa0] sm:$0xff]
      %v4530 = vld [vmem:[#allocation2 + $0xa8] sm:$0xff]
      %v4531 = vld [vmem:[#allocation2 + $0xb0] sm:$0xff]
      %v4532 = vld [vmem:[#allocation2 + $0xb8] sm:$0xff]
      %v4533 = vld [vmem:[#allocation2 + $0xc0] sm:$0xff]
      %v4534 = vld [vmem:[#allocation2 + $0xc8] sm:$0xff]
      %v4535 = vld [vmem:[#allocation2 + $0xd0] sm:$0xff]
      %v4536 = vld [vmem:[#allocation2 + $0xd8] sm:$0xff]
      %v4537 = vld [vmem:[#allocation2 + $0xe0] sm:$0xf]
      %s4538 = scalar_lea.vmem %s3, 896
      %v4539 = vld [vmem:[%s4538] sm:$0xff]
      %v4540 = vld [vmem:[%s4538 + $0x8] sm:$0xff]
      %v4541 = vld [vmem:[%s4538 + $0x10] sm:$0xff]
      %v4542 = vld [vmem:[%s4538 + $0x18] sm:$0xff]
      %v4543 = vld [vmem:[%s4538 + $0x20] sm:$0xff]
      %v4544 = vld [vmem:[%s4538 + $0x28] sm:$0xff]
      %v4545 = vld [vmem:[%s4538 + $0x30] sm:$0xff]
      %v4546 = vld [vmem:[%s4538 + $0x38] sm:$0xff]
      %v4548 = vsel %vm1365, %v4513, 0
      %v4551 = vsel %vm1365, %v4514, 0
      %v4554 = vsel %vm1365, %v4515, 0
      %v4557 = vsel %vm1365, %v4516, 0
      %v4560 = vsel %vm1365, %v4517, 0
      %v4563 = vsel %vm1365, %v4518, 0
      %v4566 = vsel %vm1365, %v4519, 0
      %v4569 = vsel %vm1365, %v4520, 0
      %v4572 = vsel %vm1365, %v4521, 0
      %v4575 = vsel %vm1365, %v4522, 0
      %v4578 = vsel %vm1365, %v4523, 0
      %v4581 = vsel %vm1365, %v4524, 0
      %v4584 = vsel %vm1365, %v4525, 0
      %v4587 = vsel %vm1365, %v4526, 0
      %v4590 = vsel %vm1365, %v4527, 0
      %v4593 = vsel %vm1365, %v4528, 0
      %v4596 = vsel %vm1365, %v4529, 0
      %v4599 = vsel %vm1365, %v4530, 0
      %v4602 = vsel %vm1365, %v4531, 0
      %v4605 = vsel %vm1365, %v4532, 0
      %v4608 = vsel %vm1365, %v4533, 0
      %v4611 = vsel %vm1365, %v4534, 0
      %v4614 = vsel %vm1365, %v4535, 0
      %v4617 = vsel %vm1365, %v4536, 0
      %v4620 = vsel %vm1365, %v4537, 0
      %4622 = vmatpush.msra.mxu0 0.0
      %4623 = vmatpush.msra.mxu0 0.0
      %4624 = vmatpush.msra.mxu0 0.0
      %4625 = vmatpush.msra.mxu0 0.0
      %4626 = vmatpush.msra.mxu0 0.0
      %4627 = vmatpush.msra.mxu0 0.0
      %4628 = vmatpush.msra.mxu0 0.0
      %4629 = vmatpush.msra.mxu0 0.0
      %4630 = vmatpush.msra.mxu0 %v4546
      %4631 = vmatpush.msra.mxu0 %v4545
      %4632 = vmatpush.msra.mxu0 %v4544
      %4633 = vmatpush.msra.mxu0 %v4543
      %4634 = vmatpush.msra.mxu0 %v4542
      %4635 = vmatpush.msra.mxu0 %v4541
      %4636 = vmatpush.msra.mxu0 %v4540
      %4637 = vmatpush.msra.mxu0 %v4539
      %4638 = vmatmul.f32.gmra.mxu0 %v4548
      %v4639 = vpop.f32.mrf.mxu0
      %v4640 = vadd.f32 0.0, %v4639
      %4641 = vmatmul.f32.gmra.mxu0 %v4551
      %v4642 = vpop.f32.mrf.mxu0
      %v4643 = vadd.f32 0.0, %v4642
      %4644 = vmatmul.f32.gmra.mxu0 %v4554
      %v4645 = vpop.f32.mrf.mxu0
      %v4646 = vadd.f32 0.0, %v4645
      %4647 = vmatmul.f32.gmra.mxu0 %v4557
      %v4648 = vpop.f32.mrf.mxu0
      %v4649 = vadd.f32 0.0, %v4648
      %4650 = vmatmul.f32.gmra.mxu0 %v4560
      %v4651 = vpop.f32.mrf.mxu0
      %v4652 = vadd.f32 0.0, %v4651
      %4653 = vmatmul.f32.gmra.mxu0 %v4563
      %v4654 = vpop.f32.mrf.mxu0
      %v4655 = vadd.f32 0.0, %v4654
      %4656 = vmatmul.f32.gmra.mxu0 %v4566
      %v4657 = vpop.f32.mrf.mxu0
      %v4658 = vadd.f32 0.0, %v4657
      %4659 = vmatmul.f32.gmra.mxu0 %v4569
      %v4660 = vpop.f32.mrf.mxu0
      %v4661 = vadd.f32 0.0, %v4660
      %4662 = vmatmul.f32.gmra.mxu0 %v4572
      %v4663 = vpop.f32.mrf.mxu0
      %v4664 = vadd.f32 0.0, %v4663
      %4665 = vmatmul.f32.gmra.mxu0 %v4575
      %v4666 = vpop.f32.mrf.mxu0
      %v4667 = vadd.f32 0.0, %v4666
      %4668 = vmatmul.f32.gmra.mxu0 %v4578
      %v4669 = vpop.f32.mrf.mxu0
      %v4670 = vadd.f32 0.0, %v4669
      %4671 = vmatmul.f32.gmra.mxu0 %v4581
      %v4672 = vpop.f32.mrf.mxu0
      %v4673 = vadd.f32 0.0, %v4672
      %4674 = vmatmul.f32.gmra.mxu0 %v4584
      %v4675 = vpop.f32.mrf.mxu0
      %v4676 = vadd.f32 0.0, %v4675
      %4677 = vmatmul.f32.gmra.mxu0 %v4587
      %v4678 = vpop.f32.mrf.mxu0
      %v4679 = vadd.f32 0.0, %v4678
      %4680 = vmatmul.f32.gmra.mxu0 %v4590
      %v4681 = vpop.f32.mrf.mxu0
      %v4682 = vadd.f32 0.0, %v4681
      %4683 = vmatmul.f32.gmra.mxu0 %v4593
      %v4684 = vpop.f32.mrf.mxu0
      %v4685 = vadd.f32 0.0, %v4684
      %4686 = vmatmul.f32.gmra.mxu0 %v4596
      %v4687 = vpop.f32.mrf.mxu0
      %v4688 = vadd.f32 0.0, %v4687
      %4689 = vmatmul.f32.gmra.mxu0 %v4599
      %v4690 = vpop.f32.mrf.mxu0
      %v4691 = vadd.f32 0.0, %v4690
      %4692 = vmatmul.f32.gmra.mxu0 %v4602
      %v4693 = vpop.f32.mrf.mxu0
      %v4694 = vadd.f32 0.0, %v4693
      %4695 = vmatmul.f32.gmra.mxu0 %v4605
      %v4696 = vpop.f32.mrf.mxu0
      %v4697 = vadd.f32 0.0, %v4696
      %4698 = vmatmul.f32.gmra.mxu0 %v4608
      %v4699 = vpop.f32.mrf.mxu0
      %v4700 = vadd.f32 0.0, %v4699
      %4701 = vmatmul.f32.gmra.mxu0 %v4611
      %v4702 = vpop.f32.mrf.mxu0
      %v4703 = vadd.f32 0.0, %v4702
      %4704 = vmatmul.f32.gmra.mxu0 %v4614
      %v4705 = vpop.f32.mrf.mxu0
      %v4706 = vadd.f32 0.0, %v4705
      %4707 = vmatmul.f32.gmra.mxu0 %v4617
      %v4708 = vpop.f32.mrf.mxu0
      %v4709 = vadd.f32 0.0, %v4708
      %4710 = vmatmul.f32.gmra.mxu0 %v4620
      %v4711 = vpop.f32.mrf.mxu0
      %v4712 = vadd.f32 0.0, %v4711
      %4713 = vdwg.mxu0
      %v4714 = vadd.f32 %v4488, %v4640
      %v4715 = vadd.f32 %v4489, %v4643
      %v4716 = vadd.f32 %v4490, %v4646
      %v4717 = vadd.f32 %v4491, %v4649
      %v4718 = vadd.f32 %v4492, %v4652
      %v4719 = vadd.f32 %v4493, %v4655
      %v4720 = vadd.f32 %v4494, %v4658
      %v4721 = vadd.f32 %v4495, %v4661
      %v4722 = vadd.f32 %v4496, %v4664
      %v4723 = vadd.f32 %v4497, %v4667
      %v4724 = vadd.f32 %v4498, %v4670
      %v4725 = vadd.f32 %v4499, %v4673
      %v4726 = vadd.f32 %v4500, %v4676
      %v4727 = vadd.f32 %v4501, %v4679
      %v4728 = vadd.f32 %v4502, %v4682
      %v4729 = vadd.f32 %v4503, %v4685
      %v4730 = vadd.f32 %v4504, %v4688
      %v4731 = vadd.f32 %v4505, %v4691
      %v4732 = vadd.f32 %v4506, %v4694
      %v4733 = vadd.f32 %v4507, %v4697
      %v4734 = vadd.f32 %v4508, %v4700
      %v4735 = vadd.f32 %v4509, %v4703
      %v4736 = vadd.f32 %v4510, %v4706
      %v4737 = vadd.f32 %v4511, %v4709
      %v4738 = vadd.f32 %v4512, %v4712
      %v4739 = vld [vmem:[#allocation2 + $0x2a] sm:$0xff]
      %v4740 = vld [vmem:[#allocation2 + $0x32] sm:$0xff]
      %v4741 = vld [vmem:[#allocation2 + $0x3a] sm:$0xff]
      %v4742 = vld [vmem:[#allocation2 + $0x42] sm:$0xff]
      %v4743 = vld [vmem:[#allocation2 + $0x4a] sm:$0xff]
      %v4744 = vld [vmem:[#allocation2 + $0x52] sm:$0xff]
      %v4745 = vld [vmem:[#allocation2 + $0x5a] sm:$0xff]
      %v4746 = vld [vmem:[#allocation2 + $0x62] sm:$0xff]
      %v4747 = vld [vmem:[#allocation2 + $0x6a] sm:$0xff]
      %v4748 = vld [vmem:[#allocation2 + $0x72] sm:$0xff]
      %v4749 = vld [vmem:[#allocation2 + $0x7a] sm:$0xff]
      %v4750 = vld [vmem:[#allocation2 + $0x82] sm:$0xff]
      %v4751 = vld [vmem:[#allocation2 + $0x8a] sm:$0xff]
      %v4752 = vld [vmem:[#allocation2 + $0x92] sm:$0xff]
      %v4753 = vld [vmem:[#allocation2 + $0x9a] sm:$0xff]
      %v4754 = vld [vmem:[#allocation2 + $0xa2] sm:$0xff]
      %v4755 = vld [vmem:[#allocation2 + $0xaa] sm:$0xff]
      %v4756 = vld [vmem:[#allocation2 + $0xb2] sm:$0xff]
      %v4757 = vld [vmem:[#allocation2 + $0xba] sm:$0xff]
      %v4758 = vld [vmem:[#allocation2 + $0xc2] sm:$0xff]
      %v4759 = vld [vmem:[#allocation2 + $0xca] sm:$0xff]
      %v4760 = vld [vmem:[#allocation2 + $0xd2] sm:$0xff]
      %v4761 = vld [vmem:[#allocation2 + $0xda] sm:$0xff]
      %v4762 = vld [vmem:[#allocation2 + $0xe2] sm:$0xff]
      %v4763 = vld [vmem:[#allocation2 + $0xea] sm:$0xf]
      %s4764 = scalar_lea.vmem %s3, 960
      %v4765 = vld [vmem:[%s4764] sm:$0xff]
      %v4766 = vld [vmem:[%s4764 + $0x8] sm:$0xff]
      %v4767 = vld [vmem:[%s4764 + $0x10] sm:$0xff]
      %v4768 = vld [vmem:[%s4764 + $0x18] sm:$0xff]
      %v4769 = vld [vmem:[%s4764 + $0x20] sm:$0xff]
      %v4770 = vld [vmem:[%s4764 + $0x28] sm:$0xff]
      %v4771 = vld [vmem:[%s4764 + $0x30] sm:$0xff]
      %v4772 = vld [vmem:[%s4764 + $0x38] sm:$0xff]
      %v4774 = vsel %vm1365, %v4739, 0
      %v4777 = vsel %vm1365, %v4740, 0
      %v4780 = vsel %vm1365, %v4741, 0
      %v4783 = vsel %vm1365, %v4742, 0
      %v4786 = vsel %vm1365, %v4743, 0
      %v4789 = vsel %vm1365, %v4744, 0
      %v4792 = vsel %vm1365, %v4745, 0
      %v4795 = vsel %vm1365, %v4746, 0
      %v4798 = vsel %vm1365, %v4747, 0
      %v4801 = vsel %vm1365, %v4748, 0
      %v4804 = vsel %vm1365, %v4749, 0
      %v4807 = vsel %vm1365, %v4750, 0
      %v4810 = vsel %vm1365, %v4751, 0
      %v4813 = vsel %vm1365, %v4752, 0
      %v4816 = vsel %vm1365, %v4753, 0
      %v4819 = vsel %vm1365, %v4754, 0
      %v4822 = vsel %vm1365, %v4755, 0
      %v4825 = vsel %vm1365, %v4756, 0
      %v4828 = vsel %vm1365, %v4757, 0
      %v4831 = vsel %vm1365, %v4758, 0
      %v4834 = vsel %vm1365, %v4759, 0
      %v4837 = vsel %vm1365, %v4760, 0
      %v4840 = vsel %vm1365, %v4761, 0
      %v4843 = vsel %vm1365, %v4762, 0
      %v4846 = vsel %vm1365, %v4763, 0
      %4848 = vmatpush.msra.mxu0 0.0
      %4849 = vmatpush.msra.mxu0 0.0
      %4850 = vmatpush.msra.mxu0 0.0
      %4851 = vmatpush.msra.mxu0 0.0
      %4852 = vmatpush.msra.mxu0 0.0
      %4853 = vmatpush.msra.mxu0 0.0
      %4854 = vmatpush.msra.mxu0 0.0
      %4855 = vmatpush.msra.mxu0 0.0
      %4856 = vmatpush.msra.mxu0 %v4772
      %4857 = vmatpush.msra.mxu0 %v4771
      %4858 = vmatpush.msra.mxu0 %v4770
      %4859 = vmatpush.msra.mxu0 %v4769
      %4860 = vmatpush.msra.mxu0 %v4768
      %4861 = vmatpush.msra.mxu0 %v4767
      %4862 = vmatpush.msra.mxu0 %v4766
      %4863 = vmatpush.msra.mxu0 %v4765
      %4864 = vmatmul.f32.gmra.mxu0 %v4774
      %v4865 = vpop.f32.mrf.mxu0
      %v4866 = vadd.f32 0.0, %v4865
      %4867 = vmatmul.f32.gmra.mxu0 %v4777
      %v4868 = vpop.f32.mrf.mxu0
      %v4869 = vadd.f32 0.0, %v4868
      %4870 = vmatmul.f32.gmra.mxu0 %v4780
      %v4871 = vpop.f32.mrf.mxu0
      %v4872 = vadd.f32 0.0, %v4871
      %4873 = vmatmul.f32.gmra.mxu0 %v4783
      %v4874 = vpop.f32.mrf.mxu0
      %v4875 = vadd.f32 0.0, %v4874
      %4876 = vmatmul.f32.gmra.mxu0 %v4786
      %v4877 = vpop.f32.mrf.mxu0
      %v4878 = vadd.f32 0.0, %v4877
      %4879 = vmatmul.f32.gmra.mxu0 %v4789
      %v4880 = vpop.f32.mrf.mxu0
      %v4881 = vadd.f32 0.0, %v4880
      %4882 = vmatmul.f32.gmra.mxu0 %v4792
      %v4883 = vpop.f32.mrf.mxu0
      %v4884 = vadd.f32 0.0, %v4883
      %4885 = vmatmul.f32.gmra.mxu0 %v4795
      %v4886 = vpop.f32.mrf.mxu0
      %v4887 = vadd.f32 0.0, %v4886
      %4888 = vmatmul.f32.gmra.mxu0 %v4798
      %v4889 = vpop.f32.mrf.mxu0
      %v4890 = vadd.f32 0.0, %v4889
      %4891 = vmatmul.f32.gmra.mxu0 %v4801
      %v4892 = vpop.f32.mrf.mxu0
      %v4893 = vadd.f32 0.0, %v4892
      %4894 = vmatmul.f32.gmra.mxu0 %v4804
      %v4895 = vpop.f32.mrf.mxu0
      %v4896 = vadd.f32 0.0, %v4895
      %4897 = vmatmul.f32.gmra.mxu0 %v4807
      %v4898 = vpop.f32.mrf.mxu0
      %v4899 = vadd.f32 0.0, %v4898
      %4900 = vmatmul.f32.gmra.mxu0 %v4810
      %v4901 = vpop.f32.mrf.mxu0
      %v4902 = vadd.f32 0.0, %v4901
      %4903 = vmatmul.f32.gmra.mxu0 %v4813
      %v4904 = vpop.f32.mrf.mxu0
      %v4905 = vadd.f32 0.0, %v4904
      %4906 = vmatmul.f32.gmra.mxu0 %v4816
      %v4907 = vpop.f32.mrf.mxu0
      %v4908 = vadd.f32 0.0, %v4907
      %4909 = vmatmul.f32.gmra.mxu0 %v4819
      %v4910 = vpop.f32.mrf.mxu0
      %v4911 = vadd.f32 0.0, %v4910
      %4912 = vmatmul.f32.gmra.mxu0 %v4822
      %v4913 = vpop.f32.mrf.mxu0
      %v4914 = vadd.f32 0.0, %v4913
      %4915 = vmatmul.f32.gmra.mxu0 %v4825
      %v4916 = vpop.f32.mrf.mxu0
      %v4917 = vadd.f32 0.0, %v4916
      %4918 = vmatmul.f32.gmra.mxu0 %v4828
      %v4919 = vpop.f32.mrf.mxu0
      %v4920 = vadd.f32 0.0, %v4919
      %4921 = vmatmul.f32.gmra.mxu0 %v4831
      %v4922 = vpop.f32.mrf.mxu0
      %v4923 = vadd.f32 0.0, %v4922
      %4924 = vmatmul.f32.gmra.mxu0 %v4834
      %v4925 = vpop.f32.mrf.mxu0
      %v4926 = vadd.f32 0.0, %v4925
      %4927 = vmatmul.f32.gmra.mxu0 %v4837
      %v4928 = vpop.f32.mrf.mxu0
      %v4929 = vadd.f32 0.0, %v4928
      %4930 = vmatmul.f32.gmra.mxu0 %v4840
      %v4931 = vpop.f32.mrf.mxu0
      %v4932 = vadd.f32 0.0, %v4931
      %4933 = vmatmul.f32.gmra.mxu0 %v4843
      %v4934 = vpop.f32.mrf.mxu0
      %v4935 = vadd.f32 0.0, %v4934
      %4936 = vmatmul.f32.gmra.mxu0 %v4846
      %v4937 = vpop.f32.mrf.mxu0
      %v4938 = vadd.f32 0.0, %v4937
      %4939 = vdwg.mxu0
      %v4940 = vadd.f32 %v4714, %v4866
      %v4941 = vadd.f32 %v4715, %v4869
      %v4942 = vadd.f32 %v4716, %v4872
      %v4943 = vadd.f32 %v4717, %v4875
      %v4944 = vadd.f32 %v4718, %v4878
      %v4945 = vadd.f32 %v4719, %v4881
      %v4946 = vadd.f32 %v4720, %v4884
      %v4947 = vadd.f32 %v4721, %v4887
      %v4948 = vadd.f32 %v4722, %v4890
      %v4949 = vadd.f32 %v4723, %v4893
      %v4950 = vadd.f32 %v4724, %v4896
      %v4951 = vadd.f32 %v4725, %v4899
      %v4952 = vadd.f32 %v4726, %v4902
      %v4953 = vadd.f32 %v4727, %v4905
      %v4954 = vadd.f32 %v4728, %v4908
      %v4955 = vadd.f32 %v4729, %v4911
      %v4956 = vadd.f32 %v4730, %v4914
      %v4957 = vadd.f32 %v4731, %v4917
      %v4958 = vadd.f32 %v4732, %v4920
      %v4959 = vadd.f32 %v4733, %v4923
      %v4960 = vadd.f32 %v4734, %v4926
      %v4961 = vadd.f32 %v4735, %v4929
      %v4962 = vadd.f32 %v4736, %v4932
      %v4963 = vadd.f32 %v4737, %v4935
      %v4964 = vadd.f32 %v4738, %v4938
      %v4965 = vld [vmem:[#allocation2 + $0x2b] sm:$0xff]
      %v4966 = vld [vmem:[#allocation2 + $0x33] sm:$0xff]
      %v4967 = vld [vmem:[#allocation2 + $0x3b] sm:$0xff]
      %v4968 = vld [vmem:[#allocation2 + $0x43] sm:$0xff]
      %v4969 = vld [vmem:[#allocation2 + $0x4b] sm:$0xff]
      %v4970 = vld [vmem:[#allocation2 + $0x53] sm:$0xff]
      %v4971 = vld [vmem:[#allocation2 + $0x5b] sm:$0xff]
      %v4972 = vld [vmem:[#allocation2 + $0x63] sm:$0xff]
      %v4973 = vld [vmem:[#allocation2 + $0x6b] sm:$0xff]
      %v4974 = vld [vmem:[#allocation2 + $0x73] sm:$0xff]
      %v4975 = vld [vmem:[#allocation2 + $0x7b] sm:$0xff]
      %v4976 = vld [vmem:[#allocation2 + $0x83] sm:$0xff]
      %v4977 = vld [vmem:[#allocation2 + $0x8b] sm:$0xff]
      %v4978 = vld [vmem:[#allocation2 + $0x93] sm:$0xff]
      %v4979 = vld [vmem:[#allocation2 + $0x9b] sm:$0xff]
      %v4980 = vld [vmem:[#allocation2 + $0xa3] sm:$0xff]
      %v4981 = vld [vmem:[#allocation2 + $0xab] sm:$0xff]
      %v4982 = vld [vmem:[#allocation2 + $0xb3] sm:$0xff]
      %v4983 = vld [vmem:[#allocation2 + $0xbb] sm:$0xff]
      %v4984 = vld [vmem:[#allocation2 + $0xc3] sm:$0xff]
      %v4985 = vld [vmem:[#allocation2 + $0xcb] sm:$0xff]
      %v4986 = vld [vmem:[#allocation2 + $0xd3] sm:$0xff]
      %v4987 = vld [vmem:[#allocation2 + $0xdb] sm:$0xff]
      %v4988 = vld [vmem:[#allocation2 + $0xe3] sm:$0xff]
      %v4989 = vld [vmem:[#allocation2 + $0xeb] sm:$0xf]
      %s4990 = scalar_lea.vmem %s3, 1024
      %v4991 = vld [vmem:[%s4990] sm:$0xff]
      %v4992 = vld [vmem:[%s4990 + $0x8] sm:$0xff]
      %v4993 = vld [vmem:[%s4990 + $0x10] sm:$0xff]
      %v4994 = vld [vmem:[%s4990 + $0x18] sm:$0xff]
      %v4995 = vld [vmem:[%s4990 + $0x20] sm:$0xff]
      %v4996 = vld [vmem:[%s4990 + $0x28] sm:$0xff]
      %v4997 = vld [vmem:[%s4990 + $0x30] sm:$0xff]
      %v4998 = vld [vmem:[%s4990 + $0x38] sm:$0xff]
      %v5000 = vsel %vm1365, %v4965, 0
      %v5003 = vsel %vm1365, %v4966, 0
      %v5006 = vsel %vm1365, %v4967, 0
      %v5009 = vsel %vm1365, %v4968, 0
      %v5012 = vsel %vm1365, %v4969, 0
      %v5015 = vsel %vm1365, %v4970, 0
      %v5018 = vsel %vm1365, %v4971, 0
      %v5021 = vsel %vm1365, %v4972, 0
      %v5024 = vsel %vm1365, %v4973, 0
      %v5027 = vsel %vm1365, %v4974, 0
      %v5030 = vsel %vm1365, %v4975, 0
      %v5033 = vsel %vm1365, %v4976, 0
      %v5036 = vsel %vm1365, %v4977, 0
      %v5039 = vsel %vm1365, %v4978, 0
      %v5042 = vsel %vm1365, %v4979, 0
      %v5045 = vsel %vm1365, %v4980, 0
      %v5048 = vsel %vm1365, %v4981, 0
      %v5051 = vsel %vm1365, %v4982, 0
      %v5054 = vsel %vm1365, %v4983, 0
      %v5057 = vsel %vm1365, %v4984, 0
      %v5060 = vsel %vm1365, %v4985, 0
      %v5063 = vsel %vm1365, %v4986, 0
      %v5066 = vsel %vm1365, %v4987, 0
      %v5069 = vsel %vm1365, %v4988, 0
      %v5072 = vsel %vm1365, %v4989, 0
      %5074 = vmatpush.msra.mxu0 0.0
      %5075 = vmatpush.msra.mxu0 0.0
      %5076 = vmatpush.msra.mxu0 0.0
      %5077 = vmatpush.msra.mxu0 0.0
      %5078 = vmatpush.msra.mxu0 0.0
      %5079 = vmatpush.msra.mxu0 0.0
      %5080 = vmatpush.msra.mxu0 0.0
      %5081 = vmatpush.msra.mxu0 0.0
      %5082 = vmatpush.msra.mxu0 %v4998
      %5083 = vmatpush.msra.mxu0 %v4997
      %5084 = vmatpush.msra.mxu0 %v4996
      %5085 = vmatpush.msra.mxu0 %v4995
      %5086 = vmatpush.msra.mxu0 %v4994
      %5087 = vmatpush.msra.mxu0 %v4993
      %5088 = vmatpush.msra.mxu0 %v4992
      %5089 = vmatpush.msra.mxu0 %v4991
      %5090 = vmatmul.f32.gmra.mxu0 %v5000
      %v5091 = vpop.f32.mrf.mxu0
      %v5092 = vadd.f32 0.0, %v5091
      %5093 = vmatmul.f32.gmra.mxu0 %v5003
      %v5094 = vpop.f32.mrf.mxu0
      %v5095 = vadd.f32 0.0, %v5094
      %5096 = vmatmul.f32.gmra.mxu0 %v5006
      %v5097 = vpop.f32.mrf.mxu0
      %v5098 = vadd.f32 0.0, %v5097
      %5099 = vmatmul.f32.gmra.mxu0 %v5009
      %v5100 = vpop.f32.mrf.mxu0
      %v5101 = vadd.f32 0.0, %v5100
      %5102 = vmatmul.f32.gmra.mxu0 %v5012
      %v5103 = vpop.f32.mrf.mxu0
      %v5104 = vadd.f32 0.0, %v5103
      %5105 = vmatmul.f32.gmra.mxu0 %v5015
      %v5106 = vpop.f32.mrf.mxu0
      %v5107 = vadd.f32 0.0, %v5106
      %5108 = vmatmul.f32.gmra.mxu0 %v5018
      %v5109 = vpop.f32.mrf.mxu0
      %v5110 = vadd.f32 0.0, %v5109
      %5111 = vmatmul.f32.gmra.mxu0 %v5021
      %v5112 = vpop.f32.mrf.mxu0
      %v5113 = vadd.f32 0.0, %v5112
      %5114 = vmatmul.f32.gmra.mxu0 %v5024
      %v5115 = vpop.f32.mrf.mxu0
      %v5116 = vadd.f32 0.0, %v5115
      %5117 = vmatmul.f32.gmra.mxu0 %v5027
      %v5118 = vpop.f32.mrf.mxu0
      %v5119 = vadd.f32 0.0, %v5118
      %5120 = vmatmul.f32.gmra.mxu0 %v5030
      %v5121 = vpop.f32.mrf.mxu0
      %v5122 = vadd.f32 0.0, %v5121
      %5123 = vmatmul.f32.gmra.mxu0 %v5033
      %v5124 = vpop.f32.mrf.mxu0
      %v5125 = vadd.f32 0.0, %v5124
      %5126 = vmatmul.f32.gmra.mxu0 %v5036
      %v5127 = vpop.f32.mrf.mxu0
      %v5128 = vadd.f32 0.0, %v5127
      %5129 = vmatmul.f32.gmra.mxu0 %v5039
      %v5130 = vpop.f32.mrf.mxu0
      %v5131 = vadd.f32 0.0, %v5130
      %5132 = vmatmul.f32.gmra.mxu0 %v5042
      %v5133 = vpop.f32.mrf.mxu0
      %v5134 = vadd.f32 0.0, %v5133
      %5135 = vmatmul.f32.gmra.mxu0 %v5045
      %v5136 = vpop.f32.mrf.mxu0
      %v5137 = vadd.f32 0.0, %v5136
      %5138 = vmatmul.f32.gmra.mxu0 %v5048
      %v5139 = vpop.f32.mrf.mxu0
      %v5140 = vadd.f32 0.0, %v5139
      %5141 = vmatmul.f32.gmra.mxu0 %v5051
      %v5142 = vpop.f32.mrf.mxu0
      %v5143 = vadd.f32 0.0, %v5142
      %5144 = vmatmul.f32.gmra.mxu0 %v5054
      %v5145 = vpop.f32.mrf.mxu0
      %v5146 = vadd.f32 0.0, %v5145
      %5147 = vmatmul.f32.gmra.mxu0 %v5057
      %v5148 = vpop.f32.mrf.mxu0
      %v5149 = vadd.f32 0.0, %v5148
      %5150 = vmatmul.f32.gmra.mxu0 %v5060
      %v5151 = vpop.f32.mrf.mxu0
      %v5152 = vadd.f32 0.0, %v5151
      %5153 = vmatmul.f32.gmra.mxu0 %v5063
      %v5154 = vpop.f32.mrf.mxu0
      %v5155 = vadd.f32 0.0, %v5154
      %5156 = vmatmul.f32.gmra.mxu0 %v5066
      %v5157 = vpop.f32.mrf.mxu0
      %v5158 = vadd.f32 0.0, %v5157
      %5159 = vmatmul.f32.gmra.mxu0 %v5069
      %v5160 = vpop.f32.mrf.mxu0
      %v5161 = vadd.f32 0.0, %v5160
      %5162 = vmatmul.f32.gmra.mxu0 %v5072
      %v5163 = vpop.f32.mrf.mxu0
      %v5164 = vadd.f32 0.0, %v5163
      %5165 = vdwg.mxu0
      %v5166 = vadd.f32 %v4940, %v5092
      %v5167 = vadd.f32 %v4941, %v5095
      %v5168 = vadd.f32 %v4942, %v5098
      %v5169 = vadd.f32 %v4943, %v5101
      %v5170 = vadd.f32 %v4944, %v5104
      %v5171 = vadd.f32 %v4945, %v5107
      %v5172 = vadd.f32 %v4946, %v5110
      %v5173 = vadd.f32 %v4947, %v5113
      %v5174 = vadd.f32 %v4948, %v5116
      %v5175 = vadd.f32 %v4949, %v5119
      %v5176 = vadd.f32 %v4950, %v5122
      %v5177 = vadd.f32 %v4951, %v5125
      %v5178 = vadd.f32 %v4952, %v5128
      %v5179 = vadd.f32 %v4953, %v5131
      %v5180 = vadd.f32 %v4954, %v5134
      %v5181 = vadd.f32 %v4955, %v5137
      %v5182 = vadd.f32 %v4956, %v5140
      %v5183 = vadd.f32 %v4957, %v5143
      %v5184 = vadd.f32 %v4958, %v5146
      %v5185 = vadd.f32 %v4959, %v5149
      %v5186 = vadd.f32 %v4960, %v5152
      %v5187 = vadd.f32 %v4961, %v5155
      %v5188 = vadd.f32 %v4962, %v5158
      %v5189 = vadd.f32 %v4963, %v5161
      %v5190 = vadd.f32 %v4964, %v5164
      %v5191 = vld [vmem:[#allocation2 + $0x2c] sm:$0xff]
      %v5192 = vld [vmem:[#allocation2 + $0x34] sm:$0xff]
      %v5193 = vld [vmem:[#allocation2 + $0x3c] sm:$0xff]
      %v5194 = vld [vmem:[#allocation2 + $0x44] sm:$0xff]
      %v5195 = vld [vmem:[#allocation2 + $0x4c] sm:$0xff]
      %v5196 = vld [vmem:[#allocation2 + $0x54] sm:$0xff]
      %v5197 = vld [vmem:[#allocation2 + $0x5c] sm:$0xff]
      %v5198 = vld [vmem:[#allocation2 + $0x64] sm:$0xff]
      %v5199 = vld [vmem:[#allocation2 + $0x6c] sm:$0xff]
      %v5200 = vld [vmem:[#allocation2 + $0x74] sm:$0xff]
      %v5201 = vld [vmem:[#allocation2 + $0x7c] sm:$0xff]
      %v5202 = vld [vmem:[#allocation2 + $0x84] sm:$0xff]
      %v5203 = vld [vmem:[#allocation2 + $0x8c] sm:$0xff]
      %v5204 = vld [vmem:[#allocation2 + $0x94] sm:$0xff]
      %v5205 = vld [vmem:[#allocation2 + $0x9c] sm:$0xff]
      %v5206 = vld [vmem:[#allocation2 + $0xa4] sm:$0xff]
      %v5207 = vld [vmem:[#allocation2 + $0xac] sm:$0xff]
      %v5208 = vld [vmem:[#allocation2 + $0xb4] sm:$0xff]
      %v5209 = vld [vmem:[#allocation2 + $0xbc] sm:$0xff]
      %v5210 = vld [vmem:[#allocation2 + $0xc4] sm:$0xff]
      %v5211 = vld [vmem:[#allocation2 + $0xcc] sm:$0xff]
      %v5212 = vld [vmem:[#allocation2 + $0xd4] sm:$0xff]
      %v5213 = vld [vmem:[#allocation2 + $0xdc] sm:$0xff]
      %v5214 = vld [vmem:[#allocation2 + $0xe4] sm:$0xff]
      %v5215 = vld [vmem:[#allocation2 + $0xec] sm:$0xf]
      %s5216 = scalar_lea.vmem %s3, 1088
      %v5217 = vld [vmem:[%s5216] sm:$0xff]
      %v5218 = vld [vmem:[%s5216 + $0x8] sm:$0xff]
      %v5219 = vld [vmem:[%s5216 + $0x10] sm:$0xff]
      %v5220 = vld [vmem:[%s5216 + $0x18] sm:$0xff]
      %v5221 = vld [vmem:[%s5216 + $0x20] sm:$0xff]
      %v5222 = vld [vmem:[%s5216 + $0x28] sm:$0xff]
      %v5223 = vld [vmem:[%s5216 + $0x30] sm:$0xff]
      %v5224 = vld [vmem:[%s5216 + $0x38] sm:$0xff]
      %v5226 = vsel %vm1365, %v5191, 0
      %v5229 = vsel %vm1365, %v5192, 0
      %v5232 = vsel %vm1365, %v5193, 0
      %v5235 = vsel %vm1365, %v5194, 0
      %v5238 = vsel %vm1365, %v5195, 0
      %v5241 = vsel %vm1365, %v5196, 0
      %v5244 = vsel %vm1365, %v5197, 0
      %v5247 = vsel %vm1365, %v5198, 0
      %v5250 = vsel %vm1365, %v5199, 0
      %v5253 = vsel %vm1365, %v5200, 0
      %v5256 = vsel %vm1365, %v5201, 0
      %v5259 = vsel %vm1365, %v5202, 0
      %v5262 = vsel %vm1365, %v5203, 0
      %v5265 = vsel %vm1365, %v5204, 0
      %v5268 = vsel %vm1365, %v5205, 0
      %v5271 = vsel %vm1365, %v5206, 0
      %v5274 = vsel %vm1365, %v5207, 0
      %v5277 = vsel %vm1365, %v5208, 0
      %v5280 = vsel %vm1365, %v5209, 0
      %v5283 = vsel %vm1365, %v5210, 0
      %v5286 = vsel %vm1365, %v5211, 0
      %v5289 = vsel %vm1365, %v5212, 0
      %v5292 = vsel %vm1365, %v5213, 0
      %v5295 = vsel %vm1365, %v5214, 0
      %v5298 = vsel %vm1365, %v5215, 0
      %5300 = vmatpush.msra.mxu0 0.0
      %5301 = vmatpush.msra.mxu0 0.0
      %5302 = vmatpush.msra.mxu0 0.0
      %5303 = vmatpush.msra.mxu0 0.0
      %5304 = vmatpush.msra.mxu0 0.0
      %5305 = vmatpush.msra.mxu0 0.0
      %5306 = vmatpush.msra.mxu0 0.0
      %5307 = vmatpush.msra.mxu0 0.0
      %5308 = vmatpush.msra.mxu0 %v5224
      %5309 = vmatpush.msra.mxu0 %v5223
      %5310 = vmatpush.msra.mxu0 %v5222
      %5311 = vmatpush.msra.mxu0 %v5221
      %5312 = vmatpush.msra.mxu0 %v5220
      %5313 = vmatpush.msra.mxu0 %v5219
      %5314 = vmatpush.msra.mxu0 %v5218
      %5315 = vmatpush.msra.mxu0 %v5217
      %5316 = vmatmul.f32.gmra.mxu0 %v5226
      %v5317 = vpop.f32.mrf.mxu0
      %v5318 = vadd.f32 0.0, %v5317
      %5319 = vmatmul.f32.gmra.mxu0 %v5229
      %v5320 = vpop.f32.mrf.mxu0
      %v5321 = vadd.f32 0.0, %v5320
      %5322 = vmatmul.f32.gmra.mxu0 %v5232
      %v5323 = vpop.f32.mrf.mxu0
      %v5324 = vadd.f32 0.0, %v5323
      %5325 = vmatmul.f32.gmra.mxu0 %v5235
      %v5326 = vpop.f32.mrf.mxu0
      %v5327 = vadd.f32 0.0, %v5326
      %5328 = vmatmul.f32.gmra.mxu0 %v5238
      %v5329 = vpop.f32.mrf.mxu0
      %v5330 = vadd.f32 0.0, %v5329
      %5331 = vmatmul.f32.gmra.mxu0 %v5241
      %v5332 = vpop.f32.mrf.mxu0
      %v5333 = vadd.f32 0.0, %v5332
      %5334 = vmatmul.f32.gmra.mxu0 %v5244
      %v5335 = vpop.f32.mrf.mxu0
      %v5336 = vadd.f32 0.0, %v5335
      %5337 = vmatmul.f32.gmra.mxu0 %v5247
      %v5338 = vpop.f32.mrf.mxu0
      %v5339 = vadd.f32 0.0, %v5338
      %5340 = vmatmul.f32.gmra.mxu0 %v5250
      %v5341 = vpop.f32.mrf.mxu0
      %v5342 = vadd.f32 0.0, %v5341
      %5343 = vmatmul.f32.gmra.mxu0 %v5253
      %v5344 = vpop.f32.mrf.mxu0
      %v5345 = vadd.f32 0.0, %v5344
      %5346 = vmatmul.f32.gmra.mxu0 %v5256
      %v5347 = vpop.f32.mrf.mxu0
      %v5348 = vadd.f32 0.0, %v5347
      %5349 = vmatmul.f32.gmra.mxu0 %v5259
      %v5350 = vpop.f32.mrf.mxu0
      %v5351 = vadd.f32 0.0, %v5350
      %5352 = vmatmul.f32.gmra.mxu0 %v5262
      %v5353 = vpop.f32.mrf.mxu0
      %v5354 = vadd.f32 0.0, %v5353
      %5355 = vmatmul.f32.gmra.mxu0 %v5265
      %v5356 = vpop.f32.mrf.mxu0
      %v5357 = vadd.f32 0.0, %v5356
      %5358 = vmatmul.f32.gmra.mxu0 %v5268
      %v5359 = vpop.f32.mrf.mxu0
      %v5360 = vadd.f32 0.0, %v5359
      %5361 = vmatmul.f32.gmra.mxu0 %v5271
      %v5362 = vpop.f32.mrf.mxu0
      %v5363 = vadd.f32 0.0, %v5362
      %5364 = vmatmul.f32.gmra.mxu0 %v5274
      %v5365 = vpop.f32.mrf.mxu0
      %v5366 = vadd.f32 0.0, %v5365
      %5367 = vmatmul.f32.gmra.mxu0 %v5277
      %v5368 = vpop.f32.mrf.mxu0
      %v5369 = vadd.f32 0.0, %v5368
      %5370 = vmatmul.f32.gmra.mxu0 %v5280
      %v5371 = vpop.f32.mrf.mxu0
      %v5372 = vadd.f32 0.0, %v5371
      %5373 = vmatmul.f32.gmra.mxu0 %v5283
      %v5374 = vpop.f32.mrf.mxu0
      %v5375 = vadd.f32 0.0, %v5374
      %5376 = vmatmul.f32.gmra.mxu0 %v5286
      %v5377 = vpop.f32.mrf.mxu0
      %v5378 = vadd.f32 0.0, %v5377
      %5379 = vmatmul.f32.gmra.mxu0 %v5289
      %v5380 = vpop.f32.mrf.mxu0
      %v5381 = vadd.f32 0.0, %v5380
      %5382 = vmatmul.f32.gmra.mxu0 %v5292
      %v5383 = vpop.f32.mrf.mxu0
      %v5384 = vadd.f32 0.0, %v5383
      %5385 = vmatmul.f32.gmra.mxu0 %v5295
      %v5386 = vpop.f32.mrf.mxu0
      %v5387 = vadd.f32 0.0, %v5386
      %5388 = vmatmul.f32.gmra.mxu0 %v5298
      %v5389 = vpop.f32.mrf.mxu0
      %v5390 = vadd.f32 0.0, %v5389
      %5391 = vdwg.mxu0
      %v5392 = vadd.f32 %v5166, %v5318
      %v5393 = vadd.f32 %v5167, %v5321
      %v5394 = vadd.f32 %v5168, %v5324
      %v5395 = vadd.f32 %v5169, %v5327
      %v5396 = vadd.f32 %v5170, %v5330
      %v5397 = vadd.f32 %v5171, %v5333
      %v5398 = vadd.f32 %v5172, %v5336
      %v5399 = vadd.f32 %v5173, %v5339
      %v5400 = vadd.f32 %v5174, %v5342
      %v5401 = vadd.f32 %v5175, %v5345
      %v5402 = vadd.f32 %v5176, %v5348
      %v5403 = vadd.f32 %v5177, %v5351
      %v5404 = vadd.f32 %v5178, %v5354
      %v5405 = vadd.f32 %v5179, %v5357
      %v5406 = vadd.f32 %v5180, %v5360
      %v5407 = vadd.f32 %v5181, %v5363
      %v5408 = vadd.f32 %v5182, %v5366
      %v5409 = vadd.f32 %v5183, %v5369
      %v5410 = vadd.f32 %v5184, %v5372
      %v5411 = vadd.f32 %v5185, %v5375
      %v5412 = vadd.f32 %v5186, %v5378
      %v5413 = vadd.f32 %v5187, %v5381
      %v5414 = vadd.f32 %v5188, %v5384
      %v5415 = vadd.f32 %v5189, %v5387
      %v5416 = vadd.f32 %v5190, %v5390
      %v5417 = vld [vmem:[#allocation2 + $0x2d] sm:$0xff]
      %v5418 = vld [vmem:[#allocation2 + $0x35] sm:$0xff]
      %v5419 = vld [vmem:[#allocation2 + $0x3d] sm:$0xff]
      %v5420 = vld [vmem:[#allocation2 + $0x45] sm:$0xff]
      %v5421 = vld [vmem:[#allocation2 + $0x4d] sm:$0xff]
      %v5422 = vld [vmem:[#allocation2 + $0x55] sm:$0xff]
      %v5423 = vld [vmem:[#allocation2 + $0x5d] sm:$0xff]
      %v5424 = vld [vmem:[#allocation2 + $0x65] sm:$0xff]
      %v5425 = vld [vmem:[#allocation2 + $0x6d] sm:$0xff]
      %v5426 = vld [vmem:[#allocation2 + $0x75] sm:$0xff]
      %v5427 = vld [vmem:[#allocation2 + $0x7d] sm:$0xff]
      %v5428 = vld [vmem:[#allocation2 + $0x85] sm:$0xff]
      %v5429 = vld [vmem:[#allocation2 + $0x8d] sm:$0xff]
      %v5430 = vld [vmem:[#allocation2 + $0x95] sm:$0xff]
      %v5431 = vld [vmem:[#allocation2 + $0x9d] sm:$0xff]
      %v5432 = vld [vmem:[#allocation2 + $0xa5] sm:$0xff]
      %v5433 = vld [vmem:[#allocation2 + $0xad] sm:$0xff]
      %v5434 = vld [vmem:[#allocation2 + $0xb5] sm:$0xff]
      %v5435 = vld [vmem:[#allocation2 + $0xbd] sm:$0xff]
      %v5436 = vld [vmem:[#allocation2 + $0xc5] sm:$0xff]
      %v5437 = vld [vmem:[#allocation2 + $0xcd] sm:$0xff]
      %v5438 = vld [vmem:[#allocation2 + $0xd5] sm:$0xff]
      %v5439 = vld [vmem:[#allocation2 + $0xdd] sm:$0xff]
      %v5440 = vld [vmem:[#allocation2 + $0xe5] sm:$0xff]
      %v5441 = vld [vmem:[#allocation2 + $0xed] sm:$0xf]
      %s5442 = scalar_lea.vmem %s3, 1152
      %v5443 = vld [vmem:[%s5442] sm:$0xff]
      %v5444 = vld [vmem:[%s5442 + $0x8] sm:$0xff]
      %v5445 = vld [vmem:[%s5442 + $0x10] sm:$0xff]
      %v5446 = vld [vmem:[%s5442 + $0x18] sm:$0xff]
      %v5447 = vld [vmem:[%s5442 + $0x20] sm:$0xff]
      %v5448 = vld [vmem:[%s5442 + $0x28] sm:$0xff]
      %v5449 = vld [vmem:[%s5442 + $0x30] sm:$0xff]
      %v5450 = vld [vmem:[%s5442 + $0x38] sm:$0xff]
      %v5452 = vsel %vm1365, %v5417, 0
      %v5455 = vsel %vm1365, %v5418, 0
      %v5458 = vsel %vm1365, %v5419, 0
      %v5461 = vsel %vm1365, %v5420, 0
      %v5464 = vsel %vm1365, %v5421, 0
      %v5467 = vsel %vm1365, %v5422, 0
      %v5470 = vsel %vm1365, %v5423, 0
      %v5473 = vsel %vm1365, %v5424, 0
      %v5476 = vsel %vm1365, %v5425, 0
      %v5479 = vsel %vm1365, %v5426, 0
      %v5482 = vsel %vm1365, %v5427, 0
      %v5485 = vsel %vm1365, %v5428, 0
      %v5488 = vsel %vm1365, %v5429, 0
      %v5491 = vsel %vm1365, %v5430, 0
      %v5494 = vsel %vm1365, %v5431, 0
      %v5497 = vsel %vm1365, %v5432, 0
      %v5500 = vsel %vm1365, %v5433, 0
      %v5503 = vsel %vm1365, %v5434, 0
      %v5506 = vsel %vm1365, %v5435, 0
      %v5509 = vsel %vm1365, %v5436, 0
      %v5512 = vsel %vm1365, %v5437, 0
      %v5515 = vsel %vm1365, %v5438, 0
      %v5518 = vsel %vm1365, %v5439, 0
      %v5521 = vsel %vm1365, %v5440, 0
      %v5524 = vsel %vm1365, %v5441, 0
      %5526 = vmatpush.msra.mxu0 0.0
      %5527 = vmatpush.msra.mxu0 0.0
      %5528 = vmatpush.msra.mxu0 0.0
      %5529 = vmatpush.msra.mxu0 0.0
      %5530 = vmatpush.msra.mxu0 0.0
      %5531 = vmatpush.msra.mxu0 0.0
      %5532 = vmatpush.msra.mxu0 0.0
      %5533 = vmatpush.msra.mxu0 0.0
      %5534 = vmatpush.msra.mxu0 %v5450
      %5535 = vmatpush.msra.mxu0 %v5449
      %5536 = vmatpush.msra.mxu0 %v5448
      %5537 = vmatpush.msra.mxu0 %v5447
      %5538 = vmatpush.msra.mxu0 %v5446
      %5539 = vmatpush.msra.mxu0 %v5445
      %5540 = vmatpush.msra.mxu0 %v5444
      %5541 = vmatpush.msra.mxu0 %v5443
      %5542 = vmatmul.f32.gmra.mxu0 %v5452
      %v5543 = vpop.f32.mrf.mxu0
      %v5544 = vadd.f32 0.0, %v5543
      %5545 = vmatmul.f32.gmra.mxu0 %v5455
      %v5546 = vpop.f32.mrf.mxu0
      %v5547 = vadd.f32 0.0, %v5546
      %5548 = vmatmul.f32.gmra.mxu0 %v5458
      %v5549 = vpop.f32.mrf.mxu0
      %v5550 = vadd.f32 0.0, %v5549
      %5551 = vmatmul.f32.gmra.mxu0 %v5461
      %v5552 = vpop.f32.mrf.mxu0
      %v5553 = vadd.f32 0.0, %v5552
      %5554 = vmatmul.f32.gmra.mxu0 %v5464
      %v5555 = vpop.f32.mrf.mxu0
      %v5556 = vadd.f32 0.0, %v5555
      %5557 = vmatmul.f32.gmra.mxu0 %v5467
      %v5558 = vpop.f32.mrf.mxu0
      %v5559 = vadd.f32 0.0, %v5558
      %5560 = vmatmul.f32.gmra.mxu0 %v5470
      %v5561 = vpop.f32.mrf.mxu0
      %v5562 = vadd.f32 0.0, %v5561
      %5563 = vmatmul.f32.gmra.mxu0 %v5473
      %v5564 = vpop.f32.mrf.mxu0
      %v5565 = vadd.f32 0.0, %v5564
      %5566 = vmatmul.f32.gmra.mxu0 %v5476
      %v5567 = vpop.f32.mrf.mxu0
      %v5568 = vadd.f32 0.0, %v5567
      %5569 = vmatmul.f32.gmra.mxu0 %v5479
      %v5570 = vpop.f32.mrf.mxu0
      %v5571 = vadd.f32 0.0, %v5570
      %5572 = vmatmul.f32.gmra.mxu0 %v5482
      %v5573 = vpop.f32.mrf.mxu0
      %v5574 = vadd.f32 0.0, %v5573
      %5575 = vmatmul.f32.gmra.mxu0 %v5485
      %v5576 = vpop.f32.mrf.mxu0
      %v5577 = vadd.f32 0.0, %v5576
      %5578 = vmatmul.f32.gmra.mxu0 %v5488
      %v5579 = vpop.f32.mrf.mxu0
      %v5580 = vadd.f32 0.0, %v5579
      %5581 = vmatmul.f32.gmra.mxu0 %v5491
      %v5582 = vpop.f32.mrf.mxu0
      %v5583 = vadd.f32 0.0, %v5582
      %5584 = vmatmul.f32.gmra.mxu0 %v5494
      %v5585 = vpop.f32.mrf.mxu0
      %v5586 = vadd.f32 0.0, %v5585
      %5587 = vmatmul.f32.gmra.mxu0 %v5497
      %v5588 = vpop.f32.mrf.mxu0
      %v5589 = vadd.f32 0.0, %v5588
      %5590 = vmatmul.f32.gmra.mxu0 %v5500
      %v5591 = vpop.f32.mrf.mxu0
      %v5592 = vadd.f32 0.0, %v5591
      %5593 = vmatmul.f32.gmra.mxu0 %v5503
      %v5594 = vpop.f32.mrf.mxu0
      %v5595 = vadd.f32 0.0, %v5594
      %5596 = vmatmul.f32.gmra.mxu0 %v5506
      %v5597 = vpop.f32.mrf.mxu0
      %v5598 = vadd.f32 0.0, %v5597
      %5599 = vmatmul.f32.gmra.mxu0 %v5509
      %v5600 = vpop.f32.mrf.mxu0
      %v5601 = vadd.f32 0.0, %v5600
      %5602 = vmatmul.f32.gmra.mxu0 %v5512
      %v5603 = vpop.f32.mrf.mxu0
      %v5604 = vadd.f32 0.0, %v5603
      %5605 = vmatmul.f32.gmra.mxu0 %v5515
      %v5606 = vpop.f32.mrf.mxu0
      %v5607 = vadd.f32 0.0, %v5606
      %5608 = vmatmul.f32.gmra.mxu0 %v5518
      %v5609 = vpop.f32.mrf.mxu0
      %v5610 = vadd.f32 0.0, %v5609
      %5611 = vmatmul.f32.gmra.mxu0 %v5521
      %v5612 = vpop.f32.mrf.mxu0
      %v5613 = vadd.f32 0.0, %v5612
      %5614 = vmatmul.f32.gmra.mxu0 %v5524
      %v5615 = vpop.f32.mrf.mxu0
      %v5616 = vadd.f32 0.0, %v5615
      %5617 = vdwg.mxu0
      %v5618 = vadd.f32 %v5392, %v5544
      %v5619 = vadd.f32 %v5393, %v5547
      %v5620 = vadd.f32 %v5394, %v5550
      %v5621 = vadd.f32 %v5395, %v5553
      %v5622 = vadd.f32 %v5396, %v5556
      %v5623 = vadd.f32 %v5397, %v5559
      %v5624 = vadd.f32 %v5398, %v5562
      %v5625 = vadd.f32 %v5399, %v5565
      %v5626 = vadd.f32 %v5400, %v5568
      %v5627 = vadd.f32 %v5401, %v5571
      %v5628 = vadd.f32 %v5402, %v5574
      %v5629 = vadd.f32 %v5403, %v5577
      %v5630 = vadd.f32 %v5404, %v5580
      %v5631 = vadd.f32 %v5405, %v5583
      %v5632 = vadd.f32 %v5406, %v5586
      %v5633 = vadd.f32 %v5407, %v5589
      %v5634 = vadd.f32 %v5408, %v5592
      %v5635 = vadd.f32 %v5409, %v5595
      %v5636 = vadd.f32 %v5410, %v5598
      %v5637 = vadd.f32 %v5411, %v5601
      %v5638 = vadd.f32 %v5412, %v5604
      %v5639 = vadd.f32 %v5413, %v5607
      %v5640 = vadd.f32 %v5414, %v5610
      %v5641 = vadd.f32 %v5415, %v5613
      %v5642 = vadd.f32 %v5416, %v5616
      %v5643 = vld [vmem:[#allocation2 + $0x2e] sm:$0xff]
      %v5644 = vld [vmem:[#allocation2 + $0x36] sm:$0xff]
      %v5645 = vld [vmem:[#allocation2 + $0x3e] sm:$0xff]
      %v5646 = vld [vmem:[#allocation2 + $0x46] sm:$0xff]
      %v5647 = vld [vmem:[#allocation2 + $0x4e] sm:$0xff]
      %v5648 = vld [vmem:[#allocation2 + $0x56] sm:$0xff]
      %v5649 = vld [vmem:[#allocation2 + $0x5e] sm:$0xff]
      %v5650 = vld [vmem:[#allocation2 + $0x66] sm:$0xff]
      %v5651 = vld [vmem:[#allocation2 + $0x6e] sm:$0xff]
      %v5652 = vld [vmem:[#allocation2 + $0x76] sm:$0xff]
      %v5653 = vld [vmem:[#allocation2 + $0x7e] sm:$0xff]
      %v5654 = vld [vmem:[#allocation2 + $0x86] sm:$0xff]
      %v5655 = vld [vmem:[#allocation2 + $0x8e] sm:$0xff]
      %v5656 = vld [vmem:[#allocation2 + $0x96] sm:$0xff]
      %v5657 = vld [vmem:[#allocation2 + $0x9e] sm:$0xff]
      %v5658 = vld [vmem:[#allocation2 + $0xa6] sm:$0xff]
      %v5659 = vld [vmem:[#allocation2 + $0xae] sm:$0xff]
      %v5660 = vld [vmem:[#allocation2 + $0xb6] sm:$0xff]
      %v5661 = vld [vmem:[#allocation2 + $0xbe] sm:$0xff]
      %v5662 = vld [vmem:[#allocation2 + $0xc6] sm:$0xff]
      %v5663 = vld [vmem:[#allocation2 + $0xce] sm:$0xff]
      %v5664 = vld [vmem:[#allocation2 + $0xd6] sm:$0xff]
      %v5665 = vld [vmem:[#allocation2 + $0xde] sm:$0xff]
      %v5666 = vld [vmem:[#allocation2 + $0xe6] sm:$0xff]
      %v5667 = vld [vmem:[#allocation2 + $0xee] sm:$0xf]
      %s5668 = scalar_lea.vmem %s3, 1216
      %v5669 = vld [vmem:[%s5668] sm:$0xff]
      %v5670 = vld [vmem:[%s5668 + $0x8] sm:$0xff]
      %v5671 = vld [vmem:[%s5668 + $0x10] sm:$0xff]
      %v5672 = vld [vmem:[%s5668 + $0x18] sm:$0xff]
      %v5673 = vld [vmem:[%s5668 + $0x20] sm:$0xff]
      %v5674 = vld [vmem:[%s5668 + $0x28] sm:$0xff]
      %v5675 = vld [vmem:[%s5668 + $0x30] sm:$0xff]
      %v5676 = vld [vmem:[%s5668 + $0x38] sm:$0xff]
      %v5678 = vsel %vm1365, %v5643, 0
      %v5681 = vsel %vm1365, %v5644, 0
      %v5684 = vsel %vm1365, %v5645, 0
      %v5687 = vsel %vm1365, %v5646, 0
      %v5690 = vsel %vm1365, %v5647, 0
      %v5693 = vsel %vm1365, %v5648, 0
      %v5696 = vsel %vm1365, %v5649, 0
      %v5699 = vsel %vm1365, %v5650, 0
      %v5702 = vsel %vm1365, %v5651, 0
      %v5705 = vsel %vm1365, %v5652, 0
      %v5708 = vsel %vm1365, %v5653, 0
      %v5711 = vsel %vm1365, %v5654, 0
      %v5714 = vsel %vm1365, %v5655, 0
      %v5717 = vsel %vm1365, %v5656, 0
      %v5720 = vsel %vm1365, %v5657, 0
      %v5723 = vsel %vm1365, %v5658, 0
      %v5726 = vsel %vm1365, %v5659, 0
      %v5729 = vsel %vm1365, %v5660, 0
      %v5732 = vsel %vm1365, %v5661, 0
      %v5735 = vsel %vm1365, %v5662, 0
      %v5738 = vsel %vm1365, %v5663, 0
      %v5741 = vsel %vm1365, %v5664, 0
      %v5744 = vsel %vm1365, %v5665, 0
      %v5747 = vsel %vm1365, %v5666, 0
      %v5750 = vsel %vm1365, %v5667, 0
      %5752 = vmatpush.msra.mxu0 0.0
      %5753 = vmatpush.msra.mxu0 0.0
      %5754 = vmatpush.msra.mxu0 0.0
      %5755 = vmatpush.msra.mxu0 0.0
      %5756 = vmatpush.msra.mxu0 0.0
      %5757 = vmatpush.msra.mxu0 0.0
      %5758 = vmatpush.msra.mxu0 0.0
      %5759 = vmatpush.msra.mxu0 0.0
      %5760 = vmatpush.msra.mxu0 %v5676
      %5761 = vmatpush.msra.mxu0 %v5675
      %5762 = vmatpush.msra.mxu0 %v5674
      %5763 = vmatpush.msra.mxu0 %v5673
      %5764 = vmatpush.msra.mxu0 %v5672
      %5765 = vmatpush.msra.mxu0 %v5671
      %5766 = vmatpush.msra.mxu0 %v5670
      %5767 = vmatpush.msra.mxu0 %v5669
      %5768 = vmatmul.f32.gmra.mxu0 %v5678
      %v5769 = vpop.f32.mrf.mxu0
      %v5770 = vadd.f32 0.0, %v5769
      %5771 = vmatmul.f32.gmra.mxu0 %v5681
      %v5772 = vpop.f32.mrf.mxu0
      %v5773 = vadd.f32 0.0, %v5772
      %5774 = vmatmul.f32.gmra.mxu0 %v5684
      %v5775 = vpop.f32.mrf.mxu0
      %v5776 = vadd.f32 0.0, %v5775
      %5777 = vmatmul.f32.gmra.mxu0 %v5687
      %v5778 = vpop.f32.mrf.mxu0
      %v5779 = vadd.f32 0.0, %v5778
      %5780 = vmatmul.f32.gmra.mxu0 %v5690
      %v5781 = vpop.f32.mrf.mxu0
      %v5782 = vadd.f32 0.0, %v5781
      %5783 = vmatmul.f32.gmra.mxu0 %v5693
      %v5784 = vpop.f32.mrf.mxu0
      %v5785 = vadd.f32 0.0, %v5784
      %5786 = vmatmul.f32.gmra.mxu0 %v5696
      %v5787 = vpop.f32.mrf.mxu0
      %v5788 = vadd.f32 0.0, %v5787
      %5789 = vmatmul.f32.gmra.mxu0 %v5699
      %v5790 = vpop.f32.mrf.mxu0
      %v5791 = vadd.f32 0.0, %v5790
      %5792 = vmatmul.f32.gmra.mxu0 %v5702
      %v5793 = vpop.f32.mrf.mxu0
      %v5794 = vadd.f32 0.0, %v5793
      %5795 = vmatmul.f32.gmra.mxu0 %v5705
      %v5796 = vpop.f32.mrf.mxu0
      %v5797 = vadd.f32 0.0, %v5796
      %5798 = vmatmul.f32.gmra.mxu0 %v5708
      %v5799 = vpop.f32.mrf.mxu0
      %v5800 = vadd.f32 0.0, %v5799
      %5801 = vmatmul.f32.gmra.mxu0 %v5711
      %v5802 = vpop.f32.mrf.mxu0
      %v5803 = vadd.f32 0.0, %v5802
      %5804 = vmatmul.f32.gmra.mxu0 %v5714
      %v5805 = vpop.f32.mrf.mxu0
      %v5806 = vadd.f32 0.0, %v5805
      %5807 = vmatmul.f32.gmra.mxu0 %v5717
      %v5808 = vpop.f32.mrf.mxu0
      %v5809 = vadd.f32 0.0, %v5808
      %5810 = vmatmul.f32.gmra.mxu0 %v5720
      %v5811 = vpop.f32.mrf.mxu0
      %v5812 = vadd.f32 0.0, %v5811
      %5813 = vmatmul.f32.gmra.mxu0 %v5723
      %v5814 = vpop.f32.mrf.mxu0
      %v5815 = vadd.f32 0.0, %v5814
      %5816 = vmatmul.f32.gmra.mxu0 %v5726
      %v5817 = vpop.f32.mrf.mxu0
      %v5818 = vadd.f32 0.0, %v5817
      %5819 = vmatmul.f32.gmra.mxu0 %v5729
      %v5820 = vpop.f32.mrf.mxu0
      %v5821 = vadd.f32 0.0, %v5820
      %5822 = vmatmul.f32.gmra.mxu0 %v5732
      %v5823 = vpop.f32.mrf.mxu0
      %v5824 = vadd.f32 0.0, %v5823
      %5825 = vmatmul.f32.gmra.mxu0 %v5735
      %v5826 = vpop.f32.mrf.mxu0
      %v5827 = vadd.f32 0.0, %v5826
      %5828 = vmatmul.f32.gmra.mxu0 %v5738
      %v5829 = vpop.f32.mrf.mxu0
      %v5830 = vadd.f32 0.0, %v5829
      %5831 = vmatmul.f32.gmra.mxu0 %v5741
      %v5832 = vpop.f32.mrf.mxu0
      %v5833 = vadd.f32 0.0, %v5832
      %5834 = vmatmul.f32.gmra.mxu0 %v5744
      %v5835 = vpop.f32.mrf.mxu0
      %v5836 = vadd.f32 0.0, %v5835
      %5837 = vmatmul.f32.gmra.mxu0 %v5747
      %v5838 = vpop.f32.mrf.mxu0
      %v5839 = vadd.f32 0.0, %v5838
      %5840 = vmatmul.f32.gmra.mxu0 %v5750
      %v5841 = vpop.f32.mrf.mxu0
      %v5842 = vadd.f32 0.0, %v5841
      %5843 = vdwg.mxu0
      %v5844 = vadd.f32 %v5618, %v5770
      %v5845 = vadd.f32 %v5619, %v5773
      %v5846 = vadd.f32 %v5620, %v5776
      %v5847 = vadd.f32 %v5621, %v5779
      %v5848 = vadd.f32 %v5622, %v5782
      %v5849 = vadd.f32 %v5623, %v5785
      %v5850 = vadd.f32 %v5624, %v5788
      %v5851 = vadd.f32 %v5625, %v5791
      %v5852 = vadd.f32 %v5626, %v5794
      %v5853 = vadd.f32 %v5627, %v5797
      %v5854 = vadd.f32 %v5628, %v5800
      %v5855 = vadd.f32 %v5629, %v5803
      %v5856 = vadd.f32 %v5630, %v5806
      %v5857 = vadd.f32 %v5631, %v5809
      %v5858 = vadd.f32 %v5632, %v5812
      %v5859 = vadd.f32 %v5633, %v5815
      %v5860 = vadd.f32 %v5634, %v5818
      %v5861 = vadd.f32 %v5635, %v5821
      %v5862 = vadd.f32 %v5636, %v5824
      %v5863 = vadd.f32 %v5637, %v5827
      %v5864 = vadd.f32 %v5638, %v5830
      %v5865 = vadd.f32 %v5639, %v5833
      %v5866 = vadd.f32 %v5640, %v5836
      %v5867 = vadd.f32 %v5641, %v5839
      %v5868 = vadd.f32 %v5642, %v5842
      %v5869 = vld [vmem:[#allocation2 + $0x38] sm:$0xff]
      %v5870 = vld [vmem:[#allocation2 + $0x40] sm:$0xff]
      %v5871 = vld [vmem:[#allocation2 + $0x48] sm:$0xff]
      %v5872 = vld [vmem:[#allocation2 + $0x50] sm:$0xff]
      %v5873 = vld [vmem:[#allocation2 + $0x58] sm:$0xff]
      %v5874 = vld [vmem:[#allocation2 + $0x60] sm:$0xff]
      %v5875 = vld [vmem:[#allocation2 + $0x68] sm:$0xff]
      %v5876 = vld [vmem:[#allocation2 + $0x70] sm:$0xff]
      %v5877 = vld [vmem:[#allocation2 + $0x78] sm:$0xff]
      %v5878 = vld [vmem:[#allocation2 + $0x80] sm:$0xff]
      %v5879 = vld [vmem:[#allocation2 + $0x88] sm:$0xff]
      %v5880 = vld [vmem:[#allocation2 + $0x90] sm:$0xff]
      %v5881 = vld [vmem:[#allocation2 + $0x98] sm:$0xff]
      %v5882 = vld [vmem:[#allocation2 + $0xa0] sm:$0xff]
      %v5883 = vld [vmem:[#allocation2 + $0xa8] sm:$0xff]
      %v5884 = vld [vmem:[#allocation2 + $0xb0] sm:$0xff]
      %v5885 = vld [vmem:[#allocation2 + $0xb8] sm:$0xff]
      %v5886 = vld [vmem:[#allocation2 + $0xc0] sm:$0xff]
      %v5887 = vld [vmem:[#allocation2 + $0xc8] sm:$0xff]
      %v5888 = vld [vmem:[#allocation2 + $0xd0] sm:$0xff]
      %v5889 = vld [vmem:[#allocation2 + $0xd8] sm:$0xff]
      %v5890 = vld [vmem:[#allocation2 + $0xe0] sm:$0xff]
      %v5891 = vld [vmem:[#allocation2 + $0xe8] sm:$0xff]
      %v5892 = vld [vmem:[#allocation2 + $0xf0] sm:$0xff]
      %v5893 = vld [vmem:[#allocation2 + $0xf8] sm:$0xf]
      %s5894 = scalar_lea.vmem %s3, 1280
      %v5895 = vld [vmem:[%s5894] sm:$0xff]
      %v5896 = vld [vmem:[%s5894 + $0x8] sm:$0xff]
      %v5897 = vld [vmem:[%s5894 + $0x10] sm:$0xff]
      %v5898 = vld [vmem:[%s5894 + $0x18] sm:$0xff]
      %v5899 = vld [vmem:[%s5894 + $0x20] sm:$0xff]
      %v5900 = vld [vmem:[%s5894 + $0x28] sm:$0xff]
      %v5901 = vld [vmem:[%s5894 + $0x30] sm:$0xff]
      %v5902 = vld [vmem:[%s5894 + $0x38] sm:$0xff]
      %v5904 = vsel %vm1365, %v5869, 0
      %v5907 = vsel %vm1365, %v5870, 0
      %v5910 = vsel %vm1365, %v5871, 0
      %v5913 = vsel %vm1365, %v5872, 0
      %v5916 = vsel %vm1365, %v5873, 0
      %v5919 = vsel %vm1365, %v5874, 0
      %v5922 = vsel %vm1365, %v5875, 0
      %v5925 = vsel %vm1365, %v5876, 0
      %v5928 = vsel %vm1365, %v5877, 0
      %v5931 = vsel %vm1365, %v5878, 0
      %v5934 = vsel %vm1365, %v5879, 0
      %v5937 = vsel %vm1365, %v5880, 0
      %v5940 = vsel %vm1365, %v5881, 0
      %v5943 = vsel %vm1365, %v5882, 0
      %v5946 = vsel %vm1365, %v5883, 0
      %v5949 = vsel %vm1365, %v5884, 0
      %v5952 = vsel %vm1365, %v5885, 0
      %v5955 = vsel %vm1365, %v5886, 0
      %v5958 = vsel %vm1365, %v5887, 0
      %v5961 = vsel %vm1365, %v5888, 0
      %v5964 = vsel %vm1365, %v5889, 0
      %v5967 = vsel %vm1365, %v5890, 0
      %v5970 = vsel %vm1365, %v5891, 0
      %v5973 = vsel %vm1365, %v5892, 0
      %v5976 = vsel %vm1365, %v5893, 0
      %5978 = vmatpush.msra.mxu0 0.0
      %5979 = vmatpush.msra.mxu0 0.0
      %5980 = vmatpush.msra.mxu0 0.0
      %5981 = vmatpush.msra.mxu0 0.0
      %5982 = vmatpush.msra.mxu0 0.0
      %5983 = vmatpush.msra.mxu0 0.0
      %5984 = vmatpush.msra.mxu0 0.0
      %5985 = vmatpush.msra.mxu0 0.0
      %5986 = vmatpush.msra.mxu0 %v5902
      %5987 = vmatpush.msra.mxu0 %v5901
      %5988 = vmatpush.msra.mxu0 %v5900
      %5989 = vmatpush.msra.mxu0 %v5899
      %5990 = vmatpush.msra.mxu0 %v5898
      %5991 = vmatpush.msra.mxu0 %v5897
      %5992 = vmatpush.msra.mxu0 %v5896
      %5993 = vmatpush.msra.mxu0 %v5895
      %5994 = vmatmul.f32.gmra.mxu0 %v5904
      %v5995 = vpop.f32.mrf.mxu0
      %v5996 = vadd.f32 0.0, %v5995
      %5997 = vmatmul.f32.gmra.mxu0 %v5907
      %v5998 = vpop.f32.mrf.mxu0
      %v5999 = vadd.f32 0.0, %v5998
      %6000 = vmatmul.f32.gmra.mxu0 %v5910
      %v6001 = vpop.f32.mrf.mxu0
      %v6002 = vadd.f32 0.0, %v6001
      %6003 = vmatmul.f32.gmra.mxu0 %v5913
      %v6004 = vpop.f32.mrf.mxu0
      %v6005 = vadd.f32 0.0, %v6004
      %6006 = vmatmul.f32.gmra.mxu0 %v5916
      %v6007 = vpop.f32.mrf.mxu0
      %v6008 = vadd.f32 0.0, %v6007
      %6009 = vmatmul.f32.gmra.mxu0 %v5919
      %v6010 = vpop.f32.mrf.mxu0
      %v6011 = vadd.f32 0.0, %v6010
      %6012 = vmatmul.f32.gmra.mxu0 %v5922
      %v6013 = vpop.f32.mrf.mxu0
      %v6014 = vadd.f32 0.0, %v6013
      %6015 = vmatmul.f32.gmra.mxu0 %v5925
      %v6016 = vpop.f32.mrf.mxu0
      %v6017 = vadd.f32 0.0, %v6016
      %6018 = vmatmul.f32.gmra.mxu0 %v5928
      %v6019 = vpop.f32.mrf.mxu0
      %v6020 = vadd.f32 0.0, %v6019
      %6021 = vmatmul.f32.gmra.mxu0 %v5931
      %v6022 = vpop.f32.mrf.mxu0
      %v6023 = vadd.f32 0.0, %v6022
      %6024 = vmatmul.f32.gmra.mxu0 %v5934
      %v6025 = vpop.f32.mrf.mxu0
      %v6026 = vadd.f32 0.0, %v6025
      %6027 = vmatmul.f32.gmra.mxu0 %v5937
      %v6028 = vpop.f32.mrf.mxu0
      %v6029 = vadd.f32 0.0, %v6028
      %6030 = vmatmul.f32.gmra.mxu0 %v5940
      %v6031 = vpop.f32.mrf.mxu0
      %v6032 = vadd.f32 0.0, %v6031
      %6033 = vmatmul.f32.gmra.mxu0 %v5943
      %v6034 = vpop.f32.mrf.mxu0
      %v6035 = vadd.f32 0.0, %v6034
      %6036 = vmatmul.f32.gmra.mxu0 %v5946
      %v6037 = vpop.f32.mrf.mxu0
      %v6038 = vadd.f32 0.0, %v6037
      %6039 = vmatmul.f32.gmra.mxu0 %v5949
      %v6040 = vpop.f32.mrf.mxu0
      %v6041 = vadd.f32 0.0, %v6040
      %6042 = vmatmul.f32.gmra.mxu0 %v5952
      %v6043 = vpop.f32.mrf.mxu0
      %v6044 = vadd.f32 0.0, %v6043
      %6045 = vmatmul.f32.gmra.mxu0 %v5955
      %v6046 = vpop.f32.mrf.mxu0
      %v6047 = vadd.f32 0.0, %v6046
      %6048 = vmatmul.f32.gmra.mxu0 %v5958
      %v6049 = vpop.f32.mrf.mxu0
      %v6050 = vadd.f32 0.0, %v6049
      %6051 = vmatmul.f32.gmra.mxu0 %v5961
      %v6052 = vpop.f32.mrf.mxu0
      %v6053 = vadd.f32 0.0, %v6052
      %6054 = vmatmul.f32.gmra.mxu0 %v5964
      %v6055 = vpop.f32.mrf.mxu0
      %v6056 = vadd.f32 0.0, %v6055
      %6057 = vmatmul.f32.gmra.mxu0 %v5967
      %v6058 = vpop.f32.mrf.mxu0
      %v6059 = vadd.f32 0.0, %v6058
      %6060 = vmatmul.f32.gmra.mxu0 %v5970
      %v6061 = vpop.f32.mrf.mxu0
      %v6062 = vadd.f32 0.0, %v6061
      %6063 = vmatmul.f32.gmra.mxu0 %v5973
      %v6064 = vpop.f32.mrf.mxu0
      %v6065 = vadd.f32 0.0, %v6064
      %6066 = vmatmul.f32.gmra.mxu0 %v5976
      %v6067 = vpop.f32.mrf.mxu0
      %v6068 = vadd.f32 0.0, %v6067
      %6069 = vdwg.mxu0
      %v6070 = vadd.f32 %v5844, %v5996
      %v6071 = vadd.f32 %v5845, %v5999
      %v6072 = vadd.f32 %v5846, %v6002
      %v6073 = vadd.f32 %v5847, %v6005
      %v6074 = vadd.f32 %v5848, %v6008
      %v6075 = vadd.f32 %v5849, %v6011
      %v6076 = vadd.f32 %v5850, %v6014
      %v6077 = vadd.f32 %v5851, %v6017
      %v6078 = vadd.f32 %v5852, %v6020
      %v6079 = vadd.f32 %v5853, %v6023
      %v6080 = vadd.f32 %v5854, %v6026
      %v6081 = vadd.f32 %v5855, %v6029
      %v6082 = vadd.f32 %v5856, %v6032
      %v6083 = vadd.f32 %v5857, %v6035
      %v6084 = vadd.f32 %v5858, %v6038
      %v6085 = vadd.f32 %v5859, %v6041
      %v6086 = vadd.f32 %v5860, %v6044
      %v6087 = vadd.f32 %v5861, %v6047
      %v6088 = vadd.f32 %v5862, %v6050
      %v6089 = vadd.f32 %v5863, %v6053
      %v6090 = vadd.f32 %v5864, %v6056
      %v6091 = vadd.f32 %v5865, %v6059
      %v6092 = vadd.f32 %v5866, %v6062
      %v6093 = vadd.f32 %v5867, %v6065
      %v6094 = vadd.f32 %v5868, %v6068
      %v6095 = vld [vmem:[#allocation2 + $0x39] sm:$0xff]
      %v6096 = vld [vmem:[#allocation2 + $0x41] sm:$0xff]
      %v6097 = vld [vmem:[#allocation2 + $0x49] sm:$0xff]
      %v6098 = vld [vmem:[#allocation2 + $0x51] sm:$0xff]
      %v6099 = vld [vmem:[#allocation2 + $0x59] sm:$0xff]
      %v6100 = vld [vmem:[#allocation2 + $0x61] sm:$0xff]
      %v6101 = vld [vmem:[#allocation2 + $0x69] sm:$0xff]
      %v6102 = vld [vmem:[#allocation2 + $0x71] sm:$0xff]
      %v6103 = vld [vmem:[#allocation2 + $0x79] sm:$0xff]
      %v6104 = vld [vmem:[#allocation2 + $0x81] sm:$0xff]
      %v6105 = vld [vmem:[#allocation2 + $0x89] sm:$0xff]
      %v6106 = vld [vmem:[#allocation2 + $0x91] sm:$0xff]
      %v6107 = vld [vmem:[#allocation2 + $0x99] sm:$0xff]
      %v6108 = vld [vmem:[#allocation2 + $0xa1] sm:$0xff]
      %v6109 = vld [vmem:[#allocation2 + $0xa9] sm:$0xff]
      %v6110 = vld [vmem:[#allocation2 + $0xb1] sm:$0xff]
      %v6111 = vld [vmem:[#allocation2 + $0xb9] sm:$0xff]
      %v6112 = vld [vmem:[#allocation2 + $0xc1] sm:$0xff]
      %v6113 = vld [vmem:[#allocation2 + $0xc9] sm:$0xff]
      %v6114 = vld [vmem:[#allocation2 + $0xd1] sm:$0xff]
      %v6115 = vld [vmem:[#allocation2 + $0xd9] sm:$0xff]
      %v6116 = vld [vmem:[#allocation2 + $0xe1] sm:$0xff]
      %v6117 = vld [vmem:[#allocation2 + $0xe9] sm:$0xff]
      %v6118 = vld [vmem:[#allocation2 + $0xf1] sm:$0xff]
      %v6119 = vld [vmem:[#allocation2 + $0xf9] sm:$0xf]
      %s6120 = scalar_lea.vmem %s3, 1344
      %v6121 = vld [vmem:[%s6120] sm:$0xff]
      %v6122 = vld [vmem:[%s6120 + $0x8] sm:$0xff]
      %v6123 = vld [vmem:[%s6120 + $0x10] sm:$0xff]
      %v6124 = vld [vmem:[%s6120 + $0x18] sm:$0xff]
      %v6125 = vld [vmem:[%s6120 + $0x20] sm:$0xff]
      %v6126 = vld [vmem:[%s6120 + $0x28] sm:$0xff]
      %v6127 = vld [vmem:[%s6120 + $0x30] sm:$0xff]
      %v6128 = vld [vmem:[%s6120 + $0x38] sm:$0xff]
      %v6130 = vsel %vm1365, %v6095, 0
      %v6133 = vsel %vm1365, %v6096, 0
      %v6136 = vsel %vm1365, %v6097, 0
      %v6139 = vsel %vm1365, %v6098, 0
      %v6142 = vsel %vm1365, %v6099, 0
      %v6145 = vsel %vm1365, %v6100, 0
      %v6148 = vsel %vm1365, %v6101, 0
      %v6151 = vsel %vm1365, %v6102, 0
      %v6154 = vsel %vm1365, %v6103, 0
      %v6157 = vsel %vm1365, %v6104, 0
      %v6160 = vsel %vm1365, %v6105, 0
      %v6163 = vsel %vm1365, %v6106, 0
      %v6166 = vsel %vm1365, %v6107, 0
      %v6169 = vsel %vm1365, %v6108, 0
      %v6172 = vsel %vm1365, %v6109, 0
      %v6175 = vsel %vm1365, %v6110, 0
      %v6178 = vsel %vm1365, %v6111, 0
      %v6181 = vsel %vm1365, %v6112, 0
      %v6184 = vsel %vm1365, %v6113, 0
      %v6187 = vsel %vm1365, %v6114, 0
      %v6190 = vsel %vm1365, %v6115, 0
      %v6193 = vsel %vm1365, %v6116, 0
      %v6196 = vsel %vm1365, %v6117, 0
      %v6199 = vsel %vm1365, %v6118, 0
      %v6202 = vsel %vm1365, %v6119, 0
      %6204 = vmatpush.msra.mxu0 0.0
      %6205 = vmatpush.msra.mxu0 0.0
      %6206 = vmatpush.msra.mxu0 0.0
      %6207 = vmatpush.msra.mxu0 0.0
      %6208 = vmatpush.msra.mxu0 0.0
      %6209 = vmatpush.msra.mxu0 0.0
      %6210 = vmatpush.msra.mxu0 0.0
      %6211 = vmatpush.msra.mxu0 0.0
      %6212 = vmatpush.msra.mxu0 %v6128
      %6213 = vmatpush.msra.mxu0 %v6127
      %6214 = vmatpush.msra.mxu0 %v6126
      %6215 = vmatpush.msra.mxu0 %v6125
      %6216 = vmatpush.msra.mxu0 %v6124
      %6217 = vmatpush.msra.mxu0 %v6123
      %6218 = vmatpush.msra.mxu0 %v6122
      %6219 = vmatpush.msra.mxu0 %v6121
      %6220 = vmatmul.f32.gmra.mxu0 %v6130
      %v6221 = vpop.f32.mrf.mxu0
      %v6222 = vadd.f32 0.0, %v6221
      %6223 = vmatmul.f32.gmra.mxu0 %v6133
      %v6224 = vpop.f32.mrf.mxu0
      %v6225 = vadd.f32 0.0, %v6224
      %6226 = vmatmul.f32.gmra.mxu0 %v6136
      %v6227 = vpop.f32.mrf.mxu0
      %v6228 = vadd.f32 0.0, %v6227
      %6229 = vmatmul.f32.gmra.mxu0 %v6139
      %v6230 = vpop.f32.mrf.mxu0
      %v6231 = vadd.f32 0.0, %v6230
      %6232 = vmatmul.f32.gmra.mxu0 %v6142
      %v6233 = vpop.f32.mrf.mxu0
      %v6234 = vadd.f32 0.0, %v6233
      %6235 = vmatmul.f32.gmra.mxu0 %v6145
      %v6236 = vpop.f32.mrf.mxu0
      %v6237 = vadd.f32 0.0, %v6236
      %6238 = vmatmul.f32.gmra.mxu0 %v6148
      %v6239 = vpop.f32.mrf.mxu0
      %v6240 = vadd.f32 0.0, %v6239
      %6241 = vmatmul.f32.gmra.mxu0 %v6151
      %v6242 = vpop.f32.mrf.mxu0
      %v6243 = vadd.f32 0.0, %v6242
      %6244 = vmatmul.f32.gmra.mxu0 %v6154
      %v6245 = vpop.f32.mrf.mxu0
      %v6246 = vadd.f32 0.0, %v6245
      %6247 = vmatmul.f32.gmra.mxu0 %v6157
      %v6248 = vpop.f32.mrf.mxu0
      %v6249 = vadd.f32 0.0, %v6248
      %6250 = vmatmul.f32.gmra.mxu0 %v6160
      %v6251 = vpop.f32.mrf.mxu0
      %v6252 = vadd.f32 0.0, %v6251
      %6253 = vmatmul.f32.gmra.mxu0 %v6163
      %v6254 = vpop.f32.mrf.mxu0
      %v6255 = vadd.f32 0.0, %v6254
      %6256 = vmatmul.f32.gmra.mxu0 %v6166
      %v6257 = vpop.f32.mrf.mxu0
      %v6258 = vadd.f32 0.0, %v6257
      %6259 = vmatmul.f32.gmra.mxu0 %v6169
      %v6260 = vpop.f32.mrf.mxu0
      %v6261 = vadd.f32 0.0, %v6260
      %6262 = vmatmul.f32.gmra.mxu0 %v6172
      %v6263 = vpop.f32.mrf.mxu0
      %v6264 = vadd.f32 0.0, %v6263
      %6265 = vmatmul.f32.gmra.mxu0 %v6175
      %v6266 = vpop.f32.mrf.mxu0
      %v6267 = vadd.f32 0.0, %v6266
      %6268 = vmatmul.f32.gmra.mxu0 %v6178
      %v6269 = vpop.f32.mrf.mxu0
      %v6270 = vadd.f32 0.0, %v6269
      %6271 = vmatmul.f32.gmra.mxu0 %v6181
      %v6272 = vpop.f32.mrf.mxu0
      %v6273 = vadd.f32 0.0, %v6272
      %6274 = vmatmul.f32.gmra.mxu0 %v6184
      %v6275 = vpop.f32.mrf.mxu0
      %v6276 = vadd.f32 0.0, %v6275
      %6277 = vmatmul.f32.gmra.mxu0 %v6187
      %v6278 = vpop.f32.mrf.mxu0
      %v6279 = vadd.f32 0.0, %v6278
      %6280 = vmatmul.f32.gmra.mxu0 %v6190
      %v6281 = vpop.f32.mrf.mxu0
      %v6282 = vadd.f32 0.0, %v6281
      %6283 = vmatmul.f32.gmra.mxu0 %v6193
      %v6284 = vpop.f32.mrf.mxu0
      %v6285 = vadd.f32 0.0, %v6284
      %6286 = vmatmul.f32.gmra.mxu0 %v6196
      %v6287 = vpop.f32.mrf.mxu0
      %v6288 = vadd.f32 0.0, %v6287
      %6289 = vmatmul.f32.gmra.mxu0 %v6199
      %v6290 = vpop.f32.mrf.mxu0
      %v6291 = vadd.f32 0.0, %v6290
      %6292 = vmatmul.f32.gmra.mxu0 %v6202
      %v6293 = vpop.f32.mrf.mxu0
      %v6294 = vadd.f32 0.0, %v6293
      %6295 = vdwg.mxu0
      %v6296 = vadd.f32 %v6070, %v6222
      %v6297 = vadd.f32 %v6071, %v6225
      %v6298 = vadd.f32 %v6072, %v6228
      %v6299 = vadd.f32 %v6073, %v6231
      %v6300 = vadd.f32 %v6074, %v6234
      %v6301 = vadd.f32 %v6075, %v6237
      %v6302 = vadd.f32 %v6076, %v6240
      %v6303 = vadd.f32 %v6077, %v6243
      %v6304 = vadd.f32 %v6078, %v6246
      %v6305 = vadd.f32 %v6079, %v6249
      %v6306 = vadd.f32 %v6080, %v6252
      %v6307 = vadd.f32 %v6081, %v6255
      %v6308 = vadd.f32 %v6082, %v6258
      %v6309 = vadd.f32 %v6083, %v6261
      %v6310 = vadd.f32 %v6084, %v6264
      %v6311 = vadd.f32 %v6085, %v6267
      %v6312 = vadd.f32 %v6086, %v6270
      %v6313 = vadd.f32 %v6087, %v6273
      %v6314 = vadd.f32 %v6088, %v6276
      %v6315 = vadd.f32 %v6089, %v6279
      %v6316 = vadd.f32 %v6090, %v6282
      %v6317 = vadd.f32 %v6091, %v6285
      %v6318 = vadd.f32 %v6092, %v6288
      %v6319 = vadd.f32 %v6093, %v6291
      %v6320 = vadd.f32 %v6094, %v6294
      %v6321 = vld [vmem:[#allocation2 + $0x3a] sm:$0xff]
      %v6322 = vld [vmem:[#allocation2 + $0x42] sm:$0xff]
      %v6323 = vld [vmem:[#allocation2 + $0x4a] sm:$0xff]
      %v6324 = vld [vmem:[#allocation2 + $0x52] sm:$0xff]
      %v6325 = vld [vmem:[#allocation2 + $0x5a] sm:$0xff]
      %v6326 = vld [vmem:[#allocation2 + $0x62] sm:$0xff]
      %v6327 = vld [vmem:[#allocation2 + $0x6a] sm:$0xff]
      %v6328 = vld [vmem:[#allocation2 + $0x72] sm:$0xff]
      %v6329 = vld [vmem:[#allocation2 + $0x7a] sm:$0xff]
      %v6330 = vld [vmem:[#allocation2 + $0x82] sm:$0xff]
      %v6331 = vld [vmem:[#allocation2 + $0x8a] sm:$0xff]
      %v6332 = vld [vmem:[#allocation2 + $0x92] sm:$0xff]
      %v6333 = vld [vmem:[#allocation2 + $0x9a] sm:$0xff]
      %v6334 = vld [vmem:[#allocation2 + $0xa2] sm:$0xff]
      %v6335 = vld [vmem:[#allocation2 + $0xaa] sm:$0xff]
      %v6336 = vld [vmem:[#allocation2 + $0xb2] sm:$0xff]
      %v6337 = vld [vmem:[#allocation2 + $0xba] sm:$0xff]
      %v6338 = vld [vmem:[#allocation2 + $0xc2] sm:$0xff]
      %v6339 = vld [vmem:[#allocation2 + $0xca] sm:$0xff]
      %v6340 = vld [vmem:[#allocation2 + $0xd2] sm:$0xff]
      %v6341 = vld [vmem:[#allocation2 + $0xda] sm:$0xff]
      %v6342 = vld [vmem:[#allocation2 + $0xe2] sm:$0xff]
      %v6343 = vld [vmem:[#allocation2 + $0xea] sm:$0xff]
      %v6344 = vld [vmem:[#allocation2 + $0xf2] sm:$0xff]
      %v6345 = vld [vmem:[#allocation2 + $0xfa] sm:$0xf]
      %s6346 = scalar_lea.vmem %s3, 1408
      %v6347 = vld [vmem:[%s6346] sm:$0xff]
      %v6348 = vld [vmem:[%s6346 + $0x8] sm:$0xff]
      %v6349 = vld [vmem:[%s6346 + $0x10] sm:$0xff]
      %v6350 = vld [vmem:[%s6346 + $0x18] sm:$0xff]
      %v6351 = vld [vmem:[%s6346 + $0x20] sm:$0xff]
      %v6352 = vld [vmem:[%s6346 + $0x28] sm:$0xff]
      %v6353 = vld [vmem:[%s6346 + $0x30] sm:$0xff]
      %v6354 = vld [vmem:[%s6346 + $0x38] sm:$0xff]
      %v6356 = vsel %vm1365, %v6321, 0
      %v6359 = vsel %vm1365, %v6322, 0
      %v6362 = vsel %vm1365, %v6323, 0
      %v6365 = vsel %vm1365, %v6324, 0
      %v6368 = vsel %vm1365, %v6325, 0
      %v6371 = vsel %vm1365, %v6326, 0
      %v6374 = vsel %vm1365, %v6327, 0
      %v6377 = vsel %vm1365, %v6328, 0
      %v6380 = vsel %vm1365, %v6329, 0
      %v6383 = vsel %vm1365, %v6330, 0
      %v6386 = vsel %vm1365, %v6331, 0
      %v6389 = vsel %vm1365, %v6332, 0
      %v6392 = vsel %vm1365, %v6333, 0
      %v6395 = vsel %vm1365, %v6334, 0
      %v6398 = vsel %vm1365, %v6335, 0
      %v6401 = vsel %vm1365, %v6336, 0
      %v6404 = vsel %vm1365, %v6337, 0
      %v6407 = vsel %vm1365, %v6338, 0
      %v6410 = vsel %vm1365, %v6339, 0
      %v6413 = vsel %vm1365, %v6340, 0
      %v6416 = vsel %vm1365, %v6341, 0
      %v6419 = vsel %vm1365, %v6342, 0
      %v6422 = vsel %vm1365, %v6343, 0
      %v6425 = vsel %vm1365, %v6344, 0
      %v6428 = vsel %vm1365, %v6345, 0
      %6430 = vmatpush.msra.mxu0 0.0
      %6431 = vmatpush.msra.mxu0 0.0
      %6432 = vmatpush.msra.mxu0 0.0
      %6433 = vmatpush.msra.mxu0 0.0
      %6434 = vmatpush.msra.mxu0 0.0
      %6435 = vmatpush.msra.mxu0 0.0
      %6436 = vmatpush.msra.mxu0 0.0
      %6437 = vmatpush.msra.mxu0 0.0
      %6438 = vmatpush.msra.mxu0 %v6354
      %6439 = vmatpush.msra.mxu0 %v6353
      %6440 = vmatpush.msra.mxu0 %v6352
      %6441 = vmatpush.msra.mxu0 %v6351
      %6442 = vmatpush.msra.mxu0 %v6350
      %6443 = vmatpush.msra.mxu0 %v6349
      %6444 = vmatpush.msra.mxu0 %v6348
      %6445 = vmatpush.msra.mxu0 %v6347
      %6446 = vmatmul.f32.gmra.mxu0 %v6356
      %v6447 = vpop.f32.mrf.mxu0
      %v6448 = vadd.f32 0.0, %v6447
      %6449 = vmatmul.f32.gmra.mxu0 %v6359
      %v6450 = vpop.f32.mrf.mxu0
      %v6451 = vadd.f32 0.0, %v6450
      %6452 = vmatmul.f32.gmra.mxu0 %v6362
      %v6453 = vpop.f32.mrf.mxu0
      %v6454 = vadd.f32 0.0, %v6453
      %6455 = vmatmul.f32.gmra.mxu0 %v6365
      %v6456 = vpop.f32.mrf.mxu0
      %v6457 = vadd.f32 0.0, %v6456
      %6458 = vmatmul.f32.gmra.mxu0 %v6368
      %v6459 = vpop.f32.mrf.mxu0
      %v6460 = vadd.f32 0.0, %v6459
      %6461 = vmatmul.f32.gmra.mxu0 %v6371
      %v6462 = vpop.f32.mrf.mxu0
      %v6463 = vadd.f32 0.0, %v6462
      %6464 = vmatmul.f32.gmra.mxu0 %v6374
      %v6465 = vpop.f32.mrf.mxu0
      %v6466 = vadd.f32 0.0, %v6465
      %6467 = vmatmul.f32.gmra.mxu0 %v6377
      %v6468 = vpop.f32.mrf.mxu0
      %v6469 = vadd.f32 0.0, %v6468
      %6470 = vmatmul.f32.gmra.mxu0 %v6380
      %v6471 = vpop.f32.mrf.mxu0
      %v6472 = vadd.f32 0.0, %v6471
      %6473 = vmatmul.f32.gmra.mxu0 %v6383
      %v6474 = vpop.f32.mrf.mxu0
      %v6475 = vadd.f32 0.0, %v6474
      %6476 = vmatmul.f32.gmra.mxu0 %v6386
      %v6477 = vpop.f32.mrf.mxu0
      %v6478 = vadd.f32 0.0, %v6477
      %6479 = vmatmul.f32.gmra.mxu0 %v6389
      %v6480 = vpop.f32.mrf.mxu0
      %v6481 = vadd.f32 0.0, %v6480
      %6482 = vmatmul.f32.gmra.mxu0 %v6392
      %v6483 = vpop.f32.mrf.mxu0
      %v6484 = vadd.f32 0.0, %v6483
      %6485 = vmatmul.f32.gmra.mxu0 %v6395
      %v6486 = vpop.f32.mrf.mxu0
      %v6487 = vadd.f32 0.0, %v6486
      %6488 = vmatmul.f32.gmra.mxu0 %v6398
      %v6489 = vpop.f32.mrf.mxu0
      %v6490 = vadd.f32 0.0, %v6489
      %6491 = vmatmul.f32.gmra.mxu0 %v6401
      %v6492 = vpop.f32.mrf.mxu0
      %v6493 = vadd.f32 0.0, %v6492
      %6494 = vmatmul.f32.gmra.mxu0 %v6404
      %v6495 = vpop.f32.mrf.mxu0
      %v6496 = vadd.f32 0.0, %v6495
      %6497 = vmatmul.f32.gmra.mxu0 %v6407
      %v6498 = vpop.f32.mrf.mxu0
      %v6499 = vadd.f32 0.0, %v6498
      %6500 = vmatmul.f32.gmra.mxu0 %v6410
      %v6501 = vpop.f32.mrf.mxu0
      %v6502 = vadd.f32 0.0, %v6501
      %6503 = vmatmul.f32.gmra.mxu0 %v6413
      %v6504 = vpop.f32.mrf.mxu0
      %v6505 = vadd.f32 0.0, %v6504
      %6506 = vmatmul.f32.gmra.mxu0 %v6416
      %v6507 = vpop.f32.mrf.mxu0
      %v6508 = vadd.f32 0.0, %v6507
      %6509 = vmatmul.f32.gmra.mxu0 %v6419
      %v6510 = vpop.f32.mrf.mxu0
      %v6511 = vadd.f32 0.0, %v6510
      %6512 = vmatmul.f32.gmra.mxu0 %v6422
      %v6513 = vpop.f32.mrf.mxu0
      %v6514 = vadd.f32 0.0, %v6513
      %6515 = vmatmul.f32.gmra.mxu0 %v6425
      %v6516 = vpop.f32.mrf.mxu0
      %v6517 = vadd.f32 0.0, %v6516
      %6518 = vmatmul.f32.gmra.mxu0 %v6428
      %v6519 = vpop.f32.mrf.mxu0
      %v6520 = vadd.f32 0.0, %v6519
      %6521 = vdwg.mxu0
      %v6522 = vadd.f32 %v6296, %v6448
      %v6523 = vadd.f32 %v6297, %v6451
      %v6524 = vadd.f32 %v6298, %v6454
      %v6525 = vadd.f32 %v6299, %v6457
      %v6526 = vadd.f32 %v6300, %v6460
      %v6527 = vadd.f32 %v6301, %v6463
      %v6528 = vadd.f32 %v6302, %v6466
      %v6529 = vadd.f32 %v6303, %v6469
      %v6530 = vadd.f32 %v6304, %v6472
      %v6531 = vadd.f32 %v6305, %v6475
      %v6532 = vadd.f32 %v6306, %v6478
      %v6533 = vadd.f32 %v6307, %v6481
      %v6534 = vadd.f32 %v6308, %v6484
      %v6535 = vadd.f32 %v6309, %v6487
      %v6536 = vadd.f32 %v6310, %v6490
      %v6537 = vadd.f32 %v6311, %v6493
      %v6538 = vadd.f32 %v6312, %v6496
      %v6539 = vadd.f32 %v6313, %v6499
      %v6540 = vadd.f32 %v6314, %v6502
      %v6541 = vadd.f32 %v6315, %v6505
      %v6542 = vadd.f32 %v6316, %v6508
      %v6543 = vadd.f32 %v6317, %v6511
      %v6544 = vadd.f32 %v6318, %v6514
      %v6545 = vadd.f32 %v6319, %v6517
      %v6546 = vadd.f32 %v6320, %v6520
      %v6547 = vld [vmem:[#allocation2 + $0x3b] sm:$0xff]
      %v6548 = vld [vmem:[#allocation2 + $0x43] sm:$0xff]
      %v6549 = vld [vmem:[#allocation2 + $0x4b] sm:$0xff]
      %v6550 = vld [vmem:[#allocation2 + $0x53] sm:$0xff]
      %v6551 = vld [vmem:[#allocation2 + $0x5b] sm:$0xff]
      %v6552 = vld [vmem:[#allocation2 + $0x63] sm:$0xff]
      %v6553 = vld [vmem:[#allocation2 + $0x6b] sm:$0xff]
      %v6554 = vld [vmem:[#allocation2 + $0x73] sm:$0xff]
      %v6555 = vld [vmem:[#allocation2 + $0x7b] sm:$0xff]
      %v6556 = vld [vmem:[#allocation2 + $0x83] sm:$0xff]
      %v6557 = vld [vmem:[#allocation2 + $0x8b] sm:$0xff]
      %v6558 = vld [vmem:[#allocation2 + $0x93] sm:$0xff]
      %v6559 = vld [vmem:[#allocation2 + $0x9b] sm:$0xff]
      %v6560 = vld [vmem:[#allocation2 + $0xa3] sm:$0xff]
      %v6561 = vld [vmem:[#allocation2 + $0xab] sm:$0xff]
      %v6562 = vld [vmem:[#allocation2 + $0xb3] sm:$0xff]
      %v6563 = vld [vmem:[#allocation2 + $0xbb] sm:$0xff]
      %v6564 = vld [vmem:[#allocation2 + $0xc3] sm:$0xff]
      %v6565 = vld [vmem:[#allocation2 + $0xcb] sm:$0xff]
      %v6566 = vld [vmem:[#allocation2 + $0xd3] sm:$0xff]
      %v6567 = vld [vmem:[#allocation2 + $0xdb] sm:$0xff]
      %v6568 = vld [vmem:[#allocation2 + $0xe3] sm:$0xff]
      %v6569 = vld [vmem:[#allocation2 + $0xeb] sm:$0xff]
      %v6570 = vld [vmem:[#allocation2 + $0xf3] sm:$0xff]
      %v6571 = vld [vmem:[#allocation2 + $0xfb] sm:$0xf]
      %s6572 = scalar_lea.vmem %s3, 1472
      %v6573 = vld [vmem:[%s6572] sm:$0xff]
      %v6574 = vld [vmem:[%s6572 + $0x8] sm:$0xff]
      %v6575 = vld [vmem:[%s6572 + $0x10] sm:$0xff]
      %v6576 = vld [vmem:[%s6572 + $0x18] sm:$0xff]
      %v6577 = vld [vmem:[%s6572 + $0x20] sm:$0xff]
      %v6578 = vld [vmem:[%s6572 + $0x28] sm:$0xff]
      %v6579 = vld [vmem:[%s6572 + $0x30] sm:$0xff]
      %v6580 = vld [vmem:[%s6572 + $0x38] sm:$0xff]
      %v6582 = vsel %vm1365, %v6547, 0
      %v6585 = vsel %vm1365, %v6548, 0
      %v6588 = vsel %vm1365, %v6549, 0
      %v6591 = vsel %vm1365, %v6550, 0
      %v6594 = vsel %vm1365, %v6551, 0
      %v6597 = vsel %vm1365, %v6552, 0
      %v6600 = vsel %vm1365, %v6553, 0
      %v6603 = vsel %vm1365, %v6554, 0
      %v6606 = vsel %vm1365, %v6555, 0
      %v6609 = vsel %vm1365, %v6556, 0
      %v6612 = vsel %vm1365, %v6557, 0
      %v6615 = vsel %vm1365, %v6558, 0
      %v6618 = vsel %vm1365, %v6559, 0
      %v6621 = vsel %vm1365, %v6560, 0
      %v6624 = vsel %vm1365, %v6561, 0
      %v6627 = vsel %vm1365, %v6562, 0
      %v6630 = vsel %vm1365, %v6563, 0
      %v6633 = vsel %vm1365, %v6564, 0
      %v6636 = vsel %vm1365, %v6565, 0
      %v6639 = vsel %vm1365, %v6566, 0
      %v6642 = vsel %vm1365, %v6567, 0
      %v6645 = vsel %vm1365, %v6568, 0
      %v6648 = vsel %vm1365, %v6569, 0
      %v6651 = vsel %vm1365, %v6570, 0
      %v6654 = vsel %vm1365, %v6571, 0
      %6656 = vmatpush.msra.mxu0 0.0
      %6657 = vmatpush.msra.mxu0 0.0
      %6658 = vmatpush.msra.mxu0 0.0
      %6659 = vmatpush.msra.mxu0 0.0
      %6660 = vmatpush.msra.mxu0 0.0
      %6661 = vmatpush.msra.mxu0 0.0
      %6662 = vmatpush.msra.mxu0 0.0
      %6663 = vmatpush.msra.mxu0 0.0
      %6664 = vmatpush.msra.mxu0 %v6580
      %6665 = vmatpush.msra.mxu0 %v6579
      %6666 = vmatpush.msra.mxu0 %v6578
      %6667 = vmatpush.msra.mxu0 %v6577
      %6668 = vmatpush.msra.mxu0 %v6576
      %6669 = vmatpush.msra.mxu0 %v6575
      %6670 = vmatpush.msra.mxu0 %v6574
      %6671 = vmatpush.msra.mxu0 %v6573
      %6672 = vmatmul.f32.gmra.mxu0 %v6582
      %v6673 = vpop.f32.mrf.mxu0
      %v6674 = vadd.f32 0.0, %v6673
      %6675 = vmatmul.f32.gmra.mxu0 %v6585
      %v6676 = vpop.f32.mrf.mxu0
      %v6677 = vadd.f32 0.0, %v6676
      %6678 = vmatmul.f32.gmra.mxu0 %v6588
      %v6679 = vpop.f32.mrf.mxu0
      %v6680 = vadd.f32 0.0, %v6679
      %6681 = vmatmul.f32.gmra.mxu0 %v6591
      %v6682 = vpop.f32.mrf.mxu0
      %v6683 = vadd.f32 0.0, %v6682
      %6684 = vmatmul.f32.gmra.mxu0 %v6594
      %v6685 = vpop.f32.mrf.mxu0
      %v6686 = vadd.f32 0.0, %v6685
      %6687 = vmatmul.f32.gmra.mxu0 %v6597
      %v6688 = vpop.f32.mrf.mxu0
      %v6689 = vadd.f32 0.0, %v6688
      %6690 = vmatmul.f32.gmra.mxu0 %v6600
      %v6691 = vpop.f32.mrf.mxu0
      %v6692 = vadd.f32 0.0, %v6691
      %6693 = vmatmul.f32.gmra.mxu0 %v6603
      %v6694 = vpop.f32.mrf.mxu0
      %v6695 = vadd.f32 0.0, %v6694
      %6696 = vmatmul.f32.gmra.mxu0 %v6606
      %v6697 = vpop.f32.mrf.mxu0
      %v6698 = vadd.f32 0.0, %v6697
      %6699 = vmatmul.f32.gmra.mxu0 %v6609
      %v6700 = vpop.f32.mrf.mxu0
      %v6701 = vadd.f32 0.0, %v6700
      %6702 = vmatmul.f32.gmra.mxu0 %v6612
      %v6703 = vpop.f32.mrf.mxu0
      %v6704 = vadd.f32 0.0, %v6703
      %6705 = vmatmul.f32.gmra.mxu0 %v6615
      %v6706 = vpop.f32.mrf.mxu0
      %v6707 = vadd.f32 0.0, %v6706
      %6708 = vmatmul.f32.gmra.mxu0 %v6618
      %v6709 = vpop.f32.mrf.mxu0
      %v6710 = vadd.f32 0.0, %v6709
      %6711 = vmatmul.f32.gmra.mxu0 %v6621
      %v6712 = vpop.f32.mrf.mxu0
      %v6713 = vadd.f32 0.0, %v6712
      %6714 = vmatmul.f32.gmra.mxu0 %v6624
      %v6715 = vpop.f32.mrf.mxu0
      %v6716 = vadd.f32 0.0, %v6715
      %6717 = vmatmul.f32.gmra.mxu0 %v6627
      %v6718 = vpop.f32.mrf.mxu0
      %v6719 = vadd.f32 0.0, %v6718
      %6720 = vmatmul.f32.gmra.mxu0 %v6630
      %v6721 = vpop.f32.mrf.mxu0
      %v6722 = vadd.f32 0.0, %v6721
      %6723 = vmatmul.f32.gmra.mxu0 %v6633
      %v6724 = vpop.f32.mrf.mxu0
      %v6725 = vadd.f32 0.0, %v6724
      %6726 = vmatmul.f32.gmra.mxu0 %v6636
      %v6727 = vpop.f32.mrf.mxu0
      %v6728 = vadd.f32 0.0, %v6727
      %6729 = vmatmul.f32.gmra.mxu0 %v6639
      %v6730 = vpop.f32.mrf.mxu0
      %v6731 = vadd.f32 0.0, %v6730
      %6732 = vmatmul.f32.gmra.mxu0 %v6642
      %v6733 = vpop.f32.mrf.mxu0
      %v6734 = vadd.f32 0.0, %v6733
      %6735 = vmatmul.f32.gmra.mxu0 %v6645
      %v6736 = vpop.f32.mrf.mxu0
      %v6737 = vadd.f32 0.0, %v6736
      %6738 = vmatmul.f32.gmra.mxu0 %v6648
      %v6739 = vpop.f32.mrf.mxu0
      %v6740 = vadd.f32 0.0, %v6739
      %6741 = vmatmul.f32.gmra.mxu0 %v6651
      %v6742 = vpop.f32.mrf.mxu0
      %v6743 = vadd.f32 0.0, %v6742
      %6744 = vmatmul.f32.gmra.mxu0 %v6654
      %v6745 = vpop.f32.mrf.mxu0
      %v6746 = vadd.f32 0.0, %v6745
      %6747 = vdwg.mxu0
      %v6748 = vadd.f32 %v6522, %v6674
      %v6749 = vadd.f32 %v6523, %v6677
      %v6750 = vadd.f32 %v6524, %v6680
      %v6751 = vadd.f32 %v6525, %v6683
      %v6752 = vadd.f32 %v6526, %v6686
      %v6753 = vadd.f32 %v6527, %v6689
      %v6754 = vadd.f32 %v6528, %v6692
      %v6755 = vadd.f32 %v6529, %v6695
      %v6756 = vadd.f32 %v6530, %v6698
      %v6757 = vadd.f32 %v6531, %v6701
      %v6758 = vadd.f32 %v6532, %v6704
      %v6759 = vadd.f32 %v6533, %v6707
      %v6760 = vadd.f32 %v6534, %v6710
      %v6761 = vadd.f32 %v6535, %v6713
      %v6762 = vadd.f32 %v6536, %v6716
      %v6763 = vadd.f32 %v6537, %v6719
      %v6764 = vadd.f32 %v6538, %v6722
      %v6765 = vadd.f32 %v6539, %v6725
      %v6766 = vadd.f32 %v6540, %v6728
      %v6767 = vadd.f32 %v6541, %v6731
      %v6768 = vadd.f32 %v6542, %v6734
      %v6769 = vadd.f32 %v6543, %v6737
      %v6770 = vadd.f32 %v6544, %v6740
      %v6771 = vadd.f32 %v6545, %v6743
      %v6772 = vadd.f32 %v6546, %v6746
      %v6773 = vld [vmem:[#allocation2 + $0x3c] sm:$0xff]
      %v6774 = vld [vmem:[#allocation2 + $0x44] sm:$0xff]
      %v6775 = vld [vmem:[#allocation2 + $0x4c] sm:$0xff]
      %v6776 = vld [vmem:[#allocation2 + $0x54] sm:$0xff]
      %v6777 = vld [vmem:[#allocation2 + $0x5c] sm:$0xff]
      %v6778 = vld [vmem:[#allocation2 + $0x64] sm:$0xff]
      %v6779 = vld [vmem:[#allocation2 + $0x6c] sm:$0xff]
      %v6780 = vld [vmem:[#allocation2 + $0x74] sm:$0xff]
      %v6781 = vld [vmem:[#allocation2 + $0x7c] sm:$0xff]
      %v6782 = vld [vmem:[#allocation2 + $0x84] sm:$0xff]
      %v6783 = vld [vmem:[#allocation2 + $0x8c] sm:$0xff]
      %v6784 = vld [vmem:[#allocation2 + $0x94] sm:$0xff]
      %v6785 = vld [vmem:[#allocation2 + $0x9c] sm:$0xff]
      %v6786 = vld [vmem:[#allocation2 + $0xa4] sm:$0xff]
      %v6787 = vld [vmem:[#allocation2 + $0xac] sm:$0xff]
      %v6788 = vld [vmem:[#allocation2 + $0xb4] sm:$0xff]
      %v6789 = vld [vmem:[#allocation2 + $0xbc] sm:$0xff]
      %v6790 = vld [vmem:[#allocation2 + $0xc4] sm:$0xff]
      %v6791 = vld [vmem:[#allocation2 + $0xcc] sm:$0xff]
      %v6792 = vld [vmem:[#allocation2 + $0xd4] sm:$0xff]
      %v6793 = vld [vmem:[#allocation2 + $0xdc] sm:$0xff]
      %v6794 = vld [vmem:[#allocation2 + $0xe4] sm:$0xff]
      %v6795 = vld [vmem:[#allocation2 + $0xec] sm:$0xff]
      %v6796 = vld [vmem:[#allocation2 + $0xf4] sm:$0xff]
      %v6797 = vld [vmem:[#allocation2 + $0xfc] sm:$0xf]
      %s6798 = scalar_lea.vmem %s3, 1536
      %v6799 = vld [vmem:[%s6798] sm:$0xff]
      %v6800 = vld [vmem:[%s6798 + $0x8] sm:$0xff]
      %v6801 = vld [vmem:[%s6798 + $0x10] sm:$0xff]
      %v6802 = vld [vmem:[%s6798 + $0x18] sm:$0xff]
      %v6803 = vld [vmem:[%s6798 + $0x20] sm:$0xff]
      %v6804 = vld [vmem:[%s6798 + $0x28] sm:$0xff]
      %v6805 = vld [vmem:[%s6798 + $0x30] sm:$0xff]
      %v6806 = vld [vmem:[%s6798 + $0x38] sm:$0xff]
      %v6808 = vsel %vm1365, %v6773, 0
      %v6811 = vsel %vm1365, %v6774, 0
      %v6814 = vsel %vm1365, %v6775, 0
      %v6817 = vsel %vm1365, %v6776, 0
      %v6820 = vsel %vm1365, %v6777, 0
      %v6823 = vsel %vm1365, %v6778, 0
      %v6826 = vsel %vm1365, %v6779, 0
      %v6829 = vsel %vm1365, %v6780, 0
      %v6832 = vsel %vm1365, %v6781, 0
      %v6835 = vsel %vm1365, %v6782, 0
      %v6838 = vsel %vm1365, %v6783, 0
      %v6841 = vsel %vm1365, %v6784, 0
      %v6844 = vsel %vm1365, %v6785, 0
      %v6847 = vsel %vm1365, %v6786, 0
      %v6850 = vsel %vm1365, %v6787, 0
      %v6853 = vsel %vm1365, %v6788, 0
      %v6856 = vsel %vm1365, %v6789, 0
      %v6859 = vsel %vm1365, %v6790, 0
      %v6862 = vsel %vm1365, %v6791, 0
      %v6865 = vsel %vm1365, %v6792, 0
      %v6868 = vsel %vm1365, %v6793, 0
      %v6871 = vsel %vm1365, %v6794, 0
      %v6874 = vsel %vm1365, %v6795, 0
      %v6877 = vsel %vm1365, %v6796, 0
      %v6880 = vsel %vm1365, %v6797, 0
      %6882 = vmatpush.msra.mxu0 0.0
      %6883 = vmatpush.msra.mxu0 0.0
      %6884 = vmatpush.msra.mxu0 0.0
      %6885 = vmatpush.msra.mxu0 0.0
      %6886 = vmatpush.msra.mxu0 0.0
      %6887 = vmatpush.msra.mxu0 0.0
      %6888 = vmatpush.msra.mxu0 0.0
      %6889 = vmatpush.msra.mxu0 0.0
      %6890 = vmatpush.msra.mxu0 %v6806
      %6891 = vmatpush.msra.mxu0 %v6805
      %6892 = vmatpush.msra.mxu0 %v6804
      %6893 = vmatpush.msra.mxu0 %v6803
      %6894 = vmatpush.msra.mxu0 %v6802
      %6895 = vmatpush.msra.mxu0 %v6801
      %6896 = vmatpush.msra.mxu0 %v6800
      %6897 = vmatpush.msra.mxu0 %v6799
      %6898 = vmatmul.f32.gmra.mxu0 %v6808
      %v6899 = vpop.f32.mrf.mxu0
      %v6900 = vadd.f32 0.0, %v6899
      %6901 = vmatmul.f32.gmra.mxu0 %v6811
      %v6902 = vpop.f32.mrf.mxu0
      %v6903 = vadd.f32 0.0, %v6902
      %6904 = vmatmul.f32.gmra.mxu0 %v6814
      %v6905 = vpop.f32.mrf.mxu0
      %v6906 = vadd.f32 0.0, %v6905
      %6907 = vmatmul.f32.gmra.mxu0 %v6817
      %v6908 = vpop.f32.mrf.mxu0
      %v6909 = vadd.f32 0.0, %v6908
      %6910 = vmatmul.f32.gmra.mxu0 %v6820
      %v6911 = vpop.f32.mrf.mxu0
      %v6912 = vadd.f32 0.0, %v6911
      %6913 = vmatmul.f32.gmra.mxu0 %v6823
      %v6914 = vpop.f32.mrf.mxu0
      %v6915 = vadd.f32 0.0, %v6914
      %6916 = vmatmul.f32.gmra.mxu0 %v6826
      %v6917 = vpop.f32.mrf.mxu0
      %v6918 = vadd.f32 0.0, %v6917
      %6919 = vmatmul.f32.gmra.mxu0 %v6829
      %v6920 = vpop.f32.mrf.mxu0
      %v6921 = vadd.f32 0.0, %v6920
      %6922 = vmatmul.f32.gmra.mxu0 %v6832
      %v6923 = vpop.f32.mrf.mxu0
      %v6924 = vadd.f32 0.0, %v6923
      %6925 = vmatmul.f32.gmra.mxu0 %v6835
      %v6926 = vpop.f32.mrf.mxu0
      %v6927 = vadd.f32 0.0, %v6926
      %6928 = vmatmul.f32.gmra.mxu0 %v6838
      %v6929 = vpop.f32.mrf.mxu0
      %v6930 = vadd.f32 0.0, %v6929
      %6931 = vmatmul.f32.gmra.mxu0 %v6841
      %v6932 = vpop.f32.mrf.mxu0
      %v6933 = vadd.f32 0.0, %v6932
      %6934 = vmatmul.f32.gmra.mxu0 %v6844
      %v6935 = vpop.f32.mrf.mxu0
      %v6936 = vadd.f32 0.0, %v6935
      %6937 = vmatmul.f32.gmra.mxu0 %v6847
      %v6938 = vpop.f32.mrf.mxu0
      %v6939 = vadd.f32 0.0, %v6938
      %6940 = vmatmul.f32.gmra.mxu0 %v6850
      %v6941 = vpop.f32.mrf.mxu0
      %v6942 = vadd.f32 0.0, %v6941
      %6943 = vmatmul.f32.gmra.mxu0 %v6853
      %v6944 = vpop.f32.mrf.mxu0
      %v6945 = vadd.f32 0.0, %v6944
      %6946 = vmatmul.f32.gmra.mxu0 %v6856
      %v6947 = vpop.f32.mrf.mxu0
      %v6948 = vadd.f32 0.0, %v6947
      %6949 = vmatmul.f32.gmra.mxu0 %v6859
      %v6950 = vpop.f32.mrf.mxu0
      %v6951 = vadd.f32 0.0, %v6950
      %6952 = vmatmul.f32.gmra.mxu0 %v6862
      %v6953 = vpop.f32.mrf.mxu0
      %v6954 = vadd.f32 0.0, %v6953
      %6955 = vmatmul.f32.gmra.mxu0 %v6865
      %v6956 = vpop.f32.mrf.mxu0
      %v6957 = vadd.f32 0.0, %v6956
      %6958 = vmatmul.f32.gmra.mxu0 %v6868
      %v6959 = vpop.f32.mrf.mxu0
      %v6960 = vadd.f32 0.0, %v6959
      %6961 = vmatmul.f32.gmra.mxu0 %v6871
      %v6962 = vpop.f32.mrf.mxu0
      %v6963 = vadd.f32 0.0, %v6962
      %6964 = vmatmul.f32.gmra.mxu0 %v6874
      %v6965 = vpop.f32.mrf.mxu0
      %v6966 = vadd.f32 0.0, %v6965
      %6967 = vmatmul.f32.gmra.mxu0 %v6877
      %v6968 = vpop.f32.mrf.mxu0
      %v6969 = vadd.f32 0.0, %v6968
      %6970 = vmatmul.f32.gmra.mxu0 %v6880
      %v6971 = vpop.f32.mrf.mxu0
      %v6972 = vadd.f32 0.0, %v6971
      %6973 = vdwg.mxu0
      %v6974 = vadd.f32 %v6748, %v6900
      %v6975 = vadd.f32 %v6749, %v6903
      %v6976 = vadd.f32 %v6750, %v6906
      %v6977 = vadd.f32 %v6751, %v6909
      %v6978 = vadd.f32 %v6752, %v6912
      %v6979 = vadd.f32 %v6753, %v6915
      %v6980 = vadd.f32 %v6754, %v6918
      %v6981 = vadd.f32 %v6755, %v6921
      %v6982 = vadd.f32 %v6756, %v6924
      %v6983 = vadd.f32 %v6757, %v6927
      %v6984 = vadd.f32 %v6758, %v6930
      %v6985 = vadd.f32 %v6759, %v6933
      %v6986 = vadd.f32 %v6760, %v6936
      %v6987 = vadd.f32 %v6761, %v6939
      %v6988 = vadd.f32 %v6762, %v6942
      %v6989 = vadd.f32 %v6763, %v6945
      %v6990 = vadd.f32 %v6764, %v6948
      %v6991 = vadd.f32 %v6765, %v6951
      %v6992 = vadd.f32 %v6766, %v6954
      %v6993 = vadd.f32 %v6767, %v6957
      %v6994 = vadd.f32 %v6768, %v6960
      %v6995 = vadd.f32 %v6769, %v6963
      %v6996 = vadd.f32 %v6770, %v6966
      %v6997 = vadd.f32 %v6771, %v6969
      %v6998 = vadd.f32 %v6772, %v6972
      %v6999 = vld [vmem:[%s4] sm:$0x1]
      %v7001 = vperm.slane %v6999, 0
      %v7003 = vadd.f32 %v6974, %v7001
      %v7004 = vadd.f32 %v6975, %v7001
      %v7005 = vadd.f32 %v6976, %v7001
      %v7006 = vadd.f32 %v6977, %v7001
      %v7007 = vadd.f32 %v6978, %v7001
      %v7008 = vadd.f32 %v6979, %v7001
      %v7009 = vadd.f32 %v6980, %v7001
      %v7010 = vadd.f32 %v6981, %v7001
      %v7011 = vadd.f32 %v6982, %v7001
      %v7012 = vadd.f32 %v6983, %v7001
      %v7013 = vadd.f32 %v6984, %v7001
      %v7014 = vadd.f32 %v6985, %v7001
      %v7015 = vadd.f32 %v6986, %v7001
      %v7016 = vadd.f32 %v6987, %v7001
      %v7017 = vadd.f32 %v6988, %v7001
      %v7018 = vadd.f32 %v6989, %v7001
      %v7019 = vadd.f32 %v6990, %v7001
      %v7020 = vadd.f32 %v6991, %v7001
      %v7021 = vadd.f32 %v6992, %v7001
      %v7022 = vadd.f32 %v6993, %v7001
      %v7023 = vadd.f32 %v6994, %v7001
      %v7024 = vadd.f32 %v6995, %v7001
      %v7025 = vadd.f32 %v6996, %v7001
      %v7026 = vadd.f32 %v6997, %v7001
      %v7027 = vadd.f32 %v6998, %v7001
      %v7028 = vmax.f32 %v7003, 0.0
      %v7029 = vmax.f32 %v7004, 0.0
      %v7030 = vmax.f32 %v7005, 0.0
      %v7031 = vmax.f32 %v7006, 0.0
      %v7032 = vmax.f32 %v7007, 0.0
      %v7033 = vmax.f32 %v7008, 0.0
      %v7034 = vmax.f32 %v7009, 0.0
      %v7035 = vmax.f32 %v7010, 0.0
      %v7036 = vmax.f32 %v7011, 0.0
      %v7037 = vmax.f32 %v7012, 0.0
      %v7038 = vmax.f32 %v7013, 0.0
      %v7039 = vmax.f32 %v7014, 0.0
      %v7040 = vmax.f32 %v7015, 0.0
      %v7041 = vmax.f32 %v7016, 0.0
      %v7042 = vmax.f32 %v7017, 0.0
      %v7043 = vmax.f32 %v7018, 0.0
      %v7044 = vmax.f32 %v7019, 0.0
      %v7045 = vmax.f32 %v7020, 0.0
      %v7046 = vmax.f32 %v7021, 0.0
      %v7047 = vmax.f32 %v7022, 0.0
      %v7048 = vmax.f32 %v7023, 0.0
      %v7049 = vmax.f32 %v7024, 0.0
      %v7050 = vmax.f32 %v7025, 0.0
      %v7051 = vmax.f32 %v7026, 0.0
      %v7052 = vmax.f32 %v7027, 0.0
      %7053 = vst.msk [vmem:[%s224] sm:$0xff] %vm1365, %v7028
      %7054 = vst.msk [vmem:[%s224 + $0x8] sm:$0xff] %vm1365, %v7029
      %7055 = vst.msk [vmem:[%s224 + $0x10] sm:$0xff] %vm1365, %v7030
      %7056 = vst.msk [vmem:[%s224 + $0x18] sm:$0xff] %vm1365, %v7031
      %7057 = vst.msk [vmem:[%s224 + $0x20] sm:$0xff] %vm1365, %v7032
      %7058 = vst.msk [vmem:[%s224 + $0x28] sm:$0xff] %vm1365, %v7033
      %7059 = vst.msk [vmem:[%s224 + $0x30] sm:$0xff] %vm1365, %v7034
      %7060 = vst.msk [vmem:[%s224 + $0x38] sm:$0xff] %vm1365, %v7035
      %7061 = vst.msk [vmem:[%s224 + $0x40] sm:$0xff] %vm1365, %v7036
      %7062 = vst.msk [vmem:[%s224 + $0x48] sm:$0xff] %vm1365, %v7037
      %7063 = vst.msk [vmem:[%s224 + $0x50] sm:$0xff] %vm1365, %v7038
      %7064 = vst.msk [vmem:[%s224 + $0x58] sm:$0xff] %vm1365, %v7039
      %7065 = vst.msk [vmem:[%s224 + $0x60] sm:$0xff] %vm1365, %v7040
      %7066 = vst.msk [vmem:[%s224 + $0x68] sm:$0xff] %vm1365, %v7041
      %7067 = vst.msk [vmem:[%s224 + $0x70] sm:$0xff] %vm1365, %v7042
      %7068 = vst.msk [vmem:[%s224 + $0x78] sm:$0xff] %vm1365, %v7043
      %7069 = vst.msk [vmem:[%s224 + $0x80] sm:$0xff] %vm1365, %v7044
      %7070 = vst.msk [vmem:[%s224 + $0x88] sm:$0xff] %vm1365, %v7045
      %7071 = vst.msk [vmem:[%s224 + $0x90] sm:$0xff] %vm1365, %v7046
      %7072 = vst.msk [vmem:[%s224 + $0x98] sm:$0xff] %vm1365, %v7047
      %7073 = vst.msk [vmem:[%s224 + $0xa0] sm:$0xff] %vm1365, %v7048
      %7074 = vst.msk [vmem:[%s224 + $0xa8] sm:$0xff] %vm1365, %v7049
      %7075 = vst.msk [vmem:[%s224 + $0xb0] sm:$0xff] %vm1365, %v7050
      %7076 = vst.msk [vmem:[%s224 + $0xb8] sm:$0xff] %vm1365, %v7051
      %7077 = vst.msk [vmem:[%s224 + $0xc0] sm:$0xf] %vm1397, %v7052
      %p7078 = scmp.lt.s32.totalorder %s16, 1
      %s7079 = scalar_select %p7078, %s16, 1
      %s7080 = smul.addr %s7079, 25
      %s7081 = smul.addr %s7080, 8
      %s7082 = scalar_lea.vmem %s5, %s7081
      // Predicated region
      $region41: #{net_forward.2} parent=39 // pred_check
        %p7083 = pneg %p144
      $region42: #{net_forward.2} parent=39 // pred_check_branch
        %7085 = sbr.rel (%p7083) target = $region44
      $region43: #{net_forward.2} parent=39 // pred_region
        _
      $region44: #{net_forward.2} parent=39 // pred_fallthru
        _
    $region40: #{net_forward.2} parent=5 // pred_fallthru
      _
    %p7086 = scmp.le.s32.totalorder 2, %s11
    // Predicated region
    $region45: #{net_forward.2} parent=5 // pred_check
      %p7087 = pneg %p7086
    $region46: #{net_forward.2} parent=5 // pred_check_branch
      %7089 = sbr.rel (%p7087) target = $region48
    $region47: #{net_forward.2} parent=5 // pred_region
      %s7090 = ssub.s32 %s11, 2
      // Predicated region
      $region49: #{net_forward.2} parent=47 // pred_check
        %p7091 = pneg %p150
      $region50: #{net_forward.2} parent=47 // pred_check_branch
        %7093 = sbr.rel (%p7091) target = $region52
      $region51: #{net_forward.2} parent=47 // pred_region
        %p7094 = scmp.lt.s32.totalorder %s17, 1
        %s7095 = scalar_select %p7094, %s17, 1
        %s7096 = smul.addr %s7095, 25
        %s7097 = smul.addr %s7096, 8
        %s7098 = scalar_lea.vmem %s5, %s7097
      $region52: #{net_forward.2} parent=47 // pred_fallthru
        _
    $region48: #{net_forward.2} parent=5 // pred_fallthru
      _
  $region6: #{net_forward.2} parent=0 // loop_footer
    %s15 = sadd.s32 1, %s11
  $region7: #{net_forward.2} parent=0 // loop_footer_branch
    %10 = sbr.rel target = $region3
  $region8: #{net_forward.2} parent=0 // loop_exit
    _

// kernel: net_forward.3
$region0: #{net_forward.3}
  #allocation0 [shape = 'u32[]', space=smem, size = 0x4, offset = 0x4, fixed_abs, tag = 'smem constant byte address 0x4 - core index']
  #allocation1 [shape = 'u32[72,128]{1,0:T(1,128)}', space=vmem, size = 0x9000, scoped, tag = 'internal scratch']
  %s0 = inlined_call_operand.vmem [shape: f32[2,12544], index: 0, kind: input, shape index: {}]
  %s1 = inlined_call_operand.vmem [shape: f32[12544,32], index: 1, kind: input, shape index: {}]
  %s2 = inlined_call_operand.vmem [shape: f32[1,32], index: 2, kind: input, shape index: {}]
  %s3 = inlined_call_operand.vmem [shape: f32[32,128], index: 3, kind: input, shape index: {}]
  %s4 = inlined_call_operand.vmem [shape: f32[1,128], index: 4, kind: input, shape index: {}]
  %s5 = inlined_call_operand.vmem [shape: f32[128,128], index: 5, kind: input, shape index: {}]
  %s6 = inlined_call_operand.vmem [shape: f32[1,128], index: 6, kind: input, shape index: {}]
  %s7 = inlined_call_operand.vmem [shape: f32[128,128], index: 7, kind: input, shape index: {}]
  %s8 = inlined_call_operand.vmem [shape: f32[1,128], index: 8, kind: input, shape index: {}]
  %s9 = inlined_call_operand.vmem [shape: f32[128,36], index: 9, kind: input, shape index: {}]
  %s10 = inlined_call_operand.vmem [shape: f32[1,36], index: 10, kind: input, shape index: {}]
  %s11 = inlined_call_operand.hbm [shape: f32[2,36], index: 11, kind: output, shape index: {}]
  %s12 = sld [smem:[#allocation0]]
  $region54: #{net_forward.3} parent=0
    _
  %s14 = ssub.s32 1, %s12
  %s15 = scalar_select 0, %s14, %s12
  $region1: #{net_forward.3} parent=0
    #allocation2 [shape = 'u8[1024]{0}', space=vmem, size = 0x400, scoped, tag = 'output window, operand 0, single buffered']
    #allocation3 [shape = 's32[1]{0}', space=sflag, size = 0x4, scoped, tag = 'scoped memory for net_forward.3']
    %16 = vsyncpa [#allocation3], 0
    // Predicated region
    $region2: #{net_forward.3} parent=1 // pred_check
      _
    $region3: #{net_forward.3} parent=1 // pred_check_branch
      %18 = sbr.rel (0) target = $region5
    $region4: #{net_forward.3} parent=1 // pred_region
      _
    $region5: #{net_forward.3} parent=1 // pred_fallthru
      _
    // Predicated region
    $region6: #{net_forward.3} parent=1 // pred_check
      _
    $region7: #{net_forward.3} parent=1 // pred_check_branch
      %20 = sbr.rel (0) target = $region9
    $region8: #{net_forward.3} parent=1 // pred_region
      _
    $region9: #{net_forward.3} parent=1 // pred_fallthru
      _
    // Predicated region
    $region10: #{net_forward.3} parent=1 // pred_check
      _
    $region11: #{net_forward.3} parent=1 // pred_check_branch
      %22 = sbr.rel (0) target = $region13
    $region12: #{net_forward.3} parent=1 // pred_region
      _
    $region13: #{net_forward.3} parent=1 // pred_fallthru
      _
    // Predicated region
    $region14: #{net_forward.3} parent=1 // pred_check
      _
    $region15: #{net_forward.3} parent=1 // pred_check_branch
      %24 = sbr.rel (0) target = $region17
    $region16: #{net_forward.3} parent=1 // pred_region
      _
    $region17: #{net_forward.3} parent=1 // pred_fallthru
      _
    // Predicated region
    $region18: #{net_forward.3} parent=1 // pred_check
      _
    $region19: #{net_forward.3} parent=1 // pred_check_branch
      %26 = sbr.rel (0) target = $region21
    $region20: #{net_forward.3} parent=1 // pred_region
      _
    $region21: #{net_forward.3} parent=1 // pred_fallthru
      _
    // Predicated region
    $region22: #{net_forward.3} parent=1 // pred_check
      _
    $region23: #{net_forward.3} parent=1 // pred_check_branch
      %28 = sbr.rel (0) target = $region25
    $region24: #{net_forward.3} parent=1 // pred_region
      _
    $region25: #{net_forward.3} parent=1 // pred_fallthru
      _
    // Predicated region
    $region26: #{net_forward.3} parent=1 // pred_check
      _
    $region27: #{net_forward.3} parent=1 // pred_check_branch
      %30 = sbr.rel (0) target = $region29
    $region28: #{net_forward.3} parent=1 // pred_region
      _
    $region29: #{net_forward.3} parent=1 // pred_fallthru
      _
    // Predicated region
    $region30: #{net_forward.3} parent=1 // pred_check
      _
    $region31: #{net_forward.3} parent=1 // pred_check_branch
      %32 = sbr.rel (0) target = $region33
    $region32: #{net_forward.3} parent=1 // pred_region
      _
    $region33: #{net_forward.3} parent=1 // pred_fallthru
      _
    // Predicated region
    $region34: #{net_forward.3} parent=1 // pred_check
      _
    $region35: #{net_forward.3} parent=1 // pred_check_branch
      %34 = sbr.rel (0) target = $region37
    $region36: #{net_forward.3} parent=1 // pred_region
      _
    $region37: #{net_forward.3} parent=1 // pred_fallthru
      _
    // Predicated region
    $region38: #{net_forward.3} parent=1 // pred_check
      _
    $region39: #{net_forward.3} parent=1 // pred_check_branch
      %36 = sbr.rel (0) target = $region41
    $region40: #{net_forward.3} parent=1 // pred_region
      _
    $region41: #{net_forward.3} parent=1 // pred_fallthru
      _
    // Predicated region
    $region42: #{net_forward.3} parent=1 // pred_check
      _
    $region43: #{net_forward.3} parent=1 // pred_check_branch
      %38 = sbr.rel (0) target = $region45
    $region44: #{net_forward.3} parent=1 // pred_region
      _
    $region45: #{net_forward.3} parent=1 // pred_fallthru
      _
    %v39 = vld [vmem:[%s0] sm:$0xff]
    %v40 = vld [vmem:[%s0 + $0x8] sm:$0xff]
    %v41 = vld [vmem:[%s0 + $0x10] sm:$0xff]
    %v42 = vld [vmem:[%s0 + $0x18] sm:$0xff]
    %v43 = vld [vmem:[%s0 + $0x20] sm:$0xff]
    %v44 = vld [vmem:[%s0 + $0x28] sm:$0xff]
    %v45 = vld [vmem:[%s0 + $0x30] sm:$0xff]
    %v46 = vld [vmem:[%s0 + $0x38] sm:$0xff]
    %v47 = vld [vmem:[%s0 + $0x40] sm:$0xff]
    %v48 = vld [vmem:[%s0 + $0x48] sm:$0xff]
    %v49 = vld [vmem:[%s0 + $0x50] sm:$0xff]
    %v50 = vld [vmem:[%s0 + $0x58] sm:$0xff]
    %v51 = vld [vmem:[%s0 + $0x60] sm:$0xff]
    %v52 = vld [vmem:[%s0 + $0x68] sm:$0xff]
    %v53 = vld [vmem:[%s0 + $0x70] sm:$0xff]
    %v54 = vld [vmem:[%s0 + $0x78] sm:$0xff]
    %v55 = vld [vmem:[%s0 + $0x80] sm:$0xff]
    %v56 = vld [vmem:[%s0 + $0x88] sm:$0xff]
    %v57 = vld [vmem:[%s0 + $0x90] sm:$0xff]
    %v58 = vld [vmem:[%s0 + $0x98] sm:$0xff]
    %v59 = vld [vmem:[%s0 + $0xa0] sm:$0xff]
    %v60 = vld [vmem:[%s0 + $0xa8] sm:$0xff]
    %v61 = vld [vmem:[%s0 + $0xb0] sm:$0xff]
    %v62 = vld [vmem:[%s0 + $0xb8] sm:$0xff]
    %v63 = vld [vmem:[%s0 + $0xc0] sm:$0xf]
    %v64 = vld [vmem:[%s1] sm:$0xff]
    %v65 = vld [vmem:[%s1 + $0x8] sm:$0xff]
    %v66 = vld [vmem:[%s1 + $0x10] sm:$0xff]
    %v67 = vld [vmem:[%s1 + $0x18] sm:$0xff]
    %v68 = vld [vmem:[%s1 + $0x20] sm:$0xff]
    %v69 = vld [vmem:[%s1 + $0x28] sm:$0xff]
    %v70 = vld [vmem:[%s1 + $0x30] sm:$0xff]
    %v71 = vld [vmem:[%s1 + $0x38] sm:$0xff]
    %v72 = vld [vmem:[%s1 + $0x40] sm:$0xff]
    %v73 = vld [vmem:[%s1 + $0x48] sm:$0xff]
    %v74 = vld [vmem:[%s1 + $0x50] sm:$0xff]
    %v75 = vld [vmem:[%s1 + $0x58] sm:$0xff]
    %v76 = vld [vmem:[%s1 + $0x60] sm:$0xff]
    %v77 = vld [vmem:[%s1 + $0x68] sm:$0xff]
    %v78 = vld [vmem:[%s1 + $0x70] sm:$0xff]
    %v79 = vld [vmem:[%s1 + $0x78] sm:$0xff]
    %v80 = vld [vmem:[%s1 + $0x80] sm:$0xff]
    %v81 = vld [vmem:[%s1 + $0x88] sm:$0xff]
    %v82 = vld [vmem:[%s1 + $0x90] sm:$0xff]
    %v83 = vld [vmem:[%s1 + $0x98] sm:$0xff]
    %v84 = vld [vmem:[%s1 + $0xa0] sm:$0xff]
    %v85 = vld [vmem:[%s1 + $0xa8] sm:$0xff]
    %v86 = vld [vmem:[%s1 + $0xb0] sm:$0xff]
    %v87 = vld [vmem:[%s1 + $0xb8] sm:$0xff]
    %v88 = vld [vmem:[%s1 + $0xc0] sm:$0xff]
    %v89 = vld [vmem:[%s1 + $0xc8] sm:$0xff]
    %v90 = vld [vmem:[%s1 + $0xd0] sm:$0xff]
    %v91 = vld [vmem:[%s1 + $0xd8] sm:$0xff]
    %v92 = vld [vmem:[%s1 + $0xe0] sm:$0xff]
    %v93 = vld [vmem:[%s1 + $0xe8] sm:$0xff]
    %v94 = vld [vmem:[%s1 + $0xf0] sm:$0xff]
    %v95 = vld [vmem:[%s1 + $0xf8] sm:$0xff]
    %v96 = vld [vmem:[%s1 + $0x100] sm:$0xff]
    %v97 = vld [vmem:[%s1 + $0x108] sm:$0xff]
    %v98 = vld [vmem:[%s1 + $0x110] sm:$0xff]
    %v99 = vld [vmem:[%s1 + $0x118] sm:$0xff]
    %v100 = vld [vmem:[%s1 + $0x120] sm:$0xff]
    %v101 = vld [vmem:[%s1 + $0x128] sm:$0xff]
    %v102 = vld [vmem:[%s1 + $0x130] sm:$0xff]
    %v103 = vld [vmem:[%s1 + $0x138] sm:$0xff]
    %v104 = vld [vmem:[%s1 + $0x140] sm:$0xff]
    %v105 = vld [vmem:[%s1 + $0x148] sm:$0xff]
    %v106 = vld [vmem:[%s1 + $0x150] sm:$0xff]
    %v107 = vld [vmem:[%s1 + $0x158] sm:$0xff]
    %v108 = vld [vmem:[%s1 + $0x160] sm:$0xff]
    %v109 = vld [vmem:[%s1 + $0x168] sm:$0xff]
    %v110 = vld [vmem:[%s1 + $0x170] sm:$0xff]
    %v111 = vld [vmem:[%s1 + $0x178] sm:$0xff]
    %v112 = vld [vmem:[%s1 + $0x180] sm:$0xff]
    %v113 = vld [vmem:[%s1 + $0x188] sm:$0xff]
    %v114 = vld [vmem:[%s1 + $0x190] sm:$0xff]
    %v115 = vld [vmem:[%s1 + $0x198] sm:$0xff]
    %v116 = vld [vmem:[%s1 + $0x1a0] sm:$0xff]
    %v117 = vld [vmem:[%s1 + $0x1a8] sm:$0xff]
    %v118 = vld [vmem:[%s1 + $0x1b0] sm:$0xff]
    %v119 = vld [vmem:[%s1 + $0x1b8] sm:$0xff]
    %v120 = vld [vmem:[%s1 + $0x1c0] sm:$0xff]
    %v121 = vld [vmem:[%s1 + $0x1c8] sm:$0xff]
    %v122 = vld [vmem:[%s1 + $0x1d0] sm:$0xff]
    %v123 = vld [vmem:[%s1 + $0x1d8] sm:$0xff]
    %v124 = vld [vmem:[%s1 + $0x1e0] sm:$0xff]
    %v125 = vld [vmem:[%s1 + $0x1e8] sm:$0xff]
    %v126 = vld [vmem:[%s1 + $0x1f0] sm:$0xff]
    %v127 = vld [vmem:[%s1 + $0x1f8] sm:$0xff]
    %v128 = vld [vmem:[%s1 + $0x200] sm:$0xff]
    %v129 = vld [vmem:[%s1 + $0x208] sm:$0xff]
    %v130 = vld [vmem:[%s1 + $0x210] sm:$0xff]
    %v131 = vld [vmem:[%s1 + $0x218] sm:$0xff]
    %v132 = vld [vmem:[%s1 + $0x220] sm:$0xff]
    %v133 = vld [vmem:[%s1 + $0x228] sm:$0xff]
    %v134 = vld [vmem:[%s1 + $0x230] sm:$0xff]
    %v135 = vld [vmem:[%s1 + $0x238] sm:$0xff]
    %v136 = vld [vmem:[%s1 + $0x240] sm:$0xff]
    %v137 = vld [vmem:[%s1 + $0x248] sm:$0xff]
    %v138 = vld [vmem:[%s1 + $0x250] sm:$0xff]
    %v139 = vld [vmem:[%s1 + $0x258] sm:$0xff]
    %v140 = vld [vmem:[%s1 + $0x260] sm:$0xff]
    %v141 = vld [vmem:[%s1 + $0x268] sm:$0xff]
    %v142 = vld [vmem:[%s1 + $0x270] sm:$0xff]
    %v143 = vld [vmem:[%s1 + $0x278] sm:$0xff]
    %v144 = vld [vmem:[%s1 + $0x280] sm:$0xff]
    %v145 = vld [vmem:[%s1 + $0x288] sm:$0xff]
    %v146 = vld [vmem:[%s1 + $0x290] sm:$0xff]
    %v147 = vld [vmem:[%s1 + $0x298] sm:$0xff]
    %v148 = vld [vmem:[%s1 + $0x2a0] sm:$0xff]
    %v149 = vld [vmem:[%s1 + $0x2a8] sm:$0xff]
    %v150 = vld [vmem:[%s1 + $0x2b0] sm:$0xff]
    %v151 = vld [vmem:[%s1 + $0x2b8] sm:$0xff]
    %v152 = vld [vmem:[%s1 + $0x2c0] sm:$0xff]
    %v153 = vld [vmem:[%s1 + $0x2c8] sm:$0xff]
    %v154 = vld [vmem:[%s1 + $0x2d0] sm:$0xff]
    %v155 = vld [vmem:[%s1 + $0x2d8] sm:$0xff]
    %v156 = vld [vmem:[%s1 + $0x2e0] sm:$0xff]
    %v157 = vld [vmem:[%s1 + $0x2e8] sm:$0xff]
    %v158 = vld [vmem:[%s1 + $0x2f0] sm:$0xff]
    %v159 = vld [vmem:[%s1 + $0x2f8] sm:$0xff]
    %v160 = vld [vmem:[%s1 + $0x300] sm:$0xff]
    %v161 = vld [vmem:[%s1 + $0x308] sm:$0xff]
    %v162 = vld [vmem:[%s1 + $0x310] sm:$0xff]
    %v163 = vld [vmem:[%s1 + $0x318] sm:$0xff]
    %v164 = vld [vmem:[%s1 + $0x320] sm:$0xff]
    %v165 = vld [vmem:[%s1 + $0x328] sm:$0xff]
    %v166 = vld [vmem:[%s1 + $0x330] sm:$0xff]
    %v167 = vld [vmem:[%s1 + $0x338] sm:$0xff]
    %v168 = vld [vmem:[%s1 + $0x340] sm:$0xff]
    %v169 = vld [vmem:[%s1 + $0x348] sm:$0xff]
    %v170 = vld [vmem:[%s1 + $0x350] sm:$0xff]
    %v171 = vld [vmem:[%s1 + $0x358] sm:$0xff]
    %v172 = vld [vmem:[%s1 + $0x360] sm:$0xff]
    %v173 = vld [vmem:[%s1 + $0x368] sm:$0xff]
    %v174 = vld [vmem:[%s1 + $0x370] sm:$0xff]
    %v175 = vld [vmem:[%s1 + $0x378] sm:$0xff]
    %v176 = vld [vmem:[%s1 + $0x380] sm:$0xff]
    %v177 = vld [vmem:[%s1 + $0x388] sm:$0xff]
    %v178 = vld [vmem:[%s1 + $0x390] sm:$0xff]
    %v179 = vld [vmem:[%s1 + $0x398] sm:$0xff]
    %v180 = vld [vmem:[%s1 + $0x3a0] sm:$0xff]
    %v181 = vld [vmem:[%s1 + $0x3a8] sm:$0xff]
    %v182 = vld [vmem:[%s1 + $0x3b0] sm:$0xff]
    %v183 = vld [vmem:[%s1 + $0x3b8] sm:$0xff]
    %v184 = vld [vmem:[%s1 + $0x3c0] sm:$0xff]
    %v185 = vld [vmem:[%s1 + $0x3c8] sm:$0xff]
    %v186 = vld [vmem:[%s1 + $0x3d0] sm:$0xff]
    %v187 = vld [vmem:[%s1 + $0x3d8] sm:$0xff]
    %v188 = vld [vmem:[%s1 + $0x3e0] sm:$0xff]
    %v189 = vld [vmem:[%s1 + $0x3e8] sm:$0xff]
    %v190 = vld [vmem:[%s1 + $0x3f0] sm:$0xff]
    %v191 = vld [vmem:[%s1 + $0x3f8] sm:$0xff]
    %v192 = vld [vmem:[%s1 + $0x400] sm:$0xff]
    %v193 = vld [vmem:[%s1 + $0x408] sm:$0xff]
    %v194 = vld [vmem:[%s1 + $0x410] sm:$0xff]
    %v195 = vld [vmem:[%s1 + $0x418] sm:$0xff]
    %v196 = vld [vmem:[%s1 + $0x420] sm:$0xff]
    %v197 = vld [vmem:[%s1 + $0x428] sm:$0xff]
    %v198 = vld [vmem:[%s1 + $0x430] sm:$0xff]
    %v199 = vld [vmem:[%s1 + $0x438] sm:$0xff]
    %v200 = vld [vmem:[%s1 + $0x440] sm:$0xff]
    %v201 = vld [vmem:[%s1 + $0x448] sm:$0xff]
    %v202 = vld [vmem:[%s1 + $0x450] sm:$0xff]
    %v203 = vld [vmem:[%s1 + $0x458] sm:$0xff]
    %v204 = vld [vmem:[%s1 + $0x460] sm:$0xff]
    %v205 = vld [vmem:[%s1 + $0x468] sm:$0xff]
    %v206 = vld [vmem:[%s1 + $0x470] sm:$0xff]
    %v207 = vld [vmem:[%s1 + $0x478] sm:$0xff]
    %v208 = vld [vmem:[%s1 + $0x480] sm:$0xff]
    %v209 = vld [vmem:[%s1 + $0x488] sm:$0xff]
    %v210 = vld [vmem:[%s1 + $0x490] sm:$0xff]
    %v211 = vld [vmem:[%s1 + $0x498] sm:$0xff]
    %v212 = vld [vmem:[%s1 + $0x4a0] sm:$0xff]
    %v213 = vld [vmem:[%s1 + $0x4a8] sm:$0xff]
    %v214 = vld [vmem:[%s1 + $0x4b0] sm:$0xff]
    %v215 = vld [vmem:[%s1 + $0x4b8] sm:$0xff]
    %v216 = vld [vmem:[%s1 + $0x4c0] sm:$0xff]
    %v217 = vld [vmem:[%s1 + $0x4c8] sm:$0xff]
    %v218 = vld [vmem:[%s1 + $0x4d0] sm:$0xff]
    %v219 = vld [vmem:[%s1 + $0x4d8] sm:$0xff]
    %v220 = vld [vmem:[%s1 + $0x4e0] sm:$0xff]
    %v221 = vld [vmem:[%s1 + $0x4e8] sm:$0xff]
    %v222 = vld [vmem:[%s1 + $0x4f0] sm:$0xff]
    %v223 = vld [vmem:[%s1 + $0x4f8] sm:$0xff]
    %v224 = vld [vmem:[%s1 + $0x500] sm:$0xff]
    %v225 = vld [vmem:[%s1 + $0x508] sm:$0xff]
    %v226 = vld [vmem:[%s1 + $0x510] sm:$0xff]
    %v227 = vld [vmem:[%s1 + $0x518] sm:$0xff]
    %v228 = vld [vmem:[%s1 + $0x520] sm:$0xff]
    %v229 = vld [vmem:[%s1 + $0x528] sm:$0xff]
    %v230 = vld [vmem:[%s1 + $0x530] sm:$0xff]
    %v231 = vld [vmem:[%s1 + $0x538] sm:$0xff]
    %v232 = vld [vmem:[%s1 + $0x540] sm:$0xff]
    %v233 = vld [vmem:[%s1 + $0x548] sm:$0xff]
    %v234 = vld [vmem:[%s1 + $0x550] sm:$0xff]
    %v235 = vld [vmem:[%s1 + $0x558] sm:$0xff]
    %v236 = vld [vmem:[%s1 + $0x560] sm:$0xff]
    %v237 = vld [vmem:[%s1 + $0x568] sm:$0xff]
    %v238 = vld [vmem:[%s1 + $0x570] sm:$0xff]
    %v239 = vld [vmem:[%s1 + $0x578] sm:$0xff]
    %v240 = vld [vmem:[%s1 + $0x580] sm:$0xff]
    %v241 = vld [vmem:[%s1 + $0x588] sm:$0xff]
    %v242 = vld [vmem:[%s1 + $0x590] sm:$0xff]
    %v243 = vld [vmem:[%s1 + $0x598] sm:$0xff]
    %v244 = vld [vmem:[%s1 + $0x5a0] sm:$0xff]
    %v245 = vld [vmem:[%s1 + $0x5a8] sm:$0xff]
    %v246 = vld [vmem:[%s1 + $0x5b0] sm:$0xff]
    %v247 = vld [vmem:[%s1 + $0x5b8] sm:$0xff]
    %v248 = vld [vmem:[%s1 + $0x5c0] sm:$0xff]
    %v249 = vld [vmem:[%s1 + $0x5c8] sm:$0xff]
    %v250 = vld [vmem:[%s1 + $0x5d0] sm:$0xff]
    %v251 = vld [vmem:[%s1 + $0x5d8] sm:$0xff]
    %v252 = vld [vmem:[%s1 + $0x5e0] sm:$0xff]
    %v253 = vld [vmem:[%s1 + $0x5e8] sm:$0xff]
    %v254 = vld [vmem:[%s1 + $0x5f0] sm:$0xff]
    %v255 = vld [vmem:[%s1 + $0x5f8] sm:$0xff]
    %v256 = vld [vmem:[%s1 + $0x600] sm:$0xff]
    %v257 = vld [vmem:[%s1 + $0x608] sm:$0xff]
    %v258 = vld [vmem:[%s1 + $0x610] sm:$0xff]
    %v259 = vld [vmem:[%s1 + $0x618] sm:$0xff]
    %v260 = vld [vmem:[%s1 + $0x620] sm:$0xff]
    %v261 = vld [vmem:[%s1 + $0x628] sm:$0xff]
    %v262 = vld [vmem:[%s1 + $0x630] sm:$0xff]
    %v263 = vld [vmem:[%s1 + $0x638] sm:$0xff]
    %v264 = vld [vmem:[%s1 + $0x640] sm:$0xff]
    %v265 = vld [vmem:[%s1 + $0x648] sm:$0xff]
    %v266 = vld [vmem:[%s1 + $0x650] sm:$0xff]
    %v267 = vld [vmem:[%s1 + $0x658] sm:$0xff]
    %v268 = vld [vmem:[%s1 + $0x660] sm:$0xff]
    %v269 = vld [vmem:[%s1 + $0x668] sm:$0xff]
    %v270 = vld [vmem:[%s1 + $0x670] sm:$0xff]
    %v271 = vld [vmem:[%s1 + $0x678] sm:$0xff]
    %v272 = vld [vmem:[%s1 + $0x680] sm:$0xff]
    %v273 = vld [vmem:[%s1 + $0x688] sm:$0xff]
    %v274 = vld [vmem:[%s1 + $0x690] sm:$0xff]
    %v275 = vld [vmem:[%s1 + $0x698] sm:$0xff]
    %v276 = vld [vmem:[%s1 + $0x6a0] sm:$0xff]
    %v277 = vld [vmem:[%s1 + $0x6a8] sm:$0xff]
    %v278 = vld [vmem:[%s1 + $0x6b0] sm:$0xff]
    %v279 = vld [vmem:[%s1 + $0x6b8] sm:$0xff]
    %v280 = vld [vmem:[%s1 + $0x6c0] sm:$0xff]
    %v281 = vld [vmem:[%s1 + $0x6c8] sm:$0xff]
    %v282 = vld [vmem:[%s1 + $0x6d0] sm:$0xff]
    %v283 = vld [vmem:[%s1 + $0x6d8] sm:$0xff]
    %v284 = vld [vmem:[%s1 + $0x6e0] sm:$0xff]
    %v285 = vld [vmem:[%s1 + $0x6e8] sm:$0xff]
    %v286 = vld [vmem:[%s1 + $0x6f0] sm:$0xff]
    %v287 = vld [vmem:[%s1 + $0x6f8] sm:$0xff]
    %v288 = vld [vmem:[%s1 + $0x700] sm:$0xff]
    %v289 = vld [vmem:[%s1 + $0x708] sm:$0xff]
    %v290 = vld [vmem:[%s1 + $0x710] sm:$0xff]
    %v291 = vld [vmem:[%s1 + $0x718] sm:$0xff]
    %v292 = vld [vmem:[%s1 + $0x720] sm:$0xff]
    %v293 = vld [vmem:[%s1 + $0x728] sm:$0xff]
    %v294 = vld [vmem:[%s1 + $0x730] sm:$0xff]
    %v295 = vld [vmem:[%s1 + $0x738] sm:$0xff]
    %v296 = vld [vmem:[%s1 + $0x740] sm:$0xff]
    %v297 = vld [vmem:[%s1 + $0x748] sm:$0xff]
    %v298 = vld [vmem:[%s1 + $0x750] sm:$0xff]
    %v299 = vld [vmem:[%s1 + $0x758] sm:$0xff]
    %v300 = vld [vmem:[%s1 + $0x760] sm:$0xff]
    %v301 = vld [vmem:[%s1 + $0x768] sm:$0xff]
    %v302 = vld [vmem:[%s1 + $0x770] sm:$0xff]
    %v303 = vld [vmem:[%s1 + $0x778] sm:$0xff]
    %v304 = vld [vmem:[%s1 + $0x780] sm:$0xff]
    %v305 = vld [vmem:[%s1 + $0x788] sm:$0xff]
    %v306 = vld [vmem:[%s1 + $0x790] sm:$0xff]
    %v307 = vld [vmem:[%s1 + $0x798] sm:$0xff]
    %v308 = vld [vmem:[%s1 + $0x7a0] sm:$0xff]
    %v309 = vld [vmem:[%s1 + $0x7a8] sm:$0xff]
    %v310 = vld [vmem:[%s1 + $0x7b0] sm:$0xff]
    %v311 = vld [vmem:[%s1 + $0x7b8] sm:$0xff]
    %v312 = vld [vmem:[%s1 + $0x7c0] sm:$0xff]
    %v313 = vld [vmem:[%s1 + $0x7c8] sm:$0xff]
    %v314 = vld [vmem:[%s1 + $0x7d0] sm:$0xff]
    %v315 = vld [vmem:[%s1 + $0x7d8] sm:$0xff]
    %v316 = vld [vmem:[%s1 + $0x7e0] sm:$0xff]
    %v317 = vld [vmem:[%s1 + $0x7e8] sm:$0xff]
    %v318 = vld [vmem:[%s1 + $0x7f0] sm:$0xff]
    %v319 = vld [vmem:[%s1 + $0x7f8] sm:$0xff]
    %v320 = vld [vmem:[%s1 + $0x800] sm:$0xff]
    %v321 = vld [vmem:[%s1 + $0x808] sm:$0xff]
    %v322 = vld [vmem:[%s1 + $0x810] sm:$0xff]
    %v323 = vld [vmem:[%s1 + $0x818] sm:$0xff]
    %v324 = vld [vmem:[%s1 + $0x820] sm:$0xff]
    %v325 = vld [vmem:[%s1 + $0x828] sm:$0xff]
    %v326 = vld [vmem:[%s1 + $0x830] sm:$0xff]
    %v327 = vld [vmem:[%s1 + $0x838] sm:$0xff]
    %v328 = vld [vmem:[%s1 + $0x840] sm:$0xff]
    %v329 = vld [vmem:[%s1 + $0x848] sm:$0xff]
    %v330 = vld [vmem:[%s1 + $0x850] sm:$0xff]
    %v331 = vld [vmem:[%s1 + $0x858] sm:$0xff]
    %v332 = vld [vmem:[%s1 + $0x860] sm:$0xff]
    %v333 = vld [vmem:[%s1 + $0x868] sm:$0xff]
    %v334 = vld [vmem:[%s1 + $0x870] sm:$0xff]
    %v335 = vld [vmem:[%s1 + $0x878] sm:$0xff]
    %v336 = vld [vmem:[%s1 + $0x880] sm:$0xff]
    %v337 = vld [vmem:[%s1 + $0x888] sm:$0xff]
    %v338 = vld [vmem:[%s1 + $0x890] sm:$0xff]
    %v339 = vld [vmem:[%s1 + $0x898] sm:$0xff]
    %v340 = vld [vmem:[%s1 + $0x8a0] sm:$0xff]
    %v341 = vld [vmem:[%s1 + $0x8a8] sm:$0xff]
    %v342 = vld [vmem:[%s1 + $0x8b0] sm:$0xff]
    %v343 = vld [vmem:[%s1 + $0x8b8] sm:$0xff]
    %v344 = vld [vmem:[%s1 + $0x8c0] sm:$0xff]
    %v345 = vld [vmem:[%s1 + $0x8c8] sm:$0xff]
    %v346 = vld [vmem:[%s1 + $0x8d0] sm:$0xff]
    %v347 = vld [vmem:[%s1 + $0x8d8] sm:$0xff]
    %v348 = vld [vmem:[%s1 + $0x8e0] sm:$0xff]
    %v349 = vld [vmem:[%s1 + $0x8e8] sm:$0xff]
    %v350 = vld [vmem:[%s1 + $0x8f0] sm:$0xff]
    %v351 = vld [vmem:[%s1 + $0x8f8] sm:$0xff]
    %v352 = vld [vmem:[%s1 + $0x900] sm:$0xff]
    %v353 = vld [vmem:[%s1 + $0x908] sm:$0xff]
    %v354 = vld [vmem:[%s1 + $0x910] sm:$0xff]
    %v355 = vld [vmem:[%s1 + $0x918] sm:$0xff]
    %v356 = vld [vmem:[%s1 + $0x920] sm:$0xff]
    %v357 = vld [vmem:[%s1 + $0x928] sm:$0xff]
    %v358 = vld [vmem:[%s1 + $0x930] sm:$0xff]
    %v359 = vld [vmem:[%s1 + $0x938] sm:$0xff]
    %v360 = vld [vmem:[%s1 + $0x940] sm:$0xff]
    %v361 = vld [vmem:[%s1 + $0x948] sm:$0xff]
    %v362 = vld [vmem:[%s1 + $0x950] sm:$0xff]
    %v363 = vld [vmem:[%s1 + $0x958] sm:$0xff]
    %v364 = vld [vmem:[%s1 + $0x960] sm:$0xff]
    %v365 = vld [vmem:[%s1 + $0x968] sm:$0xff]
    %v366 = vld [vmem:[%s1 + $0x970] sm:$0xff]
    %v367 = vld [vmem:[%s1 + $0x978] sm:$0xff]
    %v368 = vld [vmem:[%s1 + $0x980] sm:$0xff]
    %v369 = vld [vmem:[%s1 + $0x988] sm:$0xff]
    %v370 = vld [vmem:[%s1 + $0x990] sm:$0xff]
    %v371 = vld [vmem:[%s1 + $0x998] sm:$0xff]
    %v372 = vld [vmem:[%s1 + $0x9a0] sm:$0xff]
    %v373 = vld [vmem:[%s1 + $0x9a8] sm:$0xff]
    %v374 = vld [vmem:[%s1 + $0x9b0] sm:$0xff]
    %v375 = vld [vmem:[%s1 + $0x9b8] sm:$0xff]
    %v376 = vld [vmem:[%s1 + $0x9c0] sm:$0xff]
    %v377 = vld [vmem:[%s1 + $0x9c8] sm:$0xff]
    %v378 = vld [vmem:[%s1 + $0x9d0] sm:$0xff]
    %v379 = vld [vmem:[%s1 + $0x9d8] sm:$0xff]
    %v380 = vld [vmem:[%s1 + $0x9e0] sm:$0xff]
    %v381 = vld [vmem:[%s1 + $0x9e8] sm:$0xff]
    %v382 = vld [vmem:[%s1 + $0x9f0] sm:$0xff]
    %v383 = vld [vmem:[%s1 + $0x9f8] sm:$0xff]
    %v384 = vld [vmem:[%s1 + $0xa00] sm:$0xff]
    %v385 = vld [vmem:[%s1 + $0xa08] sm:$0xff]
    %v386 = vld [vmem:[%s1 + $0xa10] sm:$0xff]
    %v387 = vld [vmem:[%s1 + $0xa18] sm:$0xff]
    %v388 = vld [vmem:[%s1 + $0xa20] sm:$0xff]
    %v389 = vld [vmem:[%s1 + $0xa28] sm:$0xff]
    %v390 = vld [vmem:[%s1 + $0xa30] sm:$0xff]
    %v391 = vld [vmem:[%s1 + $0xa38] sm:$0xff]
    %v392 = vld [vmem:[%s1 + $0xa40] sm:$0xff]
    %v393 = vld [vmem:[%s1 + $0xa48] sm:$0xff]
    %v394 = vld [vmem:[%s1 + $0xa50] sm:$0xff]
    %v395 = vld [vmem:[%s1 + $0xa58] sm:$0xff]
    %v396 = vld [vmem:[%s1 + $0xa60] sm:$0xff]
    %v397 = vld [vmem:[%s1 + $0xa68] sm:$0xff]
    %v398 = vld [vmem:[%s1 + $0xa70] sm:$0xff]
    %v399 = vld [vmem:[%s1 + $0xa78] sm:$0xff]
    %v400 = vld [vmem:[%s1 + $0xa80] sm:$0xff]
    %v401 = vld [vmem:[%s1 + $0xa88] sm:$0xff]
    %v402 = vld [vmem:[%s1 + $0xa90] sm:$0xff]
    %v403 = vld [vmem:[%s1 + $0xa98] sm:$0xff]
    %v404 = vld [vmem:[%s1 + $0xaa0] sm:$0xff]
    %v405 = vld [vmem:[%s1 + $0xaa8] sm:$0xff]
    %v406 = vld [vmem:[%s1 + $0xab0] sm:$0xff]
    %v407 = vld [vmem:[%s1 + $0xab8] sm:$0xff]
    %v408 = vld [vmem:[%s1 + $0xac0] sm:$0xff]
    %v409 = vld [vmem:[%s1 + $0xac8] sm:$0xff]
    %v410 = vld [vmem:[%s1 + $0xad0] sm:$0xff]
    %v411 = vld [vmem:[%s1 + $0xad8] sm:$0xff]
    %v412 = vld [vmem:[%s1 + $0xae0] sm:$0xff]
    %v413 = vld [vmem:[%s1 + $0xae8] sm:$0xff]
    %v414 = vld [vmem:[%s1 + $0xaf0] sm:$0xff]
    %v415 = vld [vmem:[%s1 + $0xaf8] sm:$0xff]
    %v416 = vld [vmem:[%s1 + $0xb00] sm:$0xff]
    %v417 = vld [vmem:[%s1 + $0xb08] sm:$0xff]
    %v418 = vld [vmem:[%s1 + $0xb10] sm:$0xff]
    %v419 = vld [vmem:[%s1 + $0xb18] sm:$0xff]
    %v420 = vld [vmem:[%s1 + $0xb20] sm:$0xff]
    %v421 = vld [vmem:[%s1 + $0xb28] sm:$0xff]
    %v422 = vld [vmem:[%s1 + $0xb30] sm:$0xff]
    %v423 = vld [vmem:[%s1 + $0xb38] sm:$0xff]
    %v424 = vld [vmem:[%s1 + $0xb40] sm:$0xff]
    %v425 = vld [vmem:[%s1 + $0xb48] sm:$0xff]
    %v426 = vld [vmem:[%s1 + $0xb50] sm:$0xff]
    %v427 = vld [vmem:[%s1 + $0xb58] sm:$0xff]
    %v428 = vld [vmem:[%s1 + $0xb60] sm:$0xff]
    %v429 = vld [vmem:[%s1 + $0xb68] sm:$0xff]
    %v430 = vld [vmem:[%s1 + $0xb70] sm:$0xff]
    %v431 = vld [vmem:[%s1 + $0xb78] sm:$0xff]
    %v432 = vld [vmem:[%s1 + $0xb80] sm:$0xff]
    %v433 = vld [vmem:[%s1 + $0xb88] sm:$0xff]
    %v434 = vld [vmem:[%s1 + $0xb90] sm:$0xff]
    %v435 = vld [vmem:[%s1 + $0xb98] sm:$0xff]
    %v436 = vld [vmem:[%s1 + $0xba0] sm:$0xff]
    %v437 = vld [vmem:[%s1 + $0xba8] sm:$0xff]
    %v438 = vld [vmem:[%s1 + $0xbb0] sm:$0xff]
    %v439 = vld [vmem:[%s1 + $0xbb8] sm:$0xff]
    %v440 = vld [vmem:[%s1 + $0xbc0] sm:$0xff]
    %v441 = vld [vmem:[%s1 + $0xbc8] sm:$0xff]
    %v442 = vld [vmem:[%s1 + $0xbd0] sm:$0xff]
    %v443 = vld [vmem:[%s1 + $0xbd8] sm:$0xff]
    %v444 = vld [vmem:[%s1 + $0xbe0] sm:$0xff]
    %v445 = vld [vmem:[%s1 + $0xbe8] sm:$0xff]
    %v446 = vld [vmem:[%s1 + $0xbf0] sm:$0xff]
    %v447 = vld [vmem:[%s1 + $0xbf8] sm:$0xff]
    %v448 = vld [vmem:[%s1 + $0xc00] sm:$0xff]
    %v449 = vld [vmem:[%s1 + $0xc08] sm:$0xff]
    %v450 = vld [vmem:[%s1 + $0xc10] sm:$0xff]
    %v451 = vld [vmem:[%s1 + $0xc18] sm:$0xff]
    %v452 = vld [vmem:[%s1 + $0xc20] sm:$0xff]
    %v453 = vld [vmem:[%s1 + $0xc28] sm:$0xff]
    %v454 = vld [vmem:[%s1 + $0xc30] sm:$0xff]
    %v455 = vld [vmem:[%s1 + $0xc38] sm:$0xff]
    %v456 = vld [vmem:[%s1 + $0xc40] sm:$0xff]
    %v457 = vld [vmem:[%s1 + $0xc48] sm:$0xff]
    %v458 = vld [vmem:[%s1 + $0xc50] sm:$0xff]
    %v459 = vld [vmem:[%s1 + $0xc58] sm:$0xff]
    %v460 = vld [vmem:[%s1 + $0xc60] sm:$0xff]
    %v461 = vld [vmem:[%s1 + $0xc68] sm:$0xff]
    %v462 = vld [vmem:[%s1 + $0xc70] sm:$0xff]
    %v463 = vld [vmem:[%s1 + $0xc78] sm:$0xff]
    %v464 = vld [vmem:[%s1 + $0xc80] sm:$0xff]
    %v465 = vld [vmem:[%s1 + $0xc88] sm:$0xff]
    %v466 = vld [vmem:[%s1 + $0xc90] sm:$0xff]
    %v467 = vld [vmem:[%s1 + $0xc98] sm:$0xff]
    %v468 = vld [vmem:[%s1 + $0xca0] sm:$0xff]
    %v469 = vld [vmem:[%s1 + $0xca8] sm:$0xff]
    %v470 = vld [vmem:[%s1 + $0xcb0] sm:$0xff]
    %v471 = vld [vmem:[%s1 + $0xcb8] sm:$0xff]
    %v472 = vld [vmem:[%s1 + $0xcc0] sm:$0xff]
    %v473 = vld [vmem:[%s1 + $0xcc8] sm:$0xff]
    %v474 = vld [vmem:[%s1 + $0xcd0] sm:$0xff]
    %v475 = vld [vmem:[%s1 + $0xcd8] sm:$0xff]
    %v476 = vld [vmem:[%s1 + $0xce0] sm:$0xff]
    %v477 = vld [vmem:[%s1 + $0xce8] sm:$0xff]
    %v478 = vld [vmem:[%s1 + $0xcf0] sm:$0xff]
    %v479 = vld [vmem:[%s1 + $0xcf8] sm:$0xff]
    %v480 = vld [vmem:[%s1 + $0xd00] sm:$0xff]
    %v481 = vld [vmem:[%s1 + $0xd08] sm:$0xff]
    %v482 = vld [vmem:[%s1 + $0xd10] sm:$0xff]
    %v483 = vld [vmem:[%s1 + $0xd18] sm:$0xff]
    %v484 = vld [vmem:[%s1 + $0xd20] sm:$0xff]
    %v485 = vld [vmem:[%s1 + $0xd28] sm:$0xff]
    %v486 = vld [vmem:[%s1 + $0xd30] sm:$0xff]
    %v487 = vld [vmem:[%s1 + $0xd38] sm:$0xff]
    %v488 = vld [vmem:[%s1 + $0xd40] sm:$0xff]
    %v489 = vld [vmem:[%s1 + $0xd48] sm:$0xff]
    %v490 = vld [vmem:[%s1 + $0xd50] sm:$0xff]
    %v491 = vld [vmem:[%s1 + $0xd58] sm:$0xff]
    %v492 = vld [vmem:[%s1 + $0xd60] sm:$0xff]
    %v493 = vld [vmem:[%s1 + $0xd68] sm:$0xff]
    %v494 = vld [vmem:[%s1 + $0xd70] sm:$0xff]
    %v495 = vld [vmem:[%s1 + $0xd78] sm:$0xff]
    %v496 = vld [vmem:[%s1 + $0xd80] sm:$0xff]
    %v497 = vld [vmem:[%s1 + $0xd88] sm:$0xff]
    %v498 = vld [vmem:[%s1 + $0xd90] sm:$0xff]
    %v499 = vld [vmem:[%s1 + $0xd98] sm:$0xff]
    %v500 = vld [vmem:[%s1 + $0xda0] sm:$0xff]
    %v501 = vld [vmem:[%s1 + $0xda8] sm:$0xff]
    %v502 = vld [vmem:[%s1 + $0xdb0] sm:$0xff]
    %v503 = vld [vmem:[%s1 + $0xdb8] sm:$0xff]
    %v504 = vld [vmem:[%s1 + $0xdc0] sm:$0xff]
    %v505 = vld [vmem:[%s1 + $0xdc8] sm:$0xff]
    %v506 = vld [vmem:[%s1 + $0xdd0] sm:$0xff]
    %v507 = vld [vmem:[%s1 + $0xdd8] sm:$0xff]
    %v508 = vld [vmem:[%s1 + $0xde0] sm:$0xff]
    %v509 = vld [vmem:[%s1 + $0xde8] sm:$0xff]
    %v510 = vld [vmem:[%s1 + $0xdf0] sm:$0xff]
    %v511 = vld [vmem:[%s1 + $0xdf8] sm:$0xff]
    %v512 = vld [vmem:[%s1 + $0xe00] sm:$0xff]
    %v513 = vld [vmem:[%s1 + $0xe08] sm:$0xff]
    %v514 = vld [vmem:[%s1 + $0xe10] sm:$0xff]
    %v515 = vld [vmem:[%s1 + $0xe18] sm:$0xff]
    %v516 = vld [vmem:[%s1 + $0xe20] sm:$0xff]
    %v517 = vld [vmem:[%s1 + $0xe28] sm:$0xff]
    %v518 = vld [vmem:[%s1 + $0xe30] sm:$0xff]
    %v519 = vld [vmem:[%s1 + $0xe38] sm:$0xff]
    %v520 = vld [vmem:[%s1 + $0xe40] sm:$0xff]
    %v521 = vld [vmem:[%s1 + $0xe48] sm:$0xff]
    %v522 = vld [vmem:[%s1 + $0xe50] sm:$0xff]
    %v523 = vld [vmem:[%s1 + $0xe58] sm:$0xff]
    %v524 = vld [vmem:[%s1 + $0xe60] sm:$0xff]
    %v525 = vld [vmem:[%s1 + $0xe68] sm:$0xff]
    %v526 = vld [vmem:[%s1 + $0xe70] sm:$0xff]
    %v527 = vld [vmem:[%s1 + $0xe78] sm:$0xff]
    %v528 = vld [vmem:[%s1 + $0xe80] sm:$0xff]
    %v529 = vld [vmem:[%s1 + $0xe88] sm:$0xff]
    %v530 = vld [vmem:[%s1 + $0xe90] sm:$0xff]
    %v531 = vld [vmem:[%s1 + $0xe98] sm:$0xff]
    %v532 = vld [vmem:[%s1 + $0xea0] sm:$0xff]
    %v533 = vld [vmem:[%s1 + $0xea8] sm:$0xff]
    %v534 = vld [vmem:[%s1 + $0xeb0] sm:$0xff]
    %v535 = vld [vmem:[%s1 + $0xeb8] sm:$0xff]
    %v536 = vld [vmem:[%s1 + $0xec0] sm:$0xff]
    %v537 = vld [vmem:[%s1 + $0xec8] sm:$0xff]
    %v538 = vld [vmem:[%s1 + $0xed0] sm:$0xff]
    %v539 = vld [vmem:[%s1 + $0xed8] sm:$0xff]
    %v540 = vld [vmem:[%s1 + $0xee0] sm:$0xff]
    %v541 = vld [vmem:[%s1 + $0xee8] sm:$0xff]
    %v542 = vld [vmem:[%s1 + $0xef0] sm:$0xff]
    %v543 = vld [vmem:[%s1 + $0xef8] sm:$0xff]
    %v544 = vld [vmem:[%s1 + $0xf00] sm:$0xff]
    %v545 = vld [vmem:[%s1 + $0xf08] sm:$0xff]
    %v546 = vld [vmem:[%s1 + $0xf10] sm:$0xff]
    %v547 = vld [vmem:[%s1 + $0xf18] sm:$0xff]
    %v548 = vld [vmem:[%s1 + $0xf20] sm:$0xff]
    %v549 = vld [vmem:[%s1 + $0xf28] sm:$0xff]
    %v550 = vld [vmem:[%s1 + $0xf30] sm:$0xff]
    %v551 = vld [vmem:[%s1 + $0xf38] sm:$0xff]
    %v552 = vld [vmem:[%s1 + $0xf40] sm:$0xff]
    %v553 = vld [vmem:[%s1 + $0xf48] sm:$0xff]
    %v554 = vld [vmem:[%s1 + $0xf50] sm:$0xff]
    %v555 = vld [vmem:[%s1 + $0xf58] sm:$0xff]
    %v556 = vld [vmem:[%s1 + $0xf60] sm:$0xff]
    %v557 = vld [vmem:[%s1 + $0xf68] sm:$0xff]
    %v558 = vld [vmem:[%s1 + $0xf70] sm:$0xff]
    %v559 = vld [vmem:[%s1 + $0xf78] sm:$0xff]
    %v560 = vld [vmem:[%s1 + $0xf80] sm:$0xff]
    %v561 = vld [vmem:[%s1 + $0xf88] sm:$0xff]
    %v562 = vld [vmem:[%s1 + $0xf90] sm:$0xff]
    %v563 = vld [vmem:[%s1 + $0xf98] sm:$0xff]
    %v564 = vld [vmem:[%s1 + $0xfa0] sm:$0xff]
    %v565 = vld [vmem:[%s1 + $0xfa8] sm:$0xff]
    %v566 = vld [vmem:[%s1 + $0xfb0] sm:$0xff]
    %v567 = vld [vmem:[%s1 + $0xfb8] sm:$0xff]
    %v568 = vld [vmem:[%s1 + $0xfc0] sm:$0xff]
    %v569 = vld [vmem:[%s1 + $0xfc8] sm:$0xff]
    %v570 = vld [vmem:[%s1 + $0xfd0] sm:$0xff]
    %v571 = vld [vmem:[%s1 + $0xfd8] sm:$0xff]
    %v572 = vld [vmem:[%s1 + $0xfe0] sm:$0xff]
    %v573 = vld [vmem:[%s1 + $0xfe8] sm:$0xff]
    %v574 = vld [vmem:[%s1 + $0xff0] sm:$0xff]
    %v575 = vld [vmem:[%s1 + $0xff8] sm:$0xff]
    %v576 = vld [vmem:[%s1 + $0x1000] sm:$0xff]
    %v577 = vld [vmem:[%s1 + $0x1008] sm:$0xff]
    %v578 = vld [vmem:[%s1 + $0x1010] sm:$0xff]
    %v579 = vld [vmem:[%s1 + $0x1018] sm:$0xff]
    %v580 = vld [vmem:[%s1 + $0x1020] sm:$0xff]
    %v581 = vld [vmem:[%s1 + $0x1028] sm:$0xff]
    %v582 = vld [vmem:[%s1 + $0x1030] sm:$0xff]
    %v583 = vld [vmem:[%s1 + $0x1038] sm:$0xff]
    %v584 = vld [vmem:[%s1 + $0x1040] sm:$0xff]
    %v585 = vld [vmem:[%s1 + $0x1048] sm:$0xff]
    %v586 = vld [vmem:[%s1 + $0x1050] sm:$0xff]
    %v587 = vld [vmem:[%s1 + $0x1058] sm:$0xff]
    %v588 = vld [vmem:[%s1 + $0x1060] sm:$0xff]
    %v589 = vld [vmem:[%s1 + $0x1068] sm:$0xff]
    %v590 = vld [vmem:[%s1 + $0x1070] sm:$0xff]
    %v591 = vld [vmem:[%s1 + $0x1078] sm:$0xff]
    %v592 = vld [vmem:[%s1 + $0x1080] sm:$0xff]
    %v593 = vld [vmem:[%s1 + $0x1088] sm:$0xff]
    %v594 = vld [vmem:[%s1 + $0x1090] sm:$0xff]
    %v595 = vld [vmem:[%s1 + $0x1098] sm:$0xff]
    %v596 = vld [vmem:[%s1 + $0x10a0] sm:$0xff]
    %v597 = vld [vmem:[%s1 + $0x10a8] sm:$0xff]
    %v598 = vld [vmem:[%s1 + $0x10b0] sm:$0xff]
    %v599 = vld [vmem:[%s1 + $0x10b8] sm:$0xff]
    %v600 = vld [vmem:[%s1 + $0x10c0] sm:$0xff]
    %v601 = vld [vmem:[%s1 + $0x10c8] sm:$0xff]
    %v602 = vld [vmem:[%s1 + $0x10d0] sm:$0xff]
    %v603 = vld [vmem:[%s1 + $0x10d8] sm:$0xff]
    %v604 = vld [vmem:[%s1 + $0x10e0] sm:$0xff]
    %v605 = vld [vmem:[%s1 + $0x10e8] sm:$0xff]
    %v606 = vld [vmem:[%s1 + $0x10f0] sm:$0xff]
    %v607 = vld [vmem:[%s1 + $0x10f8] sm:$0xff]
    %v608 = vld [vmem:[%s1 + $0x1100] sm:$0xff]
    %v609 = vld [vmem:[%s1 + $0x1108] sm:$0xff]
    %v610 = vld [vmem:[%s1 + $0x1110] sm:$0xff]
    %v611 = vld [vmem:[%s1 + $0x1118] sm:$0xff]
    %v612 = vld [vmem:[%s1 + $0x1120] sm:$0xff]
    %v613 = vld [vmem:[%s1 + $0x1128] sm:$0xff]
    %v614 = vld [vmem:[%s1 + $0x1130] sm:$0xff]
    %v615 = vld [vmem:[%s1 + $0x1138] sm:$0xff]
    %v616 = vld [vmem:[%s1 + $0x1140] sm:$0xff]
    %v617 = vld [vmem:[%s1 + $0x1148] sm:$0xff]
    %v618 = vld [vmem:[%s1 + $0x1150] sm:$0xff]
    %v619 = vld [vmem:[%s1 + $0x1158] sm:$0xff]
    %v620 = vld [vmem:[%s1 + $0x1160] sm:$0xff]
    %v621 = vld [vmem:[%s1 + $0x1168] sm:$0xff]
    %v622 = vld [vmem:[%s1 + $0x1170] sm:$0xff]
    %v623 = vld [vmem:[%s1 + $0x1178] sm:$0xff]
    %v624 = vld [vmem:[%s1 + $0x1180] sm:$0xff]
    %v625 = vld [vmem:[%s1 + $0x1188] sm:$0xff]
    %v626 = vld [vmem:[%s1 + $0x1190] sm:$0xff]
    %v627 = vld [vmem:[%s1 + $0x1198] sm:$0xff]
    %v628 = vld [vmem:[%s1 + $0x11a0] sm:$0xff]
    %v629 = vld [vmem:[%s1 + $0x11a8] sm:$0xff]
    %v630 = vld [vmem:[%s1 + $0x11b0] sm:$0xff]
    %v631 = vld [vmem:[%s1 + $0x11b8] sm:$0xff]
    %v632 = vld [vmem:[%s1 + $0x11c0] sm:$0xff]
    %v633 = vld [vmem:[%s1 + $0x11c8] sm:$0xff]
    %v634 = vld [vmem:[%s1 + $0x11d0] sm:$0xff]
    %v635 = vld [vmem:[%s1 + $0x11d8] sm:$0xff]
    %v636 = vld [vmem:[%s1 + $0x11e0] sm:$0xff]
    %v637 = vld [vmem:[%s1 + $0x11e8] sm:$0xff]
    %v638 = vld [vmem:[%s1 + $0x11f0] sm:$0xff]
    %v639 = vld [vmem:[%s1 + $0x11f8] sm:$0xff]
    %v640 = vld [vmem:[%s1 + $0x1200] sm:$0xff]
    %v641 = vld [vmem:[%s1 + $0x1208] sm:$0xff]
    %v642 = vld [vmem:[%s1 + $0x1210] sm:$0xff]
    %v643 = vld [vmem:[%s1 + $0x1218] sm:$0xff]
    %v644 = vld [vmem:[%s1 + $0x1220] sm:$0xff]
    %v645 = vld [vmem:[%s1 + $0x1228] sm:$0xff]
    %v646 = vld [vmem:[%s1 + $0x1230] sm:$0xff]
    %v647 = vld [vmem:[%s1 + $0x1238] sm:$0xff]
    %v648 = vld [vmem:[%s1 + $0x1240] sm:$0xff]
    %v649 = vld [vmem:[%s1 + $0x1248] sm:$0xff]
    %v650 = vld [vmem:[%s1 + $0x1250] sm:$0xff]
    %v651 = vld [vmem:[%s1 + $0x1258] sm:$0xff]
    %v652 = vld [vmem:[%s1 + $0x1260] sm:$0xff]
    %v653 = vld [vmem:[%s1 + $0x1268] sm:$0xff]
    %v654 = vld [vmem:[%s1 + $0x1270] sm:$0xff]
    %v655 = vld [vmem:[%s1 + $0x1278] sm:$0xff]
    %v656 = vld [vmem:[%s1 + $0x1280] sm:$0xff]
    %v657 = vld [vmem:[%s1 + $0x1288] sm:$0xff]
    %v658 = vld [vmem:[%s1 + $0x1290] sm:$0xff]
    %v659 = vld [vmem:[%s1 + $0x1298] sm:$0xff]
    %v660 = vld [vmem:[%s1 + $0x12a0] sm:$0xff]
    %v661 = vld [vmem:[%s1 + $0x12a8] sm:$0xff]
    %v662 = vld [vmem:[%s1 + $0x12b0] sm:$0xff]
    %v663 = vld [vmem:[%s1 + $0x12b8] sm:$0xff]
    %v664 = vld [vmem:[%s1 + $0x12c0] sm:$0xff]
    %v665 = vld [vmem:[%s1 + $0x12c8] sm:$0xff]
    %v666 = vld [vmem:[%s1 + $0x12d0] sm:$0xff]
    %v667 = vld [vmem:[%s1 + $0x12d8] sm:$0xff]
    %v668 = vld [vmem:[%s1 + $0x12e0] sm:$0xff]
    %v669 = vld [vmem:[%s1 + $0x12e8] sm:$0xff]
    %v670 = vld [vmem:[%s1 + $0x12f0] sm:$0xff]
    %v671 = vld [vmem:[%s1 + $0x12f8] sm:$0xff]
    %v672 = vld [vmem:[%s1 + $0x1300] sm:$0xff]
    %v673 = vld [vmem:[%s1 + $0x1308] sm:$0xff]
    %v674 = vld [vmem:[%s1 + $0x1310] sm:$0xff]
    %v675 = vld [vmem:[%s1 + $0x1318] sm:$0xff]
    %v676 = vld [vmem:[%s1 + $0x1320] sm:$0xff]
    %v677 = vld [vmem:[%s1 + $0x1328] sm:$0xff]
    %v678 = vld [vmem:[%s1 + $0x1330] sm:$0xff]
    %v679 = vld [vmem:[%s1 + $0x1338] sm:$0xff]
    %v680 = vld [vmem:[%s1 + $0x1340] sm:$0xff]
    %v681 = vld [vmem:[%s1 + $0x1348] sm:$0xff]
    %v682 = vld [vmem:[%s1 + $0x1350] sm:$0xff]
    %v683 = vld [vmem:[%s1 + $0x1358] sm:$0xff]
    %v684 = vld [vmem:[%s1 + $0x1360] sm:$0xff]
    %v685 = vld [vmem:[%s1 + $0x1368] sm:$0xff]
    %v686 = vld [vmem:[%s1 + $0x1370] sm:$0xff]
    %v687 = vld [vmem:[%s1 + $0x1378] sm:$0xff]
    %v688 = vld [vmem:[%s1 + $0x1380] sm:$0xff]
    %v689 = vld [vmem:[%s1 + $0x1388] sm:$0xff]
    %v690 = vld [vmem:[%s1 + $0x1390] sm:$0xff]
    %v691 = vld [vmem:[%s1 + $0x1398] sm:$0xff]
    %v692 = vld [vmem:[%s1 + $0x13a0] sm:$0xff]
    %v693 = vld [vmem:[%s1 + $0x13a8] sm:$0xff]
    %v694 = vld [vmem:[%s1 + $0x13b0] sm:$0xff]
    %v695 = vld [vmem:[%s1 + $0x13b8] sm:$0xff]
    %v696 = vld [vmem:[%s1 + $0x13c0] sm:$0xff]
    %v697 = vld [vmem:[%s1 + $0x13c8] sm:$0xff]
    %v698 = vld [vmem:[%s1 + $0x13d0] sm:$0xff]
    %v699 = vld [vmem:[%s1 + $0x13d8] sm:$0xff]
    %v700 = vld [vmem:[%s1 + $0x13e0] sm:$0xff]
    %v701 = vld [vmem:[%s1 + $0x13e8] sm:$0xff]
    %v702 = vld [vmem:[%s1 + $0x13f0] sm:$0xff]
    %v703 = vld [vmem:[%s1 + $0x13f8] sm:$0xff]
    %v704 = vld [vmem:[%s1 + $0x1400] sm:$0xff]
    %v705 = vld [vmem:[%s1 + $0x1408] sm:$0xff]
    %v706 = vld [vmem:[%s1 + $0x1410] sm:$0xff]
    %v707 = vld [vmem:[%s1 + $0x1418] sm:$0xff]
    %v708 = vld [vmem:[%s1 + $0x1420] sm:$0xff]
    %v709 = vld [vmem:[%s1 + $0x1428] sm:$0xff]
    %v710 = vld [vmem:[%s1 + $0x1430] sm:$0xff]
    %v711 = vld [vmem:[%s1 + $0x1438] sm:$0xff]
    %v712 = vld [vmem:[%s1 + $0x1440] sm:$0xff]
    %v713 = vld [vmem:[%s1 + $0x1448] sm:$0xff]
    %v714 = vld [vmem:[%s1 + $0x1450] sm:$0xff]
    %v715 = vld [vmem:[%s1 + $0x1458] sm:$0xff]
    %v716 = vld [vmem:[%s1 + $0x1460] sm:$0xff]
    %v717 = vld [vmem:[%s1 + $0x1468] sm:$0xff]
    %v718 = vld [vmem:[%s1 + $0x1470] sm:$0xff]
    %v719 = vld [vmem:[%s1 + $0x1478] sm:$0xff]
    %v720 = vld [vmem:[%s1 + $0x1480] sm:$0xff]
    %v721 = vld [vmem:[%s1 + $0x1488] sm:$0xff]
    %v722 = vld [vmem:[%s1 + $0x1490] sm:$0xff]
    %v723 = vld [vmem:[%s1 + $0x1498] sm:$0xff]
    %v724 = vld [vmem:[%s1 + $0x14a0] sm:$0xff]
    %v725 = vld [vmem:[%s1 + $0x14a8] sm:$0xff]
    %v726 = vld [vmem:[%s1 + $0x14b0] sm:$0xff]
    %v727 = vld [vmem:[%s1 + $0x14b8] sm:$0xff]
    %v728 = vld [vmem:[%s1 + $0x14c0] sm:$0xff]
    %v729 = vld [vmem:[%s1 + $0x14c8] sm:$0xff]
    %v730 = vld [vmem:[%s1 + $0x14d0] sm:$0xff]
    %v731 = vld [vmem:[%s1 + $0x14d8] sm:$0xff]
    %v732 = vld [vmem:[%s1 + $0x14e0] sm:$0xff]
    %v733 = vld [vmem:[%s1 + $0x14e8] sm:$0xff]
    %v734 = vld [vmem:[%s1 + $0x14f0] sm:$0xff]
    %v735 = vld [vmem:[%s1 + $0x14f8] sm:$0xff]
    %v736 = vld [vmem:[%s1 + $0x1500] sm:$0xff]
    %v737 = vld [vmem:[%s1 + $0x1508] sm:$0xff]
    %v738 = vld [vmem:[%s1 + $0x1510] sm:$0xff]
    %v739 = vld [vmem:[%s1 + $0x1518] sm:$0xff]
    %v740 = vld [vmem:[%s1 + $0x1520] sm:$0xff]
    %v741 = vld [vmem:[%s1 + $0x1528] sm:$0xff]
    %v742 = vld [vmem:[%s1 + $0x1530] sm:$0xff]
    %v743 = vld [vmem:[%s1 + $0x1538] sm:$0xff]
    %v744 = vld [vmem:[%s1 + $0x1540] sm:$0xff]
    %v745 = vld [vmem:[%s1 + $0x1548] sm:$0xff]
    %v746 = vld [vmem:[%s1 + $0x1550] sm:$0xff]
    %v747 = vld [vmem:[%s1 + $0x1558] sm:$0xff]
    %v748 = vld [vmem:[%s1 + $0x1560] sm:$0xff]
    %v749 = vld [vmem:[%s1 + $0x1568] sm:$0xff]
    %v750 = vld [vmem:[%s1 + $0x1570] sm:$0xff]
    %v751 = vld [vmem:[%s1 + $0x1578] sm:$0xff]
    %v752 = vld [vmem:[%s1 + $0x1580] sm:$0xff]
    %v753 = vld [vmem:[%s1 + $0x1588] sm:$0xff]
    %v754 = vld [vmem:[%s1 + $0x1590] sm:$0xff]
    %v755 = vld [vmem:[%s1 + $0x1598] sm:$0xff]
    %v756 = vld [vmem:[%s1 + $0x15a0] sm:$0xff]
    %v757 = vld [vmem:[%s1 + $0x15a8] sm:$0xff]
    %v758 = vld [vmem:[%s1 + $0x15b0] sm:$0xff]
    %v759 = vld [vmem:[%s1 + $0x15b8] sm:$0xff]
    %v760 = vld [vmem:[%s1 + $0x15c0] sm:$0xff]
    %v761 = vld [vmem:[%s1 + $0x15c8] sm:$0xff]
    %v762 = vld [vmem:[%s1 + $0x15d0] sm:$0xff]
    %v763 = vld [vmem:[%s1 + $0x15d8] sm:$0xff]
    %v764 = vld [vmem:[%s1 + $0x15e0] sm:$0xff]
    %v765 = vld [vmem:[%s1 + $0x15e8] sm:$0xff]
    %v766 = vld [vmem:[%s1 + $0x15f0] sm:$0xff]
    %v767 = vld [vmem:[%s1 + $0x15f8] sm:$0xff]
    %v768 = vld [vmem:[%s1 + $0x1600] sm:$0xff]
    %v769 = vld [vmem:[%s1 + $0x1608] sm:$0xff]
    %v770 = vld [vmem:[%s1 + $0x1610] sm:$0xff]
    %v771 = vld [vmem:[%s1 + $0x1618] sm:$0xff]
    %v772 = vld [vmem:[%s1 + $0x1620] sm:$0xff]
    %v773 = vld [vmem:[%s1 + $0x1628] sm:$0xff]
    %v774 = vld [vmem:[%s1 + $0x1630] sm:$0xff]
    %v775 = vld [vmem:[%s1 + $0x1638] sm:$0xff]
    %v776 = vld [vmem:[%s1 + $0x1640] sm:$0xff]
    %v777 = vld [vmem:[%s1 + $0x1648] sm:$0xff]
    %v778 = vld [vmem:[%s1 + $0x1650] sm:$0xff]
    %v779 = vld [vmem:[%s1 + $0x1658] sm:$0xff]
    %v780 = vld [vmem:[%s1 + $0x1660] sm:$0xff]
    %v781 = vld [vmem:[%s1 + $0x1668] sm:$0xff]
    %v782 = vld [vmem:[%s1 + $0x1670] sm:$0xff]
    %v783 = vld [vmem:[%s1 + $0x1678] sm:$0xff]
    %v784 = vld [vmem:[%s1 + $0x1680] sm:$0xff]
    %v785 = vld [vmem:[%s1 + $0x1688] sm:$0xff]
    %v786 = vld [vmem:[%s1 + $0x1690] sm:$0xff]
    %v787 = vld [vmem:[%s1 + $0x1698] sm:$0xff]
    %v788 = vld [vmem:[%s1 + $0x16a0] sm:$0xff]
    %v789 = vld [vmem:[%s1 + $0x16a8] sm:$0xff]
    %v790 = vld [vmem:[%s1 + $0x16b0] sm:$0xff]
    %v791 = vld [vmem:[%s1 + $0x16b8] sm:$0xff]
    %v792 = vld [vmem:[%s1 + $0x16c0] sm:$0xff]
    %v793 = vld [vmem:[%s1 + $0x16c8] sm:$0xff]
    %v794 = vld [vmem:[%s1 + $0x16d0] sm:$0xff]
    %v795 = vld [vmem:[%s1 + $0x16d8] sm:$0xff]
    %v796 = vld [vmem:[%s1 + $0x16e0] sm:$0xff]
    %v797 = vld [vmem:[%s1 + $0x16e8] sm:$0xff]
    %v798 = vld [vmem:[%s1 + $0x16f0] sm:$0xff]
    %v799 = vld [vmem:[%s1 + $0x16f8] sm:$0xff]
    %v800 = vld [vmem:[%s1 + $0x1700] sm:$0xff]
    %v801 = vld [vmem:[%s1 + $0x1708] sm:$0xff]
    %v802 = vld [vmem:[%s1 + $0x1710] sm:$0xff]
    %v803 = vld [vmem:[%s1 + $0x1718] sm:$0xff]
    %v804 = vld [vmem:[%s1 + $0x1720] sm:$0xff]
    %v805 = vld [vmem:[%s1 + $0x1728] sm:$0xff]
    %v806 = vld [vmem:[%s1 + $0x1730] sm:$0xff]
    %v807 = vld [vmem:[%s1 + $0x1738] sm:$0xff]
    %v808 = vld [vmem:[%s1 + $0x1740] sm:$0xff]
    %v809 = vld [vmem:[%s1 + $0x1748] sm:$0xff]
    %v810 = vld [vmem:[%s1 + $0x1750] sm:$0xff]
    %v811 = vld [vmem:[%s1 + $0x1758] sm:$0xff]
    %v812 = vld [vmem:[%s1 + $0x1760] sm:$0xff]
    %v813 = vld [vmem:[%s1 + $0x1768] sm:$0xff]
    %v814 = vld [vmem:[%s1 + $0x1770] sm:$0xff]
    %v815 = vld [vmem:[%s1 + $0x1778] sm:$0xff]
    %v816 = vld [vmem:[%s1 + $0x1780] sm:$0xff]
    %v817 = vld [vmem:[%s1 + $0x1788] sm:$0xff]
    %v818 = vld [vmem:[%s1 + $0x1790] sm:$0xff]
    %v819 = vld [vmem:[%s1 + $0x1798] sm:$0xff]
    %v820 = vld [vmem:[%s1 + $0x17a0] sm:$0xff]
    %v821 = vld [vmem:[%s1 + $0x17a8] sm:$0xff]
    %v822 = vld [vmem:[%s1 + $0x17b0] sm:$0xff]
    %v823 = vld [vmem:[%s1 + $0x17b8] sm:$0xff]
    %v824 = vld [vmem:[%s1 + $0x17c0] sm:$0xff]
    %v825 = vld [vmem:[%s1 + $0x17c8] sm:$0xff]
    %v826 = vld [vmem:[%s1 + $0x17d0] sm:$0xff]
    %v827 = vld [vmem:[%s1 + $0x17d8] sm:$0xff]
    %v828 = vld [vmem:[%s1 + $0x17e0] sm:$0xff]
    %v829 = vld [vmem:[%s1 + $0x17e8] sm:$0xff]
    %v830 = vld [vmem:[%s1 + $0x17f0] sm:$0xff]
    %v831 = vld [vmem:[%s1 + $0x17f8] sm:$0xff]
    %v832 = vld [vmem:[%s1 + $0x1800] sm:$0xff]
    %v833 = vld [vmem:[%s1 + $0x1808] sm:$0xff]
    %v834 = vld [vmem:[%s1 + $0x1810] sm:$0xff]
    %v835 = vld [vmem:[%s1 + $0x1818] sm:$0xff]
    %v836 = vld [vmem:[%s1 + $0x1820] sm:$0xff]
    %v837 = vld [vmem:[%s1 + $0x1828] sm:$0xff]
    %v838 = vld [vmem:[%s1 + $0x1830] sm:$0xff]
    %v839 = vld [vmem:[%s1 + $0x1838] sm:$0xff]
    %v840 = vld [vmem:[%s1 + $0x1840] sm:$0xff]
    %v841 = vld [vmem:[%s1 + $0x1848] sm:$0xff]
    %v842 = vld [vmem:[%s1 + $0x1850] sm:$0xff]
    %v843 = vld [vmem:[%s1 + $0x1858] sm:$0xff]
    %v844 = vld [vmem:[%s1 + $0x1860] sm:$0xff]
    %v845 = vld [vmem:[%s1 + $0x1868] sm:$0xff]
    %v846 = vld [vmem:[%s1 + $0x1870] sm:$0xff]
    %v847 = vld [vmem:[%s1 + $0x1878] sm:$0xff]
    %v848 = vld [vmem:[%s1 + $0x1880] sm:$0xff]
    %v849 = vld [vmem:[%s1 + $0x1888] sm:$0xff]
    %v850 = vld [vmem:[%s1 + $0x1890] sm:$0xff]
    %v851 = vld [vmem:[%s1 + $0x1898] sm:$0xff]
    %v852 = vld [vmem:[%s1 + $0x18a0] sm:$0xff]
    %v853 = vld [vmem:[%s1 + $0x18a8] sm:$0xff]
    %v854 = vld [vmem:[%s1 + $0x18b0] sm:$0xff]
    %v855 = vld [vmem:[%s1 + $0x18b8] sm:$0xff]
    %v856 = vld [vmem:[%s1 + $0x18c0] sm:$0xff]
    %v857 = vld [vmem:[%s1 + $0x18c8] sm:$0xff]
    %v858 = vld [vmem:[%s1 + $0x18d0] sm:$0xff]
    %v859 = vld [vmem:[%s1 + $0x18d8] sm:$0xff]
    %v860 = vld [vmem:[%s1 + $0x18e0] sm:$0xff]
    %v861 = vld [vmem:[%s1 + $0x18e8] sm:$0xff]
    %v862 = vld [vmem:[%s1 + $0x18f0] sm:$0xff]
    %v863 = vld [vmem:[%s1 + $0x18f8] sm:$0xff]
    %v864 = vld [vmem:[%s1 + $0x1900] sm:$0xff]
    %v865 = vld [vmem:[%s1 + $0x1908] sm:$0xff]
    %v866 = vld [vmem:[%s1 + $0x1910] sm:$0xff]
    %v867 = vld [vmem:[%s1 + $0x1918] sm:$0xff]
    %v868 = vld [vmem:[%s1 + $0x1920] sm:$0xff]
    %v869 = vld [vmem:[%s1 + $0x1928] sm:$0xff]
    %v870 = vld [vmem:[%s1 + $0x1930] sm:$0xff]
    %v871 = vld [vmem:[%s1 + $0x1938] sm:$0xff]
    %v872 = vld [vmem:[%s1 + $0x1940] sm:$0xff]
    %v873 = vld [vmem:[%s1 + $0x1948] sm:$0xff]
    %v874 = vld [vmem:[%s1 + $0x1950] sm:$0xff]
    %v875 = vld [vmem:[%s1 + $0x1958] sm:$0xff]
    %v876 = vld [vmem:[%s1 + $0x1960] sm:$0xff]
    %v877 = vld [vmem:[%s1 + $0x1968] sm:$0xff]
    %v878 = vld [vmem:[%s1 + $0x1970] sm:$0xff]
    %v879 = vld [vmem:[%s1 + $0x1978] sm:$0xff]
    %v880 = vld [vmem:[%s1 + $0x1980] sm:$0xff]
    %v881 = vld [vmem:[%s1 + $0x1988] sm:$0xff]
    %v882 = vld [vmem:[%s1 + $0x1990] sm:$0xff]
    %v883 = vld [vmem:[%s1 + $0x1998] sm:$0xff]
    %v884 = vld [vmem:[%s1 + $0x19a0] sm:$0xff]
    %v885 = vld [vmem:[%s1 + $0x19a8] sm:$0xff]
    %v886 = vld [vmem:[%s1 + $0x19b0] sm:$0xff]
    %v887 = vld [vmem:[%s1 + $0x19b8] sm:$0xff]
    %v888 = vld [vmem:[%s1 + $0x19c0] sm:$0xff]
    %v889 = vld [vmem:[%s1 + $0x19c8] sm:$0xff]
    %v890 = vld [vmem:[%s1 + $0x19d0] sm:$0xff]
    %v891 = vld [vmem:[%s1 + $0x19d8] sm:$0xff]
    %v892 = vld [vmem:[%s1 + $0x19e0] sm:$0xff]
    %v893 = vld [vmem:[%s1 + $0x19e8] sm:$0xff]
    %v894 = vld [vmem:[%s1 + $0x19f0] sm:$0xff]
    %v895 = vld [vmem:[%s1 + $0x19f8] sm:$0xff]
    %v896 = vld [vmem:[%s1 + $0x1a00] sm:$0xff]
    %v897 = vld [vmem:[%s1 + $0x1a08] sm:$0xff]
    %v898 = vld [vmem:[%s1 + $0x1a10] sm:$0xff]
    %v899 = vld [vmem:[%s1 + $0x1a18] sm:$0xff]
    %v900 = vld [vmem:[%s1 + $0x1a20] sm:$0xff]
    %v901 = vld [vmem:[%s1 + $0x1a28] sm:$0xff]
    %v902 = vld [vmem:[%s1 + $0x1a30] sm:$0xff]
    %v903 = vld [vmem:[%s1 + $0x1a38] sm:$0xff]
    %v904 = vld [vmem:[%s1 + $0x1a40] sm:$0xff]
    %v905 = vld [vmem:[%s1 + $0x1a48] sm:$0xff]
    %v906 = vld [vmem:[%s1 + $0x1a50] sm:$0xff]
    %v907 = vld [vmem:[%s1 + $0x1a58] sm:$0xff]
    %v908 = vld [vmem:[%s1 + $0x1a60] sm:$0xff]
    %v909 = vld [vmem:[%s1 + $0x1a68] sm:$0xff]
    %v910 = vld [vmem:[%s1 + $0x1a70] sm:$0xff]
    %v911 = vld [vmem:[%s1 + $0x1a78] sm:$0xff]
    %v912 = vld [vmem:[%s1 + $0x1a80] sm:$0xff]
    %v913 = vld [vmem:[%s1 + $0x1a88] sm:$0xff]
    %v914 = vld [vmem:[%s1 + $0x1a90] sm:$0xff]
    %v915 = vld [vmem:[%s1 + $0x1a98] sm:$0xff]
    %v916 = vld [vmem:[%s1 + $0x1aa0] sm:$0xff]
    %v917 = vld [vmem:[%s1 + $0x1aa8] sm:$0xff]
    %v918 = vld [vmem:[%s1 + $0x1ab0] sm:$0xff]
    %v919 = vld [vmem:[%s1 + $0x1ab8] sm:$0xff]
    %v920 = vld [vmem:[%s1 + $0x1ac0] sm:$0xff]
    %v921 = vld [vmem:[%s1 + $0x1ac8] sm:$0xff]
    %v922 = vld [vmem:[%s1 + $0x1ad0] sm:$0xff]
    %v923 = vld [vmem:[%s1 + $0x1ad8] sm:$0xff]
    %v924 = vld [vmem:[%s1 + $0x1ae0] sm:$0xff]
    %v925 = vld [vmem:[%s1 + $0x1ae8] sm:$0xff]
    %v926 = vld [vmem:[%s1 + $0x1af0] sm:$0xff]
    %v927 = vld [vmem:[%s1 + $0x1af8] sm:$0xff]
    %v928 = vld [vmem:[%s1 + $0x1b00] sm:$0xff]
    %v929 = vld [vmem:[%s1 + $0x1b08] sm:$0xff]
    %v930 = vld [vmem:[%s1 + $0x1b10] sm:$0xff]
    %v931 = vld [vmem:[%s1 + $0x1b18] sm:$0xff]
    %v932 = vld [vmem:[%s1 + $0x1b20] sm:$0xff]
    %v933 = vld [vmem:[%s1 + $0x1b28] sm:$0xff]
    %v934 = vld [vmem:[%s1 + $0x1b30] sm:$0xff]
    %v935 = vld [vmem:[%s1 + $0x1b38] sm:$0xff]
    %v936 = vld [vmem:[%s1 + $0x1b40] sm:$0xff]
    %v937 = vld [vmem:[%s1 + $0x1b48] sm:$0xff]
    %v938 = vld [vmem:[%s1 + $0x1b50] sm:$0xff]
    %v939 = vld [vmem:[%s1 + $0x1b58] sm:$0xff]
    %v940 = vld [vmem:[%s1 + $0x1b60] sm:$0xff]
    %v941 = vld [vmem:[%s1 + $0x1b68] sm:$0xff]
    %v942 = vld [vmem:[%s1 + $0x1b70] sm:$0xff]
    %v943 = vld [vmem:[%s1 + $0x1b78] sm:$0xff]
    %v944 = vld [vmem:[%s1 + $0x1b80] sm:$0xff]
    %v945 = vld [vmem:[%s1 + $0x1b88] sm:$0xff]
    %v946 = vld [vmem:[%s1 + $0x1b90] sm:$0xff]
    %v947 = vld [vmem:[%s1 + $0x1b98] sm:$0xff]
    %v948 = vld [vmem:[%s1 + $0x1ba0] sm:$0xff]
    %v949 = vld [vmem:[%s1 + $0x1ba8] sm:$0xff]
    %v950 = vld [vmem:[%s1 + $0x1bb0] sm:$0xff]
    %v951 = vld [vmem:[%s1 + $0x1bb8] sm:$0xff]
    %v952 = vld [vmem:[%s1 + $0x1bc0] sm:$0xff]
    %v953 = vld [vmem:[%s1 + $0x1bc8] sm:$0xff]
    %v954 = vld [vmem:[%s1 + $0x1bd0] sm:$0xff]
    %v955 = vld [vmem:[%s1 + $0x1bd8] sm:$0xff]
    %v956 = vld [vmem:[%s1 + $0x1be0] sm:$0xff]
    %v957 = vld [vmem:[%s1 + $0x1be8] sm:$0xff]
    %v958 = vld [vmem:[%s1 + $0x1bf0] sm:$0xff]
    %v959 = vld [vmem:[%s1 + $0x1bf8] sm:$0xff]
    %v960 = vld [vmem:[%s1 + $0x1c00] sm:$0xff]
    %v961 = vld [vmem:[%s1 + $0x1c08] sm:$0xff]
    %v962 = vld [vmem:[%s1 + $0x1c10] sm:$0xff]
    %v963 = vld [vmem:[%s1 + $0x1c18] sm:$0xff]
    %v964 = vld [vmem:[%s1 + $0x1c20] sm:$0xff]
    %v965 = vld [vmem:[%s1 + $0x1c28] sm:$0xff]
    %v966 = vld [vmem:[%s1 + $0x1c30] sm:$0xff]
    %v967 = vld [vmem:[%s1 + $0x1c38] sm:$0xff]
    %v968 = vld [vmem:[%s1 + $0x1c40] sm:$0xff]
    %v969 = vld [vmem:[%s1 + $0x1c48] sm:$0xff]
    %v970 = vld [vmem:[%s1 + $0x1c50] sm:$0xff]
    %v971 = vld [vmem:[%s1 + $0x1c58] sm:$0xff]
    %v972 = vld [vmem:[%s1 + $0x1c60] sm:$0xff]
    %v973 = vld [vmem:[%s1 + $0x1c68] sm:$0xff]
    %v974 = vld [vmem:[%s1 + $0x1c70] sm:$0xff]
    %v975 = vld [vmem:[%s1 + $0x1c78] sm:$0xff]
    %v976 = vld [vmem:[%s1 + $0x1c80] sm:$0xff]
    %v977 = vld [vmem:[%s1 + $0x1c88] sm:$0xff]
    %v978 = vld [vmem:[%s1 + $0x1c90] sm:$0xff]
    %v979 = vld [vmem:[%s1 + $0x1c98] sm:$0xff]
    %v980 = vld [vmem:[%s1 + $0x1ca0] sm:$0xff]
    %v981 = vld [vmem:[%s1 + $0x1ca8] sm:$0xff]
    %v982 = vld [vmem:[%s1 + $0x1cb0] sm:$0xff]
    %v983 = vld [vmem:[%s1 + $0x1cb8] sm:$0xff]
    %v984 = vld [vmem:[%s1 + $0x1cc0] sm:$0xff]
    %v985 = vld [vmem:[%s1 + $0x1cc8] sm:$0xff]
    %v986 = vld [vmem:[%s1 + $0x1cd0] sm:$0xff]
    %v987 = vld [vmem:[%s1 + $0x1cd8] sm:$0xff]
    %v988 = vld [vmem:[%s1 + $0x1ce0] sm:$0xff]
    %v989 = vld [vmem:[%s1 + $0x1ce8] sm:$0xff]
    %v990 = vld [vmem:[%s1 + $0x1cf0] sm:$0xff]
    %v991 = vld [vmem:[%s1 + $0x1cf8] sm:$0xff]
    %v992 = vld [vmem:[%s1 + $0x1d00] sm:$0xff]
    %v993 = vld [vmem:[%s1 + $0x1d08] sm:$0xff]
    %v994 = vld [vmem:[%s1 + $0x1d10] sm:$0xff]
    %v995 = vld [vmem:[%s1 + $0x1d18] sm:$0xff]
    %v996 = vld [vmem:[%s1 + $0x1d20] sm:$0xff]
    %v997 = vld [vmem:[%s1 + $0x1d28] sm:$0xff]
    %v998 = vld [vmem:[%s1 + $0x1d30] sm:$0xff]
    %v999 = vld [vmem:[%s1 + $0x1d38] sm:$0xff]
    %v1000 = vld [vmem:[%s1 + $0x1d40] sm:$0xff]
    %v1001 = vld [vmem:[%s1 + $0x1d48] sm:$0xff]
    %v1002 = vld [vmem:[%s1 + $0x1d50] sm:$0xff]
    %v1003 = vld [vmem:[%s1 + $0x1d58] sm:$0xff]
    %v1004 = vld [vmem:[%s1 + $0x1d60] sm:$0xff]
    %v1005 = vld [vmem:[%s1 + $0x1d68] sm:$0xff]
    %v1006 = vld [vmem:[%s1 + $0x1d70] sm:$0xff]
    %v1007 = vld [vmem:[%s1 + $0x1d78] sm:$0xff]
    %v1008 = vld [vmem:[%s1 + $0x1d80] sm:$0xff]
    %v1009 = vld [vmem:[%s1 + $0x1d88] sm:$0xff]
    %v1010 = vld [vmem:[%s1 + $0x1d90] sm:$0xff]
    %v1011 = vld [vmem:[%s1 + $0x1d98] sm:$0xff]
    %v1012 = vld [vmem:[%s1 + $0x1da0] sm:$0xff]
    %v1013 = vld [vmem:[%s1 + $0x1da8] sm:$0xff]
    %v1014 = vld [vmem:[%s1 + $0x1db0] sm:$0xff]
    %v1015 = vld [vmem:[%s1 + $0x1db8] sm:$0xff]
    %v1016 = vld [vmem:[%s1 + $0x1dc0] sm:$0xff]
    %v1017 = vld [vmem:[%s1 + $0x1dc8] sm:$0xff]
    %v1018 = vld [vmem:[%s1 + $0x1dd0] sm:$0xff]
    %v1019 = vld [vmem:[%s1 + $0x1dd8] sm:$0xff]
    %v1020 = vld [vmem:[%s1 + $0x1de0] sm:$0xff]
    %v1021 = vld [vmem:[%s1 + $0x1de8] sm:$0xff]
    %v1022 = vld [vmem:[%s1 + $0x1df0] sm:$0xff]
    %v1023 = vld [vmem:[%s1 + $0x1df8] sm:$0xff]
    %v1024 = vld [vmem:[%s1 + $0x1e00] sm:$0xff]
    %v1025 = vld [vmem:[%s1 + $0x1e08] sm:$0xff]
    %v1026 = vld [vmem:[%s1 + $0x1e10] sm:$0xff]
    %v1027 = vld [vmem:[%s1 + $0x1e18] sm:$0xff]
    %v1028 = vld [vmem:[%s1 + $0x1e20] sm:$0xff]
    %v1029 = vld [vmem:[%s1 + $0x1e28] sm:$0xff]
    %v1030 = vld [vmem:[%s1 + $0x1e30] sm:$0xff]
    %v1031 = vld [vmem:[%s1 + $0x1e38] sm:$0xff]
    %v1032 = vld [vmem:[%s1 + $0x1e40] sm:$0xff]
    %v1033 = vld [vmem:[%s1 + $0x1e48] sm:$0xff]
    %v1034 = vld [vmem:[%s1 + $0x1e50] sm:$0xff]
    %v1035 = vld [vmem:[%s1 + $0x1e58] sm:$0xff]
    %v1036 = vld [vmem:[%s1 + $0x1e60] sm:$0xff]
    %v1037 = vld [vmem:[%s1 + $0x1e68] sm:$0xff]
    %v1038 = vld [vmem:[%s1 + $0x1e70] sm:$0xff]
    %v1039 = vld [vmem:[%s1 + $0x1e78] sm:$0xff]
    %v1040 = vld [vmem:[%s1 + $0x1e80] sm:$0xff]
    %v1041 = vld [vmem:[%s1 + $0x1e88] sm:$0xff]
    %v1042 = vld [vmem:[%s1 + $0x1e90] sm:$0xff]
    %v1043 = vld [vmem:[%s1 + $0x1e98] sm:$0xff]
    %v1044 = vld [vmem:[%s1 + $0x1ea0] sm:$0xff]
    %v1045 = vld [vmem:[%s1 + $0x1ea8] sm:$0xff]
    %v1046 = vld [vmem:[%s1 + $0x1eb0] sm:$0xff]
    %v1047 = vld [vmem:[%s1 + $0x1eb8] sm:$0xff]
    %v1048 = vld [vmem:[%s1 + $0x1ec0] sm:$0xff]
    %v1049 = vld [vmem:[%s1 + $0x1ec8] sm:$0xff]
    %v1050 = vld [vmem:[%s1 + $0x1ed0] sm:$0xff]
    %v1051 = vld [vmem:[%s1 + $0x1ed8] sm:$0xff]
    %v1052 = vld [vmem:[%s1 + $0x1ee0] sm:$0xff]
    %v1053 = vld [vmem:[%s1 + $0x1ee8] sm:$0xff]
    %v1054 = vld [vmem:[%s1 + $0x1ef0] sm:$0xff]
    %v1055 = vld [vmem:[%s1 + $0x1ef8] sm:$0xff]
    %v1056 = vld [vmem:[%s1 + $0x1f00] sm:$0xff]
    %v1057 = vld [vmem:[%s1 + $0x1f08] sm:$0xff]
    %v1058 = vld [vmem:[%s1 + $0x1f10] sm:$0xff]
    %v1059 = vld [vmem:[%s1 + $0x1f18] sm:$0xff]
    %v1060 = vld [vmem:[%s1 + $0x1f20] sm:$0xff]
    %v1061 = vld [vmem:[%s1 + $0x1f28] sm:$0xff]
    %v1062 = vld [vmem:[%s1 + $0x1f30] sm:$0xff]
    %v1063 = vld [vmem:[%s1 + $0x1f38] sm:$0xff]
    %v1064 = vld [vmem:[%s1 + $0x1f40] sm:$0xff]
    %v1065 = vld [vmem:[%s1 + $0x1f48] sm:$0xff]
    %v1066 = vld [vmem:[%s1 + $0x1f50] sm:$0xff]
    %v1067 = vld [vmem:[%s1 + $0x1f58] sm:$0xff]
    %v1068 = vld [vmem:[%s1 + $0x1f60] sm:$0xff]
    %v1069 = vld [vmem:[%s1 + $0x1f68] sm:$0xff]
    %v1070 = vld [vmem:[%s1 + $0x1f70] sm:$0xff]
    %v1071 = vld [vmem:[%s1 + $0x1f78] sm:$0xff]
    %v1072 = vld [vmem:[%s1 + $0x1f80] sm:$0xff]
    %v1073 = vld [vmem:[%s1 + $0x1f88] sm:$0xff]
    %v1074 = vld [vmem:[%s1 + $0x1f90] sm:$0xff]
    %v1075 = vld [vmem:[%s1 + $0x1f98] sm:$0xff]
    %v1076 = vld [vmem:[%s1 + $0x1fa0] sm:$0xff]
    %v1077 = vld [vmem:[%s1 + $0x1fa8] sm:$0xff]
    %v1078 = vld [vmem:[%s1 + $0x1fb0] sm:$0xff]
    %v1079 = vld [vmem:[%s1 + $0x1fb8] sm:$0xff]
    %v1080 = vld [vmem:[%s1 + $0x1fc0] sm:$0xff]
    %v1081 = vld [vmem:[%s1 + $0x1fc8] sm:$0xff]
    %v1082 = vld [vmem:[%s1 + $0x1fd0] sm:$0xff]
    %v1083 = vld [vmem:[%s1 + $0x1fd8] sm:$0xff]
    %v1084 = vld [vmem:[%s1 + $0x1fe0] sm:$0xff]
    %v1085 = vld [vmem:[%s1 + $0x1fe8] sm:$0xff]
    %v1086 = vld [vmem:[%s1 + $0x1ff0] sm:$0xff]
    %v1087 = vld [vmem:[%s1 + $0x1ff8] sm:$0xff]
    %v1088 = vld [vmem:[%s1 + $0x2000] sm:$0xff]
    %v1089 = vld [vmem:[%s1 + $0x2008] sm:$0xff]
    %v1090 = vld [vmem:[%s1 + $0x2010] sm:$0xff]
    %v1091 = vld [vmem:[%s1 + $0x2018] sm:$0xff]
    %v1092 = vld [vmem:[%s1 + $0x2020] sm:$0xff]
    %v1093 = vld [vmem:[%s1 + $0x2028] sm:$0xff]
    %v1094 = vld [vmem:[%s1 + $0x2030] sm:$0xff]
    %v1095 = vld [vmem:[%s1 + $0x2038] sm:$0xff]
    %v1096 = vld [vmem:[%s1 + $0x2040] sm:$0xff]
    %v1097 = vld [vmem:[%s1 + $0x2048] sm:$0xff]
    %v1098 = vld [vmem:[%s1 + $0x2050] sm:$0xff]
    %v1099 = vld [vmem:[%s1 + $0x2058] sm:$0xff]
    %v1100 = vld [vmem:[%s1 + $0x2060] sm:$0xff]
    %v1101 = vld [vmem:[%s1 + $0x2068] sm:$0xff]
    %v1102 = vld [vmem:[%s1 + $0x2070] sm:$0xff]
    %v1103 = vld [vmem:[%s1 + $0x2078] sm:$0xff]
    %v1104 = vld [vmem:[%s1 + $0x2080] sm:$0xff]
    %v1105 = vld [vmem:[%s1 + $0x2088] sm:$0xff]
    %v1106 = vld [vmem:[%s1 + $0x2090] sm:$0xff]
    %v1107 = vld [vmem:[%s1 + $0x2098] sm:$0xff]
    %v1108 = vld [vmem:[%s1 + $0x20a0] sm:$0xff]
    %v1109 = vld [vmem:[%s1 + $0x20a8] sm:$0xff]
    %v1110 = vld [vmem:[%s1 + $0x20b0] sm:$0xff]
    %v1111 = vld [vmem:[%s1 + $0x20b8] sm:$0xff]
    %v1112 = vld [vmem:[%s1 + $0x20c0] sm:$0xff]
    %v1113 = vld [vmem:[%s1 + $0x20c8] sm:$0xff]
    %v1114 = vld [vmem:[%s1 + $0x20d0] sm:$0xff]
    %v1115 = vld [vmem:[%s1 + $0x20d8] sm:$0xff]
    %v1116 = vld [vmem:[%s1 + $0x20e0] sm:$0xff]
    %v1117 = vld [vmem:[%s1 + $0x20e8] sm:$0xff]
    %v1118 = vld [vmem:[%s1 + $0x20f0] sm:$0xff]
    %v1119 = vld [vmem:[%s1 + $0x20f8] sm:$0xff]
    %v1120 = vld [vmem:[%s1 + $0x2100] sm:$0xff]
    %v1121 = vld [vmem:[%s1 + $0x2108] sm:$0xff]
    %v1122 = vld [vmem:[%s1 + $0x2110] sm:$0xff]
    %v1123 = vld [vmem:[%s1 + $0x2118] sm:$0xff]
    %v1124 = vld [vmem:[%s1 + $0x2120] sm:$0xff]
    %v1125 = vld [vmem:[%s1 + $0x2128] sm:$0xff]
    %v1126 = vld [vmem:[%s1 + $0x2130] sm:$0xff]
    %v1127 = vld [vmem:[%s1 + $0x2138] sm:$0xff]
    %v1128 = vld [vmem:[%s1 + $0x2140] sm:$0xff]
    %v1129 = vld [vmem:[%s1 + $0x2148] sm:$0xff]
    %v1130 = vld [vmem:[%s1 + $0x2150] sm:$0xff]
    %v1131 = vld [vmem:[%s1 + $0x2158] sm:$0xff]
    %v1132 = vld [vmem:[%s1 + $0x2160] sm:$0xff]
    %v1133 = vld [vmem:[%s1 + $0x2168] sm:$0xff]
    %v1134 = vld [vmem:[%s1 + $0x2170] sm:$0xff]
    %v1135 = vld [vmem:[%s1 + $0x2178] sm:$0xff]
    %v1136 = vld [vmem:[%s1 + $0x2180] sm:$0xff]
    %v1137 = vld [vmem:[%s1 + $0x2188] sm:$0xff]
    %v1138 = vld [vmem:[%s1 + $0x2190] sm:$0xff]
    %v1139 = vld [vmem:[%s1 + $0x2198] sm:$0xff]
    %v1140 = vld [vmem:[%s1 + $0x21a0] sm:$0xff]
    %v1141 = vld [vmem:[%s1 + $0x21a8] sm:$0xff]
    %v1142 = vld [vmem:[%s1 + $0x21b0] sm:$0xff]
    %v1143 = vld [vmem:[%s1 + $0x21b8] sm:$0xff]
    %v1144 = vld [vmem:[%s1 + $0x21c0] sm:$0xff]
    %v1145 = vld [vmem:[%s1 + $0x21c8] sm:$0xff]
    %v1146 = vld [vmem:[%s1 + $0x21d0] sm:$0xff]
    %v1147 = vld [vmem:[%s1 + $0x21d8] sm:$0xff]
    %v1148 = vld [vmem:[%s1 + $0x21e0] sm:$0xff]
    %v1149 = vld [vmem:[%s1 + $0x21e8] sm:$0xff]
    %v1150 = vld [vmem:[%s1 + $0x21f0] sm:$0xff]
    %v1151 = vld [vmem:[%s1 + $0x21f8] sm:$0xff]
    %v1152 = vld [vmem:[%s1 + $0x2200] sm:$0xff]
    %v1153 = vld [vmem:[%s1 + $0x2208] sm:$0xff]
    %v1154 = vld [vmem:[%s1 + $0x2210] sm:$0xff]
    %v1155 = vld [vmem:[%s1 + $0x2218] sm:$0xff]
    %v1156 = vld [vmem:[%s1 + $0x2220] sm:$0xff]
    %v1157 = vld [vmem:[%s1 + $0x2228] sm:$0xff]
    %v1158 = vld [vmem:[%s1 + $0x2230] sm:$0xff]
    %v1159 = vld [vmem:[%s1 + $0x2238] sm:$0xff]
    %v1160 = vld [vmem:[%s1 + $0x2240] sm:$0xff]
    %v1161 = vld [vmem:[%s1 + $0x2248] sm:$0xff]
    %v1162 = vld [vmem:[%s1 + $0x2250] sm:$0xff]
    %v1163 = vld [vmem:[%s1 + $0x2258] sm:$0xff]
    %v1164 = vld [vmem:[%s1 + $0x2260] sm:$0xff]
    %v1165 = vld [vmem:[%s1 + $0x2268] sm:$0xff]
    %v1166 = vld [vmem:[%s1 + $0x2270] sm:$0xff]
    %v1167 = vld [vmem:[%s1 + $0x2278] sm:$0xff]
    %v1168 = vld [vmem:[%s1 + $0x2280] sm:$0xff]
    %v1169 = vld [vmem:[%s1 + $0x2288] sm:$0xff]
    %v1170 = vld [vmem:[%s1 + $0x2290] sm:$0xff]
    %v1171 = vld [vmem:[%s1 + $0x2298] sm:$0xff]
    %v1172 = vld [vmem:[%s1 + $0x22a0] sm:$0xff]
    %v1173 = vld [vmem:[%s1 + $0x22a8] sm:$0xff]
    %v1174 = vld [vmem:[%s1 + $0x22b0] sm:$0xff]
    %v1175 = vld [vmem:[%s1 + $0x22b8] sm:$0xff]
    %v1176 = vld [vmem:[%s1 + $0x22c0] sm:$0xff]
    %v1177 = vld [vmem:[%s1 + $0x22c8] sm:$0xff]
    %v1178 = vld [vmem:[%s1 + $0x22d0] sm:$0xff]
    %v1179 = vld [vmem:[%s1 + $0x22d8] sm:$0xff]
    %v1180 = vld [vmem:[%s1 + $0x22e0] sm:$0xff]
    %v1181 = vld [vmem:[%s1 + $0x22e8] sm:$0xff]
    %v1182 = vld [vmem:[%s1 + $0x22f0] sm:$0xff]
    %v1183 = vld [vmem:[%s1 + $0x22f8] sm:$0xff]
    %v1184 = vld [vmem:[%s1 + $0x2300] sm:$0xff]
    %v1185 = vld [vmem:[%s1 + $0x2308] sm:$0xff]
    %v1186 = vld [vmem:[%s1 + $0x2310] sm:$0xff]
    %v1187 = vld [vmem:[%s1 + $0x2318] sm:$0xff]
    %v1188 = vld [vmem:[%s1 + $0x2320] sm:$0xff]
    %v1189 = vld [vmem:[%s1 + $0x2328] sm:$0xff]
    %v1190 = vld [vmem:[%s1 + $0x2330] sm:$0xff]
    %v1191 = vld [vmem:[%s1 + $0x2338] sm:$0xff]
    %v1192 = vld [vmem:[%s1 + $0x2340] sm:$0xff]
    %v1193 = vld [vmem:[%s1 + $0x2348] sm:$0xff]
    %v1194 = vld [vmem:[%s1 + $0x2350] sm:$0xff]
    %v1195 = vld [vmem:[%s1 + $0x2358] sm:$0xff]
    %v1196 = vld [vmem:[%s1 + $0x2360] sm:$0xff]
    %v1197 = vld [vmem:[%s1 + $0x2368] sm:$0xff]
    %v1198 = vld [vmem:[%s1 + $0x2370] sm:$0xff]
    %v1199 = vld [vmem:[%s1 + $0x2378] sm:$0xff]
    %v1200 = vld [vmem:[%s1 + $0x2380] sm:$0xff]
    %v1201 = vld [vmem:[%s1 + $0x2388] sm:$0xff]
    %v1202 = vld [vmem:[%s1 + $0x2390] sm:$0xff]
    %v1203 = vld [vmem:[%s1 + $0x2398] sm:$0xff]
    %v1204 = vld [vmem:[%s1 + $0x23a0] sm:$0xff]
    %v1205 = vld [vmem:[%s1 + $0x23a8] sm:$0xff]
    %v1206 = vld [vmem:[%s1 + $0x23b0] sm:$0xff]
    %v1207 = vld [vmem:[%s1 + $0x23b8] sm:$0xff]
    %v1208 = vld [vmem:[%s1 + $0x23c0] sm:$0xff]
    %v1209 = vld [vmem:[%s1 + $0x23c8] sm:$0xff]
    %v1210 = vld [vmem:[%s1 + $0x23d0] sm:$0xff]
    %v1211 = vld [vmem:[%s1 + $0x23d8] sm:$0xff]
    %v1212 = vld [vmem:[%s1 + $0x23e0] sm:$0xff]
    %v1213 = vld [vmem:[%s1 + $0x23e8] sm:$0xff]
    %v1214 = vld [vmem:[%s1 + $0x23f0] sm:$0xff]
    %v1215 = vld [vmem:[%s1 + $0x23f8] sm:$0xff]
    %v1216 = vld [vmem:[%s1 + $0x2400] sm:$0xff]
    %v1217 = vld [vmem:[%s1 + $0x2408] sm:$0xff]
    %v1218 = vld [vmem:[%s1 + $0x2410] sm:$0xff]
    %v1219 = vld [vmem:[%s1 + $0x2418] sm:$0xff]
    %v1220 = vld [vmem:[%s1 + $0x2420] sm:$0xff]
    %v1221 = vld [vmem:[%s1 + $0x2428] sm:$0xff]
    %v1222 = vld [vmem:[%s1 + $0x2430] sm:$0xff]
    %v1223 = vld [vmem:[%s1 + $0x2438] sm:$0xff]
    %v1224 = vld [vmem:[%s1 + $0x2440] sm:$0xff]
    %v1225 = vld [vmem:[%s1 + $0x2448] sm:$0xff]
    %v1226 = vld [vmem:[%s1 + $0x2450] sm:$0xff]
    %v1227 = vld [vmem:[%s1 + $0x2458] sm:$0xff]
    %v1228 = vld [vmem:[%s1 + $0x2460] sm:$0xff]
    %v1229 = vld [vmem:[%s1 + $0x2468] sm:$0xff]
    %v1230 = vld [vmem:[%s1 + $0x2470] sm:$0xff]
    %v1231 = vld [vmem:[%s1 + $0x2478] sm:$0xff]
    %v1232 = vld [vmem:[%s1 + $0x2480] sm:$0xff]
    %v1233 = vld [vmem:[%s1 + $0x2488] sm:$0xff]
    %v1234 = vld [vmem:[%s1 + $0x2490] sm:$0xff]
    %v1235 = vld [vmem:[%s1 + $0x2498] sm:$0xff]
    %v1236 = vld [vmem:[%s1 + $0x24a0] sm:$0xff]
    %v1237 = vld [vmem:[%s1 + $0x24a8] sm:$0xff]
    %v1238 = vld [vmem:[%s1 + $0x24b0] sm:$0xff]
    %v1239 = vld [vmem:[%s1 + $0x24b8] sm:$0xff]
    %v1240 = vld [vmem:[%s1 + $0x24c0] sm:$0xff]
    %v1241 = vld [vmem:[%s1 + $0x24c8] sm:$0xff]
    %v1242 = vld [vmem:[%s1 + $0x24d0] sm:$0xff]
    %v1243 = vld [vmem:[%s1 + $0x24d8] sm:$0xff]
    %v1244 = vld [vmem:[%s1 + $0x24e0] sm:$0xff]
    %v1245 = vld [vmem:[%s1 + $0x24e8] sm:$0xff]
    %v1246 = vld [vmem:[%s1 + $0x24f0] sm:$0xff]
    %v1247 = vld [vmem:[%s1 + $0x24f8] sm:$0xff]
    %v1248 = vld [vmem:[%s1 + $0x2500] sm:$0xff]
    %v1249 = vld [vmem:[%s1 + $0x2508] sm:$0xff]
    %v1250 = vld [vmem:[%s1 + $0x2510] sm:$0xff]
    %v1251 = vld [vmem:[%s1 + $0x2518] sm:$0xff]
    %v1252 = vld [vmem:[%s1 + $0x2520] sm:$0xff]
    %v1253 = vld [vmem:[%s1 + $0x2528] sm:$0xff]
    %v1254 = vld [vmem:[%s1 + $0x2530] sm:$0xff]
    %v1255 = vld [vmem:[%s1 + $0x2538] sm:$0xff]
    %v1256 = vld [vmem:[%s1 + $0x2540] sm:$0xff]
    %v1257 = vld [vmem:[%s1 + $0x2548] sm:$0xff]
    %v1258 = vld [vmem:[%s1 + $0x2550] sm:$0xff]
    %v1259 = vld [vmem:[%s1 + $0x2558] sm:$0xff]
    %v1260 = vld [vmem:[%s1 + $0x2560] sm:$0xff]
    %v1261 = vld [vmem:[%s1 + $0x2568] sm:$0xff]
    %v1262 = vld [vmem:[%s1 + $0x2570] sm:$0xff]
    %v1263 = vld [vmem:[%s1 + $0x2578] sm:$0xff]
    %v1264 = vld [vmem:[%s1 + $0x2580] sm:$0xff]
    %v1265 = vld [vmem:[%s1 + $0x2588] sm:$0xff]
    %v1266 = vld [vmem:[%s1 + $0x2590] sm:$0xff]
    %v1267 = vld [vmem:[%s1 + $0x2598] sm:$0xff]
    %v1268 = vld [vmem:[%s1 + $0x25a0] sm:$0xff]
    %v1269 = vld [vmem:[%s1 + $0x25a8] sm:$0xff]
    %v1270 = vld [vmem:[%s1 + $0x25b0] sm:$0xff]
    %v1271 = vld [vmem:[%s1 + $0x25b8] sm:$0xff]
    %v1272 = vld [vmem:[%s1 + $0x25c0] sm:$0xff]
    %v1273 = vld [vmem:[%s1 + $0x25c8] sm:$0xff]
    %v1274 = vld [vmem:[%s1 + $0x25d0] sm:$0xff]
    %v1275 = vld [vmem:[%s1 + $0x25d8] sm:$0xff]
    %v1276 = vld [vmem:[%s1 + $0x25e0] sm:$0xff]
    %v1277 = vld [vmem:[%s1 + $0x25e8] sm:$0xff]
    %v1278 = vld [vmem:[%s1 + $0x25f0] sm:$0xff]
    %v1279 = vld [vmem:[%s1 + $0x25f8] sm:$0xff]
    %v1280 = vld [vmem:[%s1 + $0x2600] sm:$0xff]
    %v1281 = vld [vmem:[%s1 + $0x2608] sm:$0xff]
    %v1282 = vld [vmem:[%s1 + $0x2610] sm:$0xff]
    %v1283 = vld [vmem:[%s1 + $0x2618] sm:$0xff]
    %v1284 = vld [vmem:[%s1 + $0x2620] sm:$0xff]
    %v1285 = vld [vmem:[%s1 + $0x2628] sm:$0xff]
    %v1286 = vld [vmem:[%s1 + $0x2630] sm:$0xff]
    %v1287 = vld [vmem:[%s1 + $0x2638] sm:$0xff]
    %v1288 = vld [vmem:[%s1 + $0x2640] sm:$0xff]
    %v1289 = vld [vmem:[%s1 + $0x2648] sm:$0xff]
    %v1290 = vld [vmem:[%s1 + $0x2650] sm:$0xff]
    %v1291 = vld [vmem:[%s1 + $0x2658] sm:$0xff]
    %v1292 = vld [vmem:[%s1 + $0x2660] sm:$0xff]
    %v1293 = vld [vmem:[%s1 + $0x2668] sm:$0xff]
    %v1294 = vld [vmem:[%s1 + $0x2670] sm:$0xff]
    %v1295 = vld [vmem:[%s1 + $0x2678] sm:$0xff]
    %v1296 = vld [vmem:[%s1 + $0x2680] sm:$0xff]
    %v1297 = vld [vmem:[%s1 + $0x2688] sm:$0xff]
    %v1298 = vld [vmem:[%s1 + $0x2690] sm:$0xff]
    %v1299 = vld [vmem:[%s1 + $0x2698] sm:$0xff]
    %v1300 = vld [vmem:[%s1 + $0x26a0] sm:$0xff]
    %v1301 = vld [vmem:[%s1 + $0x26a8] sm:$0xff]
    %v1302 = vld [vmem:[%s1 + $0x26b0] sm:$0xff]
    %v1303 = vld [vmem:[%s1 + $0x26b8] sm:$0xff]
    %v1304 = vld [vmem:[%s1 + $0x26c0] sm:$0xff]
    %v1305 = vld [vmem:[%s1 + $0x26c8] sm:$0xff]
    %v1306 = vld [vmem:[%s1 + $0x26d0] sm:$0xff]
    %v1307 = vld [vmem:[%s1 + $0x26d8] sm:$0xff]
    %v1308 = vld [vmem:[%s1 + $0x26e0] sm:$0xff]
    %v1309 = vld [vmem:[%s1 + $0x26e8] sm:$0xff]
    %v1310 = vld [vmem:[%s1 + $0x26f0] sm:$0xff]
    %v1311 = vld [vmem:[%s1 + $0x26f8] sm:$0xff]
    %v1312 = vld [vmem:[%s1 + $0x2700] sm:$0xff]
    %v1313 = vld [vmem:[%s1 + $0x2708] sm:$0xff]
    %v1314 = vld [vmem:[%s1 + $0x2710] sm:$0xff]
    %v1315 = vld [vmem:[%s1 + $0x2718] sm:$0xff]
    %v1316 = vld [vmem:[%s1 + $0x2720] sm:$0xff]
    %v1317 = vld [vmem:[%s1 + $0x2728] sm:$0xff]
    %v1318 = vld [vmem:[%s1 + $0x2730] sm:$0xff]
    %v1319 = vld [vmem:[%s1 + $0x2738] sm:$0xff]
    %v1320 = vld [vmem:[%s1 + $0x2740] sm:$0xff]
    %v1321 = vld [vmem:[%s1 + $0x2748] sm:$0xff]
    %v1322 = vld [vmem:[%s1 + $0x2750] sm:$0xff]
    %v1323 = vld [vmem:[%s1 + $0x2758] sm:$0xff]
    %v1324 = vld [vmem:[%s1 + $0x2760] sm:$0xff]
    %v1325 = vld [vmem:[%s1 + $0x2768] sm:$0xff]
    %v1326 = vld [vmem:[%s1 + $0x2770] sm:$0xff]
    %v1327 = vld [vmem:[%s1 + $0x2778] sm:$0xff]
    %v1328 = vld [vmem:[%s1 + $0x2780] sm:$0xff]
    %v1329 = vld [vmem:[%s1 + $0x2788] sm:$0xff]
    %v1330 = vld [vmem:[%s1 + $0x2790] sm:$0xff]
    %v1331 = vld [vmem:[%s1 + $0x2798] sm:$0xff]
    %v1332 = vld [vmem:[%s1 + $0x27a0] sm:$0xff]
    %v1333 = vld [vmem:[%s1 + $0x27a8] sm:$0xff]
    %v1334 = vld [vmem:[%s1 + $0x27b0] sm:$0xff]
    %v1335 = vld [vmem:[%s1 + $0x27b8] sm:$0xff]
    %v1336 = vld [vmem:[%s1 + $0x27c0] sm:$0xff]
    %v1337 = vld [vmem:[%s1 + $0x27c8] sm:$0xff]
    %v1338 = vld [vmem:[%s1 + $0x27d0] sm:$0xff]
    %v1339 = vld [vmem:[%s1 + $0x27d8] sm:$0xff]
    %v1340 = vld [vmem:[%s1 + $0x27e0] sm:$0xff]
    %v1341 = vld [vmem:[%s1 + $0x27e8] sm:$0xff]
    %v1342 = vld [vmem:[%s1 + $0x27f0] sm:$0xff]
    %v1343 = vld [vmem:[%s1 + $0x27f8] sm:$0xff]
    %v1344 = vld [vmem:[%s1 + $0x2800] sm:$0xff]
    %v1345 = vld [vmem:[%s1 + $0x2808] sm:$0xff]
    %v1346 = vld [vmem:[%s1 + $0x2810] sm:$0xff]
    %v1347 = vld [vmem:[%s1 + $0x2818] sm:$0xff]
    %v1348 = vld [vmem:[%s1 + $0x2820] sm:$0xff]
    %v1349 = vld [vmem:[%s1 + $0x2828] sm:$0xff]
    %v1350 = vld [vmem:[%s1 + $0x2830] sm:$0xff]
    %v1351 = vld [vmem:[%s1 + $0x2838] sm:$0xff]
    %v1352 = vld [vmem:[%s1 + $0x2840] sm:$0xff]
    %v1353 = vld [vmem:[%s1 + $0x2848] sm:$0xff]
    %v1354 = vld [vmem:[%s1 + $0x2850] sm:$0xff]
    %v1355 = vld [vmem:[%s1 + $0x2858] sm:$0xff]
    %v1356 = vld [vmem:[%s1 + $0x2860] sm:$0xff]
    %v1357 = vld [vmem:[%s1 + $0x2868] sm:$0xff]
    %v1358 = vld [vmem:[%s1 + $0x2870] sm:$0xff]
    %v1359 = vld [vmem:[%s1 + $0x2878] sm:$0xff]
    %v1360 = vld [vmem:[%s1 + $0x2880] sm:$0xff]
    %v1361 = vld [vmem:[%s1 + $0x2888] sm:$0xff]
    %v1362 = vld [vmem:[%s1 + $0x2890] sm:$0xff]
    %v1363 = vld [vmem:[%s1 + $0x2898] sm:$0xff]
    %v1364 = vld [vmem:[%s1 + $0x28a0] sm:$0xff]
    %v1365 = vld [vmem:[%s1 + $0x28a8] sm:$0xff]
    %v1366 = vld [vmem:[%s1 + $0x28b0] sm:$0xff]
    %v1367 = vld [vmem:[%s1 + $0x28b8] sm:$0xff]
    %v1368 = vld [vmem:[%s1 + $0x28c0] sm:$0xff]
    %v1369 = vld [vmem:[%s1 + $0x28c8] sm:$0xff]
    %v1370 = vld [vmem:[%s1 + $0x28d0] sm:$0xff]
    %v1371 = vld [vmem:[%s1 + $0x28d8] sm:$0xff]
    %v1372 = vld [vmem:[%s1 + $0x28e0] sm:$0xff]
    %v1373 = vld [vmem:[%s1 + $0x28e8] sm:$0xff]
    %v1374 = vld [vmem:[%s1 + $0x28f0] sm:$0xff]
    %v1375 = vld [vmem:[%s1 + $0x28f8] sm:$0xff]
    %v1376 = vld [vmem:[%s1 + $0x2900] sm:$0xff]
    %v1377 = vld [vmem:[%s1 + $0x2908] sm:$0xff]
    %v1378 = vld [vmem:[%s1 + $0x2910] sm:$0xff]
    %v1379 = vld [vmem:[%s1 + $0x2918] sm:$0xff]
    %v1380 = vld [vmem:[%s1 + $0x2920] sm:$0xff]
    %v1381 = vld [vmem:[%s1 + $0x2928] sm:$0xff]
    %v1382 = vld [vmem:[%s1 + $0x2930] sm:$0xff]
    %v1383 = vld [vmem:[%s1 + $0x2938] sm:$0xff]
    %v1384 = vld [vmem:[%s1 + $0x2940] sm:$0xff]
    %v1385 = vld [vmem:[%s1 + $0x2948] sm:$0xff]
    %v1386 = vld [vmem:[%s1 + $0x2950] sm:$0xff]
    %v1387 = vld [vmem:[%s1 + $0x2958] sm:$0xff]
    %v1388 = vld [vmem:[%s1 + $0x2960] sm:$0xff]
    %v1389 = vld [vmem:[%s1 + $0x2968] sm:$0xff]
    %v1390 = vld [vmem:[%s1 + $0x2970] sm:$0xff]
    %v1391 = vld [vmem:[%s1 + $0x2978] sm:$0xff]
    %v1392 = vld [vmem:[%s1 + $0x2980] sm:$0xff]
    %v1393 = vld [vmem:[%s1 + $0x2988] sm:$0xff]
    %v1394 = vld [vmem:[%s1 + $0x2990] sm:$0xff]
    %v1395 = vld [vmem:[%s1 + $0x2998] sm:$0xff]
    %v1396 = vld [vmem:[%s1 + $0x29a0] sm:$0xff]
    %v1397 = vld [vmem:[%s1 + $0x29a8] sm:$0xff]
    %v1398 = vld [vmem:[%s1 + $0x29b0] sm:$0xff]
    %v1399 = vld [vmem:[%s1 + $0x29b8] sm:$0xff]
    %v1400 = vld [vmem:[%s1 + $0x29c0] sm:$0xff]
    %v1401 = vld [vmem:[%s1 + $0x29c8] sm:$0xff]
    %v1402 = vld [vmem:[%s1 + $0x29d0] sm:$0xff]
    %v1403 = vld [vmem:[%s1 + $0x29d8] sm:$0xff]
    %v1404 = vld [vmem:[%s1 + $0x29e0] sm:$0xff]
    %v1405 = vld [vmem:[%s1 + $0x29e8] sm:$0xff]
    %v1406 = vld [vmem:[%s1 + $0x29f0] sm:$0xff]
    %v1407 = vld [vmem:[%s1 + $0x29f8] sm:$0xff]
    %v1408 = vld [vmem:[%s1 + $0x2a00] sm:$0xff]
    %v1409 = vld [vmem:[%s1 + $0x2a08] sm:$0xff]
    %v1410 = vld [vmem:[%s1 + $0x2a10] sm:$0xff]
    %v1411 = vld [vmem:[%s1 + $0x2a18] sm:$0xff]
    %v1412 = vld [vmem:[%s1 + $0x2a20] sm:$0xff]
    %v1413 = vld [vmem:[%s1 + $0x2a28] sm:$0xff]
    %v1414 = vld [vmem:[%s1 + $0x2a30] sm:$0xff]
    %v1415 = vld [vmem:[%s1 + $0x2a38] sm:$0xff]
    %v1416 = vld [vmem:[%s1 + $0x2a40] sm:$0xff]
    %v1417 = vld [vmem:[%s1 + $0x2a48] sm:$0xff]
    %v1418 = vld [vmem:[%s1 + $0x2a50] sm:$0xff]
    %v1419 = vld [vmem:[%s1 + $0x2a58] sm:$0xff]
    %v1420 = vld [vmem:[%s1 + $0x2a60] sm:$0xff]
    %v1421 = vld [vmem:[%s1 + $0x2a68] sm:$0xff]
    %v1422 = vld [vmem:[%s1 + $0x2a70] sm:$0xff]
    %v1423 = vld [vmem:[%s1 + $0x2a78] sm:$0xff]
    %v1424 = vld [vmem:[%s1 + $0x2a80] sm:$0xff]
    %v1425 = vld [vmem:[%s1 + $0x2a88] sm:$0xff]
    %v1426 = vld [vmem:[%s1 + $0x2a90] sm:$0xff]
    %v1427 = vld [vmem:[%s1 + $0x2a98] sm:$0xff]
    %v1428 = vld [vmem:[%s1 + $0x2aa0] sm:$0xff]
    %v1429 = vld [vmem:[%s1 + $0x2aa8] sm:$0xff]
    %v1430 = vld [vmem:[%s1 + $0x2ab0] sm:$0xff]
    %v1431 = vld [vmem:[%s1 + $0x2ab8] sm:$0xff]
    %v1432 = vld [vmem:[%s1 + $0x2ac0] sm:$0xff]
    %v1433 = vld [vmem:[%s1 + $0x2ac8] sm:$0xff]
    %v1434 = vld [vmem:[%s1 + $0x2ad0] sm:$0xff]
    %v1435 = vld [vmem:[%s1 + $0x2ad8] sm:$0xff]
    %v1436 = vld [vmem:[%s1 + $0x2ae0] sm:$0xff]
    %v1437 = vld [vmem:[%s1 + $0x2ae8] sm:$0xff]
    %v1438 = vld [vmem:[%s1 + $0x2af0] sm:$0xff]
    %v1439 = vld [vmem:[%s1 + $0x2af8] sm:$0xff]
    %v1440 = vld [vmem:[%s1 + $0x2b00] sm:$0xff]
    %v1441 = vld [vmem:[%s1 + $0x2b08] sm:$0xff]
    %v1442 = vld [vmem:[%s1 + $0x2b10] sm:$0xff]
    %v1443 = vld [vmem:[%s1 + $0x2b18] sm:$0xff]
    %v1444 = vld [vmem:[%s1 + $0x2b20] sm:$0xff]
    %v1445 = vld [vmem:[%s1 + $0x2b28] sm:$0xff]
    %v1446 = vld [vmem:[%s1 + $0x2b30] sm:$0xff]
    %v1447 = vld [vmem:[%s1 + $0x2b38] sm:$0xff]
    %v1448 = vld [vmem:[%s1 + $0x2b40] sm:$0xff]
    %v1449 = vld [vmem:[%s1 + $0x2b48] sm:$0xff]
    %v1450 = vld [vmem:[%s1 + $0x2b50] sm:$0xff]
    %v1451 = vld [vmem:[%s1 + $0x2b58] sm:$0xff]
    %v1452 = vld [vmem:[%s1 + $0x2b60] sm:$0xff]
    %v1453 = vld [vmem:[%s1 + $0x2b68] sm:$0xff]
    %v1454 = vld [vmem:[%s1 + $0x2b70] sm:$0xff]
    %v1455 = vld [vmem:[%s1 + $0x2b78] sm:$0xff]
    %v1456 = vld [vmem:[%s1 + $0x2b80] sm:$0xff]
    %v1457 = vld [vmem:[%s1 + $0x2b88] sm:$0xff]
    %v1458 = vld [vmem:[%s1 + $0x2b90] sm:$0xff]
    %v1459 = vld [vmem:[%s1 + $0x2b98] sm:$0xff]
    %v1460 = vld [vmem:[%s1 + $0x2ba0] sm:$0xff]
    %v1461 = vld [vmem:[%s1 + $0x2ba8] sm:$0xff]
    %v1462 = vld [vmem:[%s1 + $0x2bb0] sm:$0xff]
    %v1463 = vld [vmem:[%s1 + $0x2bb8] sm:$0xff]
    %v1464 = vld [vmem:[%s1 + $0x2bc0] sm:$0xff]
    %v1465 = vld [vmem:[%s1 + $0x2bc8] sm:$0xff]
    %v1466 = vld [vmem:[%s1 + $0x2bd0] sm:$0xff]
    %v1467 = vld [vmem:[%s1 + $0x2bd8] sm:$0xff]
    %v1468 = vld [vmem:[%s1 + $0x2be0] sm:$0xff]
    %v1469 = vld [vmem:[%s1 + $0x2be8] sm:$0xff]
    %v1470 = vld [vmem:[%s1 + $0x2bf0] sm:$0xff]
    %v1471 = vld [vmem:[%s1 + $0x2bf8] sm:$0xff]
    %v1472 = vld [vmem:[%s1 + $0x2c00] sm:$0xff]
    %v1473 = vld [vmem:[%s1 + $0x2c08] sm:$0xff]
    %v1474 = vld [vmem:[%s1 + $0x2c10] sm:$0xff]
    %v1475 = vld [vmem:[%s1 + $0x2c18] sm:$0xff]
    %v1476 = vld [vmem:[%s1 + $0x2c20] sm:$0xff]
    %v1477 = vld [vmem:[%s1 + $0x2c28] sm:$0xff]
    %v1478 = vld [vmem:[%s1 + $0x2c30] sm:$0xff]
    %v1479 = vld [vmem:[%s1 + $0x2c38] sm:$0xff]
    %v1480 = vld [vmem:[%s1 + $0x2c40] sm:$0xff]
    %v1481 = vld [vmem:[%s1 + $0x2c48] sm:$0xff]
    %v1482 = vld [vmem:[%s1 + $0x2c50] sm:$0xff]
    %v1483 = vld [vmem:[%s1 + $0x2c58] sm:$0xff]
    %v1484 = vld [vmem:[%s1 + $0x2c60] sm:$0xff]
    %v1485 = vld [vmem:[%s1 + $0x2c68] sm:$0xff]
    %v1486 = vld [vmem:[%s1 + $0x2c70] sm:$0xff]
    %v1487 = vld [vmem:[%s1 + $0x2c78] sm:$0xff]
    %v1488 = vld [vmem:[%s1 + $0x2c80] sm:$0xff]
    %v1489 = vld [vmem:[%s1 + $0x2c88] sm:$0xff]
    %v1490 = vld [vmem:[%s1 + $0x2c90] sm:$0xff]
    %v1491 = vld [vmem:[%s1 + $0x2c98] sm:$0xff]
    %v1492 = vld [vmem:[%s1 + $0x2ca0] sm:$0xff]
    %v1493 = vld [vmem:[%s1 + $0x2ca8] sm:$0xff]
    %v1494 = vld [vmem:[%s1 + $0x2cb0] sm:$0xff]
    %v1495 = vld [vmem:[%s1 + $0x2cb8] sm:$0xff]
    %v1496 = vld [vmem:[%s1 + $0x2cc0] sm:$0xff]
    %v1497 = vld [vmem:[%s1 + $0x2cc8] sm:$0xff]
    %v1498 = vld [vmem:[%s1 + $0x2cd0] sm:$0xff]
    %v1499 = vld [vmem:[%s1 + $0x2cd8] sm:$0xff]
    %v1500 = vld [vmem:[%s1 + $0x2ce0] sm:$0xff]
    %v1501 = vld [vmem:[%s1 + $0x2ce8] sm:$0xff]
    %v1502 = vld [vmem:[%s1 + $0x2cf0] sm:$0xff]
    %v1503 = vld [vmem:[%s1 + $0x2cf8] sm:$0xff]
    %v1504 = vld [vmem:[%s1 + $0x2d00] sm:$0xff]
    %v1505 = vld [vmem:[%s1 + $0x2d08] sm:$0xff]
    %v1506 = vld [vmem:[%s1 + $0x2d10] sm:$0xff]
    %v1507 = vld [vmem:[%s1 + $0x2d18] sm:$0xff]
    %v1508 = vld [vmem:[%s1 + $0x2d20] sm:$0xff]
    %v1509 = vld [vmem:[%s1 + $0x2d28] sm:$0xff]
    %v1510 = vld [vmem:[%s1 + $0x2d30] sm:$0xff]
    %v1511 = vld [vmem:[%s1 + $0x2d38] sm:$0xff]
    %v1512 = vld [vmem:[%s1 + $0x2d40] sm:$0xff]
    %v1513 = vld [vmem:[%s1 + $0x2d48] sm:$0xff]
    %v1514 = vld [vmem:[%s1 + $0x2d50] sm:$0xff]
    %v1515 = vld [vmem:[%s1 + $0x2d58] sm:$0xff]
    %v1516 = vld [vmem:[%s1 + $0x2d60] sm:$0xff]
    %v1517 = vld [vmem:[%s1 + $0x2d68] sm:$0xff]
    %v1518 = vld [vmem:[%s1 + $0x2d70] sm:$0xff]
    %v1519 = vld [vmem:[%s1 + $0x2d78] sm:$0xff]
    %v1520 = vld [vmem:[%s1 + $0x2d80] sm:$0xff]
    %v1521 = vld [vmem:[%s1 + $0x2d88] sm:$0xff]
    %v1522 = vld [vmem:[%s1 + $0x2d90] sm:$0xff]
    %v1523 = vld [vmem:[%s1 + $0x2d98] sm:$0xff]
    %v1524 = vld [vmem:[%s1 + $0x2da0] sm:$0xff]
    %v1525 = vld [vmem:[%s1 + $0x2da8] sm:$0xff]
    %v1526 = vld [vmem:[%s1 + $0x2db0] sm:$0xff]
    %v1527 = vld [vmem:[%s1 + $0x2db8] sm:$0xff]
    %v1528 = vld [vmem:[%s1 + $0x2dc0] sm:$0xff]
    %v1529 = vld [vmem:[%s1 + $0x2dc8] sm:$0xff]
    %v1530 = vld [vmem:[%s1 + $0x2dd0] sm:$0xff]
    %v1531 = vld [vmem:[%s1 + $0x2dd8] sm:$0xff]
    %v1532 = vld [vmem:[%s1 + $0x2de0] sm:$0xff]
    %v1533 = vld [vmem:[%s1 + $0x2de8] sm:$0xff]
    %v1534 = vld [vmem:[%s1 + $0x2df0] sm:$0xff]
    %v1535 = vld [vmem:[%s1 + $0x2df8] sm:$0xff]
    %v1536 = vld [vmem:[%s1 + $0x2e00] sm:$0xff]
    %v1537 = vld [vmem:[%s1 + $0x2e08] sm:$0xff]
    %v1538 = vld [vmem:[%s1 + $0x2e10] sm:$0xff]
    %v1539 = vld [vmem:[%s1 + $0x2e18] sm:$0xff]
    %v1540 = vld [vmem:[%s1 + $0x2e20] sm:$0xff]
    %v1541 = vld [vmem:[%s1 + $0x2e28] sm:$0xff]
    %v1542 = vld [vmem:[%s1 + $0x2e30] sm:$0xff]
    %v1543 = vld [vmem:[%s1 + $0x2e38] sm:$0xff]
    %v1544 = vld [vmem:[%s1 + $0x2e40] sm:$0xff]
    %v1545 = vld [vmem:[%s1 + $0x2e48] sm:$0xff]
    %v1546 = vld [vmem:[%s1 + $0x2e50] sm:$0xff]
    %v1547 = vld [vmem:[%s1 + $0x2e58] sm:$0xff]
    %v1548 = vld [vmem:[%s1 + $0x2e60] sm:$0xff]
    %v1549 = vld [vmem:[%s1 + $0x2e68] sm:$0xff]
    %v1550 = vld [vmem:[%s1 + $0x2e70] sm:$0xff]
    %v1551 = vld [vmem:[%s1 + $0x2e78] sm:$0xff]
    %v1552 = vld [vmem:[%s1 + $0x2e80] sm:$0xff]
    %v1553 = vld [vmem:[%s1 + $0x2e88] sm:$0xff]
    %v1554 = vld [vmem:[%s1 + $0x2e90] sm:$0xff]
    %v1555 = vld [vmem:[%s1 + $0x2e98] sm:$0xff]
    %v1556 = vld [vmem:[%s1 + $0x2ea0] sm:$0xff]
    %v1557 = vld [vmem:[%s1 + $0x2ea8] sm:$0xff]
    %v1558 = vld [vmem:[%s1 + $0x2eb0] sm:$0xff]
    %v1559 = vld [vmem:[%s1 + $0x2eb8] sm:$0xff]
    %v1560 = vld [vmem:[%s1 + $0x2ec0] sm:$0xff]
    %v1561 = vld [vmem:[%s1 + $0x2ec8] sm:$0xff]
    %v1562 = vld [vmem:[%s1 + $0x2ed0] sm:$0xff]
    %v1563 = vld [vmem:[%s1 + $0x2ed8] sm:$0xff]
    %v1564 = vld [vmem:[%s1 + $0x2ee0] sm:$0xff]
    %v1565 = vld [vmem:[%s1 + $0x2ee8] sm:$0xff]
    %v1566 = vld [vmem:[%s1 + $0x2ef0] sm:$0xff]
    %v1567 = vld [vmem:[%s1 + $0x2ef8] sm:$0xff]
    %v1568 = vld [vmem:[%s1 + $0x2f00] sm:$0xff]
    %v1569 = vld [vmem:[%s1 + $0x2f08] sm:$0xff]
    %v1570 = vld [vmem:[%s1 + $0x2f10] sm:$0xff]
    %v1571 = vld [vmem:[%s1 + $0x2f18] sm:$0xff]
    %v1572 = vld [vmem:[%s1 + $0x2f20] sm:$0xff]
    %v1573 = vld [vmem:[%s1 + $0x2f28] sm:$0xff]
    %v1574 = vld [vmem:[%s1 + $0x2f30] sm:$0xff]
    %v1575 = vld [vmem:[%s1 + $0x2f38] sm:$0xff]
    %v1576 = vld [vmem:[%s1 + $0x2f40] sm:$0xff]
    %v1577 = vld [vmem:[%s1 + $0x2f48] sm:$0xff]
    %v1578 = vld [vmem:[%s1 + $0x2f50] sm:$0xff]
    %v1579 = vld [vmem:[%s1 + $0x2f58] sm:$0xff]
    %v1580 = vld [vmem:[%s1 + $0x2f60] sm:$0xff]
    %v1581 = vld [vmem:[%s1 + $0x2f68] sm:$0xff]
    %v1582 = vld [vmem:[%s1 + $0x2f70] sm:$0xff]
    %v1583 = vld [vmem:[%s1 + $0x2f78] sm:$0xff]
    %v1584 = vld [vmem:[%s1 + $0x2f80] sm:$0xff]
    %v1585 = vld [vmem:[%s1 + $0x2f88] sm:$0xff]
    %v1586 = vld [vmem:[%s1 + $0x2f90] sm:$0xff]
    %v1587 = vld [vmem:[%s1 + $0x2f98] sm:$0xff]
    %v1588 = vld [vmem:[%s1 + $0x2fa0] sm:$0xff]
    %v1589 = vld [vmem:[%s1 + $0x2fa8] sm:$0xff]
    %v1590 = vld [vmem:[%s1 + $0x2fb0] sm:$0xff]
    %v1591 = vld [vmem:[%s1 + $0x2fb8] sm:$0xff]
    %v1592 = vld [vmem:[%s1 + $0x2fc0] sm:$0xff]
    %v1593 = vld [vmem:[%s1 + $0x2fc8] sm:$0xff]
    %v1594 = vld [vmem:[%s1 + $0x2fd0] sm:$0xff]
    %v1595 = vld [vmem:[%s1 + $0x2fd8] sm:$0xff]
    %v1596 = vld [vmem:[%s1 + $0x2fe0] sm:$0xff]
    %v1597 = vld [vmem:[%s1 + $0x2fe8] sm:$0xff]
    %v1598 = vld [vmem:[%s1 + $0x2ff0] sm:$0xff]
    %v1599 = vld [vmem:[%s1 + $0x2ff8] sm:$0xff]
    %v1600 = vld [vmem:[%s1 + $0x3000] sm:$0xff]
    %v1601 = vld [vmem:[%s1 + $0x3008] sm:$0xff]
    %v1602 = vld [vmem:[%s1 + $0x3010] sm:$0xff]
    %v1603 = vld [vmem:[%s1 + $0x3018] sm:$0xff]
    %v1604 = vld [vmem:[%s1 + $0x3020] sm:$0xff]
    %v1605 = vld [vmem:[%s1 + $0x3028] sm:$0xff]
    %v1606 = vld [vmem:[%s1 + $0x3030] sm:$0xff]
    %v1607 = vld [vmem:[%s1 + $0x3038] sm:$0xff]
    %v1608 = vld [vmem:[%s1 + $0x3040] sm:$0xff]
    %v1609 = vld [vmem:[%s1 + $0x3048] sm:$0xff]
    %v1610 = vld [vmem:[%s1 + $0x3050] sm:$0xff]
    %v1611 = vld [vmem:[%s1 + $0x3058] sm:$0xff]
    %v1612 = vld [vmem:[%s1 + $0x3060] sm:$0xff]
    %v1613 = vld [vmem:[%s1 + $0x3068] sm:$0xff]
    %v1614 = vld [vmem:[%s1 + $0x3070] sm:$0xff]
    %v1615 = vld [vmem:[%s1 + $0x3078] sm:$0xff]
    %v1616 = vld [vmem:[%s1 + $0x3080] sm:$0xff]
    %v1617 = vld [vmem:[%s1 + $0x3088] sm:$0xff]
    %v1618 = vld [vmem:[%s1 + $0x3090] sm:$0xff]
    %v1619 = vld [vmem:[%s1 + $0x3098] sm:$0xff]
    %v1620 = vld [vmem:[%s1 + $0x30a0] sm:$0xff]
    %v1621 = vld [vmem:[%s1 + $0x30a8] sm:$0xff]
    %v1622 = vld [vmem:[%s1 + $0x30b0] sm:$0xff]
    %v1623 = vld [vmem:[%s1 + $0x30b8] sm:$0xff]
    %v1624 = vld [vmem:[%s1 + $0x30c0] sm:$0xff]
    %v1625 = vld [vmem:[%s1 + $0x30c8] sm:$0xff]
    %v1626 = vld [vmem:[%s1 + $0x30d0] sm:$0xff]
    %v1627 = vld [vmem:[%s1 + $0x30d8] sm:$0xff]
    %v1628 = vld [vmem:[%s1 + $0x30e0] sm:$0xff]
    %v1629 = vld [vmem:[%s1 + $0x30e8] sm:$0xff]
    %v1630 = vld [vmem:[%s1 + $0x30f0] sm:$0xff]
    %v1631 = vld [vmem:[%s1 + $0x30f8] sm:$0xff]
    %v1632 = vld [vmem:[%s2] sm:$0x1]
    %v1634 = vperm.slane %v1632, 0
    %1661 = vst [vmem:[#allocation1] ss:$4 sm:$0xff] %v39
    %s1662 = scalar_lea.vmem [#allocation1], 32
    %1663 = vst [vmem:[%s1662] ss:$4 sm:$0xff] %v40
    %v1664 = vld.sshfl [vmem:[#allocation1] sm:$0xff pattern:$0x73625140]
    %v1665 = vld.sshfl [vmem:[#allocation1 + $0x8] sm:$0xff pattern:$0x73625140]
    %v1666 = vld.sshfl [vmem:[#allocation1 + $0x10] sm:$0xff pattern:$0x73625140]
    %v1667 = vld.sshfl [vmem:[#allocation1 + $0x18] sm:$0xff pattern:$0x73625140]
    %v1668 = vld.sshfl [vmem:[#allocation1 + $0x20] sm:$0xff pattern:$0x73625140]
    %v1669 = vld.sshfl [vmem:[#allocation1 + $0x28] sm:$0xff pattern:$0x73625140]
    %v1670 = vld.sshfl [vmem:[#allocation1 + $0x30] sm:$0xff pattern:$0x73625140]
    %v1671 = vld.sshfl [vmem:[#allocation1 + $0x38] sm:$0xff pattern:$0x73625140]
    %1672 = vst [vmem:[#allocation1] ss:$4 sm:$0xff] %v41
    %1673 = vst [vmem:[%s1662] ss:$4 sm:$0xff] %v42
    %v1674 = vld.sshfl [vmem:[#allocation1] sm:$0xff pattern:$0x73625140]
    %v1675 = vld.sshfl [vmem:[#allocation1 + $0x8] sm:$0xff pattern:$0x73625140]
    %v1676 = vld.sshfl [vmem:[#allocation1 + $0x10] sm:$0xff pattern:$0x73625140]
    %v1677 = vld.sshfl [vmem:[#allocation1 + $0x18] sm:$0xff pattern:$0x73625140]
    %v1678 = vld.sshfl [vmem:[#allocation1 + $0x20] sm:$0xff pattern:$0x73625140]
    %v1679 = vld.sshfl [vmem:[#allocation1 + $0x28] sm:$0xff pattern:$0x73625140]
    %v1680 = vld.sshfl [vmem:[#allocation1 + $0x30] sm:$0xff pattern:$0x73625140]
    %v1681 = vld.sshfl [vmem:[#allocation1 + $0x38] sm:$0xff pattern:$0x73625140]
    %1682 = vst [vmem:[#allocation1] ss:$4 sm:$0xff] %v43
    %1683 = vst [vmem:[%s1662] ss:$4 sm:$0xff] %v44
    %v1684 = vld.sshfl [vmem:[#allocation1] sm:$0xff pattern:$0x73625140]
    %v1685 = vld.sshfl [vmem:[#allocation1 + $0x8] sm:$0xff pattern:$0x73625140]
    %v1686 = vld.sshfl [vmem:[#allocation1 + $0x10] sm:$0xff pattern:$0x73625140]
    %v1687 = vld.sshfl [vmem:[#allocation1 + $0x18] sm:$0xff pattern:$0x73625140]
    %v1688 = vld.sshfl [vmem:[#allocation1 + $0x20] sm:$0xff pattern:$0x73625140]
    %v1689 = vld.sshfl [vmem:[#allocation1 + $0x28] sm:$0xff pattern:$0x73625140]
    %v1690 = vld.sshfl [vmem:[#allocation1 + $0x30] sm:$0xff pattern:$0x73625140]
    %v1691 = vld.sshfl [vmem:[#allocation1 + $0x38] sm:$0xff pattern:$0x73625140]
    %1692 = vst [vmem:[#allocation1] ss:$4 sm:$0xff] %v45
    %1693 = vst [vmem:[%s1662] ss:$4 sm:$0xff] %v46
    %v1694 = vld.sshfl [vmem:[#allocation1] sm:$0xff pattern:$0x73625140]
    %v1695 = vld.sshfl [vmem:[#allocation1 + $0x8] sm:$0xff pattern:$0x73625140]
    %v1696 = vld.sshfl [vmem:[#allocation1 + $0x10] sm:$0xff pattern:$0x73625140]
    %v1697 = vld.sshfl [vmem:[#allocation1 + $0x18] sm:$0xff pattern:$0x73625140]
    %v1698 = vld.sshfl [vmem:[#allocation1 + $0x20] sm:$0xff pattern:$0x73625140]
    %v1699 = vld.sshfl [vmem:[#allocation1 + $0x28] sm:$0xff pattern:$0x73625140]
    %v1700 = vld.sshfl [vmem:[#allocation1 + $0x30] sm:$0xff pattern:$0x73625140]
    %v1701 = vld.sshfl [vmem:[#allocation1 + $0x38] sm:$0xff pattern:$0x73625140]
    %1702 = vst [vmem:[#allocation1] ss:$4 sm:$0xff] %v47
    %1703 = vst [vmem:[%s1662] ss:$4 sm:$0xff] %v48
    %v1704 = vld.sshfl [vmem:[#allocation1] sm:$0xff pattern:$0x73625140]
    %v1705 = vld.sshfl [vmem:[#allocation1 + $0x8] sm:$0xff pattern:$0x73625140]
    %v1706 = vld.sshfl [vmem:[#allocation1 + $0x10] sm:$0xff pattern:$0x73625140]
    %v1707 = vld.sshfl [vmem:[#allocation1 + $0x18] sm:$0xff pattern:$0x73625140]
    %v1708 = vld.sshfl [vmem:[#allocation1 + $0x20] sm:$0xff pattern:$0x73625140]
    %v1709 = vld.sshfl [vmem:[#allocation1 + $0x28] sm:$0xff pattern:$0x73625140]
    %v1710 = vld.sshfl [vmem:[#allocation1 + $0x30] sm:$0xff pattern:$0x73625140]
    %v1711 = vld.sshfl [vmem:[#allocation1 + $0x38] sm:$0xff pattern:$0x73625140]
    %1712 = vst [vmem:[#allocation1] ss:$4 sm:$0xff] %v49
    %1713 = vst [vmem:[%s1662] ss:$4 sm:$0xff] %v50
    %v1714 = vld.sshfl [vmem:[#allocation1] sm:$0xff pattern:$0x73625140]
    %v1715 = vld.sshfl [vmem:[#allocation1 + $0x8] sm:$0xff pattern:$0x73625140]
    %v1716 = vld.sshfl [vmem:[#allocation1 + $0x10] sm:$0xff pattern:$0x73625140]
    %v1717 = vld.sshfl [vmem:[#allocation1 + $0x18] sm:$0xff pattern:$0x73625140]
    %v1718 = vld.sshfl [vmem:[#allocation1 + $0x20] sm:$0xff pattern:$0x73625140]
    %v1719 = vld.sshfl [vmem:[#allocation1 + $0x28] sm:$0xff pattern:$0x73625140]
    %v1720 = vld.sshfl [vmem:[#allocation1 + $0x30] sm:$0xff pattern:$0x73625140]
    %v1721 = vld.sshfl [vmem:[#allocation1 + $0x38] sm:$0xff pattern:$0x73625140]
    %1722 = vst [vmem:[#allocation1] ss:$4 sm:$0xff] %v51
    %1723 = vst [vmem:[%s1662] ss:$4 sm:$0xff] %v52
    %v1724 = vld.sshfl [vmem:[#allocation1] sm:$0xff pattern:$0x73625140]
    %v1725 = vld.sshfl [vmem:[#allocation1 + $0x8] sm:$0xff pattern:$0x73625140]
    %v1726 = vld.sshfl [vmem:[#allocation1 + $0x10] sm:$0xff pattern:$0x73625140]
    %v1727 = vld.sshfl [vmem:[#allocation1 + $0x18] sm:$0xff pattern:$0x73625140]
    %v1728 = vld.sshfl [vmem:[#allocation1 + $0x20] sm:$0xff pattern:$0x73625140]
    %v1729 = vld.sshfl [vmem:[#allocation1 + $0x28] sm:$0xff pattern:$0x73625140]
    %v1730 = vld.sshfl [vmem:[#allocation1 + $0x30] sm:$0xff pattern:$0x73625140]
    %v1731 = vld.sshfl [vmem:[#allocation1 + $0x38] sm:$0xff pattern:$0x73625140]
    %1732 = vst [vmem:[#allocation1] ss:$4 sm:$0xff] %v53
    %1733 = vst [vmem:[%s1662] ss:$4 sm:$0xff] %v54
    %v1734 = vld.sshfl [vmem:[#allocation1] sm:$0xff pattern:$0x73625140]
    %v1735 = vld.sshfl [vmem:[#allocation1 + $0x8] sm:$0xff pattern:$0x73625140]
    %v1736 = vld.sshfl [vmem:[#allocation1 + $0x10] sm:$0xff pattern:$0x73625140]
    %v1737 = vld.sshfl [vmem:[#allocation1 + $0x18] sm:$0xff pattern:$0x73625140]
    %v1738 = vld.sshfl [vmem:[#allocation1 + $0x20] sm:$0xff pattern:$0x73625140]
    %v1739 = vld.sshfl [vmem:[#allocation1 + $0x28] sm:$0xff pattern:$0x73625140]
    %v1740 = vld.sshfl [vmem:[#allocation1 + $0x30] sm:$0xff pattern:$0x73625140]
    %v1741 = vld.sshfl [vmem:[#allocation1 + $0x38] sm:$0xff pattern:$0x73625140]
    %1742 = vst [vmem:[#allocation1] ss:$4 sm:$0xff] %v55
    %1743 = vst [vmem:[%s1662] ss:$4 sm:$0xff] %v56
    %v1744 = vld.sshfl [vmem:[#allocation1] sm:$0xff pattern:$0x73625140]
    %v1745 = vld.sshfl [vmem:[#allocation1 + $0x8] sm:$0xff pattern:$0x73625140]
    %v1746 = vld.sshfl [vmem:[#allocation1 + $0x10] sm:$0xff pattern:$0x73625140]
    %v1747 = vld.sshfl [vmem:[#allocation1 + $0x18] sm:$0xff pattern:$0x73625140]
    %v1748 = vld.sshfl [vmem:[#allocation1 + $0x20] sm:$0xff pattern:$0x73625140]
    %v1749 = vld.sshfl [vmem:[#allocation1 + $0x28] sm:$0xff pattern:$0x73625140]
    %v1750 = vld.sshfl [vmem:[#allocation1 + $0x30] sm:$0xff pattern:$0x73625140]
    %v1751 = vld.sshfl [vmem:[#allocation1 + $0x38] sm:$0xff pattern:$0x73625140]
    %1752 = vst [vmem:[#allocation1] ss:$4 sm:$0xff] %v57
    %1753 = vst [vmem:[%s1662] ss:$4 sm:$0xff] %v58
    %v1754 = vld.sshfl [vmem:[#allocation1] sm:$0xff pattern:$0x73625140]
    %v1755 = vld.sshfl [vmem:[#allocation1 + $0x8] sm:$0xff pattern:$0x73625140]
    %v1756 = vld.sshfl [vmem:[#allocation1 + $0x10] sm:$0xff pattern:$0x73625140]
    %v1757 = vld.sshfl [vmem:[#allocation1 + $0x18] sm:$0xff pattern:$0x73625140]
    %v1758 = vld.sshfl [vmem:[#allocation1 + $0x20] sm:$0xff pattern:$0x73625140]
    %v1759 = vld.sshfl [vmem:[#allocation1 + $0x28] sm:$0xff pattern:$0x73625140]
    %v1760 = vld.sshfl [vmem:[#allocation1 + $0x30] sm:$0xff pattern:$0x73625140]
    %v1761 = vld.sshfl [vmem:[#allocation1 + $0x38] sm:$0xff pattern:$0x73625140]
    %1762 = vst [vmem:[#allocation1] ss:$4 sm:$0xff] %v59
    %1763 = vst [vmem:[%s1662] ss:$4 sm:$0xff] %v60
    %v1764 = vld.sshfl [vmem:[#allocation1] sm:$0xff pattern:$0x73625140]
    %v1765 = vld.sshfl [vmem:[#allocation1 + $0x8] sm:$0xff pattern:$0x73625140]
    %v1766 = vld.sshfl [vmem:[#allocation1 + $0x10] sm:$0xff pattern:$0x73625140]
    %v1767 = vld.sshfl [vmem:[#allocation1 + $0x18] sm:$0xff pattern:$0x73625140]
    %v1768 = vld.sshfl [vmem:[#allocation1 + $0x20] sm:$0xff pattern:$0x73625140]
    %v1769 = vld.sshfl [vmem:[#allocation1 + $0x28] sm:$0xff pattern:$0x73625140]
    %v1770 = vld.sshfl [vmem:[#allocation1 + $0x30] sm:$0xff pattern:$0x73625140]
    %v1771 = vld.sshfl [vmem:[#allocation1 + $0x38] sm:$0xff pattern:$0x73625140]
    %1772 = vst [vmem:[#allocation1] ss:$4 sm:$0xff] %v61
    %1773 = vst [vmem:[%s1662] ss:$4 sm:$0xff] %v62
    %v1774 = vld.sshfl [vmem:[#allocation1] sm:$0xff pattern:$0x73625140]
    %v1775 = vld.sshfl [vmem:[#allocation1 + $0x8] sm:$0xff pattern:$0x73625140]
    %v1776 = vld.sshfl [vmem:[#allocation1 + $0x10] sm:$0xff pattern:$0x73625140]
    %v1777 = vld.sshfl [vmem:[#allocation1 + $0x18] sm:$0xff pattern:$0x73625140]
    %v1778 = vld.sshfl [vmem:[#allocation1 + $0x20] sm:$0xff pattern:$0x73625140]
    %v1779 = vld.sshfl [vmem:[#allocation1 + $0x28] sm:$0xff pattern:$0x73625140]
    %v1780 = vld.sshfl [vmem:[#allocation1 + $0x30] sm:$0xff pattern:$0x73625140]
    %v1781 = vld.sshfl [vmem:[#allocation1 + $0x38] sm:$0xff pattern:$0x73625140]
    %1782 = vst [vmem:[#allocation1] ss:$4 sm:$0xff] %v63
    %v1783 = vld.sshfl [vmem:[#allocation1] sm:$0xff pattern:$0x73625140]
    %v1784 = vld.sshfl [vmem:[#allocation1 + $0x8] sm:$0xff pattern:$0x73625140]
    %1883 = vmatpush.msra.mxu0 %v79
    %1884 = vmatpush.msra.mxu0 %v78
    %1885 = vmatpush.msra.mxu0 %v77
    %1886 = vmatpush.msra.mxu0 %v76
    %1887 = vmatpush.msra.mxu0 %v75
    %1888 = vmatpush.msra.mxu0 %v74
    %1889 = vmatpush.msra.mxu0 %v73
    %1890 = vmatpush.msra.mxu0 %v72
    %1891 = vmatpush.msra.mxu0 %v71
    %1892 = vmatpush.msra.mxu0 %v70
    %1893 = vmatpush.msra.mxu0 %v69
    %1894 = vmatpush.msra.mxu0 %v68
    %1895 = vmatpush.msra.mxu0 %v67
    %1896 = vmatpush.msra.mxu0 %v66
    %1897 = vmatpush.msra.mxu0 %v65
    %1898 = vmatpush.msra.mxu0 %v64
    %1899 = vmatmul.f32.gmra.mxu0 %v1664
    %v1900 = vpop.f32.mrf.mxu0
    %v1901 = vadd.f32 %v1634, %v1900
    %1902 = vdwg.mxu0
    %1903 = vmatpush.msra.mxu0 %v95
    %1904 = vmatpush.msra.mxu0 %v94
    %1905 = vmatpush.msra.mxu0 %v93
    %1906 = vmatpush.msra.mxu0 %v92
    %1907 = vmatpush.msra.mxu0 %v91
    %1908 = vmatpush.msra.mxu0 %v90
    %1909 = vmatpush.msra.mxu0 %v89
    %1910 = vmatpush.msra.mxu0 %v88
    %1911 = vmatpush.msra.mxu0 %v87
    %1912 = vmatpush.msra.mxu0 %v86
    %1913 = vmatpush.msra.mxu0 %v85
    %1914 = vmatpush.msra.mxu0 %v84
    %1915 = vmatpush.msra.mxu0 %v83
    %1916 = vmatpush.msra.mxu0 %v82
    %1917 = vmatpush.msra.mxu0 %v81
    %1918 = vmatpush.msra.mxu0 %v80
    %1919 = vmatmul.f32.gmra.mxu0 %v1665
    %v1920 = vpop.f32.mrf.mxu0
    %v1921 = vadd.f32 %v1901, %v1920
    %1922 = vdwg.mxu0
    %1923 = vmatpush.msra.mxu0 %v111
    %1924 = vmatpush.msra.mxu0 %v110
    %1925 = vmatpush.msra.mxu0 %v109
    %1926 = vmatpush.msra.mxu0 %v108
    %1927 = vmatpush.msra.mxu0 %v107
    %1928 = vmatpush.msra.mxu0 %v106
    %1929 = vmatpush.msra.mxu0 %v105
    %1930 = vmatpush.msra.mxu0 %v104
    %1931 = vmatpush.msra.mxu0 %v103
    %1932 = vmatpush.msra.mxu0 %v102
    %1933 = vmatpush.msra.mxu0 %v101
    %1934 = vmatpush.msra.mxu0 %v100
    %1935 = vmatpush.msra.mxu0 %v99
    %1936 = vmatpush.msra.mxu0 %v98
    %1937 = vmatpush.msra.mxu0 %v97
    %1938 = vmatpush.msra.mxu0 %v96
    %1939 = vmatmul.f32.gmra.mxu0 %v1666
    %v1940 = vpop.f32.mrf.mxu0
    %v1941 = vadd.f32 %v1921, %v1940
    %1942 = vdwg.mxu0
    %1943 = vmatpush.msra.mxu0 %v127
    %1944 = vmatpush.msra.mxu0 %v126
    %1945 = vmatpush.msra.mxu0 %v125
    %1946 = vmatpush.msra.mxu0 %v124
    %1947 = vmatpush.msra.mxu0 %v123
    %1948 = vmatpush.msra.mxu0 %v122
    %1949 = vmatpush.msra.mxu0 %v121
    %1950 = vmatpush.msra.mxu0 %v120
    %1951 = vmatpush.msra.mxu0 %v119
    %1952 = vmatpush.msra.mxu0 %v118
    %1953 = vmatpush.msra.mxu0 %v117
    %1954 = vmatpush.msra.mxu0 %v116
    %1955 = vmatpush.msra.mxu0 %v115
    %1956 = vmatpush.msra.mxu0 %v114
    %1957 = vmatpush.msra.mxu0 %v113
    %1958 = vmatpush.msra.mxu0 %v112
    %1959 = vmatmul.f32.gmra.mxu0 %v1667
    %v1960 = vpop.f32.mrf.mxu0
    %v1961 = vadd.f32 %v1941, %v1960
    %1962 = vdwg.mxu0
    %1963 = vmatpush.msra.mxu0 %v143
    %1964 = vmatpush.msra.mxu0 %v142
    %1965 = vmatpush.msra.mxu0 %v141
    %1966 = vmatpush.msra.mxu0 %v140
    %1967 = vmatpush.msra.mxu0 %v139
    %1968 = vmatpush.msra.mxu0 %v138
    %1969 = vmatpush.msra.mxu0 %v137
    %1970 = vmatpush.msra.mxu0 %v136
    %1971 = vmatpush.msra.mxu0 %v135
    %1972 = vmatpush.msra.mxu0 %v134
    %1973 = vmatpush.msra.mxu0 %v133
    %1974 = vmatpush.msra.mxu0 %v132
    %1975 = vmatpush.msra.mxu0 %v131
    %1976 = vmatpush.msra.mxu0 %v130
    %1977 = vmatpush.msra.mxu0 %v129
    %1978 = vmatpush.msra.mxu0 %v128
    %1979 = vmatmul.f32.gmra.mxu0 %v1668
    %v1980 = vpop.f32.mrf.mxu0
    %v1981 = vadd.f32 %v1961, %v1980
    %1982 = vdwg.mxu0
    %1983 = vmatpush.msra.mxu0 %v159
    %1984 = vmatpush.msra.mxu0 %v158
    %1985 = vmatpush.msra.mxu0 %v157
    %1986 = vmatpush.msra.mxu0 %v156
    %1987 = vmatpush.msra.mxu0 %v155
    %1988 = vmatpush.msra.mxu0 %v154
    %1989 = vmatpush.msra.mxu0 %v153
    %1990 = vmatpush.msra.mxu0 %v152
    %1991 = vmatpush.msra.mxu0 %v151
    %1992 = vmatpush.msra.mxu0 %v150
    %1993 = vmatpush.msra.mxu0 %v149
    %1994 = vmatpush.msra.mxu0 %v148
    %1995 = vmatpush.msra.mxu0 %v147
    %1996 = vmatpush.msra.mxu0 %v146
    %1997 = vmatpush.msra.mxu0 %v145
    %1998 = vmatpush.msra.mxu0 %v144
    %1999 = vmatmul.f32.gmra.mxu0 %v1669
    %v2000 = vpop.f32.mrf.mxu0
    %v2001 = vadd.f32 %v1981, %v2000
    %2002 = vdwg.mxu0
    %2003 = vmatpush.msra.mxu0 %v175
    %2004 = vmatpush.msra.mxu0 %v174
    %2005 = vmatpush.msra.mxu0 %v173
    %2006 = vmatpush.msra.mxu0 %v172
    %2007 = vmatpush.msra.mxu0 %v171
    %2008 = vmatpush.msra.mxu0 %v170
    %2009 = vmatpush.msra.mxu0 %v169
    %2010 = vmatpush.msra.mxu0 %v168
    %2011 = vmatpush.msra.mxu0 %v167
    %2012 = vmatpush.msra.mxu0 %v166
    %2013 = vmatpush.msra.mxu0 %v165
    %2014 = vmatpush.msra.mxu0 %v164
    %2015 = vmatpush.msra.mxu0 %v163
    %2016 = vmatpush.msra.mxu0 %v162
    %2017 = vmatpush.msra.mxu0 %v161
    %2018 = vmatpush.msra.mxu0 %v160
    %2019 = vmatmul.f32.gmra.mxu0 %v1670
    %v2020 = vpop.f32.mrf.mxu0
    %v2021 = vadd.f32 %v2001, %v2020
    %2022 = vdwg.mxu0
    %2023 = vmatpush.msra.mxu0 %v191
    %2024 = vmatpush.msra.mxu0 %v190
    %2025 = vmatpush.msra.mxu0 %v189
    %2026 = vmatpush.msra.mxu0 %v188
    %2027 = vmatpush.msra.mxu0 %v187
    %2028 = vmatpush.msra.mxu0 %v186
    %2029 = vmatpush.msra.mxu0 %v185
    %2030 = vmatpush.msra.mxu0 %v184
    %2031 = vmatpush.msra.mxu0 %v183
    %2032 = vmatpush.msra.mxu0 %v182
    %2033 = vmatpush.msra.mxu0 %v181
    %2034 = vmatpush.msra.mxu0 %v180
    %2035 = vmatpush.msra.mxu0 %v179
    %2036 = vmatpush.msra.mxu0 %v178
    %2037 = vmatpush.msra.mxu0 %v177
    %2038 = vmatpush.msra.mxu0 %v176
    %2039 = vmatmul.f32.gmra.mxu0 %v1671
    %v2040 = vpop.f32.mrf.mxu0
    %v2041 = vadd.f32 %v2021, %v2040
    %2042 = vdwg.mxu0
    %2043 = vmatpush.msra.mxu0 %v207
    %2044 = vmatpush.msra.mxu0 %v206
    %2045 = vmatpush.msra.mxu0 %v205
    %2046 = vmatpush.msra.mxu0 %v204
    %2047 = vmatpush.msra.mxu0 %v203
    %2048 = vmatpush.msra.mxu0 %v202
    %2049 = vmatpush.msra.mxu0 %v201
    %2050 = vmatpush.msra.mxu0 %v200
    %2051 = vmatpush.msra.mxu0 %v199
    %2052 = vmatpush.msra.mxu0 %v198
    %2053 = vmatpush.msra.mxu0 %v197
    %2054 = vmatpush.msra.mxu0 %v196
    %2055 = vmatpush.msra.mxu0 %v195
    %2056 = vmatpush.msra.mxu0 %v194
    %2057 = vmatpush.msra.mxu0 %v193
    %2058 = vmatpush.msra.mxu0 %v192
    %2059 = vmatmul.f32.gmra.mxu0 %v1674
    %v2060 = vpop.f32.mrf.mxu0
    %v2061 = vadd.f32 %v2041, %v2060
    %2062 = vdwg.mxu0
    %2063 = vmatpush.msra.mxu0 %v223
    %2064 = vmatpush.msra.mxu0 %v222
    %2065 = vmatpush.msra.mxu0 %v221
    %2066 = vmatpush.msra.mxu0 %v220
    %2067 = vmatpush.msra.mxu0 %v219
    %2068 = vmatpush.msra.mxu0 %v218
    %2069 = vmatpush.msra.mxu0 %v217
    %2070 = vmatpush.msra.mxu0 %v216
    %2071 = vmatpush.msra.mxu0 %v215
    %2072 = vmatpush.msra.mxu0 %v214
    %2073 = vmatpush.msra.mxu0 %v213
    %2074 = vmatpush.msra.mxu0 %v212
    %2075 = vmatpush.msra.mxu0 %v211
    %2076 = vmatpush.msra.mxu0 %v210
    %2077 = vmatpush.msra.mxu0 %v209
    %2078 = vmatpush.msra.mxu0 %v208
    %2079 = vmatmul.f32.gmra.mxu0 %v1675
    %v2080 = vpop.f32.mrf.mxu0
    %v2081 = vadd.f32 %v2061, %v2080
    %2082 = vdwg.mxu0
    %2083 = vmatpush.msra.mxu0 %v239
    %2084 = vmatpush.msra.mxu0 %v238
    %2085 = vmatpush.msra.mxu0 %v237
    %2086 = vmatpush.msra.mxu0 %v236
    %2087 = vmatpush.msra.mxu0 %v235
    %2088 = vmatpush.msra.mxu0 %v234
    %2089 = vmatpush.msra.mxu0 %v233
    %2090 = vmatpush.msra.mxu0 %v232
    %2091 = vmatpush.msra.mxu0 %v231
    %2092 = vmatpush.msra.mxu0 %v230
    %2093 = vmatpush.msra.mxu0 %v229
    %2094 = vmatpush.msra.mxu0 %v228
    %2095 = vmatpush.msra.mxu0 %v227
    %2096 = vmatpush.msra.mxu0 %v226
    %2097 = vmatpush.msra.mxu0 %v225
    %2098 = vmatpush.msra.mxu0 %v224
    %2099 = vmatmul.f32.gmra.mxu0 %v1676
    %v2100 = vpop.f32.mrf.mxu0
    %v2101 = vadd.f32 %v2081, %v2100
    %2102 = vdwg.mxu0
    %2103 = vmatpush.msra.mxu0 %v255
    %2104 = vmatpush.msra.mxu0 %v254
    %2105 = vmatpush.msra.mxu0 %v253
    %2106 = vmatpush.msra.mxu0 %v252
    %2107 = vmatpush.msra.mxu0 %v251
    %2108 = vmatpush.msra.mxu0 %v250
    %2109 = vmatpush.msra.mxu0 %v249
    %2110 = vmatpush.msra.mxu0 %v248
    %2111 = vmatpush.msra.mxu0 %v247
    %2112 = vmatpush.msra.mxu0 %v246
    %2113 = vmatpush.msra.mxu0 %v245
    %2114 = vmatpush.msra.mxu0 %v244
    %2115 = vmatpush.msra.mxu0 %v243
    %2116 = vmatpush.msra.mxu0 %v242
    %2117 = vmatpush.msra.mxu0 %v241
    %2118 = vmatpush.msra.mxu0 %v240
    %2119 = vmatmul.f32.gmra.mxu0 %v1677
    %v2120 = vpop.f32.mrf.mxu0
    %v2121 = vadd.f32 %v2101, %v2120
    %2122 = vdwg.mxu0
    %2123 = vmatpush.msra.mxu0 %v271
    %2124 = vmatpush.msra.mxu0 %v270
    %2125 = vmatpush.msra.mxu0 %v269
    %2126 = vmatpush.msra.mxu0 %v268
    %2127 = vmatpush.msra.mxu0 %v267
    %2128 = vmatpush.msra.mxu0 %v266
    %2129 = vmatpush.msra.mxu0 %v265
    %2130 = vmatpush.msra.mxu0 %v264
    %2131 = vmatpush.msra.mxu0 %v263
    %2132 = vmatpush.msra.mxu0 %v262
    %2133 = vmatpush.msra.mxu0 %v261
    %2134 = vmatpush.msra.mxu0 %v260
    %2135 = vmatpush.msra.mxu0 %v259
    %2136 = vmatpush.msra.mxu0 %v258
    %2137 = vmatpush.msra.mxu0 %v257
    %2138 = vmatpush.msra.mxu0 %v256
    %2139 = vmatmul.f32.gmra.mxu0 %v1678
    %v2140 = vpop.f32.mrf.mxu0
    %v2141 = vadd.f32 %v2121, %v2140
    %2142 = vdwg.mxu0
    %2143 = vmatpush.msra.mxu0 %v287
    %2144 = vmatpush.msra.mxu0 %v286
    %2145 = vmatpush.msra.mxu0 %v285
    %2146 = vmatpush.msra.mxu0 %v284
    %2147 = vmatpush.msra.mxu0 %v283
    %2148 = vmatpush.msra.mxu0 %v282
    %2149 = vmatpush.msra.mxu0 %v281
    %2150 = vmatpush.msra.mxu0 %v280
    %2151 = vmatpush.msra.mxu0 %v279
    %2152 = vmatpush.msra.mxu0 %v278
    %2153 = vmatpush.msra.mxu0 %v277
    %2154 = vmatpush.msra.mxu0 %v276
    %2155 = vmatpush.msra.mxu0 %v275
    %2156 = vmatpush.msra.mxu0 %v274
    %2157 = vmatpush.msra.mxu0 %v273
    %2158 = vmatpush.msra.mxu0 %v272
    %2159 = vmatmul.f32.gmra.mxu0 %v1679
    %v2160 = vpop.f32.mrf.mxu0
    %v2161 = vadd.f32 %v2141, %v2160
    %2162 = vdwg.mxu0
    %2163 = vmatpush.msra.mxu0 %v303
    %2164 = vmatpush.msra.mxu0 %v302
    %2165 = vmatpush.msra.mxu0 %v301
    %2166 = vmatpush.msra.mxu0 %v300
    %2167 = vmatpush.msra.mxu0 %v299
    %2168 = vmatpush.msra.mxu0 %v298
    %2169 = vmatpush.msra.mxu0 %v297
    %2170 = vmatpush.msra.mxu0 %v296
    %2171 = vmatpush.msra.mxu0 %v295
    %2172 = vmatpush.msra.mxu0 %v294
    %2173 = vmatpush.msra.mxu0 %v293
    %2174 = vmatpush.msra.mxu0 %v292
    %2175 = vmatpush.msra.mxu0 %v291
    %2176 = vmatpush.msra.mxu0 %v290
    %2177 = vmatpush.msra.mxu0 %v289
    %2178 = vmatpush.msra.mxu0 %v288
    %2179 = vmatmul.f32.gmra.mxu0 %v1680
    %v2180 = vpop.f32.mrf.mxu0
    %v2181 = vadd.f32 %v2161, %v2180
    %2182 = vdwg.mxu0
    %2183 = vmatpush.msra.mxu0 %v319
    %2184 = vmatpush.msra.mxu0 %v318
    %2185 = vmatpush.msra.mxu0 %v317
    %2186 = vmatpush.msra.mxu0 %v316
    %2187 = vmatpush.msra.mxu0 %v315
    %2188 = vmatpush.msra.mxu0 %v314
    %2189 = vmatpush.msra.mxu0 %v313
    %2190 = vmatpush.msra.mxu0 %v312
    %2191 = vmatpush.msra.mxu0 %v311
    %2192 = vmatpush.msra.mxu0 %v310
    %2193 = vmatpush.msra.mxu0 %v309
    %2194 = vmatpush.msra.mxu0 %v308
    %2195 = vmatpush.msra.mxu0 %v307
    %2196 = vmatpush.msra.mxu0 %v306
    %2197 = vmatpush.msra.mxu0 %v305
    %2198 = vmatpush.msra.mxu0 %v304
    %2199 = vmatmul.f32.gmra.mxu0 %v1681
    %v2200 = vpop.f32.mrf.mxu0
    %v2201 = vadd.f32 %v2181, %v2200
    %2202 = vdwg.mxu0
    %2203 = vmatpush.msra.mxu0 %v335
    %2204 = vmatpush.msra.mxu0 %v334
    %2205 = vmatpush.msra.mxu0 %v333
    %2206 = vmatpush.msra.mxu0 %v332
    %2207 = vmatpush.msra.mxu0 %v331
    %2208 = vmatpush.msra.mxu0 %v330
    %2209 = vmatpush.msra.mxu0 %v329
    %2210 = vmatpush.msra.mxu0 %v328
    %2211 = vmatpush.msra.mxu0 %v327
    %2212 = vmatpush.msra.mxu0 %v326
    %2213 = vmatpush.msra.mxu0 %v325
    %2214 = vmatpush.msra.mxu0 %v324
    %2215 = vmatpush.msra.mxu0 %v323
    %2216 = vmatpush.msra.mxu0 %v322
    %2217 = vmatpush.msra.mxu0 %v321
    %2218 = vmatpush.msra.mxu0 %v320
    %2219 = vmatmul.f32.gmra.mxu0 %v1684
    %v2220 = vpop.f32.mrf.mxu0
    %v2221 = vadd.f32 %v2201, %v2220
    %2222 = vdwg.mxu0
    %2223 = vmatpush.msra.mxu0 %v351
    %2224 = vmatpush.msra.mxu0 %v350
    %2225 = vmatpush.msra.mxu0 %v349
    %2226 = vmatpush.msra.mxu0 %v348
    %2227 = vmatpush.msra.mxu0 %v347
    %2228 = vmatpush.msra.mxu0 %v346
    %2229 = vmatpush.msra.mxu0 %v345
    %2230 = vmatpush.msra.mxu0 %v344
    %2231 = vmatpush.msra.mxu0 %v343
    %2232 = vmatpush.msra.mxu0 %v342
    %2233 = vmatpush.msra.mxu0 %v341
    %2234 = vmatpush.msra.mxu0 %v340
    %2235 = vmatpush.msra.mxu0 %v339
    %2236 = vmatpush.msra.mxu0 %v338
    %2237 = vmatpush.msra.mxu0 %v337
    %2238 = vmatpush.msra.mxu0 %v336
    %2239 = vmatmul.f32.gmra.mxu0 %v1685
    %v2240 = vpop.f32.mrf.mxu0
    %v2241 = vadd.f32 %v2221, %v2240
    %2242 = vdwg.mxu0
    %2243 = vmatpush.msra.mxu0 %v367
    %2244 = vmatpush.msra.mxu0 %v366
    %2245 = vmatpush.msra.mxu0 %v365
    %2246 = vmatpush.msra.mxu0 %v364
    %2247 = vmatpush.msra.mxu0 %v363
    %2248 = vmatpush.msra.mxu0 %v362
    %2249 = vmatpush.msra.mxu0 %v361
    %2250 = vmatpush.msra.mxu0 %v360
    %2251 = vmatpush.msra.mxu0 %v359
    %2252 = vmatpush.msra.mxu0 %v358
    %2253 = vmatpush.msra.mxu0 %v357
    %2254 = vmatpush.msra.mxu0 %v356
    %2255 = vmatpush.msra.mxu0 %v355
    %2256 = vmatpush.msra.mxu0 %v354
    %2257 = vmatpush.msra.mxu0 %v353
    %2258 = vmatpush.msra.mxu0 %v352
    %2259 = vmatmul.f32.gmra.mxu0 %v1686
    %v2260 = vpop.f32.mrf.mxu0
    %v2261 = vadd.f32 %v2241, %v2260
    %2262 = vdwg.mxu0
    %2263 = vmatpush.msra.mxu0 %v383
    %2264 = vmatpush.msra.mxu0 %v382
    %2265 = vmatpush.msra.mxu0 %v381
    %2266 = vmatpush.msra.mxu0 %v380
    %2267 = vmatpush.msra.mxu0 %v379
    %2268 = vmatpush.msra.mxu0 %v378
    %2269 = vmatpush.msra.mxu0 %v377
    %2270 = vmatpush.msra.mxu0 %v376
    %2271 = vmatpush.msra.mxu0 %v375
    %2272 = vmatpush.msra.mxu0 %v374
    %2273 = vmatpush.msra.mxu0 %v373
    %2274 = vmatpush.msra.mxu0 %v372
    %2275 = vmatpush.msra.mxu0 %v371
    %2276 = vmatpush.msra.mxu0 %v370
    %2277 = vmatpush.msra.mxu0 %v369
    %2278 = vmatpush.msra.mxu0 %v368
    %2279 = vmatmul.f32.gmra.mxu0 %v1687
    %v2280 = vpop.f32.mrf.mxu0
    %v2281 = vadd.f32 %v2261, %v2280
    %2282 = vdwg.mxu0
    %2283 = vmatpush.msra.mxu0 %v399
    %2284 = vmatpush.msra.mxu0 %v398
    %2285 = vmatpush.msra.mxu0 %v397
    %2286 = vmatpush.msra.mxu0 %v396
    %2287 = vmatpush.msra.mxu0 %v395
    %2288 = vmatpush.msra.mxu0 %v394
    %2289 = vmatpush.msra.mxu0 %v393
    %2290 = vmatpush.msra.mxu0 %v392
    %2291 = vmatpush.msra.mxu0 %v391
    %2292 = vmatpush.msra.mxu0 %v390
    %2293 = vmatpush.msra.mxu0 %v389
    %2294 = vmatpush.msra.mxu0 %v388
    %2295 = vmatpush.msra.mxu0 %v387
    %2296 = vmatpush.msra.mxu0 %v386
    %2297 = vmatpush.msra.mxu0 %v385
    %2298 = vmatpush.msra.mxu0 %v384
    %2299 = vmatmul.f32.gmra.mxu0 %v1688
    %v2300 = vpop.f32.mrf.mxu0
    %v2301 = vadd.f32 %v2281, %v2300
    %2302 = vdwg.mxu0
    %2303 = vmatpush.msra.mxu0 %v415
    %2304 = vmatpush.msra.mxu0 %v414
    %2305 = vmatpush.msra.mxu0 %v413
    %2306 = vmatpush.msra.mxu0 %v412
    %2307 = vmatpush.msra.mxu0 %v411
    %2308 = vmatpush.msra.mxu0 %v410
    %2309 = vmatpush.msra.mxu0 %v409
    %2310 = vmatpush.msra.mxu0 %v408
    %2311 = vmatpush.msra.mxu0 %v407
    %2312 = vmatpush.msra.mxu0 %v406
    %2313 = vmatpush.msra.mxu0 %v405
    %2314 = vmatpush.msra.mxu0 %v404
    %2315 = vmatpush.msra.mxu0 %v403
    %2316 = vmatpush.msra.mxu0 %v402
    %2317 = vmatpush.msra.mxu0 %v401
    %2318 = vmatpush.msra.mxu0 %v400
    %2319 = vmatmul.f32.gmra.mxu0 %v1689
    %v2320 = vpop.f32.mrf.mxu0
    %v2321 = vadd.f32 %v2301, %v2320
    %2322 = vdwg.mxu0
    %2323 = vmatpush.msra.mxu0 %v431
    %2324 = vmatpush.msra.mxu0 %v430
    %2325 = vmatpush.msra.mxu0 %v429
    %2326 = vmatpush.msra.mxu0 %v428
    %2327 = vmatpush.msra.mxu0 %v427
    %2328 = vmatpush.msra.mxu0 %v426
    %2329 = vmatpush.msra.mxu0 %v425
    %2330 = vmatpush.msra.mxu0 %v424
    %2331 = vmatpush.msra.mxu0 %v423
    %2332 = vmatpush.msra.mxu0 %v422
    %2333 = vmatpush.msra.mxu0 %v421
    %2334 = vmatpush.msra.mxu0 %v420
    %2335 = vmatpush.msra.mxu0 %v419
    %2336 = vmatpush.msra.mxu0 %v418
    %2337 = vmatpush.msra.mxu0 %v417
    %2338 = vmatpush.msra.mxu0 %v416
    %2339 = vmatmul.f32.gmra.mxu0 %v1690
    %v2340 = vpop.f32.mrf.mxu0
    %v2341 = vadd.f32 %v2321, %v2340
    %2342 = vdwg.mxu0
    %2343 = vmatpush.msra.mxu0 %v447
    %2344 = vmatpush.msra.mxu0 %v446
    %2345 = vmatpush.msra.mxu0 %v445
    %2346 = vmatpush.msra.mxu0 %v444
    %2347 = vmatpush.msra.mxu0 %v443
    %2348 = vmatpush.msra.mxu0 %v442
    %2349 = vmatpush.msra.mxu0 %v441
    %2350 = vmatpush.msra.mxu0 %v440
    %2351 = vmatpush.msra.mxu0 %v439
    %2352 = vmatpush.msra.mxu0 %v438
    %2353 = vmatpush.msra.mxu0 %v437
    %2354 = vmatpush.msra.mxu0 %v436
    %2355 = vmatpush.msra.mxu0 %v435
    %2356 = vmatpush.msra.mxu0 %v434
    %2357 = vmatpush.msra.mxu0 %v433
    %2358 = vmatpush.msra.mxu0 %v432
    %2359 = vmatmul.f32.gmra.mxu0 %v1691
    %v2360 = vpop.f32.mrf.mxu0
    %v2361 = vadd.f32 %v2341, %v2360
    %2362 = vdwg.mxu0
    %2363 = vmatpush.msra.mxu0 %v463
    %2364 = vmatpush.msra.mxu0 %v462
    %2365 = vmatpush.msra.mxu0 %v461
    %2366 = vmatpush.msra.mxu0 %v460
    %2367 = vmatpush.msra.mxu0 %v459
    %2368 = vmatpush.msra.mxu0 %v458
    %2369 = vmatpush.msra.mxu0 %v457
    %2370 = vmatpush.msra.mxu0 %v456
    %2371 = vmatpush.msra.mxu0 %v455
    %2372 = vmatpush.msra.mxu0 %v454
    %2373 = vmatpush.msra.mxu0 %v453
    %2374 = vmatpush.msra.mxu0 %v452
    %2375 = vmatpush.msra.mxu0 %v451
    %2376 = vmatpush.msra.mxu0 %v450
    %2377 = vmatpush.msra.mxu0 %v449
    %2378 = vmatpush.msra.mxu0 %v448
    %2379 = vmatmul.f32.gmra.mxu0 %v1694
    %v2380 = vpop.f32.mrf.mxu0
    %v2381 = vadd.f32 %v2361, %v2380
    %2382 = vdwg.mxu0
    %2383 = vmatpush.msra.mxu0 %v479
    %2384 = vmatpush.msra.mxu0 %v478
    %2385 = vmatpush.msra.mxu0 %v477
    %2386 = vmatpush.msra.mxu0 %v476
    %2387 = vmatpush.msra.mxu0 %v475
    %2388 = vmatpush.msra.mxu0 %v474
    %2389 = vmatpush.msra.mxu0 %v473
    %2390 = vmatpush.msra.mxu0 %v472
    %2391 = vmatpush.msra.mxu0 %v471
    %2392 = vmatpush.msra.mxu0 %v470
    %2393 = vmatpush.msra.mxu0 %v469
    %2394 = vmatpush.msra.mxu0 %v468
    %2395 = vmatpush.msra.mxu0 %v467
    %2396 = vmatpush.msra.mxu0 %v466
    %2397 = vmatpush.msra.mxu0 %v465
    %2398 = vmatpush.msra.mxu0 %v464
    %2399 = vmatmul.f32.gmra.mxu0 %v1695
    %v2400 = vpop.f32.mrf.mxu0
    %v2401 = vadd.f32 %v2381, %v2400
    %2402 = vdwg.mxu0
    %2403 = vmatpush.msra.mxu0 %v495
    %2404 = vmatpush.msra.mxu0 %v494
    %2405 = vmatpush.msra.mxu0 %v493
    %2406 = vmatpush.msra.mxu0 %v492
    %2407 = vmatpush.msra.mxu0 %v491
    %2408 = vmatpush.msra.mxu0 %v490
    %2409 = vmatpush.msra.mxu0 %v489
    %2410 = vmatpush.msra.mxu0 %v488
    %2411 = vmatpush.msra.mxu0 %v487
    %2412 = vmatpush.msra.mxu0 %v486
    %2413 = vmatpush.msra.mxu0 %v485
    %2414 = vmatpush.msra.mxu0 %v484
    %2415 = vmatpush.msra.mxu0 %v483
    %2416 = vmatpush.msra.mxu0 %v482
    %2417 = vmatpush.msra.mxu0 %v481
    %2418 = vmatpush.msra.mxu0 %v480
    %2419 = vmatmul.f32.gmra.mxu0 %v1696
    %v2420 = vpop.f32.mrf.mxu0
    %v2421 = vadd.f32 %v2401, %v2420
    %2422 = vdwg.mxu0
    %2423 = vmatpush.msra.mxu0 %v511
    %2424 = vmatpush.msra.mxu0 %v510
    %2425 = vmatpush.msra.mxu0 %v509
    %2426 = vmatpush.msra.mxu0 %v508
    %2427 = vmatpush.msra.mxu0 %v507
    %2428 = vmatpush.msra.mxu0 %v506
    %2429 = vmatpush.msra.mxu0 %v505
    %2430 = vmatpush.msra.mxu0 %v504
    %2431 = vmatpush.msra.mxu0 %v503
    %2432 = vmatpush.msra.mxu0 %v502
    %2433 = vmatpush.msra.mxu0 %v501
    %2434 = vmatpush.msra.mxu0 %v500
    %2435 = vmatpush.msra.mxu0 %v499
    %2436 = vmatpush.msra.mxu0 %v498
    %2437 = vmatpush.msra.mxu0 %v497
    %2438 = vmatpush.msra.mxu0 %v496
    %2439 = vmatmul.f32.gmra.mxu0 %v1697
    %v2440 = vpop.f32.mrf.mxu0
    %v2441 = vadd.f32 %v2421, %v2440
    %2442 = vdwg.mxu0
    %2443 = vmatpush.msra.mxu0 %v527
    %2444 = vmatpush.msra.mxu0 %v526
    %2445 = vmatpush.msra.mxu0 %v525
    %2446 = vmatpush.msra.mxu0 %v524
    %2447 = vmatpush.msra.mxu0 %v523
    %2448 = vmatpush.msra.mxu0 %v522
    %2449 = vmatpush.msra.mxu0 %v521
    %2450 = vmatpush.msra.mxu0 %v520
    %2451 = vmatpush.msra.mxu0 %v519
    %2452 = vmatpush.msra.mxu0 %v518
    %2453 = vmatpush.msra.mxu0 %v517
    %2454 = vmatpush.msra.mxu0 %v516
    %2455 = vmatpush.msra.mxu0 %v515
    %2456 = vmatpush.msra.mxu0 %v514
    %2457 = vmatpush.msra.mxu0 %v513
    %2458 = vmatpush.msra.mxu0 %v512
    %2459 = vmatmul.f32.gmra.mxu0 %v1698
    %v2460 = vpop.f32.mrf.mxu0
    %v2461 = vadd.f32 %v2441, %v2460
    %2462 = vdwg.mxu0
    %2463 = vmatpush.msra.mxu0 %v543
    %2464 = vmatpush.msra.mxu0 %v542
    %2465 = vmatpush.msra.mxu0 %v541
    %2466 = vmatpush.msra.mxu0 %v540
    %2467 = vmatpush.msra.mxu0 %v539
    %2468 = vmatpush.msra.mxu0 %v538
    %2469 = vmatpush.msra.mxu0 %v537
    %2470 = vmatpush.msra.mxu0 %v536
    %2471 = vmatpush.msra.mxu0 %v535
    %2472 = vmatpush.msra.mxu0 %v534
    %2473 = vmatpush.msra.mxu0 %v533
    %2474 = vmatpush.msra.mxu0 %v532
    %2475 = vmatpush.msra.mxu0 %v531
    %2476 = vmatpush.msra.mxu0 %v530
    %2477 = vmatpush.msra.mxu0 %v529
    %2478 = vmatpush.msra.mxu0 %v528
    %2479 = vmatmul.f32.gmra.mxu0 %v1699
    %v2480 = vpop.f32.mrf.mxu0
    %v2481 = vadd.f32 %v2461, %v2480
    %2482 = vdwg.mxu0
    %2483 = vmatpush.msra.mxu0 %v559
    %2484 = vmatpush.msra.mxu0 %v558
    %2485 = vmatpush.msra.mxu0 %v557
    %2486 = vmatpush.msra.mxu0 %v556
    %2487 = vmatpush.msra.mxu0 %v555
    %2488 = vmatpush.msra.mxu0 %v554
    %2489 = vmatpush.msra.mxu0 %v553
    %2490 = vmatpush.msra.mxu0 %v552
    %2491 = vmatpush.msra.mxu0 %v551
    %2492 = vmatpush.msra.mxu0 %v550
    %2493 = vmatpush.msra.mxu0 %v549
    %2494 = vmatpush.msra.mxu0 %v548
    %2495 = vmatpush.msra.mxu0 %v547
    %2496 = vmatpush.msra.mxu0 %v546
    %2497 = vmatpush.msra.mxu0 %v545
    %2498 = vmatpush.msra.mxu0 %v544
    %2499 = vmatmul.f32.gmra.mxu0 %v1700
    %v2500 = vpop.f32.mrf.mxu0
    %v2501 = vadd.f32 %v2481, %v2500
    %2502 = vdwg.mxu0
    %2503 = vmatpush.msra.mxu0 %v575
    %2504 = vmatpush.msra.mxu0 %v574
    %2505 = vmatpush.msra.mxu0 %v573
    %2506 = vmatpush.msra.mxu0 %v572
    %2507 = vmatpush.msra.mxu0 %v571
    %2508 = vmatpush.msra.mxu0 %v570
    %2509 = vmatpush.msra.mxu0 %v569
    %2510 = vmatpush.msra.mxu0 %v568
    %2511 = vmatpush.msra.mxu0 %v567
    %2512 = vmatpush.msra.mxu0 %v566
    %2513 = vmatpush.msra.mxu0 %v565
    %2514 = vmatpush.msra.mxu0 %v564
    %2515 = vmatpush.msra.mxu0 %v563
    %2516 = vmatpush.msra.mxu0 %v562
    %2517 = vmatpush.msra.mxu0 %v561
    %2518 = vmatpush.msra.mxu0 %v560
    %2519 = vmatmul.f32.gmra.mxu0 %v1701
    %v2520 = vpop.f32.mrf.mxu0
    %v2521 = vadd.f32 %v2501, %v2520
    %2522 = vdwg.mxu0
    %2523 = vmatpush.msra.mxu0 %v591
    %2524 = vmatpush.msra.mxu0 %v590
    %2525 = vmatpush.msra.mxu0 %v589
    %2526 = vmatpush.msra.mxu0 %v588
    %2527 = vmatpush.msra.mxu0 %v587
    %2528 = vmatpush.msra.mxu0 %v586
    %2529 = vmatpush.msra.mxu0 %v585
    %2530 = vmatpush.msra.mxu0 %v584
    %2531 = vmatpush.msra.mxu0 %v583
    %2532 = vmatpush.msra.mxu0 %v582
    %2533 = vmatpush.msra.mxu0 %v581
    %2534 = vmatpush.msra.mxu0 %v580
    %2535 = vmatpush.msra.mxu0 %v579
    %2536 = vmatpush.msra.mxu0 %v578
    %2537 = vmatpush.msra.mxu0 %v577
    %2538 = vmatpush.msra.mxu0 %v576
    %2539 = vmatmul.f32.gmra.mxu0 %v1704
    %v2540 = vpop.f32.mrf.mxu0
    %v2541 = vadd.f32 %v2521, %v2540
    %2542 = vdwg.mxu0
    %2543 = vmatpush.msra.mxu0 %v607
    %2544 = vmatpush.msra.mxu0 %v606
    %2545 = vmatpush.msra.mxu0 %v605
    %2546 = vmatpush.msra.mxu0 %v604
    %2547 = vmatpush.msra.mxu0 %v603
    %2548 = vmatpush.msra.mxu0 %v602
    %2549 = vmatpush.msra.mxu0 %v601
    %2550 = vmatpush.msra.mxu0 %v600
    %2551 = vmatpush.msra.mxu0 %v599
    %2552 = vmatpush.msra.mxu0 %v598
    %2553 = vmatpush.msra.mxu0 %v597
    %2554 = vmatpush.msra.mxu0 %v596
    %2555 = vmatpush.msra.mxu0 %v595
    %2556 = vmatpush.msra.mxu0 %v594
    %2557 = vmatpush.msra.mxu0 %v593
    %2558 = vmatpush.msra.mxu0 %v592
    %2559 = vmatmul.f32.gmra.mxu0 %v1705
    %v2560 = vpop.f32.mrf.mxu0
    %v2561 = vadd.f32 %v2541, %v2560
    %2562 = vdwg.mxu0
    %2563 = vmatpush.msra.mxu0 %v623
    %2564 = vmatpush.msra.mxu0 %v622
    %2565 = vmatpush.msra.mxu0 %v621
    %2566 = vmatpush.msra.mxu0 %v620
    %2567 = vmatpush.msra.mxu0 %v619
    %2568 = vmatpush.msra.mxu0 %v618
    %2569 = vmatpush.msra.mxu0 %v617
    %2570 = vmatpush.msra.mxu0 %v616
    %2571 = vmatpush.msra.mxu0 %v615
    %2572 = vmatpush.msra.mxu0 %v614
    %2573 = vmatpush.msra.mxu0 %v613
    %2574 = vmatpush.msra.mxu0 %v612
    %2575 = vmatpush.msra.mxu0 %v611
    %2576 = vmatpush.msra.mxu0 %v610
    %2577 = vmatpush.msra.mxu0 %v609
    %2578 = vmatpush.msra.mxu0 %v608
    %2579 = vmatmul.f32.gmra.mxu0 %v1706
    %v2580 = vpop.f32.mrf.mxu0
    %v2581 = vadd.f32 %v2561, %v2580
    %2582 = vdwg.mxu0
    %2583 = vmatpush.msra.mxu0 %v639
    %2584 = vmatpush.msra.mxu0 %v638
    %2585 = vmatpush.msra.mxu0 %v637
    %2586 = vmatpush.msra.mxu0 %v636
    %2587 = vmatpush.msra.mxu0 %v635
    %2588 = vmatpush.msra.mxu0 %v634
    %2589 = vmatpush.msra.mxu0 %v633
    %2590 = vmatpush.msra.mxu0 %v632
    %2591 = vmatpush.msra.mxu0 %v631
    %2592 = vmatpush.msra.mxu0 %v630
    %2593 = vmatpush.msra.mxu0 %v629
    %2594 = vmatpush.msra.mxu0 %v628
    %2595 = vmatpush.msra.mxu0 %v627
    %2596 = vmatpush.msra.mxu0 %v626
    %2597 = vmatpush.msra.mxu0 %v625
    %2598 = vmatpush.msra.mxu0 %v624
    %2599 = vmatmul.f32.gmra.mxu0 %v1707
    %v2600 = vpop.f32.mrf.mxu0
    %v2601 = vadd.f32 %v2581, %v2600
    %2602 = vdwg.mxu0
    %2603 = vmatpush.msra.mxu0 %v655
    %2604 = vmatpush.msra.mxu0 %v654
    %2605 = vmatpush.msra.mxu0 %v653
    %2606 = vmatpush.msra.mxu0 %v652
    %2607 = vmatpush.msra.mxu0 %v651
    %2608 = vmatpush.msra.mxu0 %v650
    %2609 = vmatpush.msra.mxu0 %v649
    %2610 = vmatpush.msra.mxu0 %v648
    %2611 = vmatpush.msra.mxu0 %v647
    %2612 = vmatpush.msra.mxu0 %v646
    %2613 = vmatpush.msra.mxu0 %v645
    %2614 = vmatpush.msra.mxu0 %v644
    %2615 = vmatpush.msra.mxu0 %v643
    %2616 = vmatpush.msra.mxu0 %v642
    %2617 = vmatpush.msra.mxu0 %v641
    %2618 = vmatpush.msra.mxu0 %v640
    %2619 = vmatmul.f32.gmra.mxu0 %v1708
    %v2620 = vpop.f32.mrf.mxu0
    %v2621 = vadd.f32 %v2601, %v2620
    %2622 = vdwg.mxu0
    %2623 = vmatpush.msra.mxu0 %v671
    %2624 = vmatpush.msra.mxu0 %v670
    %2625 = vmatpush.msra.mxu0 %v669
    %2626 = vmatpush.msra.mxu0 %v668
    %2627 = vmatpush.msra.mxu0 %v667
    %2628 = vmatpush.msra.mxu0 %v666
    %2629 = vmatpush.msra.mxu0 %v665
    %2630 = vmatpush.msra.mxu0 %v664
    %2631 = vmatpush.msra.mxu0 %v663
    %2632 = vmatpush.msra.mxu0 %v662
    %2633 = vmatpush.msra.mxu0 %v661
    %2634 = vmatpush.msra.mxu0 %v660
    %2635 = vmatpush.msra.mxu0 %v659
    %2636 = vmatpush.msra.mxu0 %v658
    %2637 = vmatpush.msra.mxu0 %v657
    %2638 = vmatpush.msra.mxu0 %v656
    %2639 = vmatmul.f32.gmra.mxu0 %v1709
    %v2640 = vpop.f32.mrf.mxu0
    %v2641 = vadd.f32 %v2621, %v2640
    %2642 = vdwg.mxu0
    %2643 = vmatpush.msra.mxu0 %v687
    %2644 = vmatpush.msra.mxu0 %v686
    %2645 = vmatpush.msra.mxu0 %v685
    %2646 = vmatpush.msra.mxu0 %v684
    %2647 = vmatpush.msra.mxu0 %v683
    %2648 = vmatpush.msra.mxu0 %v682
    %2649 = vmatpush.msra.mxu0 %v681
    %2650 = vmatpush.msra.mxu0 %v680
    %2651 = vmatpush.msra.mxu0 %v679
    %2652 = vmatpush.msra.mxu0 %v678
    %2653 = vmatpush.msra.mxu0 %v677
    %2654 = vmatpush.msra.mxu0 %v676
    %2655 = vmatpush.msra.mxu0 %v675
    %2656 = vmatpush.msra.mxu0 %v674
    %2657 = vmatpush.msra.mxu0 %v673
    %2658 = vmatpush.msra.mxu0 %v672
    %2659 = vmatmul.f32.gmra.mxu0 %v1710
    %v2660 = vpop.f32.mrf.mxu0
    %v2661 = vadd.f32 %v2641, %v2660
    %2662 = vdwg.mxu0
    %2663 = vmatpush.msra.mxu0 %v703
    %2664 = vmatpush.msra.mxu0 %v702
    %2665 = vmatpush.msra.mxu0 %v701
    %2666 = vmatpush.msra.mxu0 %v700
    %2667 = vmatpush.msra.mxu0 %v699
    %2668 = vmatpush.msra.mxu0 %v698
    %2669 = vmatpush.msra.mxu0 %v697
    %2670 = vmatpush.msra.mxu0 %v696
    %2671 = vmatpush.msra.mxu0 %v695
    %2672 = vmatpush.msra.mxu0 %v694
    %2673 = vmatpush.msra.mxu0 %v693
    %2674 = vmatpush.msra.mxu0 %v692
    %2675 = vmatpush.msra.mxu0 %v691
    %2676 = vmatpush.msra.mxu0 %v690
    %2677 = vmatpush.msra.mxu0 %v689
    %2678 = vmatpush.msra.mxu0 %v688
    %2679 = vmatmul.f32.gmra.mxu0 %v1711
    %v2680 = vpop.f32.mrf.mxu0
    %v2681 = vadd.f32 %v2661, %v2680
    %2682 = vdwg.mxu0
    %2683 = vmatpush.msra.mxu0 %v719
    %2684 = vmatpush.msra.mxu0 %v718
    %2685 = vmatpush.msra.mxu0 %v717
    %2686 = vmatpush.msra.mxu0 %v716
    %2687 = vmatpush.msra.mxu0 %v715
    %2688 = vmatpush.msra.mxu0 %v714
    %2689 = vmatpush.msra.mxu0 %v713
    %2690 = vmatpush.msra.mxu0 %v712
    %2691 = vmatpush.msra.mxu0 %v711
    %2692 = vmatpush.msra.mxu0 %v710
    %2693 = vmatpush.msra.mxu0 %v709
    %2694 = vmatpush.msra.mxu0 %v708
    %2695 = vmatpush.msra.mxu0 %v707
    %2696 = vmatpush.msra.mxu0 %v706
    %2697 = vmatpush.msra.mxu0 %v705
    %2698 = vmatpush.msra.mxu0 %v704
    %2699 = vmatmul.f32.gmra.mxu0 %v1714
    %v2700 = vpop.f32.mrf.mxu0
    %v2701 = vadd.f32 %v2681, %v2700
    %2702 = vdwg.mxu0
    %2703 = vmatpush.msra.mxu0 %v735
    %2704 = vmatpush.msra.mxu0 %v734
    %2705 = vmatpush.msra.mxu0 %v733
    %2706 = vmatpush.msra.mxu0 %v732
    %2707 = vmatpush.msra.mxu0 %v731
    %2708 = vmatpush.msra.mxu0 %v730
    %2709 = vmatpush.msra.mxu0 %v729
    %2710 = vmatpush.msra.mxu0 %v728
    %2711 = vmatpush.msra.mxu0 %v727
    %2712 = vmatpush.msra.mxu0 %v726
    %2713 = vmatpush.msra.mxu0 %v725
    %2714 = vmatpush.msra.mxu0 %v724
    %2715 = vmatpush.msra.mxu0 %v723
    %2716 = vmatpush.msra.mxu0 %v722
    %2717 = vmatpush.msra.mxu0 %v721
    %2718 = vmatpush.msra.mxu0 %v720
    %2719 = vmatmul.f32.gmra.mxu0 %v1715
    %v2720 = vpop.f32.mrf.mxu0
    %v2721 = vadd.f32 %v2701, %v2720
    %2722 = vdwg.mxu0
    %2723 = vmatpush.msra.mxu0 %v751
    %2724 = vmatpush.msra.mxu0 %v750
    %2725 = vmatpush.msra.mxu0 %v749
    %2726 = vmatpush.msra.mxu0 %v748
    %2727 = vmatpush.msra.mxu0 %v747
    %2728 = vmatpush.msra.mxu0 %v746
    %2729 = vmatpush.msra.mxu0 %v745
    %2730 = vmatpush.msra.mxu0 %v744
    %2731 = vmatpush.msra.mxu0 %v743
    %2732 = vmatpush.msra.mxu0 %v742
    %2733 = vmatpush.msra.mxu0 %v741
    %2734 = vmatpush.msra.mxu0 %v740
    %2735 = vmatpush.msra.mxu0 %v739
    %2736 = vmatpush.msra.mxu0 %v738
    %2737 = vmatpush.msra.mxu0 %v737
    %2738 = vmatpush.msra.mxu0 %v736
    %2739 = vmatmul.f32.gmra.mxu0 %v1716
    %v2740 = vpop.f32.mrf.mxu0
    %v2741 = vadd.f32 %v2721, %v2740
    %2742 = vdwg.mxu0
    %2743 = vmatpush.msra.mxu0 %v767
    %2744 = vmatpush.msra.mxu0 %v766
    %2745 = vmatpush.msra.mxu0 %v765
    %2746 = vmatpush.msra.mxu0 %v764
    %2747 = vmatpush.msra.mxu0 %v763
    %2748 = vmatpush.msra.mxu0 %v762
    %2749 = vmatpush.msra.mxu0 %v761
    %2750 = vmatpush.msra.mxu0 %v760
    %2751 = vmatpush.msra.mxu0 %v759
    %2752 = vmatpush.msra.mxu0 %v758
    %2753 = vmatpush.msra.mxu0 %v757
    %2754 = vmatpush.msra.mxu0 %v756
    %2755 = vmatpush.msra.mxu0 %v755
    %2756 = vmatpush.msra.mxu0 %v754
    %2757 = vmatpush.msra.mxu0 %v753
    %2758 = vmatpush.msra.mxu0 %v752
    %2759 = vmatmul.f32.gmra.mxu0 %v1717
    %v2760 = vpop.f32.mrf.mxu0
    %v2761 = vadd.f32 %v2741, %v2760
    %2762 = vdwg.mxu0
    %2763 = vmatpush.msra.mxu0 %v783
    %2764 = vmatpush.msra.mxu0 %v782
    %2765 = vmatpush.msra.mxu0 %v781
    %2766 = vmatpush.msra.mxu0 %v780
    %2767 = vmatpush.msra.mxu0 %v779
    %2768 = vmatpush.msra.mxu0 %v778
    %2769 = vmatpush.msra.mxu0 %v777
    %2770 = vmatpush.msra.mxu0 %v776
    %2771 = vmatpush.msra.mxu0 %v775
    %2772 = vmatpush.msra.mxu0 %v774
    %2773 = vmatpush.msra.mxu0 %v773
    %2774 = vmatpush.msra.mxu0 %v772
    %2775 = vmatpush.msra.mxu0 %v771
    %2776 = vmatpush.msra.mxu0 %v770
    %2777 = vmatpush.msra.mxu0 %v769
    %2778 = vmatpush.msra.mxu0 %v768
    %2779 = vmatmul.f32.gmra.mxu0 %v1718
    %v2780 = vpop.f32.mrf.mxu0
    %v2781 = vadd.f32 %v2761, %v2780
    %2782 = vdwg.mxu0
    %2783 = vmatpush.msra.mxu0 %v799
    %2784 = vmatpush.msra.mxu0 %v798
    %2785 = vmatpush.msra.mxu0 %v797
    %2786 = vmatpush.msra.mxu0 %v796
    %2787 = vmatpush.msra.mxu0 %v795
    %2788 = vmatpush.msra.mxu0 %v794
    %2789 = vmatpush.msra.mxu0 %v793
    %2790 = vmatpush.msra.mxu0 %v792
    %2791 = vmatpush.msra.mxu0 %v791
    %2792 = vmatpush.msra.mxu0 %v790
    %2793 = vmatpush.msra.mxu0 %v789
    %2794 = vmatpush.msra.mxu0 %v788
    %2795 = vmatpush.msra.mxu0 %v787
    %2796 = vmatpush.msra.mxu0 %v786
    %2797 = vmatpush.msra.mxu0 %v785
    %2798 = vmatpush.msra.mxu0 %v784
    %2799 = vmatmul.f32.gmra.mxu0 %v1719
    %v2800 = vpop.f32.mrf.mxu0
    %v2801 = vadd.f32 %v2781, %v2800
    %2802 = vdwg.mxu0
    %2803 = vmatpush.msra.mxu0 %v815
    %2804 = vmatpush.msra.mxu0 %v814
    %2805 = vmatpush.msra.mxu0 %v813
    %2806 = vmatpush.msra.mxu0 %v812
    %2807 = vmatpush.msra.mxu0 %v811
    %2808 = vmatpush.msra.mxu0 %v810
    %2809 = vmatpush.msra.mxu0 %v809
    %2810 = vmatpush.msra.mxu0 %v808
    %2811 = vmatpush.msra.mxu0 %v807
    %2812 = vmatpush.msra.mxu0 %v806
    %2813 = vmatpush.msra.mxu0 %v805
    %2814 = vmatpush.msra.mxu0 %v804
    %2815 = vmatpush.msra.mxu0 %v803
    %2816 = vmatpush.msra.mxu0 %v802
    %2817 = vmatpush.msra.mxu0 %v801
    %2818 = vmatpush.msra.mxu0 %v800
    %2819 = vmatmul.f32.gmra.mxu0 %v1720
    %v2820 = vpop.f32.mrf.mxu0
    %v2821 = vadd.f32 %v2801, %v2820
    %2822 = vdwg.mxu0
    %2823 = vmatpush.msra.mxu0 %v831
    %2824 = vmatpush.msra.mxu0 %v830
    %2825 = vmatpush.msra.mxu0 %v829
    %2826 = vmatpush.msra.mxu0 %v828
    %2827 = vmatpush.msra.mxu0 %v827
    %2828 = vmatpush.msra.mxu0 %v826
    %2829 = vmatpush.msra.mxu0 %v825
    %2830 = vmatpush.msra.mxu0 %v824
    %2831 = vmatpush.msra.mxu0 %v823
    %2832 = vmatpush.msra.mxu0 %v822
    %2833 = vmatpush.msra.mxu0 %v821
    %2834 = vmatpush.msra.mxu0 %v820
    %2835 = vmatpush.msra.mxu0 %v819
    %2836 = vmatpush.msra.mxu0 %v818
    %2837 = vmatpush.msra.mxu0 %v817
    %2838 = vmatpush.msra.mxu0 %v816
    %2839 = vmatmul.f32.gmra.mxu0 %v1721
    %v2840 = vpop.f32.mrf.mxu0
    %v2841 = vadd.f32 %v2821, %v2840
    %2842 = vdwg.mxu0
    %2843 = vmatpush.msra.mxu0 %v847
    %2844 = vmatpush.msra.mxu0 %v846
    %2845 = vmatpush.msra.mxu0 %v845
    %2846 = vmatpush.msra.mxu0 %v844
    %2847 = vmatpush.msra.mxu0 %v843
    %2848 = vmatpush.msra.mxu0 %v842
    %2849 = vmatpush.msra.mxu0 %v841
    %2850 = vmatpush.msra.mxu0 %v840
    %2851 = vmatpush.msra.mxu0 %v839
    %2852 = vmatpush.msra.mxu0 %v838
    %2853 = vmatpush.msra.mxu0 %v837
    %2854 = vmatpush.msra.mxu0 %v836
    %2855 = vmatpush.msra.mxu0 %v835
    %2856 = vmatpush.msra.mxu0 %v834
    %2857 = vmatpush.msra.mxu0 %v833
    %2858 = vmatpush.msra.mxu0 %v832
    %2859 = vmatmul.f32.gmra.mxu0 %v1724
    %v2860 = vpop.f32.mrf.mxu0
    %v2861 = vadd.f32 %v2841, %v2860
    %2862 = vdwg.mxu0
    %2863 = vmatpush.msra.mxu0 %v863
    %2864 = vmatpush.msra.mxu0 %v862
    %2865 = vmatpush.msra.mxu0 %v861
    %2866 = vmatpush.msra.mxu0 %v860
    %2867 = vmatpush.msra.mxu0 %v859
    %2868 = vmatpush.msra.mxu0 %v858
    %2869 = vmatpush.msra.mxu0 %v857
    %2870 = vmatpush.msra.mxu0 %v856
    %2871 = vmatpush.msra.mxu0 %v855
    %2872 = vmatpush.msra.mxu0 %v854
    %2873 = vmatpush.msra.mxu0 %v853
    %2874 = vmatpush.msra.mxu0 %v852
    %2875 = vmatpush.msra.mxu0 %v851
    %2876 = vmatpush.msra.mxu0 %v850
    %2877 = vmatpush.msra.mxu0 %v849
    %2878 = vmatpush.msra.mxu0 %v848
    %2879 = vmatmul.f32.gmra.mxu0 %v1725
    %v2880 = vpop.f32.mrf.mxu0
    %v2881 = vadd.f32 %v2861, %v2880
    %2882 = vdwg.mxu0
    %2883 = vmatpush.msra.mxu0 %v879
    %2884 = vmatpush.msra.mxu0 %v878
    %2885 = vmatpush.msra.mxu0 %v877
    %2886 = vmatpush.msra.mxu0 %v876
    %2887 = vmatpush.msra.mxu0 %v875
    %2888 = vmatpush.msra.mxu0 %v874
    %2889 = vmatpush.msra.mxu0 %v873
    %2890 = vmatpush.msra.mxu0 %v872
    %2891 = vmatpush.msra.mxu0 %v871
    %2892 = vmatpush.msra.mxu0 %v870
    %2893 = vmatpush.msra.mxu0 %v869
    %2894 = vmatpush.msra.mxu0 %v868
    %2895 = vmatpush.msra.mxu0 %v867
    %2896 = vmatpush.msra.mxu0 %v866
    %2897 = vmatpush.msra.mxu0 %v865
    %2898 = vmatpush.msra.mxu0 %v864
    %2899 = vmatmul.f32.gmra.mxu0 %v1726
    %v2900 = vpop.f32.mrf.mxu0
    %v2901 = vadd.f32 %v2881, %v2900
    %2902 = vdwg.mxu0
    %2903 = vmatpush.msra.mxu0 %v895
    %2904 = vmatpush.msra.mxu0 %v894
    %2905 = vmatpush.msra.mxu0 %v893
    %2906 = vmatpush.msra.mxu0 %v892
    %2907 = vmatpush.msra.mxu0 %v891
    %2908 = vmatpush.msra.mxu0 %v890
    %2909 = vmatpush.msra.mxu0 %v889
    %2910 = vmatpush.msra.mxu0 %v888
    %2911 = vmatpush.msra.mxu0 %v887
    %2912 = vmatpush.msra.mxu0 %v886
    %2913 = vmatpush.msra.mxu0 %v885
    %2914 = vmatpush.msra.mxu0 %v884
    %2915 = vmatpush.msra.mxu0 %v883
    %2916 = vmatpush.msra.mxu0 %v882
    %2917 = vmatpush.msra.mxu0 %v881
    %2918 = vmatpush.msra.mxu0 %v880
    %2919 = vmatmul.f32.gmra.mxu0 %v1727
    %v2920 = vpop.f32.mrf.mxu0
    %v2921 = vadd.f32 %v2901, %v2920
    %2922 = vdwg.mxu0
    %2923 = vmatpush.msra.mxu0 %v911
    %2924 = vmatpush.msra.mxu0 %v910
    %2925 = vmatpush.msra.mxu0 %v909
    %2926 = vmatpush.msra.mxu0 %v908
    %2927 = vmatpush.msra.mxu0 %v907
    %2928 = vmatpush.msra.mxu0 %v906
    %2929 = vmatpush.msra.mxu0 %v905
    %2930 = vmatpush.msra.mxu0 %v904
    %2931 = vmatpush.msra.mxu0 %v903
    %2932 = vmatpush.msra.mxu0 %v902
    %2933 = vmatpush.msra.mxu0 %v901
    %2934 = vmatpush.msra.mxu0 %v900
    %2935 = vmatpush.msra.mxu0 %v899
    %2936 = vmatpush.msra.mxu0 %v898
    %2937 = vmatpush.msra.mxu0 %v897
    %2938 = vmatpush.msra.mxu0 %v896
    %2939 = vmatmul.f32.gmra.mxu0 %v1728
    %v2940 = vpop.f32.mrf.mxu0
    %v2941 = vadd.f32 %v2921, %v2940
    %2942 = vdwg.mxu0
    %2943 = vmatpush.msra.mxu0 %v927
    %2944 = vmatpush.msra.mxu0 %v926
    %2945 = vmatpush.msra.mxu0 %v925
    %2946 = vmatpush.msra.mxu0 %v924
    %2947 = vmatpush.msra.mxu0 %v923
    %2948 = vmatpush.msra.mxu0 %v922
    %2949 = vmatpush.msra.mxu0 %v921
    %2950 = vmatpush.msra.mxu0 %v920
    %2951 = vmatpush.msra.mxu0 %v919
    %2952 = vmatpush.msra.mxu0 %v918
    %2953 = vmatpush.msra.mxu0 %v917
    %2954 = vmatpush.msra.mxu0 %v916
    %2955 = vmatpush.msra.mxu0 %v915
    %2956 = vmatpush.msra.mxu0 %v914
    %2957 = vmatpush.msra.mxu0 %v913
    %2958 = vmatpush.msra.mxu0 %v912
    %2959 = vmatmul.f32.gmra.mxu0 %v1729
    %v2960 = vpop.f32.mrf.mxu0
    %v2961 = vadd.f32 %v2941, %v2960
    %2962 = vdwg.mxu0
    %2963 = vmatpush.msra.mxu0 %v943
    %2964 = vmatpush.msra.mxu0 %v942
    %2965 = vmatpush.msra.mxu0 %v941
    %2966 = vmatpush.msra.mxu0 %v940
    %2967 = vmatpush.msra.mxu0 %v939
    %2968 = vmatpush.msra.mxu0 %v938
    %2969 = vmatpush.msra.mxu0 %v937
    %2970 = vmatpush.msra.mxu0 %v936
    %2971 = vmatpush.msra.mxu0 %v935
    %2972 = vmatpush.msra.mxu0 %v934
    %2973 = vmatpush.msra.mxu0 %v933
    %2974 = vmatpush.msra.mxu0 %v932
    %2975 = vmatpush.msra.mxu0 %v931
    %2976 = vmatpush.msra.mxu0 %v930
    %2977 = vmatpush.msra.mxu0 %v929
    %2978 = vmatpush.msra.mxu0 %v928
    %2979 = vmatmul.f32.gmra.mxu0 %v1730
    %v2980 = vpop.f32.mrf.mxu0
    %v2981 = vadd.f32 %v2961, %v2980
    %2982 = vdwg.mxu0
    %2983 = vmatpush.msra.mxu0 %v959
    %2984 = vmatpush.msra.mxu0 %v958
    %2985 = vmatpush.msra.mxu0 %v957
    %2986 = vmatpush.msra.mxu0 %v956
    %2987 = vmatpush.msra.mxu0 %v955
    %2988 = vmatpush.msra.mxu0 %v954
    %2989 = vmatpush.msra.mxu0 %v953
    %2990 = vmatpush.msra.mxu0 %v952
    %2991 = vmatpush.msra.mxu0 %v951
    %2992 = vmatpush.msra.mxu0 %v950
    %2993 = vmatpush.msra.mxu0 %v949
    %2994 = vmatpush.msra.mxu0 %v948
    %2995 = vmatpush.msra.mxu0 %v947
    %2996 = vmatpush.msra.mxu0 %v946
    %2997 = vmatpush.msra.mxu0 %v945
    %2998 = vmatpush.msra.mxu0 %v944
    %2999 = vmatmul.f32.gmra.mxu0 %v1731
    %v3000 = vpop.f32.mrf.mxu0
    %v3001 = vadd.f32 %v2981, %v3000
    %3002 = vdwg.mxu0
    %3003 = vmatpush.msra.mxu0 %v975
    %3004 = vmatpush.msra.mxu0 %v974
    %3005 = vmatpush.msra.mxu0 %v973
    %3006 = vmatpush.msra.mxu0 %v972
    %3007 = vmatpush.msra.mxu0 %v971
    %3008 = vmatpush.msra.mxu0 %v970
    %3009 = vmatpush.msra.mxu0 %v969
    %3010 = vmatpush.msra.mxu0 %v968
    %3011 = vmatpush.msra.mxu0 %v967
    %3012 = vmatpush.msra.mxu0 %v966
    %3013 = vmatpush.msra.mxu0 %v965
    %3014 = vmatpush.msra.mxu0 %v964
    %3015 = vmatpush.msra.mxu0 %v963
    %3016 = vmatpush.msra.mxu0 %v962
    %3017 = vmatpush.msra.mxu0 %v961
    %3018 = vmatpush.msra.mxu0 %v960
    %3019 = vmatmul.f32.gmra.mxu0 %v1734
    %v3020 = vpop.f32.mrf.mxu0
    %v3021 = vadd.f32 %v3001, %v3020
    %3022 = vdwg.mxu0
    %3023 = vmatpush.msra.mxu0 %v991
    %3024 = vmatpush.msra.mxu0 %v990
    %3025 = vmatpush.msra.mxu0 %v989
    %3026 = vmatpush.msra.mxu0 %v988
    %3027 = vmatpush.msra.mxu0 %v987
    %3028 = vmatpush.msra.mxu0 %v986
    %3029 = vmatpush.msra.mxu0 %v985
    %3030 = vmatpush.msra.mxu0 %v984
    %3031 = vmatpush.msra.mxu0 %v983
    %3032 = vmatpush.msra.mxu0 %v982
    %3033 = vmatpush.msra.mxu0 %v981
    %3034 = vmatpush.msra.mxu0 %v980
    %3035 = vmatpush.msra.mxu0 %v979
    %3036 = vmatpush.msra.mxu0 %v978
    %3037 = vmatpush.msra.mxu0 %v977
    %3038 = vmatpush.msra.mxu0 %v976
    %3039 = vmatmul.f32.gmra.mxu0 %v1735
    %v3040 = vpop.f32.mrf.mxu0
    %v3041 = vadd.f32 %v3021, %v3040
    %3042 = vdwg.mxu0
    %3043 = vmatpush.msra.mxu0 %v1007
    %3044 = vmatpush.msra.mxu0 %v1006
    %3045 = vmatpush.msra.mxu0 %v1005
    %3046 = vmatpush.msra.mxu0 %v1004
    %3047 = vmatpush.msra.mxu0 %v1003
    %3048 = vmatpush.msra.mxu0 %v1002
    %3049 = vmatpush.msra.mxu0 %v1001
    %3050 = vmatpush.msra.mxu0 %v1000
    %3051 = vmatpush.msra.mxu0 %v999
    %3052 = vmatpush.msra.mxu0 %v998
    %3053 = vmatpush.msra.mxu0 %v997
    %3054 = vmatpush.msra.mxu0 %v996
    %3055 = vmatpush.msra.mxu0 %v995
    %3056 = vmatpush.msra.mxu0 %v994
    %3057 = vmatpush.msra.mxu0 %v993
    %3058 = vmatpush.msra.mxu0 %v992
    %3059 = vmatmul.f32.gmra.mxu0 %v1736
    %v3060 = vpop.f32.mrf.mxu0
    %v3061 = vadd.f32 %v3041, %v3060
    %3062 = vdwg.mxu0
    %3063 = vmatpush.msra.mxu0 %v1023
    %3064 = vmatpush.msra.mxu0 %v1022
    %3065 = vmatpush.msra.mxu0 %v1021
    %3066 = vmatpush.msra.mxu0 %v1020
    %3067 = vmatpush.msra.mxu0 %v1019
    %3068 = vmatpush.msra.mxu0 %v1018
    %3069 = vmatpush.msra.mxu0 %v1017
    %3070 = vmatpush.msra.mxu0 %v1016
    %3071 = vmatpush.msra.mxu0 %v1015
    %3072 = vmatpush.msra.mxu0 %v1014
    %3073 = vmatpush.msra.mxu0 %v1013
    %3074 = vmatpush.msra.mxu0 %v1012
    %3075 = vmatpush.msra.mxu0 %v1011
    %3076 = vmatpush.msra.mxu0 %v1010
    %3077 = vmatpush.msra.mxu0 %v1009
    %3078 = vmatpush.msra.mxu0 %v1008
    %3079 = vmatmul.f32.gmra.mxu0 %v1737
    %v3080 = vpop.f32.mrf.mxu0
    %v3081 = vadd.f32 %v3061, %v3080
    %3082 = vdwg.mxu0
    %3083 = vmatpush.msra.mxu0 %v1039
    %3084 = vmatpush.msra.mxu0 %v1038
    %3085 = vmatpush.msra.mxu0 %v1037
    %3086 = vmatpush.msra.mxu0 %v1036
    %3087 = vmatpush.msra.mxu0 %v1035
    %3088 = vmatpush.msra.mxu0 %v1034
    %3089 = vmatpush.msra.mxu0 %v1033
    %3090 = vmatpush.msra.mxu0 %v1032
    %3091 = vmatpush.msra.mxu0 %v1031
    %3092 = vmatpush.msra.mxu0 %v1030
    %3093 = vmatpush.msra.mxu0 %v1029
    %3094 = vmatpush.msra.mxu0 %v1028
    %3095 = vmatpush.msra.mxu0 %v1027
    %3096 = vmatpush.msra.mxu0 %v1026
    %3097 = vmatpush.msra.mxu0 %v1025
    %3098 = vmatpush.msra.mxu0 %v1024
    %3099 = vmatmul.f32.gmra.mxu0 %v1738
    %v3100 = vpop.f32.mrf.mxu0
    %v3101 = vadd.f32 %v3081, %v3100
    %3102 = vdwg.mxu0
    %3103 = vmatpush.msra.mxu0 %v1055
    %3104 = vmatpush.msra.mxu0 %v1054
    %3105 = vmatpush.msra.mxu0 %v1053
    %3106 = vmatpush.msra.mxu0 %v1052
    %3107 = vmatpush.msra.mxu0 %v1051
    %3108 = vmatpush.msra.mxu0 %v1050
    %3109 = vmatpush.msra.mxu0 %v1049
    %3110 = vmatpush.msra.mxu0 %v1048
    %3111 = vmatpush.msra.mxu0 %v1047
    %3112 = vmatpush.msra.mxu0 %v1046
    %3113 = vmatpush.msra.mxu0 %v1045
    %3114 = vmatpush.msra.mxu0 %v1044
    %3115 = vmatpush.msra.mxu0 %v1043
    %3116 = vmatpush.msra.mxu0 %v1042
    %3117 = vmatpush.msra.mxu0 %v1041
    %3118 = vmatpush.msra.mxu0 %v1040
    %3119 = vmatmul.f32.gmra.mxu0 %v1739
    %v3120 = vpop.f32.mrf.mxu0
    %v3121 = vadd.f32 %v3101, %v3120
    %3122 = vdwg.mxu0
    %3123 = vmatpush.msra.mxu0 %v1071
    %3124 = vmatpush.msra.mxu0 %v1070
    %3125 = vmatpush.msra.mxu0 %v1069
    %3126 = vmatpush.msra.mxu0 %v1068
    %3127 = vmatpush.msra.mxu0 %v1067
    %3128 = vmatpush.msra.mxu0 %v1066
    %3129 = vmatpush.msra.mxu0 %v1065
    %3130 = vmatpush.msra.mxu0 %v1064
    %3131 = vmatpush.msra.mxu0 %v1063
    %3132 = vmatpush.msra.mxu0 %v1062
    %3133 = vmatpush.msra.mxu0 %v1061
    %3134 = vmatpush.msra.mxu0 %v1060
    %3135 = vmatpush.msra.mxu0 %v1059
    %3136 = vmatpush.msra.mxu0 %v1058
    %3137 = vmatpush.msra.mxu0 %v1057
    %3138 = vmatpush.msra.mxu0 %v1056
    %3139 = vmatmul.f32.gmra.mxu0 %v1740
    %v3140 = vpop.f32.mrf.mxu0
    %v3141 = vadd.f32 %v3121, %v3140
    %3142 = vdwg.mxu0
    %3143 = vmatpush.msra.mxu0 %v1087
    %3144 = vmatpush.msra.mxu0 %v1086
    %3145 = vmatpush.msra.mxu0 %v1085
    %3146 = vmatpush.msra.mxu0 %v1084
    %3147 = vmatpush.msra.mxu0 %v1083
    %3148 = vmatpush.msra.mxu0 %v1082
    %3149 = vmatpush.msra.mxu0 %v1081
    %3150 = vmatpush.msra.mxu0 %v1080
    %3151 = vmatpush.msra.mxu0 %v1079
    %3152 = vmatpush.msra.mxu0 %v1078
    %3153 = vmatpush.msra.mxu0 %v1077
    %3154 = vmatpush.msra.mxu0 %v1076
    %3155 = vmatpush.msra.mxu0 %v1075
    %3156 = vmatpush.msra.mxu0 %v1074
    %3157 = vmatpush.msra.mxu0 %v1073
    %3158 = vmatpush.msra.mxu0 %v1072
    %3159 = vmatmul.f32.gmra.mxu0 %v1741
    %v3160 = vpop.f32.mrf.mxu0
    %v3161 = vadd.f32 %v3141, %v3160
    %3162 = vdwg.mxu0
    %3163 = vmatpush.msra.mxu0 %v1103
    %3164 = vmatpush.msra.mxu0 %v1102
    %3165 = vmatpush.msra.mxu0 %v1101
    %3166 = vmatpush.msra.mxu0 %v1100
    %3167 = vmatpush.msra.mxu0 %v1099
    %3168 = vmatpush.msra.mxu0 %v1098
    %3169 = vmatpush.msra.mxu0 %v1097
    %3170 = vmatpush.msra.mxu0 %v1096
    %3171 = vmatpush.msra.mxu0 %v1095
    %3172 = vmatpush.msra.mxu0 %v1094
    %3173 = vmatpush.msra.mxu0 %v1093
    %3174 = vmatpush.msra.mxu0 %v1092
    %3175 = vmatpush.msra.mxu0 %v1091
    %3176 = vmatpush.msra.mxu0 %v1090
    %3177 = vmatpush.msra.mxu0 %v1089
    %3178 = vmatpush.msra.mxu0 %v1088
    %3179 = vmatmul.f32.gmra.mxu0 %v1744
    %v3180 = vpop.f32.mrf.mxu0
    %v3181 = vadd.f32 %v3161, %v3180
    %3182 = vdwg.mxu0
    %3183 = vmatpush.msra.mxu0 %v1119
    %3184 = vmatpush.msra.mxu0 %v1118
    %3185 = vmatpush.msra.mxu0 %v1117
    %3186 = vmatpush.msra.mxu0 %v1116
    %3187 = vmatpush.msra.mxu0 %v1115
    %3188 = vmatpush.msra.mxu0 %v1114
    %3189 = vmatpush.msra.mxu0 %v1113
    %3190 = vmatpush.msra.mxu0 %v1112
    %3191 = vmatpush.msra.mxu0 %v1111
    %3192 = vmatpush.msra.mxu0 %v1110
    %3193 = vmatpush.msra.mxu0 %v1109
    %3194 = vmatpush.msra.mxu0 %v1108
    %3195 = vmatpush.msra.mxu0 %v1107
    %3196 = vmatpush.msra.mxu0 %v1106
    %3197 = vmatpush.msra.mxu0 %v1105
    %3198 = vmatpush.msra.mxu0 %v1104
    %3199 = vmatmul.f32.gmra.mxu0 %v1745
    %v3200 = vpop.f32.mrf.mxu0
    %v3201 = vadd.f32 %v3181, %v3200
    %3202 = vdwg.mxu0
    %3203 = vmatpush.msra.mxu0 %v1135
    %3204 = vmatpush.msra.mxu0 %v1134
    %3205 = vmatpush.msra.mxu0 %v1133
    %3206 = vmatpush.msra.mxu0 %v1132
    %3207 = vmatpush.msra.mxu0 %v1131
    %3208 = vmatpush.msra.mxu0 %v1130
    %3209 = vmatpush.msra.mxu0 %v1129
    %3210 = vmatpush.msra.mxu0 %v1128
    %3211 = vmatpush.msra.mxu0 %v1127
    %3212 = vmatpush.msra.mxu0 %v1126
    %3213 = vmatpush.msra.mxu0 %v1125
    %3214 = vmatpush.msra.mxu0 %v1124
    %3215 = vmatpush.msra.mxu0 %v1123
    %3216 = vmatpush.msra.mxu0 %v1122
    %3217 = vmatpush.msra.mxu0 %v1121
    %3218 = vmatpush.msra.mxu0 %v1120
    %3219 = vmatmul.f32.gmra.mxu0 %v1746
    %v3220 = vpop.f32.mrf.mxu0
    %v3221 = vadd.f32 %v3201, %v3220
    %3222 = vdwg.mxu0
    %3223 = vmatpush.msra.mxu0 %v1151
    %3224 = vmatpush.msra.mxu0 %v1150
    %3225 = vmatpush.msra.mxu0 %v1149
    %3226 = vmatpush.msra.mxu0 %v1148
    %3227 = vmatpush.msra.mxu0 %v1147
    %3228 = vmatpush.msra.mxu0 %v1146
    %3229 = vmatpush.msra.mxu0 %v1145
    %3230 = vmatpush.msra.mxu0 %v1144
    %3231 = vmatpush.msra.mxu0 %v1143
    %3232 = vmatpush.msra.mxu0 %v1142
    %3233 = vmatpush.msra.mxu0 %v1141
    %3234 = vmatpush.msra.mxu0 %v1140
    %3235 = vmatpush.msra.mxu0 %v1139
    %3236 = vmatpush.msra.mxu0 %v1138
    %3237 = vmatpush.msra.mxu0 %v1137
    %3238 = vmatpush.msra.mxu0 %v1136
    %3239 = vmatmul.f32.gmra.mxu0 %v1747
    %v3240 = vpop.f32.mrf.mxu0
    %v3241 = vadd.f32 %v3221, %v3240
    %3242 = vdwg.mxu0
    %3243 = vmatpush.msra.mxu0 %v1167
    %3244 = vmatpush.msra.mxu0 %v1166
    %3245 = vmatpush.msra.mxu0 %v1165
    %3246 = vmatpush.msra.mxu0 %v1164
    %3247 = vmatpush.msra.mxu0 %v1163
    %3248 = vmatpush.msra.mxu0 %v1162
    %3249 = vmatpush.msra.mxu0 %v1161
    %3250 = vmatpush.msra.mxu0 %v1160
    %3251 = vmatpush.msra.mxu0 %v1159
    %3252 = vmatpush.msra.mxu0 %v1158
    %3253 = vmatpush.msra.mxu0 %v1157
    %3254 = vmatpush.msra.mxu0 %v1156
    %3255 = vmatpush.msra.mxu0 %v1155
    %3256 = vmatpush.msra.mxu0 %v1154
    %3257 = vmatpush.msra.mxu0 %v1153
    %3258 = vmatpush.msra.mxu0 %v1152
    %3259 = vmatmul.f32.gmra.mxu0 %v1748
    %v3260 = vpop.f32.mrf.mxu0
    %v3261 = vadd.f32 %v3241, %v3260
    %3262 = vdwg.mxu0
    %3263 = vmatpush.msra.mxu0 %v1183
    %3264 = vmatpush.msra.mxu0 %v1182
    %3265 = vmatpush.msra.mxu0 %v1181
    %3266 = vmatpush.msra.mxu0 %v1180
    %3267 = vmatpush.msra.mxu0 %v1179
    %3268 = vmatpush.msra.mxu0 %v1178
    %3269 = vmatpush.msra.mxu0 %v1177
    %3270 = vmatpush.msra.mxu0 %v1176
    %3271 = vmatpush.msra.mxu0 %v1175
    %3272 = vmatpush.msra.mxu0 %v1174
    %3273 = vmatpush.msra.mxu0 %v1173
    %3274 = vmatpush.msra.mxu0 %v1172
    %3275 = vmatpush.msra.mxu0 %v1171
    %3276 = vmatpush.msra.mxu0 %v1170
    %3277 = vmatpush.msra.mxu0 %v1169
    %3278 = vmatpush.msra.mxu0 %v1168
    %3279 = vmatmul.f32.gmra.mxu0 %v1749
    %v3280 = vpop.f32.mrf.mxu0
    %v3281 = vadd.f32 %v3261, %v3280
    %3282 = vdwg.mxu0
    %3283 = vmatpush.msra.mxu0 %v1199
    %3284 = vmatpush.msra.mxu0 %v1198
    %3285 = vmatpush.msra.mxu0 %v1197
    %3286 = vmatpush.msra.mxu0 %v1196
    %3287 = vmatpush.msra.mxu0 %v1195
    %3288 = vmatpush.msra.mxu0 %v1194
    %3289 = vmatpush.msra.mxu0 %v1193
    %3290 = vmatpush.msra.mxu0 %v1192
    %3291 = vmatpush.msra.mxu0 %v1191
    %3292 = vmatpush.msra.mxu0 %v1190
    %3293 = vmatpush.msra.mxu0 %v1189
    %3294 = vmatpush.msra.mxu0 %v1188
    %3295 = vmatpush.msra.mxu0 %v1187
    %3296 = vmatpush.msra.mxu0 %v1186
    %3297 = vmatpush.msra.mxu0 %v1185
    %3298 = vmatpush.msra.mxu0 %v1184
    %3299 = vmatmul.f32.gmra.mxu0 %v1750
    %v3300 = vpop.f32.mrf.mxu0
    %v3301 = vadd.f32 %v3281, %v3300
    %3302 = vdwg.mxu0
    %3303 = vmatpush.msra.mxu0 %v1215
    %3304 = vmatpush.msra.mxu0 %v1214
    %3305 = vmatpush.msra.mxu0 %v1213
    %3306 = vmatpush.msra.mxu0 %v1212
    %3307 = vmatpush.msra.mxu0 %v1211
    %3308 = vmatpush.msra.mxu0 %v1210
    %3309 = vmatpush.msra.mxu0 %v1209
    %3310 = vmatpush.msra.mxu0 %v1208
    %3311 = vmatpush.msra.mxu0 %v1207
    %3312 = vmatpush.msra.mxu0 %v1206
    %3313 = vmatpush.msra.mxu0 %v1205
    %3314 = vmatpush.msra.mxu0 %v1204
    %3315 = vmatpush.msra.mxu0 %v1203
    %3316 = vmatpush.msra.mxu0 %v1202
    %3317 = vmatpush.msra.mxu0 %v1201
    %3318 = vmatpush.msra.mxu0 %v1200
    %3319 = vmatmul.f32.gmra.mxu0 %v1751
    %v3320 = vpop.f32.mrf.mxu0
    %v3321 = vadd.f32 %v3301, %v3320
    %3322 = vdwg.mxu0
    %3323 = vmatpush.msra.mxu0 %v1231
    %3324 = vmatpush.msra.mxu0 %v1230
    %3325 = vmatpush.msra.mxu0 %v1229
    %3326 = vmatpush.msra.mxu0 %v1228
    %3327 = vmatpush.msra.mxu0 %v1227
    %3328 = vmatpush.msra.mxu0 %v1226
    %3329 = vmatpush.msra.mxu0 %v1225
    %3330 = vmatpush.msra.mxu0 %v1224
    %3331 = vmatpush.msra.mxu0 %v1223
    %3332 = vmatpush.msra.mxu0 %v1222
    %3333 = vmatpush.msra.mxu0 %v1221
    %3334 = vmatpush.msra.mxu0 %v1220
    %3335 = vmatpush.msra.mxu0 %v1219
    %3336 = vmatpush.msra.mxu0 %v1218
    %3337 = vmatpush.msra.mxu0 %v1217
    %3338 = vmatpush.msra.mxu0 %v1216
    %3339 = vmatmul.f32.gmra.mxu0 %v1754
    %v3340 = vpop.f32.mrf.mxu0
    %v3341 = vadd.f32 %v3321, %v3340
    %3342 = vdwg.mxu0
    %3343 = vmatpush.msra.mxu0 %v1247
    %3344 = vmatpush.msra.mxu0 %v1246
    %3345 = vmatpush.msra.mxu0 %v1245
    %3346 = vmatpush.msra.mxu0 %v1244
    %3347 = vmatpush.msra.mxu0 %v1243
    %3348 = vmatpush.msra.mxu0 %v1242
    %3349 = vmatpush.msra.mxu0 %v1241
    %3350 = vmatpush.msra.mxu0 %v1240
    %3351 = vmatpush.msra.mxu0 %v1239
    %3352 = vmatpush.msra.mxu0 %v1238
    %3353 = vmatpush.msra.mxu0 %v1237
    %3354 = vmatpush.msra.mxu0 %v1236
    %3355 = vmatpush.msra.mxu0 %v1235
    %3356 = vmatpush.msra.mxu0 %v1234
    %3357 = vmatpush.msra.mxu0 %v1233
    %3358 = vmatpush.msra.mxu0 %v1232
    %3359 = vmatmul.f32.gmra.mxu0 %v1755
    %v3360 = vpop.f32.mrf.mxu0
    %v3361 = vadd.f32 %v3341, %v3360
    %3362 = vdwg.mxu0
    %3363 = vmatpush.msra.mxu0 %v1263
    %3364 = vmatpush.msra.mxu0 %v1262
    %3365 = vmatpush.msra.mxu0 %v1261
    %3366 = vmatpush.msra.mxu0 %v1260
    %3367 = vmatpush.msra.mxu0 %v1259
    %3368 = vmatpush.msra.mxu0 %v1258
    %3369 = vmatpush.msra.mxu0 %v1257
    %3370 = vmatpush.msra.mxu0 %v1256
    %3371 = vmatpush.msra.mxu0 %v1255
    %3372 = vmatpush.msra.mxu0 %v1254
    %3373 = vmatpush.msra.mxu0 %v1253
    %3374 = vmatpush.msra.mxu0 %v1252
    %3375 = vmatpush.msra.mxu0 %v1251
    %3376 = vmatpush.msra.mxu0 %v1250
    %3377 = vmatpush.msra.mxu0 %v1249
    %3378 = vmatpush.msra.mxu0 %v1248
    %3379 = vmatmul.f32.gmra.mxu0 %v1756
    %v3380 = vpop.f32.mrf.mxu0
    %v3381 = vadd.f32 %v3361, %v3380
    %3382 = vdwg.mxu0
    %3383 = vmatpush.msra.mxu0 %v1279
    %3384 = vmatpush.msra.mxu0 %v1278
    %3385 = vmatpush.msra.mxu0 %v1277
    %3386 = vmatpush.msra.mxu0 %v1276
    %3387 = vmatpush.msra.mxu0 %v1275
    %3388 = vmatpush.msra.mxu0 %v1274
    %3389 = vmatpush.msra.mxu0 %v1273
    %3390 = vmatpush.msra.mxu0 %v1272
    %3391 = vmatpush.msra.mxu0 %v1271
    %3392 = vmatpush.msra.mxu0 %v1270
    %3393 = vmatpush.msra.mxu0 %v1269
    %3394 = vmatpush.msra.mxu0 %v1268
    %3395 = vmatpush.msra.mxu0 %v1267
    %3396 = vmatpush.msra.mxu0 %v1266
    %3397 = vmatpush.msra.mxu0 %v1265
    %3398 = vmatpush.msra.mxu0 %v1264
    %3399 = vmatmul.f32.gmra.mxu0 %v1757
    %v3400 = vpop.f32.mrf.mxu0
    %v3401 = vadd.f32 %v3381, %v3400
    %3402 = vdwg.mxu0
    %3403 = vmatpush.msra.mxu0 %v1295
    %3404 = vmatpush.msra.mxu0 %v1294
    %3405 = vmatpush.msra.mxu0 %v1293
    %3406 = vmatpush.msra.mxu0 %v1292
    %3407 = vmatpush.msra.mxu0 %v1291
    %3408 = vmatpush.msra.mxu0 %v1290
    %3409 = vmatpush.msra.mxu0 %v1289
    %3410 = vmatpush.msra.mxu0 %v1288
    %3411 = vmatpush.msra.mxu0 %v1287
    %3412 = vmatpush.msra.mxu0 %v1286
    %3413 = vmatpush.msra.mxu0 %v1285
    %3414 = vmatpush.msra.mxu0 %v1284
    %3415 = vmatpush.msra.mxu0 %v1283
    %3416 = vmatpush.msra.mxu0 %v1282
    %3417 = vmatpush.msra.mxu0 %v1281
    %3418 = vmatpush.msra.mxu0 %v1280
    %3419 = vmatmul.f32.gmra.mxu0 %v1758
    %v3420 = vpop.f32.mrf.mxu0
    %v3421 = vadd.f32 %v3401, %v3420
    %3422 = vdwg.mxu0
    %3423 = vmatpush.msra.mxu0 %v1311
    %3424 = vmatpush.msra.mxu0 %v1310
    %3425 = vmatpush.msra.mxu0 %v1309
    %3426 = vmatpush.msra.mxu0 %v1308
    %3427 = vmatpush.msra.mxu0 %v1307
    %3428 = vmatpush.msra.mxu0 %v1306
    %3429 = vmatpush.msra.mxu0 %v1305
    %3430 = vmatpush.msra.mxu0 %v1304
    %3431 = vmatpush.msra.mxu0 %v1303
    %3432 = vmatpush.msra.mxu0 %v1302
    %3433 = vmatpush.msra.mxu0 %v1301
    %3434 = vmatpush.msra.mxu0 %v1300
    %3435 = vmatpush.msra.mxu0 %v1299
    %3436 = vmatpush.msra.mxu0 %v1298
    %3437 = vmatpush.msra.mxu0 %v1297
    %3438 = vmatpush.msra.mxu0 %v1296
    %3439 = vmatmul.f32.gmra.mxu0 %v1759
    %v3440 = vpop.f32.mrf.mxu0
    %v3441 = vadd.f32 %v3421, %v3440
    %3442 = vdwg.mxu0
    %3443 = vmatpush.msra.mxu0 %v1327
    %3444 = vmatpush.msra.mxu0 %v1326
    %3445 = vmatpush.msra.mxu0 %v1325
    %3446 = vmatpush.msra.mxu0 %v1324
    %3447 = vmatpush.msra.mxu0 %v1323
    %3448 = vmatpush.msra.mxu0 %v1322
    %3449 = vmatpush.msra.mxu0 %v1321
    %3450 = vmatpush.msra.mxu0 %v1320
    %3451 = vmatpush.msra.mxu0 %v1319
    %3452 = vmatpush.msra.mxu0 %v1318
    %3453 = vmatpush.msra.mxu0 %v1317
    %3454 = vmatpush.msra.mxu0 %v1316
    %3455 = vmatpush.msra.mxu0 %v1315
    %3456 = vmatpush.msra.mxu0 %v1314
    %3457 = vmatpush.msra.mxu0 %v1313
    %3458 = vmatpush.msra.mxu0 %v1312
    %3459 = vmatmul.f32.gmra.mxu0 %v1760
    %v3460 = vpop.f32.mrf.mxu0
    %v3461 = vadd.f32 %v3441, %v3460
    %3462 = vdwg.mxu0
    %3463 = vmatpush.msra.mxu0 %v1343
    %3464 = vmatpush.msra.mxu0 %v1342
    %3465 = vmatpush.msra.mxu0 %v1341
    %3466 = vmatpush.msra.mxu0 %v1340
    %3467 = vmatpush.msra.mxu0 %v1339
    %3468 = vmatpush.msra.mxu0 %v1338
    %3469 = vmatpush.msra.mxu0 %v1337
    %3470 = vmatpush.msra.mxu0 %v1336
    %3471 = vmatpush.msra.mxu0 %v1335
    %3472 = vmatpush.msra.mxu0 %v1334
    %3473 = vmatpush.msra.mxu0 %v1333
    %3474 = vmatpush.msra.mxu0 %v1332
    %3475 = vmatpush.msra.mxu0 %v1331
    %3476 = vmatpush.msra.mxu0 %v1330
    %3477 = vmatpush.msra.mxu0 %v1329
    %3478 = vmatpush.msra.mxu0 %v1328
    %3479 = vmatmul.f32.gmra.mxu0 %v1761
    %v3480 = vpop.f32.mrf.mxu0
    %v3481 = vadd.f32 %v3461, %v3480
    %3482 = vdwg.mxu0
    %3483 = vmatpush.msra.mxu0 %v1359
    %3484 = vmatpush.msra.mxu0 %v1358
    %3485 = vmatpush.msra.mxu0 %v1357
    %3486 = vmatpush.msra.mxu0 %v1356
    %3487 = vmatpush.msra.mxu0 %v1355
    %3488 = vmatpush.msra.mxu0 %v1354
    %3489 = vmatpush.msra.mxu0 %v1353
    %3490 = vmatpush.msra.mxu0 %v1352
    %3491 = vmatpush.msra.mxu0 %v1351
    %3492 = vmatpush.msra.mxu0 %v1350
    %3493 = vmatpush.msra.mxu0 %v1349
    %3494 = vmatpush.msra.mxu0 %v1348
    %3495 = vmatpush.msra.mxu0 %v1347
    %3496 = vmatpush.msra.mxu0 %v1346
    %3497 = vmatpush.msra.mxu0 %v1345
    %3498 = vmatpush.msra.mxu0 %v1344
    %3499 = vmatmul.f32.gmra.mxu0 %v1764
    %v3500 = vpop.f32.mrf.mxu0
    %v3501 = vadd.f32 %v3481, %v3500
    %3502 = vdwg.mxu0
    %3503 = vmatpush.msra.mxu0 %v1375
    %3504 = vmatpush.msra.mxu0 %v1374
    %3505 = vmatpush.msra.mxu0 %v1373
    %3506 = vmatpush.msra.mxu0 %v1372
    %3507 = vmatpush.msra.mxu0 %v1371
    %3508 = vmatpush.msra.mxu0 %v1370
    %3509 = vmatpush.msra.mxu0 %v1369
    %3510 = vmatpush.msra.mxu0 %v1368
    %3511 = vmatpush.msra.mxu0 %v1367
    %3512 = vmatpush.msra.mxu0 %v1366
    %3513 = vmatpush.msra.mxu0 %v1365
    %3514 = vmatpush.msra.mxu0 %v1364
    %3515 = vmatpush.msra.mxu0 %v1363
    %3516 = vmatpush.msra.mxu0 %v1362
    %3517 = vmatpush.msra.mxu0 %v1361
    %3518 = vmatpush.msra.mxu0 %v1360
    %3519 = vmatmul.f32.gmra.mxu0 %v1765
    %v3520 = vpop.f32.mrf.mxu0
    %v3521 = vadd.f32 %v3501, %v3520
    %3522 = vdwg.mxu0
    %3523 = vmatpush.msra.mxu0 %v1391
    %3524 = vmatpush.msra.mxu0 %v1390
    %3525 = vmatpush.msra.mxu0 %v1389
    %3526 = vmatpush.msra.mxu0 %v1388
    %3527 = vmatpush.msra.mxu0 %v1387
    %3528 = vmatpush.msra.mxu0 %v1386
    %3529 = vmatpush.msra.mxu0 %v1385
    %3530 = vmatpush.msra.mxu0 %v1384
    %3531 = vmatpush.msra.mxu0 %v1383
    %3532 = vmatpush.msra.mxu0 %v1382
    %3533 = vmatpush.msra.mxu0 %v1381
    %3534 = vmatpush.msra.mxu0 %v1380
    %3535 = vmatpush.msra.mxu0 %v1379
    %3536 = vmatpush.msra.mxu0 %v1378
    %3537 = vmatpush.msra.mxu0 %v1377
    %3538 = vmatpush.msra.mxu0 %v1376
    %3539 = vmatmul.f32.gmra.mxu0 %v1766
    %v3540 = vpop.f32.mrf.mxu0
    %v3541 = vadd.f32 %v3521, %v3540
    %3542 = vdwg.mxu0
    %3543 = vmatpush.msra.mxu0 %v1407
    %3544 = vmatpush.msra.mxu0 %v1406
    %3545 = vmatpush.msra.mxu0 %v1405
    %3546 = vmatpush.msra.mxu0 %v1404
    %3547 = vmatpush.msra.mxu0 %v1403
    %3548 = vmatpush.msra.mxu0 %v1402
    %3549 = vmatpush.msra.mxu0 %v1401
    %3550 = vmatpush.msra.mxu0 %v1400
    %3551 = vmatpush.msra.mxu0 %v1399
    %3552 = vmatpush.msra.mxu0 %v1398
    %3553 = vmatpush.msra.mxu0 %v1397
    %3554 = vmatpush.msra.mxu0 %v1396
    %3555 = vmatpush.msra.mxu0 %v1395
    %3556 = vmatpush.msra.mxu0 %v1394
    %3557 = vmatpush.msra.mxu0 %v1393
    %3558 = vmatpush.msra.mxu0 %v1392
    %3559 = vmatmul.f32.gmra.mxu0 %v1767
    %v3560 = vpop.f32.mrf.mxu0
    %v3561 = vadd.f32 %v3541, %v3560
    %3562 = vdwg.mxu0
    %3563 = vmatpush.msra.mxu0 %v1423
    %3564 = vmatpush.msra.mxu0 %v1422
    %3565 = vmatpush.msra.mxu0 %v1421
    %3566 = vmatpush.msra.mxu0 %v1420
    %3567 = vmatpush.msra.mxu0 %v1419
    %3568 = vmatpush.msra.mxu0 %v1418
    %3569 = vmatpush.msra.mxu0 %v1417
    %3570 = vmatpush.msra.mxu0 %v1416
    %3571 = vmatpush.msra.mxu0 %v1415
    %3572 = vmatpush.msra.mxu0 %v1414
    %3573 = vmatpush.msra.mxu0 %v1413
    %3574 = vmatpush.msra.mxu0 %v1412
    %3575 = vmatpush.msra.mxu0 %v1411
    %3576 = vmatpush.msra.mxu0 %v1410
    %3577 = vmatpush.msra.mxu0 %v1409
    %3578 = vmatpush.msra.mxu0 %v1408
    %3579 = vmatmul.f32.gmra.mxu0 %v1768
    %v3580 = vpop.f32.mrf.mxu0
    %v3581 = vadd.f32 %v3561, %v3580
    %3582 = vdwg.mxu0
    %3583 = vmatpush.msra.mxu0 %v1439
    %3584 = vmatpush.msra.mxu0 %v1438
    %3585 = vmatpush.msra.mxu0 %v1437
    %3586 = vmatpush.msra.mxu0 %v1436
    %3587 = vmatpush.msra.mxu0 %v1435
    %3588 = vmatpush.msra.mxu0 %v1434
    %3589 = vmatpush.msra.mxu0 %v1433
    %3590 = vmatpush.msra.mxu0 %v1432
    %3591 = vmatpush.msra.mxu0 %v1431
    %3592 = vmatpush.msra.mxu0 %v1430
    %3593 = vmatpush.msra.mxu0 %v1429
    %3594 = vmatpush.msra.mxu0 %v1428
    %3595 = vmatpush.msra.mxu0 %v1427
    %3596 = vmatpush.msra.mxu0 %v1426
    %3597 = vmatpush.msra.mxu0 %v1425
    %3598 = vmatpush.msra.mxu0 %v1424
    %3599 = vmatmul.f32.gmra.mxu0 %v1769
    %v3600 = vpop.f32.mrf.mxu0
    %v3601 = vadd.f32 %v3581, %v3600
    %3602 = vdwg.mxu0
    %3603 = vmatpush.msra.mxu0 %v1455
    %3604 = vmatpush.msra.mxu0 %v1454
    %3605 = vmatpush.msra.mxu0 %v1453
    %3606 = vmatpush.msra.mxu0 %v1452
    %3607 = vmatpush.msra.mxu0 %v1451
    %3608 = vmatpush.msra.mxu0 %v1450
    %3609 = vmatpush.msra.mxu0 %v1449
    %3610 = vmatpush.msra.mxu0 %v1448
    %3611 = vmatpush.msra.mxu0 %v1447
    %3612 = vmatpush.msra.mxu0 %v1446
    %3613 = vmatpush.msra.mxu0 %v1445
    %3614 = vmatpush.msra.mxu0 %v1444
    %3615 = vmatpush.msra.mxu0 %v1443
    %3616 = vmatpush.msra.mxu0 %v1442
    %3617 = vmatpush.msra.mxu0 %v1441
    %3618 = vmatpush.msra.mxu0 %v1440
    %3619 = vmatmul.f32.gmra.mxu0 %v1770
    %v3620 = vpop.f32.mrf.mxu0
    %v3621 = vadd.f32 %v3601, %v3620
    %3622 = vdwg.mxu0
    %3623 = vmatpush.msra.mxu0 %v1471
    %3624 = vmatpush.msra.mxu0 %v1470
    %3625 = vmatpush.msra.mxu0 %v1469
    %3626 = vmatpush.msra.mxu0 %v1468
    %3627 = vmatpush.msra.mxu0 %v1467
    %3628 = vmatpush.msra.mxu0 %v1466
    %3629 = vmatpush.msra.mxu0 %v1465
    %3630 = vmatpush.msra.mxu0 %v1464
    %3631 = vmatpush.msra.mxu0 %v1463
    %3632 = vmatpush.msra.mxu0 %v1462
    %3633 = vmatpush.msra.mxu0 %v1461
    %3634 = vmatpush.msra.mxu0 %v1460
    %3635 = vmatpush.msra.mxu0 %v1459
    %3636 = vmatpush.msra.mxu0 %v1458
    %3637 = vmatpush.msra.mxu0 %v1457
    %3638 = vmatpush.msra.mxu0 %v1456
    %3639 = vmatmul.f32.gmra.mxu0 %v1771
    %v3640 = vpop.f32.mrf.mxu0
    %v3641 = vadd.f32 %v3621, %v3640
    %3642 = vdwg.mxu0
    %3643 = vmatpush.msra.mxu0 %v1487
    %3644 = vmatpush.msra.mxu0 %v1486
    %3645 = vmatpush.msra.mxu0 %v1485
    %3646 = vmatpush.msra.mxu0 %v1484
    %3647 = vmatpush.msra.mxu0 %v1483
    %3648 = vmatpush.msra.mxu0 %v1482
    %3649 = vmatpush.msra.mxu0 %v1481
    %3650 = vmatpush.msra.mxu0 %v1480
    %3651 = vmatpush.msra.mxu0 %v1479
    %3652 = vmatpush.msra.mxu0 %v1478
    %3653 = vmatpush.msra.mxu0 %v1477
    %3654 = vmatpush.msra.mxu0 %v1476
    %3655 = vmatpush.msra.mxu0 %v1475
    %3656 = vmatpush.msra.mxu0 %v1474
    %3657 = vmatpush.msra.mxu0 %v1473
    %3658 = vmatpush.msra.mxu0 %v1472
    %3659 = vmatmul.f32.gmra.mxu0 %v1774
    %v3660 = vpop.f32.mrf.mxu0
    %v3661 = vadd.f32 %v3641, %v3660
    %3662 = vdwg.mxu0
    %3663 = vmatpush.msra.mxu0 %v1503
    %3664 = vmatpush.msra.mxu0 %v1502
    %3665 = vmatpush.msra.mxu0 %v1501
    %3666 = vmatpush.msra.mxu0 %v1500
    %3667 = vmatpush.msra.mxu0 %v1499
    %3668 = vmatpush.msra.mxu0 %v1498
    %3669 = vmatpush.msra.mxu0 %v1497
    %3670 = vmatpush.msra.mxu0 %v1496
    %3671 = vmatpush.msra.mxu0 %v1495
    %3672 = vmatpush.msra.mxu0 %v1494
    %3673 = vmatpush.msra.mxu0 %v1493
    %3674 = vmatpush.msra.mxu0 %v1492
    %3675 = vmatpush.msra.mxu0 %v1491
    %3676 = vmatpush.msra.mxu0 %v1490
    %3677 = vmatpush.msra.mxu0 %v1489
    %3678 = vmatpush.msra.mxu0 %v1488
    %3679 = vmatmul.f32.gmra.mxu0 %v1775
    %v3680 = vpop.f32.mrf.mxu0
    %v3681 = vadd.f32 %v3661, %v3680
    %3682 = vdwg.mxu0
    %3683 = vmatpush.msra.mxu0 %v1519
    %3684 = vmatpush.msra.mxu0 %v1518
    %3685 = vmatpush.msra.mxu0 %v1517
    %3686 = vmatpush.msra.mxu0 %v1516
    %3687 = vmatpush.msra.mxu0 %v1515
    %3688 = vmatpush.msra.mxu0 %v1514
    %3689 = vmatpush.msra.mxu0 %v1513
    %3690 = vmatpush.msra.mxu0 %v1512
    %3691 = vmatpush.msra.mxu0 %v1511
    %3692 = vmatpush.msra.mxu0 %v1510
    %3693 = vmatpush.msra.mxu0 %v1509
    %3694 = vmatpush.msra.mxu0 %v1508
    %3695 = vmatpush.msra.mxu0 %v1507
    %3696 = vmatpush.msra.mxu0 %v1506
    %3697 = vmatpush.msra.mxu0 %v1505
    %3698 = vmatpush.msra.mxu0 %v1504
    %3699 = vmatmul.f32.gmra.mxu0 %v1776
    %v3700 = vpop.f32.mrf.mxu0
    %v3701 = vadd.f32 %v3681, %v3700
    %3702 = vdwg.mxu0
    %3703 = vmatpush.msra.mxu0 %v1535
    %3704 = vmatpush.msra.mxu0 %v1534
    %3705 = vmatpush.msra.mxu0 %v1533
    %3706 = vmatpush.msra.mxu0 %v1532
    %3707 = vmatpush.msra.mxu0 %v1531
    %3708 = vmatpush.msra.mxu0 %v1530
    %3709 = vmatpush.msra.mxu0 %v1529
    %3710 = vmatpush.msra.mxu0 %v1528
    %3711 = vmatpush.msra.mxu0 %v1527
    %3712 = vmatpush.msra.mxu0 %v1526
    %3713 = vmatpush.msra.mxu0 %v1525
    %3714 = vmatpush.msra.mxu0 %v1524
    %3715 = vmatpush.msra.mxu0 %v1523
    %3716 = vmatpush.msra.mxu0 %v1522
    %3717 = vmatpush.msra.mxu0 %v1521
    %3718 = vmatpush.msra.mxu0 %v1520
    %3719 = vmatmul.f32.gmra.mxu0 %v1777
    %v3720 = vpop.f32.mrf.mxu0
    %v3721 = vadd.f32 %v3701, %v3720
    %3722 = vdwg.mxu0
    %3723 = vmatpush.msra.mxu0 %v1551
    %3724 = vmatpush.msra.mxu0 %v1550
    %3725 = vmatpush.msra.mxu0 %v1549
    %3726 = vmatpush.msra.mxu0 %v1548
    %3727 = vmatpush.msra.mxu0 %v1547
    %3728 = vmatpush.msra.mxu0 %v1546
    %3729 = vmatpush.msra.mxu0 %v1545
    %3730 = vmatpush.msra.mxu0 %v1544
    %3731 = vmatpush.msra.mxu0 %v1543
    %3732 = vmatpush.msra.mxu0 %v1542
    %3733 = vmatpush.msra.mxu0 %v1541
    %3734 = vmatpush.msra.mxu0 %v1540
    %3735 = vmatpush.msra.mxu0 %v1539
    %3736 = vmatpush.msra.mxu0 %v1538
    %3737 = vmatpush.msra.mxu0 %v1537
    %3738 = vmatpush.msra.mxu0 %v1536
    %3739 = vmatmul.f32.gmra.mxu0 %v1778
    %v3740 = vpop.f32.mrf.mxu0
    %v3741 = vadd.f32 %v3721, %v3740
    %3742 = vdwg.mxu0
    %3743 = vmatpush.msra.mxu0 %v1567
    %3744 = vmatpush.msra.mxu0 %v1566
    %3745 = vmatpush.msra.mxu0 %v1565
    %3746 = vmatpush.msra.mxu0 %v1564
    %3747 = vmatpush.msra.mxu0 %v1563
    %3748 = vmatpush.msra.mxu0 %v1562
    %3749 = vmatpush.msra.mxu0 %v1561
    %3750 = vmatpush.msra.mxu0 %v1560
    %3751 = vmatpush.msra.mxu0 %v1559
    %3752 = vmatpush.msra.mxu0 %v1558
    %3753 = vmatpush.msra.mxu0 %v1557
    %3754 = vmatpush.msra.mxu0 %v1556
    %3755 = vmatpush.msra.mxu0 %v1555
    %3756 = vmatpush.msra.mxu0 %v1554
    %3757 = vmatpush.msra.mxu0 %v1553
    %3758 = vmatpush.msra.mxu0 %v1552
    %3759 = vmatmul.f32.gmra.mxu0 %v1779
    %v3760 = vpop.f32.mrf.mxu0
    %v3761 = vadd.f32 %v3741, %v3760
    %3762 = vdwg.mxu0
    %3763 = vmatpush.msra.mxu0 %v1583
    %3764 = vmatpush.msra.mxu0 %v1582
    %3765 = vmatpush.msra.mxu0 %v1581
    %3766 = vmatpush.msra.mxu0 %v1580
    %3767 = vmatpush.msra.mxu0 %v1579
    %3768 = vmatpush.msra.mxu0 %v1578
    %3769 = vmatpush.msra.mxu0 %v1577
    %3770 = vmatpush.msra.mxu0 %v1576
    %3771 = vmatpush.msra.mxu0 %v1575
    %3772 = vmatpush.msra.mxu0 %v1574
    %3773 = vmatpush.msra.mxu0 %v1573
    %3774 = vmatpush.msra.mxu0 %v1572
    %3775 = vmatpush.msra.mxu0 %v1571
    %3776 = vmatpush.msra.mxu0 %v1570
    %3777 = vmatpush.msra.mxu0 %v1569
    %3778 = vmatpush.msra.mxu0 %v1568
    %3779 = vmatmul.f32.gmra.mxu0 %v1780
    %v3780 = vpop.f32.mrf.mxu0
    %v3781 = vadd.f32 %v3761, %v3780
    %3782 = vdwg.mxu0
    %3783 = vmatpush.msra.mxu0 %v1599
    %3784 = vmatpush.msra.mxu0 %v1598
    %3785 = vmatpush.msra.mxu0 %v1597
    %3786 = vmatpush.msra.mxu0 %v1596
    %3787 = vmatpush.msra.mxu0 %v1595
    %3788 = vmatpush.msra.mxu0 %v1594
    %3789 = vmatpush.msra.mxu0 %v1593
    %3790 = vmatpush.msra.mxu0 %v1592
    %3791 = vmatpush.msra.mxu0 %v1591
    %3792 = vmatpush.msra.mxu0 %v1590
    %3793 = vmatpush.msra.mxu0 %v1589
    %3794 = vmatpush.msra.mxu0 %v1588
    %3795 = vmatpush.msra.mxu0 %v1587
    %3796 = vmatpush.msra.mxu0 %v1586
    %3797 = vmatpush.msra.mxu0 %v1585
    %3798 = vmatpush.msra.mxu0 %v1584
    %3799 = vmatmul.f32.gmra.mxu0 %v1781
    %v3800 = vpop.f32.mrf.mxu0
    %v3801 = vadd.f32 %v3781, %v3800
    %3802 = vdwg.mxu0
    %3803 = vmatpush.msra.mxu0 %v1615
    %3804 = vmatpush.msra.mxu0 %v1614
    %3805 = vmatpush.msra.mxu0 %v1613
    %3806 = vmatpush.msra.mxu0 %v1612
    %3807 = vmatpush.msra.mxu0 %v1611
    %3808 = vmatpush.msra.mxu0 %v1610
    %3809 = vmatpush.msra.mxu0 %v1609
    %3810 = vmatpush.msra.mxu0 %v1608
    %3811 = vmatpush.msra.mxu0 %v1607
    %3812 = vmatpush.msra.mxu0 %v1606
    %3813 = vmatpush.msra.mxu0 %v1605
    %3814 = vmatpush.msra.mxu0 %v1604
    %3815 = vmatpush.msra.mxu0 %v1603
    %3816 = vmatpush.msra.mxu0 %v1602
    %3817 = vmatpush.msra.mxu0 %v1601
    %3818 = vmatpush.msra.mxu0 %v1600
    %3819 = vmatmul.f32.gmra.mxu0 %v1783
    %v3820 = vpop.f32.mrf.mxu0
    %v3821 = vadd.f32 %v3801, %v3820
    %3822 = vdwg.mxu0
    %3823 = vmatpush.msra.mxu0 %v1631
    %3824 = vmatpush.msra.mxu0 %v1630
    %3825 = vmatpush.msra.mxu0 %v1629
    %3826 = vmatpush.msra.mxu0 %v1628
    %3827 = vmatpush.msra.mxu0 %v1627
    %3828 = vmatpush.msra.mxu0 %v1626
    %3829 = vmatpush.msra.mxu0 %v1625
    %3830 = vmatpush.msra.mxu0 %v1624
    %3831 = vmatpush.msra.mxu0 %v1623
    %3832 = vmatpush.msra.mxu0 %v1622
    %3833 = vmatpush.msra.mxu0 %v1621
    %3834 = vmatpush.msra.mxu0 %v1620
    %3835 = vmatpush.msra.mxu0 %v1619
    %3836 = vmatpush.msra.mxu0 %v1618
    %3837 = vmatpush.msra.mxu0 %v1617
    %3838 = vmatpush.msra.mxu0 %v1616
    %3839 = vmatmul.f32.gmra.mxu0 %v1784
    %v3840 = vpop.f32.mrf.mxu0
    %v3841 = vadd.f32 %v3821, %v3840
    %3842 = vdwg.mxu0
    %v3843 = vmax.f32 %v3841, 0.0
    %v3844 = vld [vmem:[%s3] sm:$0xff]
    %v3845 = vld [vmem:[%s3 + $0x8] sm:$0xff]
    %v3846 = vld [vmem:[%s3 + $0x10] sm:$0xff]
    %v3847 = vld [vmem:[%s3 + $0x18] sm:$0xff]
    %v3848 = vld [vmem:[%s4] sm:$0x1]
    %v3850 = vperm.slane %v3848, 0
    %vm3852 = vcmask 261120
    %v3854 = vsel %vm3852, %v3843, 0
    %3856 = vmatpush.msra.mxu0 0.0
    %3857 = vmatpush.msra.mxu0 0.0
    %3858 = vmatpush.msra.mxu0 0.0
    %3859 = vmatpush.msra.mxu0 0.0
    %3860 = vmatpush.msra.mxu0 0.0
    %3861 = vmatpush.msra.mxu0 0.0
    %3862 = vmatpush.msra.mxu0 0.0
    %3863 = vmatpush.msra.mxu0 0.0
    %3864 = vmatpush.msra.mxu0 0.0
    %3865 = vmatpush.msra.mxu0 0.0
    %3866 = vmatpush.msra.mxu0 0.0
    %3867 = vmatpush.msra.mxu0 0.0
    %3868 = vmatpush.msra.mxu0 %v3847
    %3869 = vmatpush.msra.mxu0 %v3846
    %3870 = vmatpush.msra.mxu0 %v3845
    %3871 = vmatpush.msra.mxu0 %v3844
    %3872 = vmatmul.f32.gmra.mxu0 %v3854
    %v3873 = vpop.f32.mrf.mxu0
    %v3874 = vadd.f32 %v3850, %v3873
    %3875 = vdwg.mxu0
    %v3876 = vmax.f32 %v3874, 0.0
    %v3877 = vld [vmem:[%s5] sm:$0xff]
    %v3878 = vld [vmem:[%s5 + $0x8] sm:$0xff]
    %v3879 = vld [vmem:[%s5 + $0x10] sm:$0xff]
    %v3880 = vld [vmem:[%s5 + $0x18] sm:$0xff]
    %v3881 = vld [vmem:[%s5 + $0x20] sm:$0xff]
    %v3882 = vld [vmem:[%s5 + $0x28] sm:$0xff]
    %v3883 = vld [vmem:[%s5 + $0x30] sm:$0xff]
    %v3884 = vld [vmem:[%s5 + $0x38] sm:$0xff]
    %v3885 = vld [vmem:[%s5 + $0x40] sm:$0xff]
    %v3886 = vld [vmem:[%s5 + $0x48] sm:$0xff]
    %v3887 = vld [vmem:[%s5 + $0x50] sm:$0xff]
    %v3888 = vld [vmem:[%s5 + $0x58] sm:$0xff]
    %v3889 = vld [vmem:[%s5 + $0x60] sm:$0xff]
    %v3890 = vld [vmem:[%s5 + $0x68] sm:$0xff]
    %v3891 = vld [vmem:[%s5 + $0x70] sm:$0xff]
    %v3892 = vld [vmem:[%s5 + $0x78] sm:$0xff]
    %v3893 = vld [vmem:[%s6] sm:$0x1]
    %v3895 = vperm.slane %v3893, 0
    %3897 = vmatpush.msra.mxu0 %v3892
    %3898 = vmatpush.msra.mxu0 %v3891
    %3899 = vmatpush.msra.mxu0 %v3890
    %3900 = vmatpush.msra.mxu0 %v3889
    %3901 = vmatpush.msra.mxu0 %v3888
    %3902 = vmatpush.msra.mxu0 %v3887
    %3903 = vmatpush.msra.mxu0 %v3886
    %3904 = vmatpush.msra.mxu0 %v3885
    %3905 = vmatpush.msra.mxu0 %v3884
    %3906 = vmatpush.msra.mxu0 %v3883
    %3907 = vmatpush.msra.mxu0 %v3882
    %3908 = vmatpush.msra.mxu0 %v3881
    %3909 = vmatpush.msra.mxu0 %v3880
    %3910 = vmatpush.msra.mxu0 %v3879
    %3911 = vmatpush.msra.mxu0 %v3878
    %3912 = vmatpush.msra.mxu0 %v3877
    %3913 = vmatmul.f32.gmra.mxu0 %v3876
    %v3914 = vpop.f32.mrf.mxu0
    %v3915 = vadd.f32 %v3895, %v3914
    %3916 = vdwg.mxu0
    %v3917 = vmax.f32 %v3915, 0.0
    %v3918 = vld [vmem:[%s7] sm:$0xff]
    %v3919 = vld [vmem:[%s7 + $0x8] sm:$0xff]
    %v3920 = vld [vmem:[%s7 + $0x10] sm:$0xff]
    %v3921 = vld [vmem:[%s7 + $0x18] sm:$0xff]
    %v3922 = vld [vmem:[%s7 + $0x20] sm:$0xff]
    %v3923 = vld [vmem:[%s7 + $0x28] sm:$0xff]
    %v3924 = vld [vmem:[%s7 + $0x30] sm:$0xff]
    %v3925 = vld [vmem:[%s7 + $0x38] sm:$0xff]
    %v3926 = vld [vmem:[%s7 + $0x40] sm:$0xff]
    %v3927 = vld [vmem:[%s7 + $0x48] sm:$0xff]
    %v3928 = vld [vmem:[%s7 + $0x50] sm:$0xff]
    %v3929 = vld [vmem:[%s7 + $0x58] sm:$0xff]
    %v3930 = vld [vmem:[%s7 + $0x60] sm:$0xff]
    %v3931 = vld [vmem:[%s7 + $0x68] sm:$0xff]
    %v3932 = vld [vmem:[%s7 + $0x70] sm:$0xff]
    %v3933 = vld [vmem:[%s7 + $0x78] sm:$0xff]
    %v3934 = vld [vmem:[%s8] sm:$0x1]
    %v3936 = vperm.slane %v3934, 0
    %3938 = vmatpush.msra.mxu0 %v3933
    %3939 = vmatpush.msra.mxu0 %v3932
    %3940 = vmatpush.msra.mxu0 %v3931
    %3941 = vmatpush.msra.mxu0 %v3930
    %3942 = vmatpush.msra.mxu0 %v3929
    %3943 = vmatpush.msra.mxu0 %v3928
    %3944 = vmatpush.msra.mxu0 %v3927
    %3945 = vmatpush.msra.mxu0 %v3926
    %3946 = vmatpush.msra.mxu0 %v3925
    %3947 = vmatpush.msra.mxu0 %v3924
    %3948 = vmatpush.msra.mxu0 %v3923
    %3949 = vmatpush.msra.mxu0 %v3922
    %3950 = vmatpush.msra.mxu0 %v3921
    %3951 = vmatpush.msra.mxu0 %v3920
    %3952 = vmatpush.msra.mxu0 %v3919
    %3953 = vmatpush.msra.mxu0 %v3918
    %3954 = vmatmul.f32.gmra.mxu0 %v3917
    %v3955 = vpop.f32.mrf.mxu0
    %v3956 = vadd.f32 %v3936, %v3955
    %3957 = vdwg.mxu0
    %v3958 = vmax.f32 %v3956, 0.0
    %v3959 = vld [vmem:[%s9] sm:$0xff]
    %v3960 = vld [vmem:[%s9 + $0x8] sm:$0xff]
    %v3961 = vld [vmem:[%s9 + $0x10] sm:$0xff]
    %v3962 = vld [vmem:[%s9 + $0x18] sm:$0xff]
    %v3963 = vld [vmem:[%s9 + $0x20] sm:$0xff]
    %v3964 = vld [vmem:[%s9 + $0x28] sm:$0xff]
    %v3965 = vld [vmem:[%s9 + $0x30] sm:$0xff]
    %v3966 = vld [vmem:[%s9 + $0x38] sm:$0xff]
    %v3967 = vld [vmem:[%s9 + $0x40] sm:$0xff]
    %v3968 = vld [vmem:[%s9 + $0x48] sm:$0xff]
    %v3969 = vld [vmem:[%s9 + $0x50] sm:$0xff]
    %v3970 = vld [vmem:[%s9 + $0x58] sm:$0xff]
    %v3971 = vld [vmem:[%s9 + $0x60] sm:$0xff]
    %v3972 = vld [vmem:[%s9 + $0x68] sm:$0xff]
    %v3973 = vld [vmem:[%s9 + $0x70] sm:$0xff]
    %v3974 = vld [vmem:[%s9 + $0x78] sm:$0xff]
    %v3975 = vld [vmem:[%s10] sm:$0x1]
    %v3977 = vperm.slane %v3975, 0
    %3979 = vmatpush.msra.mxu0 %v3974
    %3980 = vmatpush.msra.mxu0 %v3973
    %3981 = vmatpush.msra.mxu0 %v3972
    %3982 = vmatpush.msra.mxu0 %v3971
    %3983 = vmatpush.msra.mxu0 %v3970
    %3984 = vmatpush.msra.mxu0 %v3969
    %3985 = vmatpush.msra.mxu0 %v3968
    %3986 = vmatpush.msra.mxu0 %v3967
    %3987 = vmatpush.msra.mxu0 %v3966
    %3988 = vmatpush.msra.mxu0 %v3965
    %3989 = vmatpush.msra.mxu0 %v3964
    %3990 = vmatpush.msra.mxu0 %v3963
    %3991 = vmatpush.msra.mxu0 %v3962
    %3992 = vmatpush.msra.mxu0 %v3961
    %3993 = vmatpush.msra.mxu0 %v3960
    %3994 = vmatpush.msra.mxu0 %v3959
    %3995 = vmatmul.f32.gmra.mxu0 %v3958
    %v3996 = vpop.f32.mrf.mxu0
    %v3997 = vadd.f32 %v3977, %v3996
    %3998 = vdwg.mxu0
    %vm3999 = vcmask 287744
    %4000 = vst.msk [vmem:[#allocation2] sm:$0x3] %vm3999, %v3997
    // Predicated region
    $region46: #{net_forward.3} parent=1 // pred_check
      _
    $region47: #{net_forward.3} parent=1 // pred_check_branch
      %4002 = sbr.rel (0) target = $region49
    $region48: #{net_forward.3} parent=1 // pred_region
      %4004 = vsyncadd [#allocation3], 0
      %s4006 = sshll.u32 [#allocation2], 4
      %s4007 = int_to_ptr.vmem [resolvable:$true] %s4006
      %s4008 = sshll.u32 %s11, 4
      %s4009 = int_to_ptr.hbm [resolvable:$true] %s4008
      %4011 = dma.vmem_to_hbm [thread:$0]  %s4007, 32, %s4009, [#allocation3]
    $region49: #{net_forward.3} parent=1 // pred_fallthru
      _
    // Predicated region
    $region50: #{net_forward.3} parent=1 // pred_check
      _
    $region51: #{net_forward.3} parent=1 // pred_check_branch
      %4013 = sbr.rel (0) target = $region53
    $region52: #{net_forward.3} parent=1 // pred_region
      %4015 = dma.done [#allocation3], 32
    $region53: #{net_forward.3} parent=1 // pred_fallthru
      _
    %4016 = vsyncpa [#allocation3], 1

</llo_original>
